<compile_context>
chip_gen: v7x
topology: tpu7x:2x2x1
jax: 0.10.0
libtpu: 0.0.40
codegen_flags: <defaults>
</compile_context>

<pallas_src>
from functools import lru_cache

import numpy as np
import jax
import jax.numpy as jnp
from jax.experimental import pallas as pl
from jax.experimental.pallas import tpu as pltpu

_C1 = 0.01 ** 2
_C2 = 0.03 ** 2
_MS_WEIGHT = np.array([0.0448, 0.2856, 0.3001, 0.2363, 0.1333], np.float32)


# ----------------------------- parameter setup ------------------------------
def gaussian_1d(window_size: int, sigma: float) -> np.ndarray:
    x = np.arange(window_size, dtype=np.float64)
    g = np.exp(-((x - window_size // 2) ** 2) / (2.0 * sigma ** 2))
    return (g / g.sum()).astype(np.float32)


def band_matrix(size: int, g1d: np.ndarray) -> np.ndarray:
    """Banded M s.t. M @ x == 1-D Gaussian conv of x with zero padding."""
    half = len(g1d) // 2
    idx = np.arange(size)
    d = idx[None, :] - idx[:, None]                       # column - row offset
    vals = g1d[np.clip(d + half, 0, len(g1d) - 1)]
    return np.where(np.abs(d) <= half, vals, 0.0).astype(np.float32)


def pool_matrices(h: int, w: int):
    """PH (h//2, h), PW (w, w//2) s.t. PH @ X @ PW == 2x2 avg-pool stride 2."""
    ph = 0.5 * np.kron(np.eye(h // 2, dtype=np.float32), np.ones((1, 2), np.float32))
    pw = 0.5 * np.kron(np.eye(w // 2, dtype=np.float32), np.ones((2, 1), np.float32))
    return ph.astype(np.float32), pw.astype(np.float32)


@lru_cache(maxsize=None)
def _level_constants(h, w, p, window_size, levels):
    """Per-level constants packed into 4 zero-padded bf16 slabs.

    Every slab keeps the fixed level-0 footprint; level l's active block sits
    in the top-left corner, so every in-kernel dot is MXU-tile aligned and the
    padded rows/cols (all zeros) keep the inactive map region exactly zero.
    """
    g1d = gaussian_1d(window_size, 1.5)
    pw = p * w
    n_pool = max(levels - 1, 1)
    bh = np.zeros((levels, h, h), np.float32)        # row (height) blur
    bw = np.zeros((levels, pw, pw), np.float32)      # lane (width) blur, block-diag over planes
    ph = np.zeros((n_pool, h, h), np.float32)        # row 2x2 pool
    pwp = np.zeros((n_pool, pw, pw), np.float32)     # lane 2x2 pool, block-diag over planes
    eye_p = np.eye(p, dtype=np.float32)
    hh, ww = h, w
    for l in range(levels):
        bh[l, :hh, :hh] = band_matrix(hh, g1d)
        bw[l, :p * ww, :p * ww] = np.kron(eye_p, band_matrix(ww, g1d))
        if l + 1 < levels:
            ph_l, pw_l = pool_matrices(hh, ww)
            ph[l, :hh // 2, :hh] = ph_l
            pwp[l, :p * ww, :(p * ww) // 2] = np.kron(eye_p, pw_l)
        hh //= 2
        ww //= 2
    cast = lambda a: jnp.asarray(a, jnp.bfloat16)    # bf16 matmul operands
    return cast(bh), cast(bw), cast(ph), cast(pwp)


# --------------------------- device-aware grouping ---------------------------
def _dual_tensorcore() -> bool:
    """True on chips whose grid is sharded across 2 TensorCores (v4/v5p/v7x)."""
    try:
        kind = jax.devices()[0].device_kind.lower()
    except Exception:
        return False
    if "lite" in kind or "v5e" in kind or "v6e" in kind or "v6" in kind:
        return False                                   # single-TC chips
    return any(t in kind for t in ("v4", "v5p", "v5", "v7"))


def _choose_group(nb: int, w: int, dual_core: bool):
    """Planes per grid step P, grid steps G and number of zero padding planes.

    Prefers lane-dense P*W (multiple of 128) with minimum plane padding.
    Single-TC chips take the largest such P (usually G == 1); dual-TC chips
    keep >= 2 grid steps when possible so the parallel grid axis can shard.
    """
    cap = 512 if dual_core else 1024                   # lane budget per step
    lane_ps = [q for q in range(1, max(cap // w, 0) + 1) if (q * w) % 128 == 0]
    if lane_ps:
        padded = lambda q: -(-nb // q) * q
        best_pad = min(padded(q) for q in lane_ps)
        best = [q for q in lane_ps if padded(q) == best_pad]
        if dual_core:
            multi = [q for q in best if -(-nb // q) >= 2]
            p = max(multi) if multi else max(best)
        else:
            p = max(best)
    else:                                              # very wide images
        divs = [d for d in range(1, nb + 1) if nb % d == 0 and d * w <= cap] or [1]
        p = max(divs)
        if dual_core and p == nb and nb >= 2:
            smaller = [d for d in divs if d <= nb // 2]
            if smaller:
                p = max(smaller)
    n_total = -(-nb // p) * p
    return p, n_total // p, n_total - nb


# ------------------------------- Pallas kernel -------------------------------
def _make_msssim_kernel(levels: int, h: int, w: int, p: int, nb: int):
    c1, c2 = _C1, _C2
    pw = p * w

    def kernel(x1_ref, x2_ref, bh_ref, bw_ref, ph_ref, pwp_ref,
               ssim_ref, mcs_ref):
        x1 = x1_ref[0]                       # (H, P*W) f32, planes along lanes
        x2 = x2_ref[0]

        # Real-pixel masks: level maps keep the fixed (H, P*W) footprint; at
        # level l the real data occupies rows < h_l and lanes < real_planes*w_l
        # (planes repack contiguously after each 2x2 pool; padding planes and
        # the zeroed border contribute ssim = mcs = 1 and are masked out).
        row_ids = jax.lax.broadcasted_iota(jnp.int32, (h, pw), 0)
        lane_ids = jax.lax.broadcasted_iota(jnp.int32, (h, pw), 1)
        real_planes = jnp.minimum(p, nb - pl.program_id(0) * p)

        ssim_sums, mcs_sums = [], []
        hh, ww = h, w
        for l in range(levels):
            bh = bh_ref[l]                   # (H, H)    bf16 row-blur band
            bw = bw_ref[l]                   # (PW, PW)  bf16 block-diag col-blur

            def blur(s):
                t = jnp.dot(bh, s.astype(jnp.bfloat16),
                            preferred_element_type=jnp.float32)
                return jnp.dot(t.astype(jnp.bfloat16), bw,
                               preferred_element_type=jnp.float32)

            mu1 = blur(x1)
            mu2 = blur(x2)
            e11 = blur(x1 * x1)
            e22 = blur(x2 * x2)
            e12 = blur(x1 * x2)

            mu1_sq = mu1 * mu1
            mu2_sq = mu2 * mu2
            mu1_mu2 = mu1 * mu2
            sigma1_sq = e11 - mu1_sq
            sigma2_sq = e22 - mu2_sq
            sigma12 = e12 - mu1_mu2

            v1 = 2.0 * sigma12 + c2
            v2 = sigma1_sq + sigma2_sq + c2
            r2 = pl.reciprocal(v2, approx=True)          # EUP slot
            r2 = r2 * (2.0 - v2 * r2)                    # one Newton step (VPU)
            mcs_map = v1 * r2

            d1 = mu1_sq + mu2_sq + c1
            r1 = pl.reciprocal(d1, approx=True)
            r1 = r1 * (2.0 - d1 * r1)
            ssim_map = mcs_map * (2.0 * mu1_mu2 + c1) * r1

            mask = ((row_ids < hh) &
                    (lane_ids < real_planes * ww)).astype(jnp.float32)
            ssim_sums.append(jnp.sum(ssim_map * mask, keepdims=True))    # (1,1)
            mcs_sums.append(jnp.sum(mcs_map * mask, keepdims=True))      # (1,1)

            if l + 1 < levels:
                ph = ph_ref[l]               # (H, H)    bf16 2x2 row pool
                pwp = pwp_ref[l]             # (PW, PW)  bf16 2x2 col pool

                def pool(s):
                    t = jnp.dot(ph, s.astype(jnp.bfloat16),
                                preferred_element_type=jnp.float32)
                    return jnp.dot(t.astype(jnp.bfloat16), pwp,
                                   preferred_element_type=jnp.float32)

                x1 = pool(x1)
                x2 = pool(x2)
                hh //= 2
                ww //= 2

        # Single lane-dense store of all per-level sums for this group.
        ssim_ref[0] = jnp.concatenate(ssim_sums, axis=1)     # (1, levels)
        mcs_ref[0] = jnp.concatenate(mcs_sums, axis=1)       # (1, levels)

    return kernel


# --------------------------------- wrapper -----------------------------------
def ms_ssim_pallas(img1, img2, window_size: int = 11, levels: int = 5):
    """MS_SSIM.forward.  img1/img2: NCHW float32; H, W divisible by 2**(levels-1)."""
    n, c, h, w = img1.shape
    assert 2 <= levels <= len(_MS_WEIGHT)
    div = 1 << (levels - 1)
    assert h % div == 0 and w % div == 0, "H, W must be divisible by 2**(levels-1)"

    nb = n * c
    p, g, n_pad = _choose_group(nb, w, _dual_tensorcore())
    pw = p * w

    def regroup(x):
        x = jnp.asarray(x, jnp.float32).reshape(nb, h, w)
        if n_pad:
            x = jnp.concatenate([x, jnp.zeros((n_pad, h, w), jnp.float32)], 0)
        x = x.reshape(g, p, h, w)
        # TODO(synk): for large images express this plane->lane regroup via the
        # BlockSpec index_map instead of paying an extra XLA transpose pass.
        return jnp.transpose(x, (0, 2, 1, 3)).reshape(g, h, pw)

    x1 = regroup(img1)
    x2 = regroup(img2)

    bh_s, bw_s, ph_s, pwp_s = _level_constants(h, w, p, window_size, levels)

    def const_spec(a):
        # Grid-invariant block index -> the pipeline only DMAs these once.
        return pl.BlockSpec(tuple(a.shape), lambda b: (0, 0, 0))

    in_specs = [pl.BlockSpec((1, h, pw), lambda b: (b, 0, 0)),
                pl.BlockSpec((1, h, pw), lambda b: (b, 0, 0)),
                const_spec(bh_s), const_spec(bw_s),
                const_spec(ph_s), const_spec(pwp_s)]

    out_specs = (pl.BlockSpec((1, 1, levels), lambda b: (b, 0, 0)),
                 pl.BlockSpec((1, 1, levels), lambda b: (b, 0, 0)))
    out_shape = (jax.ShapeDtypeStruct((g, 1, levels), jnp.float32),
                 jax.ShapeDtypeStruct((g, 1, levels), jnp.float32))

    ssim_sums, mcs_sums = pl.pallas_call(
        _make_msssim_kernel(levels, h, w, p, nb),
        grid=(g,),
        in_specs=in_specs,
        out_specs=out_specs,
        out_shape=out_shape,
        compiler_params=pltpu.CompilerParams(
            dimension_semantics=("parallel",),
            # small working set at these sizes; stays well inside v7x's 64 MiB.
            vmem_limit_bytes=32 * 1024 * 1024),
    )(x1, x2, bh_s, bw_s, ph_s, pwp_s)

    counts = jnp.asarray([nb * (h >> l) * (w >> l) for l in range(levels)],
                         jnp.float32)
    msssim = jnp.sum(ssim_sums, axis=(0, 1)) / counts      # per-level means
    mcs = jnp.sum(mcs_sums, axis=(0, 1)) / counts

    weight = jnp.asarray(_MS_WEIGHT[:levels])
    # Matches the PyTorch module's (quirky) broadcasting combination exactly.
    return jnp.prod(msssim[levels - 1] ** weight[levels - 1]
                    * mcs[: levels - 1] ** weight[: levels - 1])


# ------------------------- pure-JAX reference (check) -------------------------
def _ref_ms_ssim(img1, img2, window_size: int = 11, levels: int = 5):
    n, c, h, w = img1.shape
    weight = jnp.asarray(_MS_WEIGHT[:levels])
    g = jnp.asarray(gaussian_1d(window_size, 1.5))
    w2d = jnp.outer(g, g)
    kern = jnp.broadcast_to(w2d, (c, 1, window_size, window_size))

    def conv(x):
        return jax.lax.conv_general_dilated(
            x, kern, window_strides=(1, 1),
            padding=[(window_size // 2,) * 2] * 2,
            dimension_numbers=("NCHW", "OIHW", "NCHW"),
            feature_group_count=c,
            precision=jax.lax.Precision.HIGHEST)

    msssim, mcs = [], []
    for _ in range(levels):
        mu1, mu2 = conv(img1), conv(img2)
        mu1_sq, mu2_sq, mu1_mu2 = mu1 * mu1, mu2 * mu2, mu1 * mu2
        s1 = conv(img1 * img1) - mu1_sq
        s2 = conv(img2 * img2) - mu2_sq
        s12 = conv(img1 * img2) - mu1_mu2
        ssim_map = (2 * mu1_mu2 + _C1) * (2 * s12 + _C2) / \
                   ((mu1_sq + mu2_sq + _C1) * (s1 + s2 + _C2))
        mcs_map = (2.0 * s12 + _C2) / (s1 + s2 + _C2)
        msssim.append(ssim_map.mean())
        mcs.append(mcs_map.mean())
        nn, cc, hh, ww = img1.shape
        img1 = img1.reshape(nn, cc, hh // 2, 2, ww // 2, 2).mean(axis=(3, 5))
        img2 = img2.reshape(nn, cc, hh // 2, 2, ww // 2, 2).mean(axis=(3, 5))
    msssim, mcs = jnp.stack(msssim), jnp.stack(mcs)
    return jnp.prod(msssim[levels - 1] ** weight[levels - 1]
                    * mcs[: levels - 1] ** weight[: levels - 1])


if __name__ == "__main__":
    key = jax.random.PRNGKey(0)
    k1, k2 = jax.random.split(key)
    # batch=2, channels=3, spatial=32 (>= 2**4 so all 5 pyramid levels exist).
    # img2 is a perturbed copy of img1 so the metric is well-conditioned.
    img1 = jax.random.uniform(k1, (2, 3, 32, 32), dtype=jnp.float32)
    noise = jax.random.uniform(k2, (2, 3, 32, 32), dtype=jnp.float32)
    img2 = jnp.clip(img1 + 0.1 * (noise - 0.5), 0.0, 1.0)

    out = ms_ssim_pallas(img1, img2)
    out = jax.block_until_ready(out)

    ref = _ref_ms_ssim(img1, img2)
    assert bool(jnp.isfinite(out)), out
    assert jnp.allclose(out, ref, rtol=2e-2, atol=2e-3), (out, ref)
    print("KERNEL_OK")
</pallas_src>

<mosaic_0001>
module attributes {stable_mosaic.version = 11 : i64} {
  func.func @kernel(%arg0: i32, %arg1: memref<1x32x256xf32, #tpu.memory_space<vmem>>, %arg2: memref<1x32x256xf32, #tpu.memory_space<vmem>>, %arg3: memref<5x32x32xbf16, #tpu.memory_space<vmem>>, %arg4: memref<5x256x256xbf16, #tpu.memory_space<vmem>>, %arg5: memref<4x32x32xbf16, #tpu.memory_space<vmem>>, %arg6: memref<4x256x256xbf16, #tpu.memory_space<vmem>>, %arg7: memref<1x1x5xf32, #tpu.memory_space<vmem>>, %arg8: memref<1x1x5xf32, #tpu.memory_space<vmem>>) attributes {dimension_semantics = [#tpu.dimension_semantics<parallel>], iteration_bounds = array<i64: 1>, scalar_prefetch = 0 : i64, scratch_operands = 0 : i64, tpu.core_type = #tpu.core_type<tc>, window_params = [{transform_indices = @transform_0, window_bounds = array<i64: 1, 32, 256>}, {transform_indices = @transform_1, window_bounds = array<i64: 1, 32, 256>}, {pipeline_mode = #tpu.pipeline_mode<synchronous>, transform_indices = @transform_2, window_bounds = array<i64: 5, 32, 32>}, {pipeline_mode = #tpu.pipeline_mode<synchronous>, transform_indices = @transform_3, window_bounds = array<i64: 5, 256, 256>}, {pipeline_mode = #tpu.pipeline_mode<synchronous>, transform_indices = @transform_4, window_bounds = array<i64: 4, 32, 32>}, {pipeline_mode = #tpu.pipeline_mode<synchronous>, transform_indices = @transform_5, window_bounds = array<i64: 4, 256, 256>}, {transform_indices = @transform_6, window_bounds = array<i64: 1, 1, 5>}, {transform_indices = @transform_7, window_bounds = array<i64: 1, 1, 5>}]} {
    %c0 = arith.constant 0 : index
    %c0_0 = arith.constant 0 : index
    %c0_1 = arith.constant 0 : index
    %0 = vector.load %arg1[%c0, %c0_0, %c0_1] : memref<1x32x256xf32, #tpu.memory_space<vmem>>, vector<1x32x256xf32>
    %1 = vector.shape_cast %0 : vector<1x32x256xf32> to vector<32x256xf32>
    %c0_2 = arith.constant 0 : index
    %c0_3 = arith.constant 0 : index
    %c0_4 = arith.constant 0 : index
    %2 = vector.load %arg2[%c0_2, %c0_3, %c0_4] : memref<1x32x256xf32, #tpu.memory_space<vmem>>, vector<1x32x256xf32>
    %3 = vector.shape_cast %2 : vector<1x32x256xf32> to vector<32x256xf32>
    %4 = tpu.iota {dimensions = array<i32: 0>} : vector<32x256xi32>
    %5 = tpu.iota {dimensions = array<i32: 1>} : vector<32x256xi32>
    %c8_i32 = arith.constant 8 : i32
    %6 = arith.muli %arg0, %c8_i32 : i32
    %c6_i32 = arith.constant 6 : i32
    %7 = arith.subi %c6_i32, %6 : i32
    %c8_i32_5 = arith.constant 8 : i32
    %8 = arith.minsi %c8_i32_5, %7 : i32
    %c0_6 = arith.constant 0 : index
    %c0_7 = arith.constant 0 : index
    %c0_8 = arith.constant 0 : index
    %9 = vector.load %arg3[%c0_6, %c0_7, %c0_8] : memref<5x32x32xbf16, #tpu.memory_space<vmem>>, vector<1x32x32xbf16>
    %10 = vector.shape_cast %9 : vector<1x32x32xbf16> to vector<32x32xbf16>
    %c0_9 = arith.constant 0 : index
    %c0_10 = arith.constant 0 : index
    %c0_11 = arith.constant 0 : index
    %11 = vector.load %arg4[%c0_9, %c0_10, %c0_11] : memref<5x256x256xbf16, #tpu.memory_space<vmem>>, vector<1x256x256xbf16>
    %12 = vector.shape_cast %11 : vector<1x256x256xbf16> to vector<256x256xbf16>
    %13 = arith.truncf %1 : vector<32x256xf32> to vector<32x256xbf16>
    %cst = arith.constant dense<0.000000e+00> : vector<32x256xf32>
    %14 = tpu.matmul %10, %13, %cst {dimension_numbers = #tpu.dot_dimension_numbers<[1], [0], [0], [1], [0, 0, 1, 1], [], []>} : vector<32x32xbf16>, vector<32x256xbf16>, vector<32x256xf32> -> vector<32x256xf32>
    %15 = arith.truncf %14 : vector<32x256xf32> to vector<32x256xbf16>
    %cst_12 = arith.constant dense<0.000000e+00> : vector<32x256xf32>
    %16 = tpu.matmul %15, %12, %cst_12 {dimension_numbers = #tpu.dot_dimension_numbers<[1], [0], [0], [1], [0, 0, 1, 1], [], []>} : vector<32x256xbf16>, vector<256x256xbf16>, vector<32x256xf32> -> vector<32x256xf32>
    %17 = arith.truncf %3 : vector<32x256xf32> to vector<32x256xbf16>
    %cst_13 = arith.constant dense<0.000000e+00> : vector<32x256xf32>
    %18 = tpu.matmul %10, %17, %cst_13 {dimension_numbers = #tpu.dot_dimension_numbers<[1], [0], [0], [1], [0, 0, 1, 1], [], []>} : vector<32x32xbf16>, vector<32x256xbf16>, vector<32x256xf32> -> vector<32x256xf32>
    %19 = arith.truncf %18 : vector<32x256xf32> to vector<32x256xbf16>
    %cst_14 = arith.constant dense<0.000000e+00> : vector<32x256xf32>
    %20 = tpu.matmul %19, %12, %cst_14 {dimension_numbers = #tpu.dot_dimension_numbers<[1], [0], [0], [1], [0, 0, 1, 1], [], []>} : vector<32x256xbf16>, vector<256x256xbf16>, vector<32x256xf32> -> vector<32x256xf32>
    %21 = arith.mulf %1, %1 : vector<32x256xf32>
    %22 = arith.truncf %21 : vector<32x256xf32> to vector<32x256xbf16>
    %cst_15 = arith.constant dense<0.000000e+00> : vector<32x256xf32>
    %23 = tpu.matmul %10, %22, %cst_15 {dimension_numbers = #tpu.dot_dimension_numbers<[1], [0], [0], [1], [0, 0, 1, 1], [], []>} : vector<32x32xbf16>, vector<32x256xbf16>, vector<32x256xf32> -> vector<32x256xf32>
    %24 = arith.truncf %23 : vector<32x256xf32> to vector<32x256xbf16>
    %cst_16 = arith.constant dense<0.000000e+00> : vector<32x256xf32>
    %25 = tpu.matmul %24, %12, %cst_16 {dimension_numbers = #tpu.dot_dimension_numbers<[1], [0], [0], [1], [0, 0, 1, 1], [], []>} : vector<32x256xbf16>, vector<256x256xbf16>, vector<32x256xf32> -> vector<32x256xf32>
    %26 = arith.mulf %3, %3 : vector<32x256xf32>
    %27 = arith.truncf %26 : vector<32x256xf32> to vector<32x256xbf16>
    %cst_17 = arith.constant dense<0.000000e+00> : vector<32x256xf32>
    %28 = tpu.matmul %10, %27, %cst_17 {dimension_numbers = #tpu.dot_dimension_numbers<[1], [0], [0], [1], [0, 0, 1, 1], [], []>} : vector<32x32xbf16>, vector<32x256xbf16>, vector<32x256xf32> -> vector<32x256xf32>
    %29 = arith.truncf %28 : vector<32x256xf32> to vector<32x256xbf16>
    %cst_18 = arith.constant dense<0.000000e+00> : vector<32x256xf32>
    %30 = tpu.matmul %29, %12, %cst_18 {dimension_numbers = #tpu.dot_dimension_numbers<[1], [0], [0], [1], [0, 0, 1, 1], [], []>} : vector<32x256xbf16>, vector<256x256xbf16>, vector<32x256xf32> -> vector<32x256xf32>
    %31 = arith.mulf %1, %3 : vector<32x256xf32>
    %32 = arith.truncf %31 : vector<32x256xf32> to vector<32x256xbf16>
    %cst_19 = arith.constant dense<0.000000e+00> : vector<32x256xf32>
    %33 = tpu.matmul %10, %32, %cst_19 {dimension_numbers = #tpu.dot_dimension_numbers<[1], [0], [0], [1], [0, 0, 1, 1], [], []>} : vector<32x32xbf16>, vector<32x256xbf16>, vector<32x256xf32> -> vector<32x256xf32>
    %34 = arith.truncf %33 : vector<32x256xf32> to vector<32x256xbf16>
    %cst_20 = arith.constant dense<0.000000e+00> : vector<32x256xf32>
    %35 = tpu.matmul %34, %12, %cst_20 {dimension_numbers = #tpu.dot_dimension_numbers<[1], [0], [0], [1], [0, 0, 1, 1], [], []>} : vector<32x256xbf16>, vector<256x256xbf16>, vector<32x256xf32> -> vector<32x256xf32>
    %36 = arith.mulf %16, %16 : vector<32x256xf32>
    %37 = arith.mulf %20, %20 : vector<32x256xf32>
    %38 = arith.mulf %16, %20 : vector<32x256xf32>
    %39 = arith.subf %25, %36 : vector<32x256xf32>
    %40 = arith.subf %30, %37 : vector<32x256xf32>
    %41 = arith.subf %35, %38 : vector<32x256xf32>
    %cst_21 = arith.constant 2.000000e+00 : f32
    %42 = vector.broadcast %cst_21 : f32 to vector<32x256xf32>
    %43 = arith.mulf %42, %41 : vector<32x256xf32>
    %cst_22 = arith.constant 8.99999984E-4 : f32
    %44 = vector.broadcast %cst_22 : f32 to vector<32x256xf32>
    %45 = arith.addf %43, %44 : vector<32x256xf32>
    %46 = arith.addf %39, %40 : vector<32x256xf32>
    %cst_23 = arith.constant 8.99999984E-4 : f32
    %47 = vector.broadcast %cst_23 : f32 to vector<32x256xf32>
    %48 = arith.addf %46, %47 : vector<32x256xf32>
    %49 = tpu.reciprocal %48 {approx = true} : vector<32x256xf32> -> vector<32x256xf32>
    %50 = arith.mulf %48, %49 : vector<32x256xf32>
    %cst_24 = arith.constant 2.000000e+00 : f32
    %51 = vector.broadcast %cst_24 : f32 to vector<32x256xf32>
    %52 = arith.subf %51, %50 : vector<32x256xf32>
    %53 = arith.mulf %49, %52 : vector<32x256xf32>
    %54 = arith.mulf %45, %53 : vector<32x256xf32>
    %55 = arith.addf %36, %37 : vector<32x256xf32>
    %cst_25 = arith.constant 9.99999974E-5 : f32
    %56 = vector.broadcast %cst_25 : f32 to vector<32x256xf32>
    %57 = arith.addf %55, %56 : vector<32x256xf32>
    %58 = tpu.reciprocal %57 {approx = true} : vector<32x256xf32> -> vector<32x256xf32>
    %59 = arith.mulf %57, %58 : vector<32x256xf32>
    %cst_26 = arith.constant 2.000000e+00 : f32
    %60 = vector.broadcast %cst_26 : f32 to vector<32x256xf32>
    %61 = arith.subf %60, %59 : vector<32x256xf32>
    %62 = arith.mulf %58, %61 : vector<32x256xf32>
    %cst_27 = arith.constant 2.000000e+00 : f32
    %63 = vector.broadcast %cst_27 : f32 to vector<32x256xf32>
    %64 = arith.mulf %63, %38 : vector<32x256xf32>
    %cst_28 = arith.constant 9.99999974E-5 : f32
    %65 = vector.broadcast %cst_28 : f32 to vector<32x256xf32>
    %66 = arith.addf %64, %65 : vector<32x256xf32>
    %67 = arith.mulf %54, %66 : vector<32x256xf32>
    %68 = arith.mulf %67, %62 : vector<32x256xf32>
    %c32_i32 = arith.constant 32 : i32
    %69 = vector.broadcast %c32_i32 : i32 to vector<32x256xi32>
    %70 = arith.cmpi slt, %4, %69 : vector<32x256xi32>
    %c32_i32_29 = arith.constant 32 : i32
    %71 = arith.muli %8, %c32_i32_29 : i32
    %72 = vector.broadcast %71 : i32 to vector<32x256xi32>
    %73 = arith.cmpi slt, %5, %72 : vector<32x256xi32>
    %74 = arith.andi %70, %73 : vector<32x256xi1>
    %75 = arith.extui %74 : vector<32x256xi1> to vector<32x256xi32>
    %76 = arith.sitofp %75 : vector<32x256xi32> to vector<32x256xf32>
    %77 = arith.mulf %68, %76 : vector<32x256xf32>
    %78 = vector.shape_cast %77 : vector<32x256xf32> to vector<1x32x256xf32>
    %cst_30 = arith.constant dense<0.000000e+00> : vector<1xf32>
    %79 = vector.multi_reduction <add>, %78, %cst_30 [1, 2] : vector<1x32x256xf32> to vector<1xf32>
    %80 = vector.shape_cast %79 : vector<1xf32> to vector<1x1x1xf32>
    %81 = vector.extract %80[0, 0, 0] : f32 from vector<1x1x1xf32>
    %82 = vector.broadcast %81 : f32 to vector<1x1xf32>
    %83 = arith.mulf %54, %76 : vector<32x256xf32>
    %84 = vector.shape_cast %83 : vector<32x256xf32> to vector<1x32x256xf32>
    %cst_31 = arith.constant dense<0.000000e+00> : vector<1xf32>
    %85 = vector.multi_reduction <add>, %84, %cst_31 [1, 2] : vector<1x32x256xf32> to vector<1xf32>
    %86 = vector.shape_cast %85 : vector<1xf32> to vector<1x1x1xf32>
    %87 = vector.extract %86[0, 0, 0] : f32 from vector<1x1x1xf32>
    %88 = vector.broadcast %87 : f32 to vector<1x1xf32>
    %c0_32 = arith.constant 0 : index
    %c0_33 = arith.constant 0 : index
    %c0_34 = arith.constant 0 : index
    %89 = vector.load %arg5[%c0_32, %c0_33, %c0_34] : memref<4x32x32xbf16, #tpu.memory_space<vmem>>, vector<1x32x32xbf16>
    %90 = vector.shape_cast %89 : vector<1x32x32xbf16> to vector<32x32xbf16>
    %c0_35 = arith.constant 0 : index
    %c0_36 = arith.constant 0 : index
    %c0_37 = arith.constant 0 : index
    %91 = vector.load %arg6[%c0_35, %c0_36, %c0_37] : memref<4x256x256xbf16, #tpu.memory_space<vmem>>, vector<1x256x256xbf16>
    %92 = vector.shape_cast %91 : vector<1x256x256xbf16> to vector<256x256xbf16>
    %93 = arith.truncf %1 : vector<32x256xf32> to vector<32x256xbf16>
    %cst_38 = arith.constant dense<0.000000e+00> : vector<32x256xf32>
    %94 = tpu.matmul %90, %93, %cst_38 {dimension_numbers = #tpu.dot_dimension_numbers<[1], [0], [0], [1], [0, 0, 1, 1], [], []>} : vector<32x32xbf16>, vector<32x256xbf16>, vector<32x256xf32> -> vector<32x256xf32>
    %95 = arith.truncf %94 : vector<32x256xf32> to vector<32x256xbf16>
    %cst_39 = arith.constant dense<0.000000e+00> : vector<32x256xf32>
    %96 = tpu.matmul %95, %92, %cst_39 {dimension_numbers = #tpu.dot_dimension_numbers<[1], [0], [0], [1], [0, 0, 1, 1], [], []>} : vector<32x256xbf16>, vector<256x256xbf16>, vector<32x256xf32> -> vector<32x256xf32>
    %97 = arith.truncf %3 : vector<32x256xf32> to vector<32x256xbf16>
    %cst_40 = arith.constant dense<0.000000e+00> : vector<32x256xf32>
    %98 = tpu.matmul %90, %97, %cst_40 {dimension_numbers = #tpu.dot_dimension_numbers<[1], [0], [0], [1], [0, 0, 1, 1], [], []>} : vector<32x32xbf16>, vector<32x256xbf16>, vector<32x256xf32> -> vector<32x256xf32>
    %99 = arith.truncf %98 : vector<32x256xf32> to vector<32x256xbf16>
    %cst_41 = arith.constant dense<0.000000e+00> : vector<32x256xf32>
    %100 = tpu.matmul %99, %92, %cst_41 {dimension_numbers = #tpu.dot_dimension_numbers<[1], [0], [0], [1], [0, 0, 1, 1], [], []>} : vector<32x256xbf16>, vector<256x256xbf16>, vector<32x256xf32> -> vector<32x256xf32>
    %c1 = arith.constant 1 : index
    %c0_42 = arith.constant 0 : index
    %c0_43 = arith.constant 0 : index
    %101 = vector.load %arg3[%c1, %c0_42, %c0_43] : memref<5x32x32xbf16, #tpu.memory_space<vmem>>, vector<1x32x32xbf16>
    %102 = vector.shape_cast %101 : vector<1x32x32xbf16> to vector<32x32xbf16>
    %c1_44 = arith.constant 1 : index
    %c0_45 = arith.constant 0 : index
    %c0_46 = arith.constant 0 : index
    %103 = vector.load %arg4[%c1_44, %c0_45, %c0_46] : memref<5x256x256xbf16, #tpu.memory_space<vmem>>, vector<1x256x256xbf16>
    %104 = vector.shape_cast %103 : vector<1x256x256xbf16> to vector<256x256xbf16>
    %105 = arith.truncf %96 : vector<32x256xf32> to vector<32x256xbf16>
    %cst_47 = arith.constant dense<0.000000e+00> : vector<32x256xf32>
    %106 = tpu.matmul %102, %105, %cst_47 {dimension_numbers = #tpu.dot_dimension_numbers<[1], [0], [0], [1], [0, 0, 1, 1], [], []>} : vector<32x32xbf16>, vector<32x256xbf16>, vector<32x256xf32> -> vector<32x256xf32>
    %107 = arith.truncf %106 : vector<32x256xf32> to vector<32x256xbf16>
    %cst_48 = arith.constant dense<0.000000e+00> : vector<32x256xf32>
    %108 = tpu.matmul %107, %104, %cst_48 {dimension_numbers = #tpu.dot_dimension_numbers<[1], [0], [0], [1], [0, 0, 1, 1], [], []>} : vector<32x256xbf16>, vector<256x256xbf16>, vector<32x256xf32> -> vector<32x256xf32>
    %109 = arith.truncf %100 : vector<32x256xf32> to vector<32x256xbf16>
    %cst_49 = arith.constant dense<0.000000e+00> : vector<32x256xf32>
    %110 = tpu.matmul %102, %109, %cst_49 {dimension_numbers = #tpu.dot_dimension_numbers<[1], [0], [0], [1], [0, 0, 1, 1], [], []>} : vector<32x32xbf16>, vector<32x256xbf16>, vector<32x256xf32> -> vector<32x256xf32>
    %111 = arith.truncf %110 : vector<32x256xf32> to vector<32x256xbf16>
    %cst_50 = arith.constant dense<0.000000e+00> : vector<32x256xf32>
    %112 = tpu.matmul %111, %104, %cst_50 {dimension_numbers = #tpu.dot_dimension_numbers<[1], [0], [0], [1], [0, 0, 1, 1], [], []>} : vector<32x256xbf16>, vector<256x256xbf16>, vector<32x256xf32> -> vector<32x256xf32>
    %113 = arith.mulf %96, %96 : vector<32x256xf32>
    %114 = arith.truncf %113 : vector<32x256xf32> to vector<32x256xbf16>
    %cst_51 = arith.constant dense<0.000000e+00> : vector<32x256xf32>
    %115 = tpu.matmul %102, %114, %cst_51 {dimension_numbers = #tpu.dot_dimension_numbers<[1], [0], [0], [1], [0, 0, 1, 1], [], []>} : vector<32x32xbf16>, vector<32x256xbf16>, vector<32x256xf32> -> vector<32x256xf32>
    %116 = arith.truncf %115 : vector<32x256xf32> to vector<32x256xbf16>
    %cst_52 = arith.constant dense<0.000000e+00> : vector<32x256xf32>
    %117 = tpu.matmul %116, %104, %cst_52 {dimension_numbers = #tpu.dot_dimension_numbers<[1], [0], [0], [1], [0, 0, 1, 1], [], []>} : vector<32x256xbf16>, vector<256x256xbf16>, vector<32x256xf32> -> vector<32x256xf32>
    %118 = arith.mulf %100, %100 : vector<32x256xf32>
    %119 = arith.truncf %118 : vector<32x256xf32> to vector<32x256xbf16>
    %cst_53 = arith.constant dense<0.000000e+00> : vector<32x256xf32>
    %120 = tpu.matmul %102, %119, %cst_53 {dimension_numbers = #tpu.dot_dimension_numbers<[1], [0], [0], [1], [0, 0, 1, 1], [], []>} : vector<32x32xbf16>, vector<32x256xbf16>, vector<32x256xf32> -> vector<32x256xf32>
    %121 = arith.truncf %120 : vector<32x256xf32> to vector<32x256xbf16>
    %cst_54 = arith.constant dense<0.000000e+00> : vector<32x256xf32>
    %122 = tpu.matmul %121, %104, %cst_54 {dimension_numbers = #tpu.dot_dimension_numbers<[1], [0], [0], [1], [0, 0, 1, 1], [], []>} : vector<32x256xbf16>, vector<256x256xbf16>, vector<32x256xf32> -> vector<32x256xf32>
    %123 = arith.mulf %96, %100 : vector<32x256xf32>
    %124 = arith.truncf %123 : vector<32x256xf32> to vector<32x256xbf16>
    %cst_55 = arith.constant dense<0.000000e+00> : vector<32x256xf32>
    %125 = tpu.matmul %102, %124, %cst_55 {dimension_numbers = #tpu.dot_dimension_numbers<[1], [0], [0], [1], [0, 0, 1, 1], [], []>} : vector<32x32xbf16>, vector<32x256xbf16>, vector<32x256xf32> -> vector<32x256xf32>
    %126 = arith.truncf %125 : vector<32x256xf32> to vector<32x256xbf16>
    %cst_56 = arith.constant dense<0.000000e+00> : vector<32x256xf32>
    %127 = tpu.matmul %126, %104, %cst_56 {dimension_numbers = #tpu.dot_dimension_numbers<[1], [0], [0], [1], [0, 0, 1, 1], [], []>} : vector<32x256xbf16>, vector<256x256xbf16>, vector<32x256xf32> -> vector<32x256xf32>
    %128 = arith.mulf %108, %108 : vector<32x256xf32>
    %129 = arith.mulf %112, %112 : vector<32x256xf32>
    %130 = arith.mulf %108, %112 : vector<32x256xf32>
    %131 = arith.subf %117, %128 : vector<32x256xf32>
    %132 = arith.subf %122, %129 : vector<32x256xf32>
    %133 = arith.subf %127, %130 : vector<32x256xf32>
    %cst_57 = arith.constant 2.000000e+00 : f32
    %134 = vector.broadcast %cst_57 : f32 to vector<32x256xf32>
    %135 = arith.mulf %134, %133 : vector<32x256xf32>
    %cst_58 = arith.constant 8.99999984E-4 : f32
    %136 = vector.broadcast %cst_58 : f32 to vector<32x256xf32>
    %137 = arith.addf %135, %136 : vector<32x256xf32>
    %138 = arith.addf %131, %132 : vector<32x256xf32>
    %cst_59 = arith.constant 8.99999984E-4 : f32
    %139 = vector.broadcast %cst_59 : f32 to vector<32x256xf32>
    %140 = arith.addf %138, %139 : vector<32x256xf32>
    %141 = tpu.reciprocal %140 {approx = true} : vector<32x256xf32> -> vector<32x256xf32>
    %142 = arith.mulf %140, %141 : vector<32x256xf32>
    %cst_60 = arith.constant 2.000000e+00 : f32
    %143 = vector.broadcast %cst_60 : f32 to vector<32x256xf32>
    %144 = arith.subf %143, %142 : vector<32x256xf32>
    %145 = arith.mulf %141, %144 : vector<32x256xf32>
    %146 = arith.mulf %137, %145 : vector<32x256xf32>
    %147 = arith.addf %128, %129 : vector<32x256xf32>
    %cst_61 = arith.constant 9.99999974E-5 : f32
    %148 = vector.broadcast %cst_61 : f32 to vector<32x256xf32>
    %149 = arith.addf %147, %148 : vector<32x256xf32>
    %150 = tpu.reciprocal %149 {approx = true} : vector<32x256xf32> -> vector<32x256xf32>
    %151 = arith.mulf %149, %150 : vector<32x256xf32>
    %cst_62 = arith.constant 2.000000e+00 : f32
    %152 = vector.broadcast %cst_62 : f32 to vector<32x256xf32>
    %153 = arith.subf %152, %151 : vector<32x256xf32>
    %154 = arith.mulf %150, %153 : vector<32x256xf32>
    %cst_63 = arith.constant 2.000000e+00 : f32
    %155 = vector.broadcast %cst_63 : f32 to vector<32x256xf32>
    %156 = arith.mulf %155, %130 : vector<32x256xf32>
    %cst_64 = arith.constant 9.99999974E-5 : f32
    %157 = vector.broadcast %cst_64 : f32 to vector<32x256xf32>
    %158 = arith.addf %156, %157 : vector<32x256xf32>
    %159 = arith.mulf %146, %158 : vector<32x256xf32>
    %160 = arith.mulf %159, %154 : vector<32x256xf32>
    %c16_i32 = arith.constant 16 : i32
    %161 = vector.broadcast %c16_i32 : i32 to vector<32x256xi32>
    %162 = arith.cmpi slt, %4, %161 : vector<32x256xi32>
    %c16_i32_65 = arith.constant 16 : i32
    %163 = arith.muli %8, %c16_i32_65 : i32
    %164 = vector.broadcast %163 : i32 to vector<32x256xi32>
    %165 = arith.cmpi slt, %5, %164 : vector<32x256xi32>
    %166 = arith.andi %162, %165 : vector<32x256xi1>
    %167 = arith.extui %166 : vector<32x256xi1> to vector<32x256xi32>
    %168 = arith.sitofp %167 : vector<32x256xi32> to vector<32x256xf32>
    %169 = arith.mulf %160, %168 : vector<32x256xf32>
    %170 = vector.shape_cast %169 : vector<32x256xf32> to vector<1x32x256xf32>
    %cst_66 = arith.constant dense<0.000000e+00> : vector<1xf32>
    %171 = vector.multi_reduction <add>, %170, %cst_66 [1, 2] : vector<1x32x256xf32> to vector<1xf32>
    %172 = vector.shape_cast %171 : vector<1xf32> to vector<1x1x1xf32>
    %173 = vector.extract %172[0, 0, 0] : f32 from vector<1x1x1xf32>
    %174 = vector.broadcast %173 : f32 to vector<1x1xf32>
    %175 = arith.mulf %146, %168 : vector<32x256xf32>
    %176 = vector.shape_cast %175 : vector<32x256xf32> to vector<1x32x256xf32>
    %cst_67 = arith.constant dense<0.000000e+00> : vector<1xf32>
    %177 = vector.multi_reduction <add>, %176, %cst_67 [1, 2] : vector<1x32x256xf32> to vector<1xf32>
    %178 = vector.shape_cast %177 : vector<1xf32> to vector<1x1x1xf32>
    %179 = vector.extract %178[0, 0, 0] : f32 from vector<1x1x1xf32>
    %180 = vector.broadcast %179 : f32 to vector<1x1xf32>
    %c1_68 = arith.constant 1 : index
    %c0_69 = arith.constant 0 : index
    %c0_70 = arith.constant 0 : index
    %181 = vector.load %arg5[%c1_68, %c0_69, %c0_70] : memref<4x32x32xbf16, #tpu.memory_space<vmem>>, vector<1x32x32xbf16>
    %182 = vector.shape_cast %181 : vector<1x32x32xbf16> to vector<32x32xbf16>
    %c1_71 = arith.constant 1 : index
    %c0_72 = arith.constant 0 : index
    %c0_73 = arith.constant 0 : index
    %183 = vector.load %arg6[%c1_71, %c0_72, %c0_73] : memref<4x256x256xbf16, #tpu.memory_space<vmem>>, vector<1x256x256xbf16>
    %184 = vector.shape_cast %183 : vector<1x256x256xbf16> to vector<256x256xbf16>
    %185 = arith.truncf %96 : vector<32x256xf32> to vector<32x256xbf16>
    %cst_74 = arith.constant dense<0.000000e+00> : vector<32x256xf32>
    %186 = tpu.matmul %182, %185, %cst_74 {dimension_numbers = #tpu.dot_dimension_numbers<[1], [0], [0], [1], [0, 0, 1, 1], [], []>} : vector<32x32xbf16>, vector<32x256xbf16>, vector<32x256xf32> -> vector<32x256xf32>
    %187 = arith.truncf %186 : vector<32x256xf32> to vector<32x256xbf16>
    %cst_75 = arith.constant dense<0.000000e+00> : vector<32x256xf32>
    %188 = tpu.matmul %187, %184, %cst_75 {dimension_numbers = #tpu.dot_dimension_numbers<[1], [0], [0], [1], [0, 0, 1, 1], [], []>} : vector<32x256xbf16>, vector<256x256xbf16>, vector<32x256xf32> -> vector<32x256xf32>
    %189 = arith.truncf %100 : vector<32x256xf32> to vector<32x256xbf16>
    %cst_76 = arith.constant dense<0.000000e+00> : vector<32x256xf32>
    %190 = tpu.matmul %182, %189, %cst_76 {dimension_numbers = #tpu.dot_dimension_numbers<[1], [0], [0], [1], [0, 0, 1, 1], [], []>} : vector<32x32xbf16>, vector<32x256xbf16>, vector<32x256xf32> -> vector<32x256xf32>
    %191 = arith.truncf %190 : vector<32x256xf32> to vector<32x256xbf16>
    %cst_77 = arith.constant dense<0.000000e+00> : vector<32x256xf32>
    %192 = tpu.matmul %191, %184, %cst_77 {dimension_numbers = #tpu.dot_dimension_numbers<[1], [0], [0], [1], [0, 0, 1, 1], [], []>} : vector<32x256xbf16>, vector<256x256xbf16>, vector<32x256xf32> -> vector<32x256xf32>
    %c2 = arith.constant 2 : index
    %c0_78 = arith.constant 0 : index
    %c0_79 = arith.constant 0 : index
    %193 = vector.load %arg3[%c2, %c0_78, %c0_79] : memref<5x32x32xbf16, #tpu.memory_space<vmem>>, vector<1x32x32xbf16>
    %194 = vector.shape_cast %193 : vector<1x32x32xbf16> to vector<32x32xbf16>
    %c2_80 = arith.constant 2 : index
    %c0_81 = arith.constant 0 : index
    %c0_82 = arith.constant 0 : index
    %195 = vector.load %arg4[%c2_80, %c0_81, %c0_82] : memref<5x256x256xbf16, #tpu.memory_space<vmem>>, vector<1x256x256xbf16>
    %196 = vector.shape_cast %195 : vector<1x256x256xbf16> to vector<256x256xbf16>
    %197 = arith.truncf %188 : vector<32x256xf32> to vector<32x256xbf16>
    %cst_83 = arith.constant dense<0.000000e+00> : vector<32x256xf32>
    %198 = tpu.matmul %194, %197, %cst_83 {dimension_numbers = #tpu.dot_dimension_numbers<[1], [0], [0], [1], [0, 0, 1, 1], [], []>} : vector<32x32xbf16>, vector<32x256xbf16>, vector<32x256xf32> -> vector<32x256xf32>
    %199 = arith.truncf %198 : vector<32x256xf32> to vector<32x256xbf16>
    %cst_84 = arith.constant dense<0.000000e+00> : vector<32x256xf32>
    %200 = tpu.matmul %199, %196, %cst_84 {dimension_numbers = #tpu.dot_dimension_numbers<[1], [0], [0], [1], [0, 0, 1, 1], [], []>} : vector<32x256xbf16>, vector<256x256xbf16>, vector<32x256xf32> -> vector<32x256xf32>
    %201 = arith.truncf %192 : vector<32x256xf32> to vector<32x256xbf16>
    %cst_85 = arith.constant dense<0.000000e+00> : vector<32x256xf32>
    %202 = tpu.matmul %194, %201, %cst_85 {dimension_numbers = #tpu.dot_dimension_numbers<[1], [0], [0], [1], [0, 0, 1, 1], [], []>} : vector<32x32xbf16>, vector<32x256xbf16>, vector<32x256xf32> -> vector<32x256xf32>
    %203 = arith.truncf %202 : vector<32x256xf32> to vector<32x256xbf16>
    %cst_86 = arith.constant dense<0.000000e+00> : vector<32x256xf32>
    %204 = tpu.matmul %203, %196, %cst_86 {dimension_numbers = #tpu.dot_dimension_numbers<[1], [0], [0], [1], [0, 0, 1, 1], [], []>} : vector<32x256xbf16>, vector<256x256xbf16>, vector<32x256xf32> -> vector<32x256xf32>
    %205 = arith.mulf %188, %188 : vector<32x256xf32>
    %206 = arith.truncf %205 : vector<32x256xf32> to vector<32x256xbf16>
    %cst_87 = arith.constant dense<0.000000e+00> : vector<32x256xf32>
    %207 = tpu.matmul %194, %206, %cst_87 {dimension_numbers = #tpu.dot_dimension_numbers<[1], [0], [0], [1], [0, 0, 1, 1], [], []>} : vector<32x32xbf16>, vector<32x256xbf16>, vector<32x256xf32> -> vector<32x256xf32>
    %208 = arith.truncf %207 : vector<32x256xf32> to vector<32x256xbf16>
    %cst_88 = arith.constant dense<0.000000e+00> : vector<32x256xf32>
    %209 = tpu.matmul %208, %196, %cst_88 {dimension_numbers = #tpu.dot_dimension_numbers<[1], [0], [0], [1], [0, 0, 1, 1], [], []>} : vector<32x256xbf16>, vector<256x256xbf16>, vector<32x256xf32> -> vector<32x256xf32>
    %210 = arith.mulf %192, %192 : vector<32x256xf32>
    %211 = arith.truncf %210 : vector<32x256xf32> to vector<32x256xbf16>
    %cst_89 = arith.constant dense<0.000000e+00> : vector<32x256xf32>
    %212 = tpu.matmul %194, %211, %cst_89 {dimension_numbers = #tpu.dot_dimension_numbers<[1], [0], [0], [1], [0, 0, 1, 1], [], []>} : vector<32x32xbf16>, vector<32x256xbf16>, vector<32x256xf32> -> vector<32x256xf32>
    %213 = arith.truncf %212 : vector<32x256xf32> to vector<32x256xbf16>
    %cst_90 = arith.constant dense<0.000000e+00> : vector<32x256xf32>
    %214 = tpu.matmul %213, %196, %cst_90 {dimension_numbers = #tpu.dot_dimension_numbers<[1], [0], [0], [1], [0, 0, 1, 1], [], []>} : vector<32x256xbf16>, vector<256x256xbf16>, vector<32x256xf32> -> vector<32x256xf32>
    %215 = arith.mulf %188, %192 : vector<32x256xf32>
    %216 = arith.truncf %215 : vector<32x256xf32> to vector<32x256xbf16>
    %cst_91 = arith.constant dense<0.000000e+00> : vector<32x256xf32>
    %217 = tpu.matmul %194, %216, %cst_91 {dimension_numbers = #tpu.dot_dimension_numbers<[1], [0], [0], [1], [0, 0, 1, 1], [], []>} : vector<32x32xbf16>, vector<32x256xbf16>, vector<32x256xf32> -> vector<32x256xf32>
    %218 = arith.truncf %217 : vector<32x256xf32> to vector<32x256xbf16>
    %cst_92 = arith.constant dense<0.000000e+00> : vector<32x256xf32>
    %219 = tpu.matmul %218, %196, %cst_92 {dimension_numbers = #tpu.dot_dimension_numbers<[1], [0], [0], [1], [0, 0, 1, 1], [], []>} : vector<32x256xbf16>, vector<256x256xbf16>, vector<32x256xf32> -> vector<32x256xf32>
    %220 = arith.mulf %200, %200 : vector<32x256xf32>
    %221 = arith.mulf %204, %204 : vector<32x256xf32>
    %222 = arith.mulf %200, %204 : vector<32x256xf32>
    %223 = arith.subf %209, %220 : vector<32x256xf32>
    %224 = arith.subf %214, %221 : vector<32x256xf32>
    %225 = arith.subf %219, %222 : vector<32x256xf32>
    %cst_93 = arith.constant 2.000000e+00 : f32
    %226 = vector.broadcast %cst_93 : f32 to vector<32x256xf32>
    %227 = arith.mulf %226, %225 : vector<32x256xf32>
    %cst_94 = arith.constant 8.99999984E-4 : f32
    %228 = vector.broadcast %cst_94 : f32 to vector<32x256xf32>
    %229 = arith.addf %227, %228 : vector<32x256xf32>
    %230 = arith.addf %223, %224 : vector<32x256xf32>
    %cst_95 = arith.constant 8.99999984E-4 : f32
    %231 = vector.broadcast %cst_95 : f32 to vector<32x256xf32>
    %232 = arith.addf %230, %231 : vector<32x256xf32>
    %233 = tpu.reciprocal %232 {approx = true} : vector<32x256xf32> -> vector<32x256xf32>
    %234 = arith.mulf %232, %233 : vector<32x256xf32>
    %cst_96 = arith.constant 2.000000e+00 : f32
    %235 = vector.broadcast %cst_96 : f32 to vector<32x256xf32>
    %236 = arith.subf %235, %234 : vector<32x256xf32>
    %237 = arith.mulf %233, %236 : vector<32x256xf32>
    %238 = arith.mulf %229, %237 : vector<32x256xf32>
    %239 = arith.addf %220, %221 : vector<32x256xf32>
    %cst_97 = arith.constant 9.99999974E-5 : f32
    %240 = vector.broadcast %cst_97 : f32 to vector<32x256xf32>
    %241 = arith.addf %239, %240 : vector<32x256xf32>
    %242 = tpu.reciprocal %241 {approx = true} : vector<32x256xf32> -> vector<32x256xf32>
    %243 = arith.mulf %241, %242 : vector<32x256xf32>
    %cst_98 = arith.constant 2.000000e+00 : f32
    %244 = vector.broadcast %cst_98 : f32 to vector<32x256xf32>
    %245 = arith.subf %244, %243 : vector<32x256xf32>
    %246 = arith.mulf %242, %245 : vector<32x256xf32>
    %cst_99 = arith.constant 2.000000e+00 : f32
    %247 = vector.broadcast %cst_99 : f32 to vector<32x256xf32>
    %248 = arith.mulf %247, %222 : vector<32x256xf32>
    %cst_100 = arith.constant 9.99999974E-5 : f32
    %249 = vector.broadcast %cst_100 : f32 to vector<32x256xf32>
    %250 = arith.addf %248, %249 : vector<32x256xf32>
    %251 = arith.mulf %238, %250 : vector<32x256xf32>
    %252 = arith.mulf %251, %246 : vector<32x256xf32>
    %c8_i32_101 = arith.constant 8 : i32
    %253 = vector.broadcast %c8_i32_101 : i32 to vector<32x256xi32>
    %254 = arith.cmpi slt, %4, %253 : vector<32x256xi32>
    %c8_i32_102 = arith.constant 8 : i32
    %255 = arith.muli %8, %c8_i32_102 : i32
    %256 = vector.broadcast %255 : i32 to vector<32x256xi32>
    %257 = arith.cmpi slt, %5, %256 : vector<32x256xi32>
    %258 = arith.andi %254, %257 : vector<32x256xi1>
    %259 = arith.extui %258 : vector<32x256xi1> to vector<32x256xi32>
    %260 = arith.sitofp %259 : vector<32x256xi32> to vector<32x256xf32>
    %261 = arith.mulf %252, %260 : vector<32x256xf32>
    %262 = vector.shape_cast %261 : vector<32x256xf32> to vector<1x32x256xf32>
    %cst_103 = arith.constant dense<0.000000e+00> : vector<1xf32>
    %263 = vector.multi_reduction <add>, %262, %cst_103 [1, 2] : vector<1x32x256xf32> to vector<1xf32>
    %264 = vector.shape_cast %263 : vector<1xf32> to vector<1x1x1xf32>
    %265 = vector.extract %264[0, 0, 0] : f32 from vector<1x1x1xf32>
    %266 = vector.broadcast %265 : f32 to vector<1x1xf32>
    %267 = arith.mulf %238, %260 : vector<32x256xf32>
    %268 = vector.shape_cast %267 : vector<32x256xf32> to vector<1x32x256xf32>
    %cst_104 = arith.constant dense<0.000000e+00> : vector<1xf32>
    %269 = vector.multi_reduction <add>, %268, %cst_104 [1, 2] : vector<1x32x256xf32> to vector<1xf32>
    %270 = vector.shape_cast %269 : vector<1xf32> to vector<1x1x1xf32>
    %271 = vector.extract %270[0, 0, 0] : f32 from vector<1x1x1xf32>
    %272 = vector.broadcast %271 : f32 to vector<1x1xf32>
    %c2_105 = arith.constant 2 : index
    %c0_106 = arith.constant 0 : index
    %c0_107 = arith.constant 0 : index
    %273 = vector.load %arg5[%c2_105, %c0_106, %c0_107] : memref<4x32x32xbf16, #tpu.memory_space<vmem>>, vector<1x32x32xbf16>
    %274 = vector.shape_cast %273 : vector<1x32x32xbf16> to vector<32x32xbf16>
    %c2_108 = arith.constant 2 : index
    %c0_109 = arith.constant 0 : index
    %c0_110 = arith.constant 0 : index
    %275 = vector.load %arg6[%c2_108, %c0_109, %c0_110] : memref<4x256x256xbf16, #tpu.memory_space<vmem>>, vector<1x256x256xbf16>
    %276 = vector.shape_cast %275 : vector<1x256x256xbf16> to vector<256x256xbf16>
    %277 = arith.truncf %188 : vector<32x256xf32> to vector<32x256xbf16>
    %cst_111 = arith.constant dense<0.000000e+00> : vector<32x256xf32>
    %278 = tpu.matmul %274, %277, %cst_111 {dimension_numbers = #tpu.dot_dimension_numbers<[1], [0], [0], [1], [0, 0, 1, 1], [], []>} : vector<32x32xbf16>, vector<32x256xbf16>, vector<32x256xf32> -> vector<32x256xf32>
    %279 = arith.truncf %278 : vector<32x256xf32> to vector<32x256xbf16>
    %cst_112 = arith.constant dense<0.000000e+00> : vector<32x256xf32>
    %280 = tpu.matmul %279, %276, %cst_112 {dimension_numbers = #tpu.dot_dimension_numbers<[1], [0], [0], [1], [0, 0, 1, 1], [], []>} : vector<32x256xbf16>, vector<256x256xbf16>, vector<32x256xf32> -> vector<32x256xf32>
    %281 = arith.truncf %192 : vector<32x256xf32> to vector<32x256xbf16>
    %cst_113 = arith.constant dense<0.000000e+00> : vector<32x256xf32>
    %282 = tpu.matmul %274, %281, %cst_113 {dimension_numbers = #tpu.dot_dimension_numbers<[1], [0], [0], [1], [0, 0, 1, 1], [], []>} : vector<32x32xbf16>, vector<32x256xbf16>, vector<32x256xf32> -> vector<32x256xf32>
    %283 = arith.truncf %282 : vector<32x256xf32> to vector<32x256xbf16>
    %cst_114 = arith.constant dense<0.000000e+00> : vector<32x256xf32>
    %284 = tpu.matmul %283, %276, %cst_114 {dimension_numbers = #tpu.dot_dimension_numbers<[1], [0], [0], [1], [0, 0, 1, 1], [], []>} : vector<32x256xbf16>, vector<256x256xbf16>, vector<32x256xf32> -> vector<32x256xf32>
    %c3 = arith.constant 3 : index
    %c0_115 = arith.constant 0 : index
    %c0_116 = arith.constant 0 : index
    %285 = vector.load %arg3[%c3, %c0_115, %c0_116] : memref<5x32x32xbf16, #tpu.memory_space<vmem>>, vector<1x32x32xbf16>
    %286 = vector.shape_cast %285 : vector<1x32x32xbf16> to vector<32x32xbf16>
    %c3_117 = arith.constant 3 : index
    %c0_118 = arith.constant 0 : index
    %c0_119 = arith.constant 0 : index
    %287 = vector.load %arg4[%c3_117, %c0_118, %c0_119] : memref<5x256x256xbf16, #tpu.memory_space<vmem>>, vector<1x256x256xbf16>
    %288 = vector.shape_cast %287 : vector<1x256x256xbf16> to vector<256x256xbf16>
    %289 = arith.truncf %280 : vector<32x256xf32> to vector<32x256xbf16>
    %cst_120 = arith.constant dense<0.000000e+00> : vector<32x256xf32>
    %290 = tpu.matmul %286, %289, %cst_120 {dimension_numbers = #tpu.dot_dimension_numbers<[1], [0], [0], [1], [0, 0, 1, 1], [], []>} : vector<32x32xbf16>, vector<32x256xbf16>, vector<32x256xf32> -> vector<32x256xf32>
    %291 = arith.truncf %290 : vector<32x256xf32> to vector<32x256xbf16>
    %cst_121 = arith.constant dense<0.000000e+00> : vector<32x256xf32>
    %292 = tpu.matmul %291, %288, %cst_121 {dimension_numbers = #tpu.dot_dimension_numbers<[1], [0], [0], [1], [0, 0, 1, 1], [], []>} : vector<32x256xbf16>, vector<256x256xbf16>, vector<32x256xf32> -> vector<32x256xf32>
    %293 = arith.truncf %284 : vector<32x256xf32> to vector<32x256xbf16>
    %cst_122 = arith.constant dense<0.000000e+00> : vector<32x256xf32>
    %294 = tpu.matmul %286, %293, %cst_122 {dimension_numbers = #tpu.dot_dimension_numbers<[1], [0], [0], [1], [0, 0, 1, 1], [], []>} : vector<32x32xbf16>, vector<32x256xbf16>, vector<32x256xf32> -> vector<32x256xf32>
    %295 = arith.truncf %294 : vector<32x256xf32> to vector<32x256xbf16>
    %cst_123 = arith.constant dense<0.000000e+00> : vector<32x256xf32>
    %296 = tpu.matmul %295, %288, %cst_123 {dimension_numbers = #tpu.dot_dimension_numbers<[1], [0], [0], [1], [0, 0, 1, 1], [], []>} : vector<32x256xbf16>, vector<256x256xbf16>, vector<32x256xf32> -> vector<32x256xf32>
    %297 = arith.mulf %280, %280 : vector<32x256xf32>
    %298 = arith.truncf %297 : vector<32x256xf32> to vector<32x256xbf16>
    %cst_124 = arith.constant dense<0.000000e+00> : vector<32x256xf32>
    %299 = tpu.matmul %286, %298, %cst_124 {dimension_numbers = #tpu.dot_dimension_numbers<[1], [0], [0], [1], [0, 0, 1, 1], [], []>} : vector<32x32xbf16>, vector<32x256xbf16>, vector<32x256xf32> -> vector<32x256xf32>
    %300 = arith.truncf %299 : vector<32x256xf32> to vector<32x256xbf16>
    %cst_125 = arith.constant dense<0.000000e+00> : vector<32x256xf32>
    %301 = tpu.matmul %300, %288, %cst_125 {dimension_numbers = #tpu.dot_dimension_numbers<[1], [0], [0], [1], [0, 0, 1, 1], [], []>} : vector<32x256xbf16>, vector<256x256xbf16>, vector<32x256xf32> -> vector<32x256xf32>
    %302 = arith.mulf %284, %284 : vector<32x256xf32>
    %303 = arith.truncf %302 : vector<32x256xf32> to vector<32x256xbf16>
    %cst_126 = arith.constant dense<0.000000e+00> : vector<32x256xf32>
    %304 = tpu.matmul %286, %303, %cst_126 {dimension_numbers = #tpu.dot_dimension_numbers<[1], [0], [0], [1], [0, 0, 1, 1], [], []>} : vector<32x32xbf16>, vector<32x256xbf16>, vector<32x256xf32> -> vector<32x256xf32>
    %305 = arith.truncf %304 : vector<32x256xf32> to vector<32x256xbf16>
    %cst_127 = arith.constant dense<0.000000e+00> : vector<32x256xf32>
    %306 = tpu.matmul %305, %288, %cst_127 {dimension_numbers = #tpu.dot_dimension_numbers<[1], [0], [0], [1], [0, 0, 1, 1], [], []>} : vector<32x256xbf16>, vector<256x256xbf16>, vector<32x256xf32> -> vector<32x256xf32>
    %307 = arith.mulf %280, %284 : vector<32x256xf32>
    %308 = arith.truncf %307 : vector<32x256xf32> to vector<32x256xbf16>
    %cst_128 = arith.constant dense<0.000000e+00> : vector<32x256xf32>
    %309 = tpu.matmul %286, %308, %cst_128 {dimension_numbers = #tpu.dot_dimension_numbers<[1], [0], [0], [1], [0, 0, 1, 1], [], []>} : vector<32x32xbf16>, vector<32x256xbf16>, vector<32x256xf32> -> vector<32x256xf32>
    %310 = arith.truncf %309 : vector<32x256xf32> to vector<32x256xbf16>
    %cst_129 = arith.constant dense<0.000000e+00> : vector<32x256xf32>
    %311 = tpu.matmul %310, %288, %cst_129 {dimension_numbers = #tpu.dot_dimension_numbers<[1], [0], [0], [1], [0, 0, 1, 1], [], []>} : vector<32x256xbf16>, vector<256x256xbf16>, vector<32x256xf32> -> vector<32x256xf32>
    %312 = arith.mulf %292, %292 : vector<32x256xf32>
    %313 = arith.mulf %296, %296 : vector<32x256xf32>
    %314 = arith.mulf %292, %296 : vector<32x256xf32>
    %315 = arith.subf %301, %312 : vector<32x256xf32>
    %316 = arith.subf %306, %313 : vector<32x256xf32>
    %317 = arith.subf %311, %314 : vector<32x256xf32>
    %cst_130 = arith.constant 2.000000e+00 : f32
    %318 = vector.broadcast %cst_130 : f32 to vector<32x256xf32>
    %319 = arith.mulf %318, %317 : vector<32x256xf32>
    %cst_131 = arith.constant 8.99999984E-4 : f32
    %320 = vector.broadcast %cst_131 : f32 to vector<32x256xf32>
    %321 = arith.addf %319, %320 : vector<32x256xf32>
    %322 = arith.addf %315, %316 : vector<32x256xf32>
    %cst_132 = arith.constant 8.99999984E-4 : f32
    %323 = vector.broadcast %cst_132 : f32 to vector<32x256xf32>
    %324 = arith.addf %322, %323 : vector<32x256xf32>
    %325 = tpu.reciprocal %324 {approx = true} : vector<32x256xf32> -> vector<32x256xf32>
    %326 = arith.mulf %324, %325 : vector<32x256xf32>
    %cst_133 = arith.constant 2.000000e+00 : f32
    %327 = vector.broadcast %cst_133 : f32 to vector<32x256xf32>
    %328 = arith.subf %327, %326 : vector<32x256xf32>
    %329 = arith.mulf %325, %328 : vector<32x256xf32>
    %330 = arith.mulf %321, %329 : vector<32x256xf32>
    %331 = arith.addf %312, %313 : vector<32x256xf32>
    %cst_134 = arith.constant 9.99999974E-5 : f32
    %332 = vector.broadcast %cst_134 : f32 to vector<32x256xf32>
    %333 = arith.addf %331, %332 : vector<32x256xf32>
    %334 = tpu.reciprocal %333 {approx = true} : vector<32x256xf32> -> vector<32x256xf32>
    %335 = arith.mulf %333, %334 : vector<32x256xf32>
    %cst_135 = arith.constant 2.000000e+00 : f32
    %336 = vector.broadcast %cst_135 : f32 to vector<32x256xf32>
    %337 = arith.subf %336, %335 : vector<32x256xf32>
    %338 = arith.mulf %334, %337 : vector<32x256xf32>
    %cst_136 = arith.constant 2.000000e+00 : f32
    %339 = vector.broadcast %cst_136 : f32 to vector<32x256xf32>
    %340 = arith.mulf %339, %314 : vector<32x256xf32>
    %cst_137 = arith.constant 9.99999974E-5 : f32
    %341 = vector.broadcast %cst_137 : f32 to vector<32x256xf32>
    %342 = arith.addf %340, %341 : vector<32x256xf32>
    %343 = arith.mulf %330, %342 : vector<32x256xf32>
    %344 = arith.mulf %343, %338 : vector<32x256xf32>
    %c4_i32 = arith.constant 4 : i32
    %345 = vector.broadcast %c4_i32 : i32 to vector<32x256xi32>
    %346 = arith.cmpi slt, %4, %345 : vector<32x256xi32>
    %c4_i32_138 = arith.constant 4 : i32
    %347 = arith.muli %8, %c4_i32_138 : i32
    %348 = vector.broadcast %347 : i32 to vector<32x256xi32>
    %349 = arith.cmpi slt, %5, %348 : vector<32x256xi32>
    %350 = arith.andi %346, %349 : vector<32x256xi1>
    %351 = arith.extui %350 : vector<32x256xi1> to vector<32x256xi32>
    %352 = arith.sitofp %351 : vector<32x256xi32> to vector<32x256xf32>
    %353 = arith.mulf %344, %352 : vector<32x256xf32>
    %354 = vector.shape_cast %353 : vector<32x256xf32> to vector<1x32x256xf32>
    %cst_139 = arith.constant dense<0.000000e+00> : vector<1xf32>
    %355 = vector.multi_reduction <add>, %354, %cst_139 [1, 2] : vector<1x32x256xf32> to vector<1xf32>
    %356 = vector.shape_cast %355 : vector<1xf32> to vector<1x1x1xf32>
    %357 = vector.extract %356[0, 0, 0] : f32 from vector<1x1x1xf32>
    %358 = vector.broadcast %357 : f32 to vector<1x1xf32>
    %359 = arith.mulf %330, %352 : vector<32x256xf32>
    %360 = vector.shape_cast %359 : vector<32x256xf32> to vector<1x32x256xf32>
    %cst_140 = arith.constant dense<0.000000e+00> : vector<1xf32>
    %361 = vector.multi_reduction <add>, %360, %cst_140 [1, 2] : vector<1x32x256xf32> to vector<1xf32>
    %362 = vector.shape_cast %361 : vector<1xf32> to vector<1x1x1xf32>
    %363 = vector.extract %362[0, 0, 0] : f32 from vector<1x1x1xf32>
    %364 = vector.broadcast %363 : f32 to vector<1x1xf32>
    %c3_141 = arith.constant 3 : index
    %c0_142 = arith.constant 0 : index
    %c0_143 = arith.constant 0 : index
    %365 = vector.load %arg5[%c3_141, %c0_142, %c0_143] : memref<4x32x32xbf16, #tpu.memory_space<vmem>>, vector<1x32x32xbf16>
    %366 = vector.shape_cast %365 : vector<1x32x32xbf16> to vector<32x32xbf16>
    %c3_144 = arith.constant 3 : index
    %c0_145 = arith.constant 0 : index
    %c0_146 = arith.constant 0 : index
    %367 = vector.load %arg6[%c3_144, %c0_145, %c0_146] : memref<4x256x256xbf16, #tpu.memory_space<vmem>>, vector<1x256x256xbf16>
    %368 = vector.shape_cast %367 : vector<1x256x256xbf16> to vector<256x256xbf16>
    %369 = arith.truncf %280 : vector<32x256xf32> to vector<32x256xbf16>
    %cst_147 = arith.constant dense<0.000000e+00> : vector<32x256xf32>
    %370 = tpu.matmul %366, %369, %cst_147 {dimension_numbers = #tpu.dot_dimension_numbers<[1], [0], [0], [1], [0, 0, 1, 1], [], []>} : vector<32x32xbf16>, vector<32x256xbf16>, vector<32x256xf32> -> vector<32x256xf32>
    %371 = arith.truncf %370 : vector<32x256xf32> to vector<32x256xbf16>
    %cst_148 = arith.constant dense<0.000000e+00> : vector<32x256xf32>
    %372 = tpu.matmul %371, %368, %cst_148 {dimension_numbers = #tpu.dot_dimension_numbers<[1], [0], [0], [1], [0, 0, 1, 1], [], []>} : vector<32x256xbf16>, vector<256x256xbf16>, vector<32x256xf32> -> vector<32x256xf32>
    %373 = arith.truncf %284 : vector<32x256xf32> to vector<32x256xbf16>
    %cst_149 = arith.constant dense<0.000000e+00> : vector<32x256xf32>
    %374 = tpu.matmul %366, %373, %cst_149 {dimension_numbers = #tpu.dot_dimension_numbers<[1], [0], [0], [1], [0, 0, 1, 1], [], []>} : vector<32x32xbf16>, vector<32x256xbf16>, vector<32x256xf32> -> vector<32x256xf32>
    %375 = arith.truncf %374 : vector<32x256xf32> to vector<32x256xbf16>
    %cst_150 = arith.constant dense<0.000000e+00> : vector<32x256xf32>
    %376 = tpu.matmul %375, %368, %cst_150 {dimension_numbers = #tpu.dot_dimension_numbers<[1], [0], [0], [1], [0, 0, 1, 1], [], []>} : vector<32x256xbf16>, vector<256x256xbf16>, vector<32x256xf32> -> vector<32x256xf32>
    %c4 = arith.constant 4 : index
    %c0_151 = arith.constant 0 : index
    %c0_152 = arith.constant 0 : index
    %377 = vector.load %arg3[%c4, %c0_151, %c0_152] : memref<5x32x32xbf16, #tpu.memory_space<vmem>>, vector<1x32x32xbf16>
    %378 = vector.shape_cast %377 : vector<1x32x32xbf16> to vector<32x32xbf16>
    %c4_153 = arith.constant 4 : index
    %c0_154 = arith.constant 0 : index
    %c0_155 = arith.constant 0 : index
    %379 = vector.load %arg4[%c4_153, %c0_154, %c0_155] : memref<5x256x256xbf16, #tpu.memory_space<vmem>>, vector<1x256x256xbf16>
    %380 = vector.shape_cast %379 : vector<1x256x256xbf16> to vector<256x256xbf16>
    %381 = arith.truncf %372 : vector<32x256xf32> to vector<32x256xbf16>
    %cst_156 = arith.constant dense<0.000000e+00> : vector<32x256xf32>
    %382 = tpu.matmul %378, %381, %cst_156 {dimension_numbers = #tpu.dot_dimension_numbers<[1], [0], [0], [1], [0, 0, 1, 1], [], []>} : vector<32x32xbf16>, vector<32x256xbf16>, vector<32x256xf32> -> vector<32x256xf32>
    %383 = arith.truncf %382 : vector<32x256xf32> to vector<32x256xbf16>
    %cst_157 = arith.constant dense<0.000000e+00> : vector<32x256xf32>
    %384 = tpu.matmul %383, %380, %cst_157 {dimension_numbers = #tpu.dot_dimension_numbers<[1], [0], [0], [1], [0, 0, 1, 1], [], []>} : vector<32x256xbf16>, vector<256x256xbf16>, vector<32x256xf32> -> vector<32x256xf32>
    %385 = arith.truncf %376 : vector<32x256xf32> to vector<32x256xbf16>
    %cst_158 = arith.constant dense<0.000000e+00> : vector<32x256xf32>
    %386 = tpu.matmul %378, %385, %cst_158 {dimension_numbers = #tpu.dot_dimension_numbers<[1], [0], [0], [1], [0, 0, 1, 1], [], []>} : vector<32x32xbf16>, vector<32x256xbf16>, vector<32x256xf32> -> vector<32x256xf32>
    %387 = arith.truncf %386 : vector<32x256xf32> to vector<32x256xbf16>
    %cst_159 = arith.constant dense<0.000000e+00> : vector<32x256xf32>
    %388 = tpu.matmul %387, %380, %cst_159 {dimension_numbers = #tpu.dot_dimension_numbers<[1], [0], [0], [1], [0, 0, 1, 1], [], []>} : vector<32x256xbf16>, vector<256x256xbf16>, vector<32x256xf32> -> vector<32x256xf32>
    %389 = arith.mulf %372, %372 : vector<32x256xf32>
    %390 = arith.truncf %389 : vector<32x256xf32> to vector<32x256xbf16>
    %cst_160 = arith.constant dense<0.000000e+00> : vector<32x256xf32>
    %391 = tpu.matmul %378, %390, %cst_160 {dimension_numbers = #tpu.dot_dimension_numbers<[1], [0], [0], [1], [0, 0, 1, 1], [], []>} : vector<32x32xbf16>, vector<32x256xbf16>, vector<32x256xf32> -> vector<32x256xf32>
    %392 = arith.truncf %391 : vector<32x256xf32> to vector<32x256xbf16>
    %cst_161 = arith.constant dense<0.000000e+00> : vector<32x256xf32>
    %393 = tpu.matmul %392, %380, %cst_161 {dimension_numbers = #tpu.dot_dimension_numbers<[1], [0], [0], [1], [0, 0, 1, 1], [], []>} : vector<32x256xbf16>, vector<256x256xbf16>, vector<32x256xf32> -> vector<32x256xf32>
    %394 = arith.mulf %376, %376 : vector<32x256xf32>
    %395 = arith.truncf %394 : vector<32x256xf32> to vector<32x256xbf16>
    %cst_162 = arith.constant dense<0.000000e+00> : vector<32x256xf32>
    %396 = tpu.matmul %378, %395, %cst_162 {dimension_numbers = #tpu.dot_dimension_numbers<[1], [0], [0], [1], [0, 0, 1, 1], [], []>} : vector<32x32xbf16>, vector<32x256xbf16>, vector<32x256xf32> -> vector<32x256xf32>
    %397 = arith.truncf %396 : vector<32x256xf32> to vector<32x256xbf16>
    %cst_163 = arith.constant dense<0.000000e+00> : vector<32x256xf32>
    %398 = tpu.matmul %397, %380, %cst_163 {dimension_numbers = #tpu.dot_dimension_numbers<[1], [0], [0], [1], [0, 0, 1, 1], [], []>} : vector<32x256xbf16>, vector<256x256xbf16>, vector<32x256xf32> -> vector<32x256xf32>
    %399 = arith.mulf %372, %376 : vector<32x256xf32>
    %400 = arith.truncf %399 : vector<32x256xf32> to vector<32x256xbf16>
    %cst_164 = arith.constant dense<0.000000e+00> : vector<32x256xf32>
    %401 = tpu.matmul %378, %400, %cst_164 {dimension_numbers = #tpu.dot_dimension_numbers<[1], [0], [0], [1], [0, 0, 1, 1], [], []>} : vector<32x32xbf16>, vector<32x256xbf16>, vector<32x256xf32> -> vector<32x256xf32>
    %402 = arith.truncf %401 : vector<32x256xf32> to vector<32x256xbf16>
    %cst_165 = arith.constant dense<0.000000e+00> : vector<32x256xf32>
    %403 = tpu.matmul %402, %380, %cst_165 {dimension_numbers = #tpu.dot_dimension_numbers<[1], [0], [0], [1], [0, 0, 1, 1], [], []>} : vector<32x256xbf16>, vector<256x256xbf16>, vector<32x256xf32> -> vector<32x256xf32>
    %404 = arith.mulf %384, %384 : vector<32x256xf32>
    %405 = arith.mulf %388, %388 : vector<32x256xf32>
    %406 = arith.mulf %384, %388 : vector<32x256xf32>
    %407 = arith.subf %393, %404 : vector<32x256xf32>
    %408 = arith.subf %398, %405 : vector<32x256xf32>
    %409 = arith.subf %403, %406 : vector<32x256xf32>
    %cst_166 = arith.constant 2.000000e+00 : f32
    %410 = vector.broadcast %cst_166 : f32 to vector<32x256xf32>
    %411 = arith.mulf %410, %409 : vector<32x256xf32>
    %cst_167 = arith.constant 8.99999984E-4 : f32
    %412 = vector.broadcast %cst_167 : f32 to vector<32x256xf32>
    %413 = arith.addf %411, %412 : vector<32x256xf32>
    %414 = arith.addf %407, %408 : vector<32x256xf32>
    %cst_168 = arith.constant 8.99999984E-4 : f32
    %415 = vector.broadcast %cst_168 : f32 to vector<32x256xf32>
    %416 = arith.addf %414, %415 : vector<32x256xf32>
    %417 = tpu.reciprocal %416 {approx = true} : vector<32x256xf32> -> vector<32x256xf32>
    %418 = arith.mulf %416, %417 : vector<32x256xf32>
    %cst_169 = arith.constant 2.000000e+00 : f32
    %419 = vector.broadcast %cst_169 : f32 to vector<32x256xf32>
    %420 = arith.subf %419, %418 : vector<32x256xf32>
    %421 = arith.mulf %417, %420 : vector<32x256xf32>
    %422 = arith.mulf %413, %421 : vector<32x256xf32>
    %423 = arith.addf %404, %405 : vector<32x256xf32>
    %cst_170 = arith.constant 9.99999974E-5 : f32
    %424 = vector.broadcast %cst_170 : f32 to vector<32x256xf32>
    %425 = arith.addf %423, %424 : vector<32x256xf32>
    %426 = tpu.reciprocal %425 {approx = true} : vector<32x256xf32> -> vector<32x256xf32>
    %427 = arith.mulf %425, %426 : vector<32x256xf32>
    %cst_171 = arith.constant 2.000000e+00 : f32
    %428 = vector.broadcast %cst_171 : f32 to vector<32x256xf32>
    %429 = arith.subf %428, %427 : vector<32x256xf32>
    %430 = arith.mulf %426, %429 : vector<32x256xf32>
    %cst_172 = arith.constant 2.000000e+00 : f32
    %431 = vector.broadcast %cst_172 : f32 to vector<32x256xf32>
    %432 = arith.mulf %431, %406 : vector<32x256xf32>
    %cst_173 = arith.constant 9.99999974E-5 : f32
    %433 = vector.broadcast %cst_173 : f32 to vector<32x256xf32>
    %434 = arith.addf %432, %433 : vector<32x256xf32>
    %435 = arith.mulf %422, %434 : vector<32x256xf32>
    %436 = arith.mulf %435, %430 : vector<32x256xf32>
    %c2_i32 = arith.constant 2 : i32
    %437 = vector.broadcast %c2_i32 : i32 to vector<32x256xi32>
    %438 = arith.cmpi slt, %4, %437 : vector<32x256xi32>
    %c2_i32_174 = arith.constant 2 : i32
    %439 = arith.muli %8, %c2_i32_174 : i32
    %440 = vector.broadcast %439 : i32 to vector<32x256xi32>
    %441 = arith.cmpi slt, %5, %440 : vector<32x256xi32>
    %442 = arith.andi %438, %441 : vector<32x256xi1>
    %443 = arith.extui %442 : vector<32x256xi1> to vector<32x256xi32>
    %444 = arith.sitofp %443 : vector<32x256xi32> to vector<32x256xf32>
    %445 = arith.mulf %436, %444 : vector<32x256xf32>
    %446 = vector.shape_cast %445 : vector<32x256xf32> to vector<1x32x256xf32>
    %cst_175 = arith.constant dense<0.000000e+00> : vector<1xf32>
    %447 = vector.multi_reduction <add>, %446, %cst_175 [1, 2] : vector<1x32x256xf32> to vector<1xf32>
    %448 = vector.shape_cast %447 : vector<1xf32> to vector<1x1x1xf32>
    %449 = vector.extract %448[0, 0, 0] : f32 from vector<1x1x1xf32>
    %450 = vector.broadcast %449 : f32 to vector<1x1xf32>
    %451 = arith.mulf %422, %444 : vector<32x256xf32>
    %452 = vector.shape_cast %451 : vector<32x256xf32> to vector<1x32x256xf32>
    %cst_176 = arith.constant dense<0.000000e+00> : vector<1xf32>
    %453 = vector.multi_reduction <add>, %452, %cst_176 [1, 2] : vector<1x32x256xf32> to vector<1xf32>
    %454 = vector.shape_cast %453 : vector<1xf32> to vector<1x1x1xf32>
    %455 = vector.extract %454[0, 0, 0] : f32 from vector<1x1x1xf32>
    %456 = vector.broadcast %455 : f32 to vector<1x1xf32>
    %457 = tpu.concatenate %82, %174, %266, %358, %450 in 1 : vector<1x1xf32>, vector<1x1xf32>, vector<1x1xf32>, vector<1x1xf32>, vector<1x1xf32> -> vector<1x5xf32>
    %c0_177 = arith.constant 0 : index
    %c0_178 = arith.constant 0 : index
    %c0_179 = arith.constant 0 : index
    %458 = vector.load %arg7[%c0_177, %c0_178, %c0_179] : memref<1x1x5xf32, #tpu.memory_space<vmem>>, vector<1x1x5xf32>
    %459 = vector.shape_cast %458 : vector<1x1x5xf32> to vector<1x5xf32>
    %460 = vector.shape_cast %457 : vector<1x5xf32> to vector<1x1x5xf32>
    tpu.vector_store %arg7[%c0_177, %c0_178, %c0_179], %460 {strides = array<i32>} : memref<1x1x5xf32, #tpu.memory_space<vmem>>, vector<1x1x5xf32>,
    %461 = tpu.concatenate %88, %180, %272, %364, %456 in 1 : vector<1x1xf32>, vector<1x1xf32>, vector<1x1xf32>, vector<1x1xf32>, vector<1x1xf32> -> vector<1x5xf32>
    %c0_180 = arith.constant 0 : index
    %c0_181 = arith.constant 0 : index
    %c0_182 = arith.constant 0 : index
    %462 = vector.load %arg8[%c0_180, %c0_181, %c0_182] : memref<1x1x5xf32, #tpu.memory_space<vmem>>, vector<1x1x5xf32>
    %463 = vector.shape_cast %462 : vector<1x1x5xf32> to vector<1x5xf32>
    %464 = vector.shape_cast %461 : vector<1x5xf32> to vector<1x1x5xf32>
    tpu.vector_store %arg8[%c0_180, %c0_181, %c0_182], %464 {strides = array<i32>} : memref<1x1x5xf32, #tpu.memory_space<vmem>>, vector<1x1x5xf32>,
    return
  }
  func.func @transform_0(%arg0: i32) -> (i32, i32, i32) {
    %c0_i32 = arith.constant 0 : i32
    %c0_i32_0 = arith.constant 0 : i32
    %c0_i32_1 = arith.constant 0 : i32
    return %arg0, %c0_i32, %c0_i32_0 : i32, i32, i32
  }
  func.func @transform_1(%arg0: i32) -> (i32, i32, i32) {
    %c0_i32 = arith.constant 0 : i32
    %c0_i32_0 = arith.constant 0 : i32
    %c0_i32_1 = arith.constant 0 : i32
    return %arg0, %c0_i32, %c0_i32_0 : i32, i32, i32
  }
  func.func @transform_2(%arg0: i32) -> (i32, i32, i32) {
    %c0_i32 = arith.constant 0 : i32
    %c0_i32_0 = arith.constant 0 : i32
    %c0_i32_1 = arith.constant 0 : i32
    %c0_i32_2 = arith.constant 0 : i32
    return %c0_i32, %c0_i32_0, %c0_i32_1 : i32, i32, i32
  }
  func.func @transform_3(%arg0: i32) -> (i32, i32, i32) {
    %c0_i32 = arith.constant 0 : i32
    %c0_i32_0 = arith.constant 0 : i32
    %c0_i32_1 = arith.constant 0 : i32
    %c0_i32_2 = arith.constant 0 : i32
    return %c0_i32, %c0_i32_0, %c0_i32_1 : i32, i32, i32
  }
  func.func @transform_4(%arg0: i32) -> (i32, i32, i32) {
    %c0_i32 = arith.constant 0 : i32
    %c0_i32_0 = arith.constant 0 : i32
    %c0_i32_1 = arith.constant 0 : i32
    %c0_i32_2 = arith.constant 0 : i32
    return %c0_i32, %c0_i32_0, %c0_i32_1 : i32, i32, i32
  }
  func.func @transform_5(%arg0: i32) -> (i32, i32, i32) {
    %c0_i32 = arith.constant 0 : i32
    %c0_i32_0 = arith.constant 0 : i32
    %c0_i32_1 = arith.constant 0 : i32
    %c0_i32_2 = arith.constant 0 : i32
    return %c0_i32, %c0_i32_0, %c0_i32_1 : i32, i32, i32
  }
  func.func @transform_6(%arg0: i32) -> (i32, i32, i32) {
    %c0_i32 = arith.constant 0 : i32
    %c0_i32_0 = arith.constant 0 : i32
    %c0_i32_1 = arith.constant 0 : i32
    return %arg0, %c0_i32, %c0_i32_0 : i32, i32, i32
  }
  func.func @transform_7(%arg0: i32) -> (i32, i32, i32) {
    %c0_i32 = arith.constant 0 : i32
    %c0_i32_0 = arith.constant 0 : i32
    %c0_i32_1 = arith.constant 0 : i32
    return %arg0, %c0_i32, %c0_i32_0 : i32, i32, i32
  }
}

</mosaic_0001>

<llo_original>
// kernel: tpu_custom_call.1
$region0: #{tpu_custom_call.1}
  #allocation0 [shape = 'u32[]', space=smem, size = 0x4, offset = 0x4, fixed_abs, tag = 'smem constant byte address 0x4 - core index']
  #allocation1 [shape = 'u32[144,128]{1,0:T(1,128)}', space=vmem, size = 0x12000, scoped, tag = 'internal scratch']
  %s0 = inlined_call_operand.hbm [shape: f32[1,32,256], index: 0, kind: input, shape index: {}]
  %s1 = inlined_call_operand.hbm [shape: f32[1,32,256], index: 1, kind: input, shape index: {}]
  %s2 = inlined_call_operand.hbm [shape: bf16[5,32,32], index: 2, kind: input, shape index: {}]
  %s3 = inlined_call_operand.hbm [shape: bf16[5,256,256], index: 3, kind: input, shape index: {}]
  %s4 = inlined_call_operand.hbm [shape: bf16[4,32,32], index: 4, kind: input, shape index: {}]
  %s5 = inlined_call_operand.hbm [shape: bf16[4,256,256], index: 5, kind: input, shape index: {}]
  %s6 = inlined_call_operand.hbm [shape: f32[1,1,5], index: 6, kind: output, shape index: {0}]
  %s7 = inlined_call_operand.hbm [shape: f32[1,1,5], index: 7, kind: output, shape index: {1}]
  %8 = xla_tuple %s6, %s7
  %s9 = sld [smem:[#allocation0]]
  $region66: #{tpu_custom_call.1} parent=0
    _
  %s11 = ssub.s32 1, %s9
  %s12 = scalar_select 0, %s11, %s9
  $region1: #{tpu_custom_call.1} parent=0
    #allocation2 [shape = 'u8[32768]{0}', space=vmem, size = 0x8000, scoped, tag = 'input window, operand 0, single buffered']
    #allocation3 [shape = 's32[1]{0}', space=sflag, size = 0x4, scoped, tag = 'scoped memory for tpu_custom_call.1']
    #allocation4 [shape = 's32[1]{0}', space=sflag, size = 0x4, scoped, tag = 'scoped memory for tpu_custom_call.1']
    #allocation5 [shape = 'u8[32768]{0}', space=vmem, size = 0x8000, scoped, tag = 'input window, operand 1, single buffered']
    #allocation6 [shape = 's32[1]{0}', space=sflag, size = 0x4, scoped, tag = 'scoped memory for tpu_custom_call.1']
    #allocation7 [shape = 'u8[40960]{0}', space=vmem, size = 0xa000, scoped, tag = 'input window, operand 2, single buffered']
    #allocation8 [shape = 'u8[655360]{0}', space=vmem, size = 0xa0000, scoped, tag = 'input window, operand 3, single buffered']
    #allocation9 [shape = 's32[1]{0}', space=sflag, size = 0x4, scoped, tag = 'scoped memory for tpu_custom_call.1']
    #allocation10 [shape = 'u8[32768]{0}', space=vmem, size = 0x8000, scoped, tag = 'input window, operand 4, single buffered']
    #allocation11 [shape = 'u8[524288]{0}', space=vmem, size = 0x80000, scoped, tag = 'input window, operand 5, single buffered']
    #allocation12 [shape = 's32[1]{0}', space=sflag, size = 0x4, scoped, tag = 'scoped memory for tpu_custom_call.1']
    #allocation13 [shape = 'u8[512]{0}', space=vmem, size = 0x400, scoped, tag = 'output window, operand 0, single buffered']
    #allocation14 [shape = 'u8[512]{0}', space=vmem, size = 0x400, scoped, tag = 'output window, operand 1, single buffered']
    #allocation15 [shape = 's32[1]{0}', space=sflag, size = 0x4, scoped, tag = 'scoped memory for tpu_custom_call.1']
    %13 = vsyncpa [#allocation3], 0
    %14 = vsyncpa [#allocation6], 0
    %15 = vsyncpa [#allocation9], 0
    %16 = vsyncpa [#allocation12], 0
    %17 = vsyncpa [#allocation4], 0
    %18 = vsyncpa [#allocation15], 0
    // Predicated region
    $region2: #{tpu_custom_call.1} parent=1 // pred_check
      _
    $region3: #{tpu_custom_call.1} parent=1 // pred_check_branch
      %20 = sbr.rel (0) target = $region5
    $region4: #{tpu_custom_call.1} parent=1 // pred_region
      %s22 = ssub.s32 1024, 1024
      %23 = vsyncadd [#allocation3], %s22
      %s24 = sshll.u32 [#allocation2], 4
      %s25 = int_to_ptr.vmem [resolvable:$true] %s24
      %30 = dma.hbm_to_vmem [thread:$0]  %s0, 1024, %s25, [#allocation3], 256, 256, 16
    $region5: #{tpu_custom_call.1} parent=1 // pred_fallthru
      _
    // Predicated region
    $region6: #{tpu_custom_call.1} parent=1 // pred_check
      _
    $region7: #{tpu_custom_call.1} parent=1 // pred_check_branch
      %32 = sbr.rel (0) target = $region9
    $region8: #{tpu_custom_call.1} parent=1 // pred_region
      %s34 = ssub.s32 1024, 1024
      %35 = vsyncadd [#allocation6], %s34
      %s36 = sshll.u32 [#allocation5], 4
      %s37 = int_to_ptr.vmem [resolvable:$true] %s36
      %42 = dma.hbm_to_vmem [thread:$0]  %s1, 1024, %s37, [#allocation6], 256, 256, 16
    $region9: #{tpu_custom_call.1} parent=1 // pred_fallthru
      _
    // Predicated region
    $region10: #{tpu_custom_call.1} parent=1 // pred_check
      _
    $region11: #{tpu_custom_call.1} parent=1 // pred_check_branch
      %44 = sbr.rel (0) target = $region13
    $region12: #{tpu_custom_call.1} parent=1 // pred_region
      %s46 = ssub.s32 1280, 1280
      %47 = vsyncadd [#allocation6], %s46
      %s48 = sshll.u32 [#allocation7], 4
      %s49 = int_to_ptr.vmem [resolvable:$true] %s48
      %54 = dma.hbm_to_vmem [thread:$0]  %s2, 1280, %s49, [#allocation6], 64, 64, 4
    $region13: #{tpu_custom_call.1} parent=1 // pred_fallthru
      _
    // Predicated region
    $region14: #{tpu_custom_call.1} parent=1 // pred_check
      _
    $region15: #{tpu_custom_call.1} parent=1 // pred_check_branch
      %56 = sbr.rel (0) target = $region17
    $region16: #{tpu_custom_call.1} parent=1 // pred_region
      %s58 = ssub.s32 20480, 20480
      %59 = vsyncadd [#allocation9], %s58
      %s60 = sshll.u32 [#allocation8], 4
      %s61 = int_to_ptr.vmem [resolvable:$true] %s60
      %66 = dma.hbm_to_vmem [thread:$0]  %s3, 20480, %s61, [#allocation9], 128, 128, 8
    $region17: #{tpu_custom_call.1} parent=1 // pred_fallthru
      _
    // Predicated region
    $region18: #{tpu_custom_call.1} parent=1 // pred_check
      _
    $region19: #{tpu_custom_call.1} parent=1 // pred_check_branch
      %68 = sbr.rel (0) target = $region21
    $region20: #{tpu_custom_call.1} parent=1 // pred_region
      %s70 = ssub.s32 1024, 1024
      %71 = vsyncadd [#allocation9], %s70
      %s72 = sshll.u32 [#allocation10], 4
      %s73 = int_to_ptr.vmem [resolvable:$true] %s72
      %78 = dma.hbm_to_vmem [thread:$0]  %s4, 1024, %s73, [#allocation9], 64, 64, 4
    $region21: #{tpu_custom_call.1} parent=1 // pred_fallthru
      _
    // Predicated region
    $region22: #{tpu_custom_call.1} parent=1 // pred_check
      _
    $region23: #{tpu_custom_call.1} parent=1 // pred_check_branch
      %80 = sbr.rel (0) target = $region25
    $region24: #{tpu_custom_call.1} parent=1 // pred_region
      %s82 = ssub.s32 16384, 16384
      %83 = vsyncadd [#allocation12], %s82
      %s84 = sshll.u32 [#allocation11], 4
      %s85 = int_to_ptr.vmem [resolvable:$true] %s84
      %90 = dma.hbm_to_vmem [thread:$0]  %s5, 16384, %s85, [#allocation12], 128, 128, 8
    $region25: #{tpu_custom_call.1} parent=1 // pred_fallthru
      _
    // Predicated region
    $region26: #{tpu_custom_call.1} parent=1 // pred_check
      _
    $region27: #{tpu_custom_call.1} parent=1 // pred_check_branch
      %92 = sbr.rel (0) target = $region29
    $region28: #{tpu_custom_call.1} parent=1 // pred_region
      %93 = dma.done [#allocation3], 1024
    $region29: #{tpu_custom_call.1} parent=1 // pred_fallthru
      _
    // Predicated region
    $region30: #{tpu_custom_call.1} parent=1 // pred_check
      _
    $region31: #{tpu_custom_call.1} parent=1 // pred_check_branch
      %95 = sbr.rel (0) target = $region33
    $region32: #{tpu_custom_call.1} parent=1 // pred_region
      %96 = dma.done [#allocation6], 1024
    $region33: #{tpu_custom_call.1} parent=1 // pred_fallthru
      _
    // Predicated region
    $region34: #{tpu_custom_call.1} parent=1 // pred_check
      _
    $region35: #{tpu_custom_call.1} parent=1 // pred_check_branch
      %98 = sbr.rel (0) target = $region37
    $region36: #{tpu_custom_call.1} parent=1 // pred_region
      %99 = dma.done [#allocation6], 1280
    $region37: #{tpu_custom_call.1} parent=1 // pred_fallthru
      _
    // Predicated region
    $region38: #{tpu_custom_call.1} parent=1 // pred_check
      _
    $region39: #{tpu_custom_call.1} parent=1 // pred_check_branch
      %101 = sbr.rel (0) target = $region41
    $region40: #{tpu_custom_call.1} parent=1 // pred_region
      %102 = dma.done [#allocation9], 20480
    $region41: #{tpu_custom_call.1} parent=1 // pred_fallthru
      _
    // Predicated region
    $region42: #{tpu_custom_call.1} parent=1 // pred_check
      _
    $region43: #{tpu_custom_call.1} parent=1 // pred_check_branch
      %104 = sbr.rel (0) target = $region45
    $region44: #{tpu_custom_call.1} parent=1 // pred_region
      %105 = dma.done [#allocation9], 1024
    $region45: #{tpu_custom_call.1} parent=1 // pred_fallthru
      _
    // Predicated region
    $region46: #{tpu_custom_call.1} parent=1 // pred_check
      _
    $region47: #{tpu_custom_call.1} parent=1 // pred_check_branch
      %107 = sbr.rel (0) target = $region49
    $region48: #{tpu_custom_call.1} parent=1 // pred_region
      %108 = dma.done [#allocation12], 16384
    $region49: #{tpu_custom_call.1} parent=1 // pred_fallthru
      _
    %v110 = vld [vmem:[#allocation2] sm:$0xff]
    %v111 = vld [vmem:[#allocation2 + $0x8] sm:$0xff]
    %v112 = vld [vmem:[#allocation2 + $0x10] sm:$0xff]
    %v113 = vld [vmem:[#allocation2 + $0x18] sm:$0xff]
    %v114 = vld [vmem:[#allocation2 + $0x20] sm:$0xff]
    %v115 = vld [vmem:[#allocation2 + $0x28] sm:$0xff]
    %v116 = vld [vmem:[#allocation2 + $0x30] sm:$0xff]
    %v117 = vld [vmem:[#allocation2 + $0x38] sm:$0xff]
    %v118 = vld [vmem:[#allocation5] sm:$0xff]
    %v119 = vld [vmem:[#allocation5 + $0x8] sm:$0xff]
    %v120 = vld [vmem:[#allocation5 + $0x10] sm:$0xff]
    %v121 = vld [vmem:[#allocation5 + $0x18] sm:$0xff]
    %v122 = vld [vmem:[#allocation5 + $0x20] sm:$0xff]
    %v123 = vld [vmem:[#allocation5 + $0x28] sm:$0xff]
    %v124 = vld [vmem:[#allocation5 + $0x30] sm:$0xff]
    %v125 = vld [vmem:[#allocation5 + $0x38] sm:$0xff]
    %v126 = vlaneseq
    %v127 = vshrl.u32 %v126, 7
    %v128 = vadd.s32 %v127, 8
    %v129 = vadd.s32 %v127, 16
    %v130 = vadd.s32 %v127, 24
    %v131 = vlaneseq
    %v132 = vand.u32 %v131, 127
    %v133 = vadd.s32 %v132, 128
    %s134 = smul.u32 0, 8
    %s135 = ssub.s32 6, %s134
    %p136 = scmp.lt.s32.totalorder %s135, 8
    %s137 = scalar_select %p136, %s135, 8
    %v138 = vld [vmem:[#allocation7] sm:$0xf]
    %v139 = vld [vmem:[#allocation7 + $0x4] sm:$0xf]
    %v140 = vld [vmem:[#allocation7 + $0x8] sm:$0xf]
    %v141 = vld [vmem:[#allocation7 + $0xc] sm:$0xf]
    %v142 = vld [vmem:[#allocation8] sm:$0xff]
    %v143 = vld [vmem:[#allocation8 + $0x8] sm:$0xff]
    %v144 = vld [vmem:[#allocation8 + $0x10] sm:$0xff]
    %v145 = vld [vmem:[#allocation8 + $0x18] sm:$0xff]
    %v146 = vld [vmem:[#allocation8 + $0x20] sm:$0xff]
    %v147 = vld [vmem:[#allocation8 + $0x28] sm:$0xff]
    %v148 = vld [vmem:[#allocation8 + $0x30] sm:$0xff]
    %v149 = vld [vmem:[#allocation8 + $0x38] sm:$0xff]
    %v150 = vld [vmem:[#allocation8 + $0x40] sm:$0xff]
    %v151 = vld [vmem:[#allocation8 + $0x48] sm:$0xff]
    %v152 = vld [vmem:[#allocation8 + $0x50] sm:$0xff]
    %v153 = vld [vmem:[#allocation8 + $0x58] sm:$0xff]
    %v154 = vld [vmem:[#allocation8 + $0x60] sm:$0xff]
    %v155 = vld [vmem:[#allocation8 + $0x68] sm:$0xff]
    %v156 = vld [vmem:[#allocation8 + $0x70] sm:$0xff]
    %v157 = vld [vmem:[#allocation8 + $0x78] sm:$0xff]
    %v158 = vld [vmem:[#allocation8 + $0x80] sm:$0xff]
    %v159 = vld [vmem:[#allocation8 + $0x88] sm:$0xff]
    %v160 = vld [vmem:[#allocation8 + $0x90] sm:$0xff]
    %v161 = vld [vmem:[#allocation8 + $0x98] sm:$0xff]
    %v162 = vld [vmem:[#allocation8 + $0xa0] sm:$0xff]
    %v163 = vld [vmem:[#allocation8 + $0xa8] sm:$0xff]
    %v164 = vld [vmem:[#allocation8 + $0xb0] sm:$0xff]
    %v165 = vld [vmem:[#allocation8 + $0xb8] sm:$0xff]
    %v166 = vld [vmem:[#allocation8 + $0xc0] sm:$0xff]
    %v167 = vld [vmem:[#allocation8 + $0xc8] sm:$0xff]
    %v168 = vld [vmem:[#allocation8 + $0xd0] sm:$0xff]
    %v169 = vld [vmem:[#allocation8 + $0xd8] sm:$0xff]
    %v170 = vld [vmem:[#allocation8 + $0xe0] sm:$0xff]
    %v171 = vld [vmem:[#allocation8 + $0xe8] sm:$0xff]
    %v172 = vld [vmem:[#allocation8 + $0xf0] sm:$0xff]
    %v173 = vld [vmem:[#allocation8 + $0xf8] sm:$0xff]
    %v174 = vpack.c.bf16 %v112, %v110
    %v175 = vpack.c.bf16 %v113, %v111
    %v176 = vpack.c.bf16 %v116, %v114
    %v177 = vpack.c.bf16 %v117, %v115
    %v182 = vunpack.c.l.b16 %v138
    %v183 = vunpack.c.l.b16 %v139
    %v184 = vunpack.c.l.b16 %v140
    %v185 = vunpack.c.l.b16 %v141
    %v186 = vpack.c.b16 %v183, %v182
    %v187 = vpack.c.b16 %v185, %v184
    %vm188 = vcmask 261120
    %v190 = vsel %vm188, %v186, 0
    %v193 = vsel %vm188, %v187, 0
    %195 = vmatprep.subr.bf16.mxu0 %v175
    %196 = vmatpush1.bf16.msra.mxu0 %v174
    %197 = vmatprep.subr.bf16.mxu0 %v177
    %198 = vmatpush1.bf16.msra.mxu0 %v176
    %199 = vmatprep.subr.bf16.mxu0 0
    %200 = vmatpush1.bf16.msra.mxu0 0
    %201 = vmatprep.subr.bf16.mxu0 0
    %202 = vmatpush1.bf16.msra.mxu0 0
    %203 = vmatprep.subr.bf16.mxu0 0
    %204 = vmatpush1.bf16.msra.mxu0 0
    %205 = vmatprep.subr.bf16.mxu0 0
    %206 = vmatpush1.bf16.msra.mxu0 0
    %207 = vmatprep.subr.bf16.mxu0 0
    %208 = vmatpush1.bf16.msra.mxu0 0
    %209 = vmatprep.subr.bf16.mxu0 0
    %210 = vmatpush1.bf16.msra.mxu0 0
    %211 = vmatprep.subr.bf16.mxu0 0
    %212 = vmatpush1.bf16.msra.mxu0 0
    %213 = vmatprep.subr.bf16.mxu0 0
    %214 = vmatpush1.bf16.msra.mxu0 0
    %215 = vmatprep.subr.bf16.mxu0 0
    %216 = vmatpush1.bf16.msra.mxu0 0
    %217 = vmatprep.subr.bf16.mxu0 0
    %218 = vmatpush1.bf16.msra.mxu0 0
    %219 = vmatprep.subr.bf16.mxu0 0
    %220 = vmatpush1.bf16.msra.mxu0 0
    %221 = vmatprep.subr.bf16.mxu0 0
    %222 = vmatpush1.bf16.msra.mxu0 0
    %223 = vmatprep.subr.bf16.mxu0 0
    %224 = vmatpush1.bf16.msra.mxu0 0
    %225 = vmatprep.subr.bf16.mxu0 0
    %226 = vmatpush1.bf16.msra.mxu0 0
    %227 = vmatprep.mubr.bf16.mxu0 0
    %228 = vmatmul.mubr.bf16.gmra.mrb[0].mxu0 %v190
    %v229 = vpop.f32.mrb[0].mxu0
    %v230 = vadd.f32 0.0, %v229
    %v231 = vpop.f32.mrb[0].mxu0
    %v232 = vadd.f32 0.0, %v231
    %v233 = vpop.f32.mrb[0].mxu0
    %v234 = vadd.f32 0.0, %v233
    %v235 = vpop.f32.mrb[0].mxu0
    %v236 = vadd.f32 0.0, %v235
    %237 = vmatprep.mubr.bf16.mxu0 0
    %238 = vmatmul.mubr.bf16.gmra.mrb[0].mxu0 %v193
    %v239 = vpop.f32.mrb[0].mxu0
    %v240 = vadd.f32 0.0, %v239
    %v241 = vpop.f32.mrb[0].mxu0
    %v242 = vadd.f32 0.0, %v241
    %v243 = vpop.f32.mrb[0].mxu0
    %v244 = vadd.f32 0.0, %v243
    %v245 = vpop.f32.mrb[0].mxu0
    %v246 = vadd.f32 0.0, %v245
    %247 = vdwg.mxu0
    %v248 = vpack.c.bf16 %v234, %v230
    %v249 = vpack.c.bf16 %v236, %v232
    %v250 = vpack.c.bf16 %v244, %v240
    %v251 = vpack.c.bf16 %v246, %v242
    %v284 = vunpack.c.l.b16 %v142
    %v285 = vunpack.c.h.b16 %v142
    %v286 = vunpack.c.l.b16 %v143
    %v287 = vunpack.c.h.b16 %v143
    %v288 = vunpack.c.l.b16 %v144
    %v289 = vunpack.c.h.b16 %v144
    %v290 = vunpack.c.l.b16 %v145
    %v291 = vunpack.c.h.b16 %v145
    %v292 = vunpack.c.l.b16 %v146
    %v293 = vunpack.c.h.b16 %v146
    %v294 = vunpack.c.l.b16 %v147
    %v295 = vunpack.c.h.b16 %v147
    %v296 = vunpack.c.l.b16 %v148
    %v297 = vunpack.c.h.b16 %v148
    %v298 = vunpack.c.l.b16 %v149
    %v299 = vunpack.c.h.b16 %v149
    %v300 = vunpack.c.l.b16 %v150
    %v301 = vunpack.c.h.b16 %v150
    %v302 = vunpack.c.l.b16 %v151
    %v303 = vunpack.c.h.b16 %v151
    %v304 = vunpack.c.l.b16 %v152
    %v305 = vunpack.c.h.b16 %v152
    %v306 = vunpack.c.l.b16 %v153
    %v307 = vunpack.c.h.b16 %v153
    %v308 = vunpack.c.l.b16 %v154
    %v309 = vunpack.c.h.b16 %v154
    %v310 = vunpack.c.l.b16 %v155
    %v311 = vunpack.c.h.b16 %v155
    %v312 = vunpack.c.l.b16 %v156
    %v313 = vunpack.c.h.b16 %v156
    %v314 = vunpack.c.l.b16 %v157
    %v315 = vunpack.c.h.b16 %v157
    %v316 = vunpack.c.l.b16 %v158
    %v317 = vunpack.c.h.b16 %v158
    %v318 = vunpack.c.l.b16 %v159
    %v319 = vunpack.c.h.b16 %v159
    %v320 = vunpack.c.l.b16 %v160
    %v321 = vunpack.c.h.b16 %v160
    %v322 = vunpack.c.l.b16 %v161
    %v323 = vunpack.c.h.b16 %v161
    %v324 = vunpack.c.l.b16 %v162
    %v325 = vunpack.c.h.b16 %v162
    %v326 = vunpack.c.l.b16 %v163
    %v327 = vunpack.c.h.b16 %v163
    %v328 = vunpack.c.l.b16 %v164
    %v329 = vunpack.c.h.b16 %v164
    %v330 = vunpack.c.l.b16 %v165
    %v331 = vunpack.c.h.b16 %v165
    %v332 = vunpack.c.l.b16 %v166
    %v333 = vunpack.c.h.b16 %v166
    %v334 = vunpack.c.l.b16 %v167
    %v335 = vunpack.c.h.b16 %v167
    %v336 = vunpack.c.l.b16 %v168
    %v337 = vunpack.c.h.b16 %v168
    %v338 = vunpack.c.l.b16 %v169
    %v339 = vunpack.c.h.b16 %v169
    %v340 = vunpack.c.l.b16 %v170
    %v341 = vunpack.c.h.b16 %v170
    %v342 = vunpack.c.l.b16 %v171
    %v343 = vunpack.c.h.b16 %v171
    %v344 = vunpack.c.l.b16 %v172
    %v345 = vunpack.c.h.b16 %v172
    %v346 = vunpack.c.l.b16 %v173
    %v347 = vunpack.c.h.b16 %v173
    %v348 = vpack.c.b16 %v286, %v284
    %v349 = vpack.c.b16 %v287, %v285
    %v350 = vpack.c.b16 %v290, %v288
    %v351 = vpack.c.b16 %v291, %v289
    %v352 = vpack.c.b16 %v294, %v292
    %v353 = vpack.c.b16 %v295, %v293
    %v354 = vpack.c.b16 %v298, %v296
    %v355 = vpack.c.b16 %v299, %v297
    %v356 = vpack.c.b16 %v302, %v300
    %v357 = vpack.c.b16 %v303, %v301
    %v358 = vpack.c.b16 %v306, %v304
    %v359 = vpack.c.b16 %v307, %v305
    %v360 = vpack.c.b16 %v310, %v308
    %v361 = vpack.c.b16 %v311, %v309
    %v362 = vpack.c.b16 %v314, %v312
    %v363 = vpack.c.b16 %v315, %v313
    %v364 = vpack.c.b16 %v318, %v316
    %v365 = vpack.c.b16 %v319, %v317
    %v366 = vpack.c.b16 %v322, %v320
    %v367 = vpack.c.b16 %v323, %v321
    %v368 = vpack.c.b16 %v326, %v324
    %v369 = vpack.c.b16 %v327, %v325
    %v370 = vpack.c.b16 %v330, %v328
    %v371 = vpack.c.b16 %v331, %v329
    %v372 = vpack.c.b16 %v334, %v332
    %v373 = vpack.c.b16 %v335, %v333
    %v374 = vpack.c.b16 %v338, %v336
    %v375 = vpack.c.b16 %v339, %v337
    %v376 = vpack.c.b16 %v342, %v340
    %v377 = vpack.c.b16 %v343, %v341
    %v378 = vpack.c.b16 %v346, %v344
    %v379 = vpack.c.b16 %v347, %v345
    %412 = vmatprep.subr.bf16.mxu0 %v349
    %413 = vmatpush1.bf16.msra.mxu0 %v348
    %414 = vmatprep.subr.bf16.mxu0 %v351
    %415 = vmatpush1.bf16.msra.mxu0 %v350
    %416 = vmatprep.subr.bf16.mxu0 %v353
    %417 = vmatpush1.bf16.msra.mxu0 %v352
    %418 = vmatprep.subr.bf16.mxu0 %v355
    %419 = vmatpush1.bf16.msra.mxu0 %v354
    %420 = vmatprep.subr.bf16.mxu0 %v357
    %421 = vmatpush1.bf16.msra.mxu0 %v356
    %422 = vmatprep.subr.bf16.mxu0 %v359
    %423 = vmatpush1.bf16.msra.mxu0 %v358
    %424 = vmatprep.subr.bf16.mxu0 %v361
    %425 = vmatpush1.bf16.msra.mxu0 %v360
    %426 = vmatprep.subr.bf16.mxu0 %v363
    %427 = vmatpush1.bf16.msra.mxu0 %v362
    %428 = vmatprep.subr.bf16.mxu0 %v365
    %429 = vmatpush1.bf16.msra.mxu0 %v364
    %430 = vmatprep.subr.bf16.mxu0 %v367
    %431 = vmatpush1.bf16.msra.mxu0 %v366
    %432 = vmatprep.subr.bf16.mxu0 %v369
    %433 = vmatpush1.bf16.msra.mxu0 %v368
    %434 = vmatprep.subr.bf16.mxu0 %v371
    %435 = vmatpush1.bf16.msra.mxu0 %v370
    %436 = vmatprep.subr.bf16.mxu0 %v373
    %437 = vmatpush1.bf16.msra.mxu0 %v372
    %438 = vmatprep.subr.bf16.mxu0 %v375
    %439 = vmatpush1.bf16.msra.mxu0 %v374
    %440 = vmatprep.subr.bf16.mxu0 %v377
    %441 = vmatpush1.bf16.msra.mxu0 %v376
    %442 = vmatprep.subr.bf16.mxu0 %v379
    %443 = vmatpush1.bf16.msra.mxu0 %v378
    %444 = vmatprep.mubr.bf16.mxu0 %v249
    %445 = vmatmul.mubr.bf16.gmra.mrb[0].mxu0 %v248
    %v446 = vpop.f32.mrb[0].mxu0
    %v447 = vadd.f32 0.0, %v446
    %v448 = vpop.f32.mrb[0].mxu0
    %v449 = vadd.f32 0.0, %v448
    %v450 = vpop.f32.mrb[0].mxu0
    %v451 = vadd.f32 0.0, %v450
    %v452 = vpop.f32.mrb[0].mxu0
    %v453 = vadd.f32 0.0, %v452
    %454 = vmatprep.mubr.bf16.mxu0 %v251
    %455 = vmatmul.mubr.bf16.gmra.mrb[0].mxu0 %v250
    %v456 = vpop.f32.mrb[0].mxu0
    %v457 = vadd.f32 0.0, %v456
    %v458 = vpop.f32.mrb[0].mxu0
    %v459 = vadd.f32 0.0, %v458
    %v460 = vpop.f32.mrb[0].mxu0
    %v461 = vadd.f32 0.0, %v460
    %v462 = vpop.f32.mrb[0].mxu0
    %v463 = vadd.f32 0.0, %v462
    %464 = vdwg.mxu0
    %v465 = vpack.c.bf16 %v120, %v118
    %v466 = vpack.c.bf16 %v121, %v119
    %v467 = vpack.c.bf16 %v124, %v122
    %v468 = vpack.c.bf16 %v125, %v123
    %469 = vmatprep.subr.bf16.mxu0 %v466
    %470 = vmatpush1.bf16.msra.mxu0 %v465
    %471 = vmatprep.subr.bf16.mxu0 %v468
    %472 = vmatpush1.bf16.msra.mxu0 %v467
    %473 = vmatprep.subr.bf16.mxu0 0
    %474 = vmatpush1.bf16.msra.mxu0 0
    %475 = vmatprep.subr.bf16.mxu0 0
    %476 = vmatpush1.bf16.msra.mxu0 0
    %477 = vmatprep.subr.bf16.mxu0 0
    %478 = vmatpush1.bf16.msra.mxu0 0
    %479 = vmatprep.subr.bf16.mxu0 0
    %480 = vmatpush1.bf16.msra.mxu0 0
    %481 = vmatprep.subr.bf16.mxu0 0
    %482 = vmatpush1.bf16.msra.mxu0 0
    %483 = vmatprep.subr.bf16.mxu0 0
    %484 = vmatpush1.bf16.msra.mxu0 0
    %485 = vmatprep.subr.bf16.mxu0 0
    %486 = vmatpush1.bf16.msra.mxu0 0
    %487 = vmatprep.subr.bf16.mxu0 0
    %488 = vmatpush1.bf16.msra.mxu0 0
    %489 = vmatprep.subr.bf16.mxu0 0
    %490 = vmatpush1.bf16.msra.mxu0 0
    %491 = vmatprep.subr.bf16.mxu0 0
    %492 = vmatpush1.bf16.msra.mxu0 0
    %493 = vmatprep.subr.bf16.mxu0 0
    %494 = vmatpush1.bf16.msra.mxu0 0
    %495 = vmatprep.subr.bf16.mxu0 0
    %496 = vmatpush1.bf16.msra.mxu0 0
    %497 = vmatprep.subr.bf16.mxu0 0
    %498 = vmatpush1.bf16.msra.mxu0 0
    %499 = vmatprep.subr.bf16.mxu0 0
    %500 = vmatpush1.bf16.msra.mxu0 0
    %501 = vmatprep.mubr.bf16.mxu0 0
    %502 = vmatmul.mubr.bf16.gmra.mrb[0].mxu0 %v190
    %v503 = vpop.f32.mrb[0].mxu0
    %v504 = vadd.f32 0.0, %v503
    %v505 = vpop.f32.mrb[0].mxu0
    %v506 = vadd.f32 0.0, %v505
    %v507 = vpop.f32.mrb[0].mxu0
    %v508 = vadd.f32 0.0, %v507
    %v509 = vpop.f32.mrb[0].mxu0
    %v510 = vadd.f32 0.0, %v509
    %511 = vmatprep.mubr.bf16.mxu0 0
    %512 = vmatmul.mubr.bf16.gmra.mrb[0].mxu0 %v193
    %v513 = vpop.f32.mrb[0].mxu0
    %v514 = vadd.f32 0.0, %v513
    %v515 = vpop.f32.mrb[0].mxu0
    %v516 = vadd.f32 0.0, %v515
    %v517 = vpop.f32.mrb[0].mxu0
    %v518 = vadd.f32 0.0, %v517
    %v519 = vpop.f32.mrb[0].mxu0
    %v520 = vadd.f32 0.0, %v519
    %521 = vdwg.mxu0
    %v522 = vpack.c.bf16 %v508, %v504
    %v523 = vpack.c.bf16 %v510, %v506
    %v524 = vpack.c.bf16 %v518, %v514
    %v525 = vpack.c.bf16 %v520, %v516
    %526 = vmatprep.subr.bf16.mxu0 %v349
    %527 = vmatpush1.bf16.msra.mxu0 %v348
    %528 = vmatprep.subr.bf16.mxu0 %v351
    %529 = vmatpush1.bf16.msra.mxu0 %v350
    %530 = vmatprep.subr.bf16.mxu0 %v353
    %531 = vmatpush1.bf16.msra.mxu0 %v352
    %532 = vmatprep.subr.bf16.mxu0 %v355
    %533 = vmatpush1.bf16.msra.mxu0 %v354
    %534 = vmatprep.subr.bf16.mxu0 %v357
    %535 = vmatpush1.bf16.msra.mxu0 %v356
    %536 = vmatprep.subr.bf16.mxu0 %v359
    %537 = vmatpush1.bf16.msra.mxu0 %v358
    %538 = vmatprep.subr.bf16.mxu0 %v361
    %539 = vmatpush1.bf16.msra.mxu0 %v360
    %540 = vmatprep.subr.bf16.mxu0 %v363
    %541 = vmatpush1.bf16.msra.mxu0 %v362
    %542 = vmatprep.subr.bf16.mxu0 %v365
    %543 = vmatpush1.bf16.msra.mxu0 %v364
    %544 = vmatprep.subr.bf16.mxu0 %v367
    %545 = vmatpush1.bf16.msra.mxu0 %v366
    %546 = vmatprep.subr.bf16.mxu0 %v369
    %547 = vmatpush1.bf16.msra.mxu0 %v368
    %548 = vmatprep.subr.bf16.mxu0 %v371
    %549 = vmatpush1.bf16.msra.mxu0 %v370
    %550 = vmatprep.subr.bf16.mxu0 %v373
    %551 = vmatpush1.bf16.msra.mxu0 %v372
    %552 = vmatprep.subr.bf16.mxu0 %v375
    %553 = vmatpush1.bf16.msra.mxu0 %v374
    %554 = vmatprep.subr.bf16.mxu0 %v377
    %555 = vmatpush1.bf16.msra.mxu0 %v376
    %556 = vmatprep.subr.bf16.mxu0 %v379
    %557 = vmatpush1.bf16.msra.mxu0 %v378
    %558 = vmatprep.mubr.bf16.mxu0 %v523
    %559 = vmatmul.mubr.bf16.gmra.mrb[0].mxu0 %v522
    %v560 = vpop.f32.mrb[0].mxu0
    %v561 = vadd.f32 0.0, %v560
    %v562 = vpop.f32.mrb[0].mxu0
    %v563 = vadd.f32 0.0, %v562
    %v564 = vpop.f32.mrb[0].mxu0
    %v565 = vadd.f32 0.0, %v564
    %v566 = vpop.f32.mrb[0].mxu0
    %v567 = vadd.f32 0.0, %v566
    %568 = vmatprep.mubr.bf16.mxu0 %v525
    %569 = vmatmul.mubr.bf16.gmra.mrb[0].mxu0 %v524
    %v570 = vpop.f32.mrb[0].mxu0
    %v571 = vadd.f32 0.0, %v570
    %v572 = vpop.f32.mrb[0].mxu0
    %v573 = vadd.f32 0.0, %v572
    %v574 = vpop.f32.mrb[0].mxu0
    %v575 = vadd.f32 0.0, %v574
    %v576 = vpop.f32.mrb[0].mxu0
    %v577 = vadd.f32 0.0, %v576
    %578 = vdwg.mxu0
    %v579 = vmul.f32 %v110, %v110
    %v580 = vmul.f32 %v111, %v111
    %v581 = vmul.f32 %v112, %v112
    %v582 = vmul.f32 %v113, %v113
    %v583 = vmul.f32 %v114, %v114
    %v584 = vmul.f32 %v115, %v115
    %v585 = vmul.f32 %v116, %v116
    %v586 = vmul.f32 %v117, %v117
    %v587 = vpack.c.bf16 %v581, %v579
    %v588 = vpack.c.bf16 %v582, %v580
    %v589 = vpack.c.bf16 %v585, %v583
    %v590 = vpack.c.bf16 %v586, %v584
    %591 = vmatprep.subr.bf16.mxu0 %v588
    %592 = vmatpush1.bf16.msra.mxu0 %v587
    %593 = vmatprep.subr.bf16.mxu0 %v590
    %594 = vmatpush1.bf16.msra.mxu0 %v589
    %595 = vmatprep.subr.bf16.mxu0 0
    %596 = vmatpush1.bf16.msra.mxu0 0
    %597 = vmatprep.subr.bf16.mxu0 0
    %598 = vmatpush1.bf16.msra.mxu0 0
    %599 = vmatprep.subr.bf16.mxu0 0
    %600 = vmatpush1.bf16.msra.mxu0 0
    %601 = vmatprep.subr.bf16.mxu0 0
    %602 = vmatpush1.bf16.msra.mxu0 0
    %603 = vmatprep.subr.bf16.mxu0 0
    %604 = vmatpush1.bf16.msra.mxu0 0
    %605 = vmatprep.subr.bf16.mxu0 0
    %606 = vmatpush1.bf16.msra.mxu0 0
    %607 = vmatprep.subr.bf16.mxu0 0
    %608 = vmatpush1.bf16.msra.mxu0 0
    %609 = vmatprep.subr.bf16.mxu0 0
    %610 = vmatpush1.bf16.msra.mxu0 0
    %611 = vmatprep.subr.bf16.mxu0 0
    %612 = vmatpush1.bf16.msra.mxu0 0
    %613 = vmatprep.subr.bf16.mxu0 0
    %614 = vmatpush1.bf16.msra.mxu0 0
    %615 = vmatprep.subr.bf16.mxu0 0
    %616 = vmatpush1.bf16.msra.mxu0 0
    %617 = vmatprep.subr.bf16.mxu0 0
    %618 = vmatpush1.bf16.msra.mxu0 0
    %619 = vmatprep.subr.bf16.mxu0 0
    %620 = vmatpush1.bf16.msra.mxu0 0
    %621 = vmatprep.subr.bf16.mxu0 0
    %622 = vmatpush1.bf16.msra.mxu0 0
    %623 = vmatprep.mubr.bf16.mxu0 0
    %624 = vmatmul.mubr.bf16.gmra.mrb[0].mxu0 %v190
    %v625 = vpop.f32.mrb[0].mxu0
    %v626 = vadd.f32 0.0, %v625
    %v627 = vpop.f32.mrb[0].mxu0
    %v628 = vadd.f32 0.0, %v627
    %v629 = vpop.f32.mrb[0].mxu0
    %v630 = vadd.f32 0.0, %v629
    %v631 = vpop.f32.mrb[0].mxu0
    %v632 = vadd.f32 0.0, %v631
    %633 = vmatprep.mubr.bf16.mxu0 0
    %634 = vmatmul.mubr.bf16.gmra.mrb[0].mxu0 %v193
    %v635 = vpop.f32.mrb[0].mxu0
    %v636 = vadd.f32 0.0, %v635
    %v637 = vpop.f32.mrb[0].mxu0
    %v638 = vadd.f32 0.0, %v637
    %v639 = vpop.f32.mrb[0].mxu0
    %v640 = vadd.f32 0.0, %v639
    %v641 = vpop.f32.mrb[0].mxu0
    %v642 = vadd.f32 0.0, %v641
    %643 = vdwg.mxu0
    %v644 = vpack.c.bf16 %v630, %v626
    %v645 = vpack.c.bf16 %v632, %v628
    %v646 = vpack.c.bf16 %v640, %v636
    %v647 = vpack.c.bf16 %v642, %v638
    %648 = vmatprep.subr.bf16.mxu0 %v349
    %649 = vmatpush1.bf16.msra.mxu0 %v348
    %650 = vmatprep.subr.bf16.mxu0 %v351
    %651 = vmatpush1.bf16.msra.mxu0 %v350
    %652 = vmatprep.subr.bf16.mxu0 %v353
    %653 = vmatpush1.bf16.msra.mxu0 %v352
    %654 = vmatprep.subr.bf16.mxu0 %v355
    %655 = vmatpush1.bf16.msra.mxu0 %v354
    %656 = vmatprep.subr.bf16.mxu0 %v357
    %657 = vmatpush1.bf16.msra.mxu0 %v356
    %658 = vmatprep.subr.bf16.mxu0 %v359
    %659 = vmatpush1.bf16.msra.mxu0 %v358
    %660 = vmatprep.subr.bf16.mxu0 %v361
    %661 = vmatpush1.bf16.msra.mxu0 %v360
    %662 = vmatprep.subr.bf16.mxu0 %v363
    %663 = vmatpush1.bf16.msra.mxu0 %v362
    %664 = vmatprep.subr.bf16.mxu0 %v365
    %665 = vmatpush1.bf16.msra.mxu0 %v364
    %666 = vmatprep.subr.bf16.mxu0 %v367
    %667 = vmatpush1.bf16.msra.mxu0 %v366
    %668 = vmatprep.subr.bf16.mxu0 %v369
    %669 = vmatpush1.bf16.msra.mxu0 %v368
    %670 = vmatprep.subr.bf16.mxu0 %v371
    %671 = vmatpush1.bf16.msra.mxu0 %v370
    %672 = vmatprep.subr.bf16.mxu0 %v373
    %673 = vmatpush1.bf16.msra.mxu0 %v372
    %674 = vmatprep.subr.bf16.mxu0 %v375
    %675 = vmatpush1.bf16.msra.mxu0 %v374
    %676 = vmatprep.subr.bf16.mxu0 %v377
    %677 = vmatpush1.bf16.msra.mxu0 %v376
    %678 = vmatprep.subr.bf16.mxu0 %v379
    %679 = vmatpush1.bf16.msra.mxu0 %v378
    %680 = vmatprep.mubr.bf16.mxu0 %v645
    %681 = vmatmul.mubr.bf16.gmra.mrb[0].mxu0 %v644
    %v682 = vpop.f32.mrb[0].mxu0
    %v683 = vadd.f32 0.0, %v682
    %v684 = vpop.f32.mrb[0].mxu0
    %v685 = vadd.f32 0.0, %v684
    %v686 = vpop.f32.mrb[0].mxu0
    %v687 = vadd.f32 0.0, %v686
    %v688 = vpop.f32.mrb[0].mxu0
    %v689 = vadd.f32 0.0, %v688
    %690 = vmatprep.mubr.bf16.mxu0 %v647
    %691 = vmatmul.mubr.bf16.gmra.mrb[0].mxu0 %v646
    %v692 = vpop.f32.mrb[0].mxu0
    %v693 = vadd.f32 0.0, %v692
    %v694 = vpop.f32.mrb[0].mxu0
    %v695 = vadd.f32 0.0, %v694
    %v696 = vpop.f32.mrb[0].mxu0
    %v697 = vadd.f32 0.0, %v696
    %v698 = vpop.f32.mrb[0].mxu0
    %v699 = vadd.f32 0.0, %v698
    %700 = vdwg.mxu0
    %v701 = vmul.f32 %v118, %v118
    %v702 = vmul.f32 %v119, %v119
    %v703 = vmul.f32 %v120, %v120
    %v704 = vmul.f32 %v121, %v121
    %v705 = vmul.f32 %v122, %v122
    %v706 = vmul.f32 %v123, %v123
    %v707 = vmul.f32 %v124, %v124
    %v708 = vmul.f32 %v125, %v125
    %v709 = vpack.c.bf16 %v703, %v701
    %v710 = vpack.c.bf16 %v704, %v702
    %v711 = vpack.c.bf16 %v707, %v705
    %v712 = vpack.c.bf16 %v708, %v706
    %713 = vmatprep.subr.bf16.mxu0 %v710
    %714 = vmatpush1.bf16.msra.mxu0 %v709
    %715 = vmatprep.subr.bf16.mxu0 %v712
    %716 = vmatpush1.bf16.msra.mxu0 %v711
    %717 = vmatprep.subr.bf16.mxu0 0
    %718 = vmatpush1.bf16.msra.mxu0 0
    %719 = vmatprep.subr.bf16.mxu0 0
    %720 = vmatpush1.bf16.msra.mxu0 0
    %721 = vmatprep.subr.bf16.mxu0 0
    %722 = vmatpush1.bf16.msra.mxu0 0
    %723 = vmatprep.subr.bf16.mxu0 0
    %724 = vmatpush1.bf16.msra.mxu0 0
    %725 = vmatprep.subr.bf16.mxu0 0
    %726 = vmatpush1.bf16.msra.mxu0 0
    %727 = vmatprep.subr.bf16.mxu0 0
    %728 = vmatpush1.bf16.msra.mxu0 0
    %729 = vmatprep.subr.bf16.mxu0 0
    %730 = vmatpush1.bf16.msra.mxu0 0
    %731 = vmatprep.subr.bf16.mxu0 0
    %732 = vmatpush1.bf16.msra.mxu0 0
    %733 = vmatprep.subr.bf16.mxu0 0
    %734 = vmatpush1.bf16.msra.mxu0 0
    %735 = vmatprep.subr.bf16.mxu0 0
    %736 = vmatpush1.bf16.msra.mxu0 0
    %737 = vmatprep.subr.bf16.mxu0 0
    %738 = vmatpush1.bf16.msra.mxu0 0
    %739 = vmatprep.subr.bf16.mxu0 0
    %740 = vmatpush1.bf16.msra.mxu0 0
    %741 = vmatprep.subr.bf16.mxu0 0
    %742 = vmatpush1.bf16.msra.mxu0 0
    %743 = vmatprep.subr.bf16.mxu0 0
    %744 = vmatpush1.bf16.msra.mxu0 0
    %745 = vmatprep.mubr.bf16.mxu0 0
    %746 = vmatmul.mubr.bf16.gmra.mrb[0].mxu0 %v190
    %v747 = vpop.f32.mrb[0].mxu0
    %v748 = vadd.f32 0.0, %v747
    %v749 = vpop.f32.mrb[0].mxu0
    %v750 = vadd.f32 0.0, %v749
    %v751 = vpop.f32.mrb[0].mxu0
    %v752 = vadd.f32 0.0, %v751
    %v753 = vpop.f32.mrb[0].mxu0
    %v754 = vadd.f32 0.0, %v753
    %755 = vmatprep.mubr.bf16.mxu0 0
    %756 = vmatmul.mubr.bf16.gmra.mrb[0].mxu0 %v193
    %v757 = vpop.f32.mrb[0].mxu0
    %v758 = vadd.f32 0.0, %v757
    %v759 = vpop.f32.mrb[0].mxu0
    %v760 = vadd.f32 0.0, %v759
    %v761 = vpop.f32.mrb[0].mxu0
    %v762 = vadd.f32 0.0, %v761
    %v763 = vpop.f32.mrb[0].mxu0
    %v764 = vadd.f32 0.0, %v763
    %765 = vdwg.mxu0
    %v766 = vpack.c.bf16 %v752, %v748
    %v767 = vpack.c.bf16 %v754, %v750
    %v768 = vpack.c.bf16 %v762, %v758
    %v769 = vpack.c.bf16 %v764, %v760
    %770 = vmatprep.subr.bf16.mxu0 %v349
    %771 = vmatpush1.bf16.msra.mxu0 %v348
    %772 = vmatprep.subr.bf16.mxu0 %v351
    %773 = vmatpush1.bf16.msra.mxu0 %v350
    %774 = vmatprep.subr.bf16.mxu0 %v353
    %775 = vmatpush1.bf16.msra.mxu0 %v352
    %776 = vmatprep.subr.bf16.mxu0 %v355
    %777 = vmatpush1.bf16.msra.mxu0 %v354
    %778 = vmatprep.subr.bf16.mxu0 %v357
    %779 = vmatpush1.bf16.msra.mxu0 %v356
    %780 = vmatprep.subr.bf16.mxu0 %v359
    %781 = vmatpush1.bf16.msra.mxu0 %v358
    %782 = vmatprep.subr.bf16.mxu0 %v361
    %783 = vmatpush1.bf16.msra.mxu0 %v360
    %784 = vmatprep.subr.bf16.mxu0 %v363
    %785 = vmatpush1.bf16.msra.mxu0 %v362
    %786 = vmatprep.subr.bf16.mxu0 %v365
    %787 = vmatpush1.bf16.msra.mxu0 %v364
    %788 = vmatprep.subr.bf16.mxu0 %v367
    %789 = vmatpush1.bf16.msra.mxu0 %v366
    %790 = vmatprep.subr.bf16.mxu0 %v369
    %791 = vmatpush1.bf16.msra.mxu0 %v368
    %792 = vmatprep.subr.bf16.mxu0 %v371
    %793 = vmatpush1.bf16.msra.mxu0 %v370
    %794 = vmatprep.subr.bf16.mxu0 %v373
    %795 = vmatpush1.bf16.msra.mxu0 %v372
    %796 = vmatprep.subr.bf16.mxu0 %v375
    %797 = vmatpush1.bf16.msra.mxu0 %v374
    %798 = vmatprep.subr.bf16.mxu0 %v377
    %799 = vmatpush1.bf16.msra.mxu0 %v376
    %800 = vmatprep.subr.bf16.mxu0 %v379
    %801 = vmatpush1.bf16.msra.mxu0 %v378
    %802 = vmatprep.mubr.bf16.mxu0 %v767
    %803 = vmatmul.mubr.bf16.gmra.mrb[0].mxu0 %v766
    %v804 = vpop.f32.mrb[0].mxu0
    %v805 = vadd.f32 0.0, %v804
    %v806 = vpop.f32.mrb[0].mxu0
    %v807 = vadd.f32 0.0, %v806
    %v808 = vpop.f32.mrb[0].mxu0
    %v809 = vadd.f32 0.0, %v808
    %v810 = vpop.f32.mrb[0].mxu0
    %v811 = vadd.f32 0.0, %v810
    %812 = vmatprep.mubr.bf16.mxu0 %v769
    %813 = vmatmul.mubr.bf16.gmra.mrb[0].mxu0 %v768
    %v814 = vpop.f32.mrb[0].mxu0
    %v815 = vadd.f32 0.0, %v814
    %v816 = vpop.f32.mrb[0].mxu0
    %v817 = vadd.f32 0.0, %v816
    %v818 = vpop.f32.mrb[0].mxu0
    %v819 = vadd.f32 0.0, %v818
    %v820 = vpop.f32.mrb[0].mxu0
    %v821 = vadd.f32 0.0, %v820
    %822 = vdwg.mxu0
    %v823 = vmul.f32 %v110, %v118
    %v824 = vmul.f32 %v111, %v119
    %v825 = vmul.f32 %v112, %v120
    %v826 = vmul.f32 %v113, %v121
    %v827 = vmul.f32 %v114, %v122
    %v828 = vmul.f32 %v115, %v123
    %v829 = vmul.f32 %v116, %v124
    %v830 = vmul.f32 %v117, %v125
    %v831 = vpack.c.bf16 %v825, %v823
    %v832 = vpack.c.bf16 %v826, %v824
    %v833 = vpack.c.bf16 %v829, %v827
    %v834 = vpack.c.bf16 %v830, %v828
    %835 = vmatprep.subr.bf16.mxu0 %v832
    %836 = vmatpush1.bf16.msra.mxu0 %v831
    %837 = vmatprep.subr.bf16.mxu0 %v834
    %838 = vmatpush1.bf16.msra.mxu0 %v833
    %839 = vmatprep.subr.bf16.mxu0 0
    %840 = vmatpush1.bf16.msra.mxu0 0
    %841 = vmatprep.subr.bf16.mxu0 0
    %842 = vmatpush1.bf16.msra.mxu0 0
    %843 = vmatprep.subr.bf16.mxu0 0
    %844 = vmatpush1.bf16.msra.mxu0 0
    %845 = vmatprep.subr.bf16.mxu0 0
    %846 = vmatpush1.bf16.msra.mxu0 0
    %847 = vmatprep.subr.bf16.mxu0 0
    %848 = vmatpush1.bf16.msra.mxu0 0
    %849 = vmatprep.subr.bf16.mxu0 0
    %850 = vmatpush1.bf16.msra.mxu0 0
    %851 = vmatprep.subr.bf16.mxu0 0
    %852 = vmatpush1.bf16.msra.mxu0 0
    %853 = vmatprep.subr.bf16.mxu0 0
    %854 = vmatpush1.bf16.msra.mxu0 0
    %855 = vmatprep.subr.bf16.mxu0 0
    %856 = vmatpush1.bf16.msra.mxu0 0
    %857 = vmatprep.subr.bf16.mxu0 0
    %858 = vmatpush1.bf16.msra.mxu0 0
    %859 = vmatprep.subr.bf16.mxu0 0
    %860 = vmatpush1.bf16.msra.mxu0 0
    %861 = vmatprep.subr.bf16.mxu0 0
    %862 = vmatpush1.bf16.msra.mxu0 0
    %863 = vmatprep.subr.bf16.mxu0 0
    %864 = vmatpush1.bf16.msra.mxu0 0
    %865 = vmatprep.subr.bf16.mxu0 0
    %866 = vmatpush1.bf16.msra.mxu0 0
    %867 = vmatprep.mubr.bf16.mxu0 0
    %868 = vmatmul.mubr.bf16.gmra.mrb[0].mxu0 %v190
    %v869 = vpop.f32.mrb[0].mxu0
    %v870 = vadd.f32 0.0, %v869
    %v871 = vpop.f32.mrb[0].mxu0
    %v872 = vadd.f32 0.0, %v871
    %v873 = vpop.f32.mrb[0].mxu0
    %v874 = vadd.f32 0.0, %v873
    %v875 = vpop.f32.mrb[0].mxu0
    %v876 = vadd.f32 0.0, %v875
    %877 = vmatprep.mubr.bf16.mxu0 0
    %878 = vmatmul.mubr.bf16.gmra.mrb[0].mxu0 %v193
    %v879 = vpop.f32.mrb[0].mxu0
    %v880 = vadd.f32 0.0, %v879
    %v881 = vpop.f32.mrb[0].mxu0
    %v882 = vadd.f32 0.0, %v881
    %v883 = vpop.f32.mrb[0].mxu0
    %v884 = vadd.f32 0.0, %v883
    %v885 = vpop.f32.mrb[0].mxu0
    %v886 = vadd.f32 0.0, %v885
    %887 = vdwg.mxu0
    %v888 = vpack.c.bf16 %v874, %v870
    %v889 = vpack.c.bf16 %v876, %v872
    %v890 = vpack.c.bf16 %v884, %v880
    %v891 = vpack.c.bf16 %v886, %v882
    %892 = vmatprep.subr.bf16.mxu0 %v349
    %893 = vmatpush1.bf16.msra.mxu0 %v348
    %894 = vmatprep.subr.bf16.mxu0 %v351
    %895 = vmatpush1.bf16.msra.mxu0 %v350
    %896 = vmatprep.subr.bf16.mxu0 %v353
    %897 = vmatpush1.bf16.msra.mxu0 %v352
    %898 = vmatprep.subr.bf16.mxu0 %v355
    %899 = vmatpush1.bf16.msra.mxu0 %v354
    %900 = vmatprep.subr.bf16.mxu0 %v357
    %901 = vmatpush1.bf16.msra.mxu0 %v356
    %902 = vmatprep.subr.bf16.mxu0 %v359
    %903 = vmatpush1.bf16.msra.mxu0 %v358
    %904 = vmatprep.subr.bf16.mxu0 %v361
    %905 = vmatpush1.bf16.msra.mxu0 %v360
    %906 = vmatprep.subr.bf16.mxu0 %v363
    %907 = vmatpush1.bf16.msra.mxu0 %v362
    %908 = vmatprep.subr.bf16.mxu0 %v365
    %909 = vmatpush1.bf16.msra.mxu0 %v364
    %910 = vmatprep.subr.bf16.mxu0 %v367
    %911 = vmatpush1.bf16.msra.mxu0 %v366
    %912 = vmatprep.subr.bf16.mxu0 %v369
    %913 = vmatpush1.bf16.msra.mxu0 %v368
    %914 = vmatprep.subr.bf16.mxu0 %v371
    %915 = vmatpush1.bf16.msra.mxu0 %v370
    %916 = vmatprep.subr.bf16.mxu0 %v373
    %917 = vmatpush1.bf16.msra.mxu0 %v372
    %918 = vmatprep.subr.bf16.mxu0 %v375
    %919 = vmatpush1.bf16.msra.mxu0 %v374
    %920 = vmatprep.subr.bf16.mxu0 %v377
    %921 = vmatpush1.bf16.msra.mxu0 %v376
    %922 = vmatprep.subr.bf16.mxu0 %v379
    %923 = vmatpush1.bf16.msra.mxu0 %v378
    %924 = vmatprep.mubr.bf16.mxu0 %v889
    %925 = vmatmul.mubr.bf16.gmra.mrb[0].mxu0 %v888
    %v926 = vpop.f32.mrb[0].mxu0
    %v927 = vadd.f32 0.0, %v926
    %v928 = vpop.f32.mrb[0].mxu0
    %v929 = vadd.f32 0.0, %v928
    %v930 = vpop.f32.mrb[0].mxu0
    %v931 = vadd.f32 0.0, %v930
    %v932 = vpop.f32.mrb[0].mxu0
    %v933 = vadd.f32 0.0, %v932
    %934 = vmatprep.mubr.bf16.mxu0 %v891
    %935 = vmatmul.mubr.bf16.gmra.mrb[0].mxu0 %v890
    %v936 = vpop.f32.mrb[0].mxu0
    %v937 = vadd.f32 0.0, %v936
    %v938 = vpop.f32.mrb[0].mxu0
    %v939 = vadd.f32 0.0, %v938
    %v940 = vpop.f32.mrb[0].mxu0
    %v941 = vadd.f32 0.0, %v940
    %v942 = vpop.f32.mrb[0].mxu0
    %v943 = vadd.f32 0.0, %v942
    %944 = vdwg.mxu0
    %v945 = vmul.f32 %v447, %v447
    %v946 = vmul.f32 %v449, %v449
    %v947 = vmul.f32 %v451, %v451
    %v948 = vmul.f32 %v453, %v453
    %v949 = vmul.f32 %v457, %v457
    %v950 = vmul.f32 %v459, %v459
    %v951 = vmul.f32 %v461, %v461
    %v952 = vmul.f32 %v463, %v463
    %v953 = vmul.f32 %v561, %v561
    %v954 = vmul.f32 %v563, %v563
    %v955 = vmul.f32 %v565, %v565
    %v956 = vmul.f32 %v567, %v567
    %v957 = vmul.f32 %v571, %v571
    %v958 = vmul.f32 %v573, %v573
    %v959 = vmul.f32 %v575, %v575
    %v960 = vmul.f32 %v577, %v577
    %v961 = vmul.f32 %v447, %v561
    %v962 = vmul.f32 %v449, %v563
    %v963 = vmul.f32 %v451, %v565
    %v964 = vmul.f32 %v453, %v567
    %v965 = vmul.f32 %v457, %v571
    %v966 = vmul.f32 %v459, %v573
    %v967 = vmul.f32 %v461, %v575
    %v968 = vmul.f32 %v463, %v577
    %v969 = vsub.f32 %v683, %v945
    %v970 = vsub.f32 %v685, %v946
    %v971 = vsub.f32 %v687, %v947
    %v972 = vsub.f32 %v689, %v948
    %v973 = vsub.f32 %v693, %v949
    %v974 = vsub.f32 %v695, %v950
    %v975 = vsub.f32 %v697, %v951
    %v976 = vsub.f32 %v699, %v952
    %v977 = vsub.f32 %v805, %v953
    %v978 = vsub.f32 %v807, %v954
    %v979 = vsub.f32 %v809, %v955
    %v980 = vsub.f32 %v811, %v956
    %v981 = vsub.f32 %v815, %v957
    %v982 = vsub.f32 %v817, %v958
    %v983 = vsub.f32 %v819, %v959
    %v984 = vsub.f32 %v821, %v960
    %v985 = vsub.f32 %v927, %v961
    %v986 = vsub.f32 %v929, %v962
    %v987 = vsub.f32 %v931, %v963
    %v988 = vsub.f32 %v933, %v964
    %v989 = vsub.f32 %v937, %v965
    %v990 = vsub.f32 %v939, %v966
    %v991 = vsub.f32 %v941, %v967
    %v992 = vsub.f32 %v943, %v968
    %v993 = vmul.f32 %v985, 2.0
    %v994 = vmul.f32 %v986, 2.0
    %v995 = vmul.f32 %v987, 2.0
    %v996 = vmul.f32 %v988, 2.0
    %v997 = vmul.f32 %v989, 2.0
    %v998 = vmul.f32 %v990, 2.0
    %v999 = vmul.f32 %v991, 2.0
    %v1000 = vmul.f32 %v992, 2.0
    %v1001 = vadd.f32 %v993, 0.0009
    %v1002 = vadd.f32 %v994, 0.0009
    %v1003 = vadd.f32 %v995, 0.0009
    %v1004 = vadd.f32 %v996, 0.0009
    %v1005 = vadd.f32 %v997, 0.0009
    %v1006 = vadd.f32 %v998, 0.0009
    %v1007 = vadd.f32 %v999, 0.0009
    %v1008 = vadd.f32 %v1000, 0.0009
    %v1009 = vadd.f32 %v969, %v977
    %v1010 = vadd.f32 %v970, %v978
    %v1011 = vadd.f32 %v971, %v979
    %v1012 = vadd.f32 %v972, %v980
    %v1013 = vadd.f32 %v973, %v981
    %v1014 = vadd.f32 %v974, %v982
    %v1015 = vadd.f32 %v975, %v983
    %v1016 = vadd.f32 %v976, %v984
    %v1017 = vadd.f32 %v1009, 0.0009
    %v1018 = vadd.f32 %v1010, 0.0009
    %v1019 = vadd.f32 %v1011, 0.0009
    %v1020 = vadd.f32 %v1012, 0.0009
    %v1021 = vadd.f32 %v1013, 0.0009
    %v1022 = vadd.f32 %v1014, 0.0009
    %v1023 = vadd.f32 %v1015, 0.0009
    %v1024 = vadd.f32 %v1016, 0.0009
    %v1025 = vrcp.pop %v1017
    %v1026 = vrcp.pop %v1018
    %v1027 = vrcp.pop %v1019
    %v1028 = vrcp.pop %v1020
    %v1029 = vrcp.pop %v1021
    %v1030 = vrcp.pop %v1022
    %v1031 = vrcp.pop %v1023
    %v1032 = vrcp.pop %v1024
    %v1033 = vmul.f32 %v1017, %v1025
    %v1034 = vmul.f32 %v1018, %v1026
    %v1035 = vmul.f32 %v1019, %v1027
    %v1036 = vmul.f32 %v1020, %v1028
    %v1037 = vmul.f32 %v1021, %v1029
    %v1038 = vmul.f32 %v1022, %v1030
    %v1039 = vmul.f32 %v1023, %v1031
    %v1040 = vmul.f32 %v1024, %v1032
    %v1041 = vsub.f32 2.0, %v1033
    %v1042 = vsub.f32 2.0, %v1034
    %v1043 = vsub.f32 2.0, %v1035
    %v1044 = vsub.f32 2.0, %v1036
    %v1045 = vsub.f32 2.0, %v1037
    %v1046 = vsub.f32 2.0, %v1038
    %v1047 = vsub.f32 2.0, %v1039
    %v1048 = vsub.f32 2.0, %v1040
    %v1049 = vmul.f32 %v1025, %v1041
    %v1050 = vmul.f32 %v1026, %v1042
    %v1051 = vmul.f32 %v1027, %v1043
    %v1052 = vmul.f32 %v1028, %v1044
    %v1053 = vmul.f32 %v1029, %v1045
    %v1054 = vmul.f32 %v1030, %v1046
    %v1055 = vmul.f32 %v1031, %v1047
    %v1056 = vmul.f32 %v1032, %v1048
    %v1057 = vmul.f32 %v1001, %v1049
    %v1058 = vmul.f32 %v1002, %v1050
    %v1059 = vmul.f32 %v1003, %v1051
    %v1060 = vmul.f32 %v1004, %v1052
    %v1061 = vmul.f32 %v1005, %v1053
    %v1062 = vmul.f32 %v1006, %v1054
    %v1063 = vmul.f32 %v1007, %v1055
    %v1064 = vmul.f32 %v1008, %v1056
    %v1065 = vadd.f32 %v945, %v953
    %v1066 = vadd.f32 %v946, %v954
    %v1067 = vadd.f32 %v947, %v955
    %v1068 = vadd.f32 %v948, %v956
    %v1069 = vadd.f32 %v949, %v957
    %v1070 = vadd.f32 %v950, %v958
    %v1071 = vadd.f32 %v951, %v959
    %v1072 = vadd.f32 %v952, %v960
    %v1073 = vadd.f32 %v1065, 0.0001
    %v1074 = vadd.f32 %v1066, 0.0001
    %v1075 = vadd.f32 %v1067, 0.0001
    %v1076 = vadd.f32 %v1068, 0.0001
    %v1077 = vadd.f32 %v1069, 0.0001
    %v1078 = vadd.f32 %v1070, 0.0001
    %v1079 = vadd.f32 %v1071, 0.0001
    %v1080 = vadd.f32 %v1072, 0.0001
    %v1081 = vrcp.pop %v1073
    %v1082 = vrcp.pop %v1074
    %v1083 = vrcp.pop %v1075
    %v1084 = vrcp.pop %v1076
    %v1085 = vrcp.pop %v1077
    %v1086 = vrcp.pop %v1078
    %v1087 = vrcp.pop %v1079
    %v1088 = vrcp.pop %v1080
    %v1089 = vmul.f32 %v1073, %v1081
    %v1090 = vmul.f32 %v1074, %v1082
    %v1091 = vmul.f32 %v1075, %v1083
    %v1092 = vmul.f32 %v1076, %v1084
    %v1093 = vmul.f32 %v1077, %v1085
    %v1094 = vmul.f32 %v1078, %v1086
    %v1095 = vmul.f32 %v1079, %v1087
    %v1096 = vmul.f32 %v1080, %v1088
    %v1097 = vsub.f32 2.0, %v1089
    %v1098 = vsub.f32 2.0, %v1090
    %v1099 = vsub.f32 2.0, %v1091
    %v1100 = vsub.f32 2.0, %v1092
    %v1101 = vsub.f32 2.0, %v1093
    %v1102 = vsub.f32 2.0, %v1094
    %v1103 = vsub.f32 2.0, %v1095
    %v1104 = vsub.f32 2.0, %v1096
    %v1105 = vmul.f32 %v1081, %v1097
    %v1106 = vmul.f32 %v1082, %v1098
    %v1107 = vmul.f32 %v1083, %v1099
    %v1108 = vmul.f32 %v1084, %v1100
    %v1109 = vmul.f32 %v1085, %v1101
    %v1110 = vmul.f32 %v1086, %v1102
    %v1111 = vmul.f32 %v1087, %v1103
    %v1112 = vmul.f32 %v1088, %v1104
    %v1113 = vmul.f32 %v961, 2.0
    %v1114 = vmul.f32 %v962, 2.0
    %v1115 = vmul.f32 %v963, 2.0
    %v1116 = vmul.f32 %v964, 2.0
    %v1117 = vmul.f32 %v965, 2.0
    %v1118 = vmul.f32 %v966, 2.0
    %v1119 = vmul.f32 %v967, 2.0
    %v1120 = vmul.f32 %v968, 2.0
    %v1121 = vadd.f32 %v1113, 0.0001
    %v1122 = vadd.f32 %v1114, 0.0001
    %v1123 = vadd.f32 %v1115, 0.0001
    %v1124 = vadd.f32 %v1116, 0.0001
    %v1125 = vadd.f32 %v1117, 0.0001
    %v1126 = vadd.f32 %v1118, 0.0001
    %v1127 = vadd.f32 %v1119, 0.0001
    %v1128 = vadd.f32 %v1120, 0.0001
    %v1129 = vmul.f32 %v1057, %v1121
    %v1130 = vmul.f32 %v1058, %v1122
    %v1131 = vmul.f32 %v1059, %v1123
    %v1132 = vmul.f32 %v1060, %v1124
    %v1133 = vmul.f32 %v1061, %v1125
    %v1134 = vmul.f32 %v1062, %v1126
    %v1135 = vmul.f32 %v1063, %v1127
    %v1136 = vmul.f32 %v1064, %v1128
    %v1137 = vmul.f32 %v1129, %v1105
    %v1138 = vmul.f32 %v1130, %v1106
    %v1139 = vmul.f32 %v1131, %v1107
    %v1140 = vmul.f32 %v1132, %v1108
    %v1141 = vmul.f32 %v1133, %v1109
    %v1142 = vmul.f32 %v1134, %v1110
    %v1143 = vmul.f32 %v1135, %v1111
    %v1144 = vmul.f32 %v1136, %v1112
    %vm1145 = vcmp.lt.s32.totalorder %v127, 32
    %vm1146 = vcmp.lt.s32.totalorder %v128, 32
    %vm1147 = vcmp.lt.s32.totalorder %v129, 32
    %vm1148 = vcmp.lt.s32.totalorder %v130, 32
    %s1149 = smul.u32 %s137, 32
    %v1150 = vstv %s1149
    %vm1151 = vcmp.lt.s32.totalorder %v132, %v1150
    %vm1152 = vcmp.lt.s32.totalorder %v133, %v1150
    %vm1153 = vmand %vm1145, %vm1151
    %vm1154 = vmand %vm1145, %vm1152
    %vm1155 = vmand %vm1146, %vm1151
    %vm1156 = vmand %vm1146, %vm1152
    %vm1157 = vmand %vm1147, %vm1151
    %vm1158 = vmand %vm1147, %vm1152
    %vm1159 = vmand %vm1148, %vm1151
    %vm1160 = vmand %vm1148, %vm1152
    %v1161 = vsel %vm1153, 1, 0
    %v1162 = vsel %vm1154, 1, 0
    %v1163 = vsel %vm1155, 1, 0
    %v1164 = vsel %vm1156, 1, 0
    %v1165 = vsel %vm1157, 1, 0
    %v1166 = vsel %vm1158, 1, 0
    %v1167 = vsel %vm1159, 1, 0
    %v1168 = vsel %vm1160, 1, 0
    %v1169 = vcvt.s32.f32 %v1161
    %v1170 = vcvt.s32.f32 %v1162
    %v1171 = vcvt.s32.f32 %v1163
    %v1172 = vcvt.s32.f32 %v1164
    %v1173 = vcvt.s32.f32 %v1165
    %v1174 = vcvt.s32.f32 %v1166
    %v1175 = vcvt.s32.f32 %v1167
    %v1176 = vcvt.s32.f32 %v1168
    %v1177 = vmul.f32 %v1137, %v1169
    %v1178 = vmul.f32 %v1138, %v1170
    %v1179 = vmul.f32 %v1139, %v1171
    %v1180 = vmul.f32 %v1140, %v1172
    %v1181 = vmul.f32 %v1141, %v1173
    %v1182 = vmul.f32 %v1142, %v1174
    %v1183 = vmul.f32 %v1143, %v1175
    %v1184 = vmul.f32 %v1144, %v1176
    %v1185 = vadd.f32 %v1177, %v1178
    %v1186 = vadd.f32 %v1185, %v1179
    %v1187 = vadd.f32 %v1186, %v1180
    %v1188 = vadd.f32 %v1187, %v1181
    %v1189 = vadd.f32 %v1188, %v1182
    %v1190 = vadd.f32 %v1189, %v1183
    %v1191 = vadd.f32 %v1190, %v1184
    %1192 = vadd.xlane.f32.xlu0 %v1191
    %v1193 = vpop.xlane.xlu0 %1192
    %v1194 = vrot.slane %v1193, 4
    %v1195 = vadd.f32 %v1193, %v1194
    %v1196 = vrot.slane %v1195, 2
    %v1197 = vadd.f32 %v1195, %v1196
    %v1198 = vrot.slane %v1197, 1
    %v1199 = vadd.f32 %v1197, %v1198
    %s1200 = vtos %v1199
    %v1201 = vstv %s1200
    %v1202 = vmul.f32 %v1057, %v1169
    %v1203 = vmul.f32 %v1058, %v1170
    %v1204 = vmul.f32 %v1059, %v1171
    %v1205 = vmul.f32 %v1060, %v1172
    %v1206 = vmul.f32 %v1061, %v1173
    %v1207 = vmul.f32 %v1062, %v1174
    %v1208 = vmul.f32 %v1063, %v1175
    %v1209 = vmul.f32 %v1064, %v1176
    %v1210 = vadd.f32 %v1202, %v1203
    %v1211 = vadd.f32 %v1210, %v1204
    %v1212 = vadd.f32 %v1211, %v1205
    %v1213 = vadd.f32 %v1212, %v1206
    %v1214 = vadd.f32 %v1213, %v1207
    %v1215 = vadd.f32 %v1214, %v1208
    %v1216 = vadd.f32 %v1215, %v1209
    %1217 = vadd.xlane.f32.xlu0 %v1216
    %v1218 = vpop.xlane.xlu0 %1217
    %v1219 = vrot.slane %v1218, 4
    %v1220 = vadd.f32 %v1218, %v1219
    %v1221 = vrot.slane %v1220, 2
    %v1222 = vadd.f32 %v1220, %v1221
    %v1223 = vrot.slane %v1222, 1
    %v1224 = vadd.f32 %v1222, %v1223
    %s1225 = vtos %v1224
    %v1226 = vstv %s1225
    %v1227 = vld [vmem:[#allocation10] sm:$0xf]
    %v1228 = vld [vmem:[#allocation10 + $0x4] sm:$0xf]
    %v1229 = vld [vmem:[#allocation10 + $0x8] sm:$0xf]
    %v1230 = vld [vmem:[#allocation10 + $0xc] sm:$0xf]
    %v1231 = vld [vmem:[#allocation11] sm:$0xff]
    %v1232 = vld [vmem:[#allocation11 + $0x8] sm:$0xff]
    %v1233 = vld [vmem:[#allocation11 + $0x10] sm:$0xff]
    %v1234 = vld [vmem:[#allocation11 + $0x18] sm:$0xff]
    %v1235 = vld [vmem:[#allocation11 + $0x20] sm:$0xff]
    %v1236 = vld [vmem:[#allocation11 + $0x28] sm:$0xff]
    %v1237 = vld [vmem:[#allocation11 + $0x30] sm:$0xff]
    %v1238 = vld [vmem:[#allocation11 + $0x38] sm:$0xff]
    %v1239 = vld [vmem:[#allocation11 + $0x40] sm:$0xff]
    %v1240 = vld [vmem:[#allocation11 + $0x48] sm:$0xff]
    %v1241 = vld [vmem:[#allocation11 + $0x50] sm:$0xff]
    %v1242 = vld [vmem:[#allocation11 + $0x58] sm:$0xff]
    %v1243 = vld [vmem:[#allocation11 + $0x60] sm:$0xff]
    %v1244 = vld [vmem:[#allocation11 + $0x68] sm:$0xff]
    %v1245 = vld [vmem:[#allocation11 + $0x70] sm:$0xff]
    %v1246 = vld [vmem:[#allocation11 + $0x78] sm:$0xff]
    %v1247 = vld [vmem:[#allocation11 + $0x80] sm:$0xff]
    %v1248 = vld [vmem:[#allocation11 + $0x88] sm:$0xff]
    %v1249 = vld [vmem:[#allocation11 + $0x90] sm:$0xff]
    %v1250 = vld [vmem:[#allocation11 + $0x98] sm:$0xff]
    %v1251 = vld [vmem:[#allocation11 + $0xa0] sm:$0xff]
    %v1252 = vld [vmem:[#allocation11 + $0xa8] sm:$0xff]
    %v1253 = vld [vmem:[#allocation11 + $0xb0] sm:$0xff]
    %v1254 = vld [vmem:[#allocation11 + $0xb8] sm:$0xff]
    %v1255 = vld [vmem:[#allocation11 + $0xc0] sm:$0xff]
    %v1256 = vld [vmem:[#allocation11 + $0xc8] sm:$0xff]
    %v1257 = vld [vmem:[#allocation11 + $0xd0] sm:$0xff]
    %v1258 = vld [vmem:[#allocation11 + $0xd8] sm:$0xff]
    %v1259 = vld [vmem:[#allocation11 + $0xe0] sm:$0xff]
    %v1260 = vld [vmem:[#allocation11 + $0xe8] sm:$0xff]
    %v1261 = vld [vmem:[#allocation11 + $0xf0] sm:$0xff]
    %v1262 = vld [vmem:[#allocation11 + $0xf8] sm:$0xff]
    %v1267 = vunpack.c.l.b16 %v1227
    %v1268 = vunpack.c.l.b16 %v1228
    %v1269 = vunpack.c.l.b16 %v1229
    %v1270 = vunpack.c.l.b16 %v1230
    %v1271 = vpack.c.b16 %v1268, %v1267
    %v1272 = vpack.c.b16 %v1270, %v1269
    %v1274 = vsel %vm188, %v1271, 0
    %v1277 = vsel %vm188, %v1272, 0
    %1279 = vmatprep.subr.bf16.mxu0 %v175
    %1280 = vmatpush1.bf16.msra.mxu0 %v174
    %1281 = vmatprep.subr.bf16.mxu0 %v177
    %1282 = vmatpush1.bf16.msra.mxu0 %v176
    %1283 = vmatprep.subr.bf16.mxu0 0
    %1284 = vmatpush1.bf16.msra.mxu0 0
    %1285 = vmatprep.subr.bf16.mxu0 0
    %1286 = vmatpush1.bf16.msra.mxu0 0
    %1287 = vmatprep.subr.bf16.mxu0 0
    %1288 = vmatpush1.bf16.msra.mxu0 0
    %1289 = vmatprep.subr.bf16.mxu0 0
    %1290 = vmatpush1.bf16.msra.mxu0 0
    %1291 = vmatprep.subr.bf16.mxu0 0
    %1292 = vmatpush1.bf16.msra.mxu0 0
    %1293 = vmatprep.subr.bf16.mxu0 0
    %1294 = vmatpush1.bf16.msra.mxu0 0
    %1295 = vmatprep.subr.bf16.mxu0 0
    %1296 = vmatpush1.bf16.msra.mxu0 0
    %1297 = vmatprep.subr.bf16.mxu0 0
    %1298 = vmatpush1.bf16.msra.mxu0 0
    %1299 = vmatprep.subr.bf16.mxu0 0
    %1300 = vmatpush1.bf16.msra.mxu0 0
    %1301 = vmatprep.subr.bf16.mxu0 0
    %1302 = vmatpush1.bf16.msra.mxu0 0
    %1303 = vmatprep.subr.bf16.mxu0 0
    %1304 = vmatpush1.bf16.msra.mxu0 0
    %1305 = vmatprep.subr.bf16.mxu0 0
    %1306 = vmatpush1.bf16.msra.mxu0 0
    %1307 = vmatprep.subr.bf16.mxu0 0
    %1308 = vmatpush1.bf16.msra.mxu0 0
    %1309 = vmatprep.subr.bf16.mxu0 0
    %1310 = vmatpush1.bf16.msra.mxu0 0
    %1311 = vmatprep.mubr.bf16.mxu0 0
    %1312 = vmatmul.mubr.bf16.gmra.mrb[0].mxu0 %v1274
    %v1313 = vpop.f32.mrb[0].mxu0
    %v1314 = vadd.f32 0.0, %v1313
    %v1315 = vpop.f32.mrb[0].mxu0
    %v1316 = vadd.f32 0.0, %v1315
    %v1317 = vpop.f32.mrb[0].mxu0
    %v1318 = vadd.f32 0.0, %v1317
    %v1319 = vpop.f32.mrb[0].mxu0
    %v1320 = vadd.f32 0.0, %v1319
    %1321 = vmatprep.mubr.bf16.mxu0 0
    %1322 = vmatmul.mubr.bf16.gmra.mrb[0].mxu0 %v1277
    %v1323 = vpop.f32.mrb[0].mxu0
    %v1324 = vadd.f32 0.0, %v1323
    %v1325 = vpop.f32.mrb[0].mxu0
    %v1326 = vadd.f32 0.0, %v1325
    %v1327 = vpop.f32.mrb[0].mxu0
    %v1328 = vadd.f32 0.0, %v1327
    %v1329 = vpop.f32.mrb[0].mxu0
    %v1330 = vadd.f32 0.0, %v1329
    %1331 = vdwg.mxu0
    %v1332 = vpack.c.bf16 %v1318, %v1314
    %v1333 = vpack.c.bf16 %v1320, %v1316
    %v1334 = vpack.c.bf16 %v1328, %v1324
    %v1335 = vpack.c.bf16 %v1330, %v1326
    %v1368 = vunpack.c.l.b16 %v1231
    %v1369 = vunpack.c.h.b16 %v1231
    %v1370 = vunpack.c.l.b16 %v1232
    %v1371 = vunpack.c.h.b16 %v1232
    %v1372 = vunpack.c.l.b16 %v1233
    %v1373 = vunpack.c.h.b16 %v1233
    %v1374 = vunpack.c.l.b16 %v1234
    %v1375 = vunpack.c.h.b16 %v1234
    %v1376 = vunpack.c.l.b16 %v1235
    %v1377 = vunpack.c.h.b16 %v1235
    %v1378 = vunpack.c.l.b16 %v1236
    %v1379 = vunpack.c.h.b16 %v1236
    %v1380 = vunpack.c.l.b16 %v1237
    %v1381 = vunpack.c.h.b16 %v1237
    %v1382 = vunpack.c.l.b16 %v1238
    %v1383 = vunpack.c.h.b16 %v1238
    %v1384 = vunpack.c.l.b16 %v1239
    %v1385 = vunpack.c.h.b16 %v1239
    %v1386 = vunpack.c.l.b16 %v1240
    %v1387 = vunpack.c.h.b16 %v1240
    %v1388 = vunpack.c.l.b16 %v1241
    %v1389 = vunpack.c.h.b16 %v1241
    %v1390 = vunpack.c.l.b16 %v1242
    %v1391 = vunpack.c.h.b16 %v1242
    %v1392 = vunpack.c.l.b16 %v1243
    %v1393 = vunpack.c.h.b16 %v1243
    %v1394 = vunpack.c.l.b16 %v1244
    %v1395 = vunpack.c.h.b16 %v1244
    %v1396 = vunpack.c.l.b16 %v1245
    %v1397 = vunpack.c.h.b16 %v1245
    %v1398 = vunpack.c.l.b16 %v1246
    %v1399 = vunpack.c.h.b16 %v1246
    %v1400 = vunpack.c.l.b16 %v1247
    %v1401 = vunpack.c.h.b16 %v1247
    %v1402 = vunpack.c.l.b16 %v1248
    %v1403 = vunpack.c.h.b16 %v1248
    %v1404 = vunpack.c.l.b16 %v1249
    %v1405 = vunpack.c.h.b16 %v1249
    %v1406 = vunpack.c.l.b16 %v1250
    %v1407 = vunpack.c.h.b16 %v1250
    %v1408 = vunpack.c.l.b16 %v1251
    %v1409 = vunpack.c.h.b16 %v1251
    %v1410 = vunpack.c.l.b16 %v1252
    %v1411 = vunpack.c.h.b16 %v1252
    %v1412 = vunpack.c.l.b16 %v1253
    %v1413 = vunpack.c.h.b16 %v1253
    %v1414 = vunpack.c.l.b16 %v1254
    %v1415 = vunpack.c.h.b16 %v1254
    %v1416 = vunpack.c.l.b16 %v1255
    %v1417 = vunpack.c.h.b16 %v1255
    %v1418 = vunpack.c.l.b16 %v1256
    %v1419 = vunpack.c.h.b16 %v1256
    %v1420 = vunpack.c.l.b16 %v1257
    %v1421 = vunpack.c.h.b16 %v1257
    %v1422 = vunpack.c.l.b16 %v1258
    %v1423 = vunpack.c.h.b16 %v1258
    %v1424 = vunpack.c.l.b16 %v1259
    %v1425 = vunpack.c.h.b16 %v1259
    %v1426 = vunpack.c.l.b16 %v1260
    %v1427 = vunpack.c.h.b16 %v1260
    %v1428 = vunpack.c.l.b16 %v1261
    %v1429 = vunpack.c.h.b16 %v1261
    %v1430 = vunpack.c.l.b16 %v1262
    %v1431 = vunpack.c.h.b16 %v1262
    %v1432 = vpack.c.b16 %v1370, %v1368
    %v1433 = vpack.c.b16 %v1371, %v1369
    %v1434 = vpack.c.b16 %v1374, %v1372
    %v1435 = vpack.c.b16 %v1375, %v1373
    %v1436 = vpack.c.b16 %v1378, %v1376
    %v1437 = vpack.c.b16 %v1379, %v1377
    %v1438 = vpack.c.b16 %v1382, %v1380
    %v1439 = vpack.c.b16 %v1383, %v1381
    %v1440 = vpack.c.b16 %v1386, %v1384
    %v1441 = vpack.c.b16 %v1387, %v1385
    %v1442 = vpack.c.b16 %v1390, %v1388
    %v1443 = vpack.c.b16 %v1391, %v1389
    %v1444 = vpack.c.b16 %v1394, %v1392
    %v1445 = vpack.c.b16 %v1395, %v1393
    %v1446 = vpack.c.b16 %v1398, %v1396
    %v1447 = vpack.c.b16 %v1399, %v1397
    %v1448 = vpack.c.b16 %v1402, %v1400
    %v1449 = vpack.c.b16 %v1403, %v1401
    %v1450 = vpack.c.b16 %v1406, %v1404
    %v1451 = vpack.c.b16 %v1407, %v1405
    %v1452 = vpack.c.b16 %v1410, %v1408
    %v1453 = vpack.c.b16 %v1411, %v1409
    %v1454 = vpack.c.b16 %v1414, %v1412
    %v1455 = vpack.c.b16 %v1415, %v1413
    %v1456 = vpack.c.b16 %v1418, %v1416
    %v1457 = vpack.c.b16 %v1419, %v1417
    %v1458 = vpack.c.b16 %v1422, %v1420
    %v1459 = vpack.c.b16 %v1423, %v1421
    %v1460 = vpack.c.b16 %v1426, %v1424
    %v1461 = vpack.c.b16 %v1427, %v1425
    %v1462 = vpack.c.b16 %v1430, %v1428
    %v1463 = vpack.c.b16 %v1431, %v1429
    %1496 = vmatprep.subr.bf16.mxu0 %v1433
    %1497 = vmatpush1.bf16.msra.mxu0 %v1432
    %1498 = vmatprep.subr.bf16.mxu0 %v1435
    %1499 = vmatpush1.bf16.msra.mxu0 %v1434
    %1500 = vmatprep.subr.bf16.mxu0 %v1437
    %1501 = vmatpush1.bf16.msra.mxu0 %v1436
    %1502 = vmatprep.subr.bf16.mxu0 %v1439
    %1503 = vmatpush1.bf16.msra.mxu0 %v1438
    %1504 = vmatprep.subr.bf16.mxu0 %v1441
    %1505 = vmatpush1.bf16.msra.mxu0 %v1440
    %1506 = vmatprep.subr.bf16.mxu0 %v1443
    %1507 = vmatpush1.bf16.msra.mxu0 %v1442
    %1508 = vmatprep.subr.bf16.mxu0 %v1445
    %1509 = vmatpush1.bf16.msra.mxu0 %v1444
    %1510 = vmatprep.subr.bf16.mxu0 %v1447
    %1511 = vmatpush1.bf16.msra.mxu0 %v1446
    %1512 = vmatprep.subr.bf16.mxu0 %v1449
    %1513 = vmatpush1.bf16.msra.mxu0 %v1448
    %1514 = vmatprep.subr.bf16.mxu0 %v1451
    %1515 = vmatpush1.bf16.msra.mxu0 %v1450
    %1516 = vmatprep.subr.bf16.mxu0 %v1453
    %1517 = vmatpush1.bf16.msra.mxu0 %v1452
    %1518 = vmatprep.subr.bf16.mxu0 %v1455
    %1519 = vmatpush1.bf16.msra.mxu0 %v1454
    %1520 = vmatprep.subr.bf16.mxu0 %v1457
    %1521 = vmatpush1.bf16.msra.mxu0 %v1456
    %1522 = vmatprep.subr.bf16.mxu0 %v1459
    %1523 = vmatpush1.bf16.msra.mxu0 %v1458
    %1524 = vmatprep.subr.bf16.mxu0 %v1461
    %1525 = vmatpush1.bf16.msra.mxu0 %v1460
    %1526 = vmatprep.subr.bf16.mxu0 %v1463
    %1527 = vmatpush1.bf16.msra.mxu0 %v1462
    %1528 = vmatprep.mubr.bf16.mxu0 %v1333
    %1529 = vmatmul.mubr.bf16.gmra.mrb[0].mxu0 %v1332
    %v1530 = vpop.f32.mrb[0].mxu0
    %v1531 = vadd.f32 0.0, %v1530
    %v1532 = vpop.f32.mrb[0].mxu0
    %v1533 = vadd.f32 0.0, %v1532
    %v1534 = vpop.f32.mrb[0].mxu0
    %v1535 = vadd.f32 0.0, %v1534
    %v1536 = vpop.f32.mrb[0].mxu0
    %v1537 = vadd.f32 0.0, %v1536
    %1538 = vmatprep.mubr.bf16.mxu0 %v1335
    %1539 = vmatmul.mubr.bf16.gmra.mrb[0].mxu0 %v1334
    %v1540 = vpop.f32.mrb[0].mxu0
    %v1541 = vadd.f32 0.0, %v1540
    %v1542 = vpop.f32.mrb[0].mxu0
    %v1543 = vadd.f32 0.0, %v1542
    %v1544 = vpop.f32.mrb[0].mxu0
    %v1545 = vadd.f32 0.0, %v1544
    %v1546 = vpop.f32.mrb[0].mxu0
    %v1547 = vadd.f32 0.0, %v1546
    %1548 = vdwg.mxu0
    %1549 = vmatprep.subr.bf16.mxu0 %v466
    %1550 = vmatpush1.bf16.msra.mxu0 %v465
    %1551 = vmatprep.subr.bf16.mxu0 %v468
    %1552 = vmatpush1.bf16.msra.mxu0 %v467
    %1553 = vmatprep.subr.bf16.mxu0 0
    %1554 = vmatpush1.bf16.msra.mxu0 0
    %1555 = vmatprep.subr.bf16.mxu0 0
    %1556 = vmatpush1.bf16.msra.mxu0 0
    %1557 = vmatprep.subr.bf16.mxu0 0
    %1558 = vmatpush1.bf16.msra.mxu0 0
    %1559 = vmatprep.subr.bf16.mxu0 0
    %1560 = vmatpush1.bf16.msra.mxu0 0
    %1561 = vmatprep.subr.bf16.mxu0 0
    %1562 = vmatpush1.bf16.msra.mxu0 0
    %1563 = vmatprep.subr.bf16.mxu0 0
    %1564 = vmatpush1.bf16.msra.mxu0 0
    %1565 = vmatprep.subr.bf16.mxu0 0
    %1566 = vmatpush1.bf16.msra.mxu0 0
    %1567 = vmatprep.subr.bf16.mxu0 0
    %1568 = vmatpush1.bf16.msra.mxu0 0
    %1569 = vmatprep.subr.bf16.mxu0 0
    %1570 = vmatpush1.bf16.msra.mxu0 0
    %1571 = vmatprep.subr.bf16.mxu0 0
    %1572 = vmatpush1.bf16.msra.mxu0 0
    %1573 = vmatprep.subr.bf16.mxu0 0
    %1574 = vmatpush1.bf16.msra.mxu0 0
    %1575 = vmatprep.subr.bf16.mxu0 0
    %1576 = vmatpush1.bf16.msra.mxu0 0
    %1577 = vmatprep.subr.bf16.mxu0 0
    %1578 = vmatpush1.bf16.msra.mxu0 0
    %1579 = vmatprep.subr.bf16.mxu0 0
    %1580 = vmatpush1.bf16.msra.mxu0 0
    %1581 = vmatprep.mubr.bf16.mxu0 0
    %1582 = vmatmul.mubr.bf16.gmra.mrb[0].mxu0 %v1274
    %v1583 = vpop.f32.mrb[0].mxu0
    %v1584 = vadd.f32 0.0, %v1583
    %v1585 = vpop.f32.mrb[0].mxu0
    %v1586 = vadd.f32 0.0, %v1585
    %v1587 = vpop.f32.mrb[0].mxu0
    %v1588 = vadd.f32 0.0, %v1587
    %v1589 = vpop.f32.mrb[0].mxu0
    %v1590 = vadd.f32 0.0, %v1589
    %1591 = vmatprep.mubr.bf16.mxu0 0
    %1592 = vmatmul.mubr.bf16.gmra.mrb[0].mxu0 %v1277
    %v1593 = vpop.f32.mrb[0].mxu0
    %v1594 = vadd.f32 0.0, %v1593
    %v1595 = vpop.f32.mrb[0].mxu0
    %v1596 = vadd.f32 0.0, %v1595
    %v1597 = vpop.f32.mrb[0].mxu0
    %v1598 = vadd.f32 0.0, %v1597
    %v1599 = vpop.f32.mrb[0].mxu0
    %v1600 = vadd.f32 0.0, %v1599
    %1601 = vdwg.mxu0
    %v1602 = vpack.c.bf16 %v1588, %v1584
    %v1603 = vpack.c.bf16 %v1590, %v1586
    %v1604 = vpack.c.bf16 %v1598, %v1594
    %v1605 = vpack.c.bf16 %v1600, %v1596
    %1606 = vmatprep.subr.bf16.mxu0 %v1433
    %1607 = vmatpush1.bf16.msra.mxu0 %v1432
    %1608 = vmatprep.subr.bf16.mxu0 %v1435
    %1609 = vmatpush1.bf16.msra.mxu0 %v1434
    %1610 = vmatprep.subr.bf16.mxu0 %v1437
    %1611 = vmatpush1.bf16.msra.mxu0 %v1436
    %1612 = vmatprep.subr.bf16.mxu0 %v1439
    %1613 = vmatpush1.bf16.msra.mxu0 %v1438
    %1614 = vmatprep.subr.bf16.mxu0 %v1441
    %1615 = vmatpush1.bf16.msra.mxu0 %v1440
    %1616 = vmatprep.subr.bf16.mxu0 %v1443
    %1617 = vmatpush1.bf16.msra.mxu0 %v1442
    %1618 = vmatprep.subr.bf16.mxu0 %v1445
    %1619 = vmatpush1.bf16.msra.mxu0 %v1444
    %1620 = vmatprep.subr.bf16.mxu0 %v1447
    %1621 = vmatpush1.bf16.msra.mxu0 %v1446
    %1622 = vmatprep.subr.bf16.mxu0 %v1449
    %1623 = vmatpush1.bf16.msra.mxu0 %v1448
    %1624 = vmatprep.subr.bf16.mxu0 %v1451
    %1625 = vmatpush1.bf16.msra.mxu0 %v1450
    %1626 = vmatprep.subr.bf16.mxu0 %v1453
    %1627 = vmatpush1.bf16.msra.mxu0 %v1452
    %1628 = vmatprep.subr.bf16.mxu0 %v1455
    %1629 = vmatpush1.bf16.msra.mxu0 %v1454
    %1630 = vmatprep.subr.bf16.mxu0 %v1457
    %1631 = vmatpush1.bf16.msra.mxu0 %v1456
    %1632 = vmatprep.subr.bf16.mxu0 %v1459
    %1633 = vmatpush1.bf16.msra.mxu0 %v1458
    %1634 = vmatprep.subr.bf16.mxu0 %v1461
    %1635 = vmatpush1.bf16.msra.mxu0 %v1460
    %1636 = vmatprep.subr.bf16.mxu0 %v1463
    %1637 = vmatpush1.bf16.msra.mxu0 %v1462
    %1638 = vmatprep.mubr.bf16.mxu0 %v1603
    %1639 = vmatmul.mubr.bf16.gmra.mrb[0].mxu0 %v1602
    %v1640 = vpop.f32.mrb[0].mxu0
    %v1641 = vadd.f32 0.0, %v1640
    %v1642 = vpop.f32.mrb[0].mxu0
    %v1643 = vadd.f32 0.0, %v1642
    %v1644 = vpop.f32.mrb[0].mxu0
    %v1645 = vadd.f32 0.0, %v1644
    %v1646 = vpop.f32.mrb[0].mxu0
    %v1647 = vadd.f32 0.0, %v1646
    %1648 = vmatprep.mubr.bf16.mxu0 %v1605
    %1649 = vmatmul.mubr.bf16.gmra.mrb[0].mxu0 %v1604
    %v1650 = vpop.f32.mrb[0].mxu0
    %v1651 = vadd.f32 0.0, %v1650
    %v1652 = vpop.f32.mrb[0].mxu0
    %v1653 = vadd.f32 0.0, %v1652
    %v1654 = vpop.f32.mrb[0].mxu0
    %v1655 = vadd.f32 0.0, %v1654
    %v1656 = vpop.f32.mrb[0].mxu0
    %v1657 = vadd.f32 0.0, %v1656
    %1658 = vdwg.mxu0
    %s1659 = scalar_lea.vmem [#allocation7], 16
    %v1660 = vld [vmem:[%s1659] sm:$0xf]
    %v1661 = vld [vmem:[%s1659 + $0x4] sm:$0xf]
    %v1662 = vld [vmem:[%s1659 + $0x8] sm:$0xf]
    %v1663 = vld [vmem:[%s1659 + $0xc] sm:$0xf]
    %s1664 = scalar_lea.vmem [#allocation8], 256
    %v1665 = vld [vmem:[%s1664] sm:$0xff]
    %v1666 = vld [vmem:[%s1664 + $0x8] sm:$0xff]
    %v1667 = vld [vmem:[%s1664 + $0x10] sm:$0xff]
    %v1668 = vld [vmem:[%s1664 + $0x18] sm:$0xff]
    %v1669 = vld [vmem:[%s1664 + $0x20] sm:$0xff]
    %v1670 = vld [vmem:[%s1664 + $0x28] sm:$0xff]
    %v1671 = vld [vmem:[%s1664 + $0x30] sm:$0xff]
    %v1672 = vld [vmem:[%s1664 + $0x38] sm:$0xff]
    %v1673 = vld [vmem:[%s1664 + $0x40] sm:$0xff]
    %v1674 = vld [vmem:[%s1664 + $0x48] sm:$0xff]
    %v1675 = vld [vmem:[%s1664 + $0x50] sm:$0xff]
    %v1676 = vld [vmem:[%s1664 + $0x58] sm:$0xff]
    %v1677 = vld [vmem:[%s1664 + $0x60] sm:$0xff]
    %v1678 = vld [vmem:[%s1664 + $0x68] sm:$0xff]
    %v1679 = vld [vmem:[%s1664 + $0x70] sm:$0xff]
    %v1680 = vld [vmem:[%s1664 + $0x78] sm:$0xff]
    %v1681 = vld [vmem:[%s1664 + $0x80] sm:$0xff]
    %v1682 = vld [vmem:[%s1664 + $0x88] sm:$0xff]
    %v1683 = vld [vmem:[%s1664 + $0x90] sm:$0xff]
    %v1684 = vld [vmem:[%s1664 + $0x98] sm:$0xff]
    %v1685 = vld [vmem:[%s1664 + $0xa0] sm:$0xff]
    %v1686 = vld [vmem:[%s1664 + $0xa8] sm:$0xff]
    %v1687 = vld [vmem:[%s1664 + $0xb0] sm:$0xff]
    %v1688 = vld [vmem:[%s1664 + $0xb8] sm:$0xff]
    %v1689 = vld [vmem:[%s1664 + $0xc0] sm:$0xff]
    %v1690 = vld [vmem:[%s1664 + $0xc8] sm:$0xff]
    %v1691 = vld [vmem:[%s1664 + $0xd0] sm:$0xff]
    %v1692 = vld [vmem:[%s1664 + $0xd8] sm:$0xff]
    %v1693 = vld [vmem:[%s1664 + $0xe0] sm:$0xff]
    %v1694 = vld [vmem:[%s1664 + $0xe8] sm:$0xff]
    %v1695 = vld [vmem:[%s1664 + $0xf0] sm:$0xff]
    %v1696 = vld [vmem:[%s1664 + $0xf8] sm:$0xff]
    %v1697 = vpack.c.bf16 %v1535, %v1531
    %v1698 = vpack.c.bf16 %v1537, %v1533
    %v1699 = vpack.c.bf16 %v1545, %v1541
    %v1700 = vpack.c.bf16 %v1547, %v1543
    %v1705 = vunpack.c.l.b16 %v1660
    %v1706 = vunpack.c.l.b16 %v1661
    %v1707 = vunpack.c.l.b16 %v1662
    %v1708 = vunpack.c.l.b16 %v1663
    %v1709 = vpack.c.b16 %v1706, %v1705
    %v1710 = vpack.c.b16 %v1708, %v1707
    %v1712 = vsel %vm188, %v1709, 0
    %v1715 = vsel %vm188, %v1710, 0
    %1717 = vmatprep.subr.bf16.mxu0 %v1698
    %1718 = vmatpush1.bf16.msra.mxu0 %v1697
    %1719 = vmatprep.subr.bf16.mxu0 %v1700
    %1720 = vmatpush1.bf16.msra.mxu0 %v1699
    %1721 = vmatprep.subr.bf16.mxu0 0
    %1722 = vmatpush1.bf16.msra.mxu0 0
    %1723 = vmatprep.subr.bf16.mxu0 0
    %1724 = vmatpush1.bf16.msra.mxu0 0
    %1725 = vmatprep.subr.bf16.mxu0 0
    %1726 = vmatpush1.bf16.msra.mxu0 0
    %1727 = vmatprep.subr.bf16.mxu0 0
    %1728 = vmatpush1.bf16.msra.mxu0 0
    %1729 = vmatprep.subr.bf16.mxu0 0
    %1730 = vmatpush1.bf16.msra.mxu0 0
    %1731 = vmatprep.subr.bf16.mxu0 0
    %1732 = vmatpush1.bf16.msra.mxu0 0
    %1733 = vmatprep.subr.bf16.mxu0 0
    %1734 = vmatpush1.bf16.msra.mxu0 0
    %1735 = vmatprep.subr.bf16.mxu0 0
    %1736 = vmatpush1.bf16.msra.mxu0 0
    %1737 = vmatprep.subr.bf16.mxu0 0
    %1738 = vmatpush1.bf16.msra.mxu0 0
    %1739 = vmatprep.subr.bf16.mxu0 0
    %1740 = vmatpush1.bf16.msra.mxu0 0
    %1741 = vmatprep.subr.bf16.mxu0 0
    %1742 = vmatpush1.bf16.msra.mxu0 0
    %1743 = vmatprep.subr.bf16.mxu0 0
    %1744 = vmatpush1.bf16.msra.mxu0 0
    %1745 = vmatprep.subr.bf16.mxu0 0
    %1746 = vmatpush1.bf16.msra.mxu0 0
    %1747 = vmatprep.subr.bf16.mxu0 0
    %1748 = vmatpush1.bf16.msra.mxu0 0
    %1749 = vmatprep.mubr.bf16.mxu0 0
    %1750 = vmatmul.mubr.bf16.gmra.mrb[0].mxu0 %v1712
    %v1751 = vpop.f32.mrb[0].mxu0
    %v1752 = vadd.f32 0.0, %v1751
    %v1753 = vpop.f32.mrb[0].mxu0
    %v1754 = vadd.f32 0.0, %v1753
    %v1755 = vpop.f32.mrb[0].mxu0
    %v1756 = vadd.f32 0.0, %v1755
    %v1757 = vpop.f32.mrb[0].mxu0
    %v1758 = vadd.f32 0.0, %v1757
    %1759 = vmatprep.mubr.bf16.mxu0 0
    %1760 = vmatmul.mubr.bf16.gmra.mrb[0].mxu0 %v1715
    %v1761 = vpop.f32.mrb[0].mxu0
    %v1762 = vadd.f32 0.0, %v1761
    %v1763 = vpop.f32.mrb[0].mxu0
    %v1764 = vadd.f32 0.0, %v1763
    %v1765 = vpop.f32.mrb[0].mxu0
    %v1766 = vadd.f32 0.0, %v1765
    %v1767 = vpop.f32.mrb[0].mxu0
    %v1768 = vadd.f32 0.0, %v1767
    %1769 = vdwg.mxu0
    %v1770 = vpack.c.bf16 %v1756, %v1752
    %v1771 = vpack.c.bf16 %v1758, %v1754
    %v1772 = vpack.c.bf16 %v1766, %v1762
    %v1773 = vpack.c.bf16 %v1768, %v1764
    %v1806 = vunpack.c.l.b16 %v1665
    %v1807 = vunpack.c.h.b16 %v1665
    %v1808 = vunpack.c.l.b16 %v1666
    %v1809 = vunpack.c.h.b16 %v1666
    %v1810 = vunpack.c.l.b16 %v1667
    %v1811 = vunpack.c.h.b16 %v1667
    %v1812 = vunpack.c.l.b16 %v1668
    %v1813 = vunpack.c.h.b16 %v1668
    %v1814 = vunpack.c.l.b16 %v1669
    %v1815 = vunpack.c.h.b16 %v1669
    %v1816 = vunpack.c.l.b16 %v1670
    %v1817 = vunpack.c.h.b16 %v1670
    %v1818 = vunpack.c.l.b16 %v1671
    %v1819 = vunpack.c.h.b16 %v1671
    %v1820 = vunpack.c.l.b16 %v1672
    %v1821 = vunpack.c.h.b16 %v1672
    %v1822 = vunpack.c.l.b16 %v1673
    %v1823 = vunpack.c.h.b16 %v1673
    %v1824 = vunpack.c.l.b16 %v1674
    %v1825 = vunpack.c.h.b16 %v1674
    %v1826 = vunpack.c.l.b16 %v1675
    %v1827 = vunpack.c.h.b16 %v1675
    %v1828 = vunpack.c.l.b16 %v1676
    %v1829 = vunpack.c.h.b16 %v1676
    %v1830 = vunpack.c.l.b16 %v1677
    %v1831 = vunpack.c.h.b16 %v1677
    %v1832 = vunpack.c.l.b16 %v1678
    %v1833 = vunpack.c.h.b16 %v1678
    %v1834 = vunpack.c.l.b16 %v1679
    %v1835 = vunpack.c.h.b16 %v1679
    %v1836 = vunpack.c.l.b16 %v1680
    %v1837 = vunpack.c.h.b16 %v1680
    %v1838 = vunpack.c.l.b16 %v1681
    %v1839 = vunpack.c.h.b16 %v1681
    %v1840 = vunpack.c.l.b16 %v1682
    %v1841 = vunpack.c.h.b16 %v1682
    %v1842 = vunpack.c.l.b16 %v1683
    %v1843 = vunpack.c.h.b16 %v1683
    %v1844 = vunpack.c.l.b16 %v1684
    %v1845 = vunpack.c.h.b16 %v1684
    %v1846 = vunpack.c.l.b16 %v1685
    %v1847 = vunpack.c.h.b16 %v1685
    %v1848 = vunpack.c.l.b16 %v1686
    %v1849 = vunpack.c.h.b16 %v1686
    %v1850 = vunpack.c.l.b16 %v1687
    %v1851 = vunpack.c.h.b16 %v1687
    %v1852 = vunpack.c.l.b16 %v1688
    %v1853 = vunpack.c.h.b16 %v1688
    %v1854 = vunpack.c.l.b16 %v1689
    %v1855 = vunpack.c.h.b16 %v1689
    %v1856 = vunpack.c.l.b16 %v1690
    %v1857 = vunpack.c.h.b16 %v1690
    %v1858 = vunpack.c.l.b16 %v1691
    %v1859 = vunpack.c.h.b16 %v1691
    %v1860 = vunpack.c.l.b16 %v1692
    %v1861 = vunpack.c.h.b16 %v1692
    %v1862 = vunpack.c.l.b16 %v1693
    %v1863 = vunpack.c.h.b16 %v1693
    %v1864 = vunpack.c.l.b16 %v1694
    %v1865 = vunpack.c.h.b16 %v1694
    %v1866 = vunpack.c.l.b16 %v1695
    %v1867 = vunpack.c.h.b16 %v1695
    %v1868 = vunpack.c.l.b16 %v1696
    %v1869 = vunpack.c.h.b16 %v1696
    %v1870 = vpack.c.b16 %v1808, %v1806
    %v1871 = vpack.c.b16 %v1809, %v1807
    %v1872 = vpack.c.b16 %v1812, %v1810
    %v1873 = vpack.c.b16 %v1813, %v1811
    %v1874 = vpack.c.b16 %v1816, %v1814
    %v1875 = vpack.c.b16 %v1817, %v1815
    %v1876 = vpack.c.b16 %v1820, %v1818
    %v1877 = vpack.c.b16 %v1821, %v1819
    %v1878 = vpack.c.b16 %v1824, %v1822
    %v1879 = vpack.c.b16 %v1825, %v1823
    %v1880 = vpack.c.b16 %v1828, %v1826
    %v1881 = vpack.c.b16 %v1829, %v1827
    %v1882 = vpack.c.b16 %v1832, %v1830
    %v1883 = vpack.c.b16 %v1833, %v1831
    %v1884 = vpack.c.b16 %v1836, %v1834
    %v1885 = vpack.c.b16 %v1837, %v1835
    %v1886 = vpack.c.b16 %v1840, %v1838
    %v1887 = vpack.c.b16 %v1841, %v1839
    %v1888 = vpack.c.b16 %v1844, %v1842
    %v1889 = vpack.c.b16 %v1845, %v1843
    %v1890 = vpack.c.b16 %v1848, %v1846
    %v1891 = vpack.c.b16 %v1849, %v1847
    %v1892 = vpack.c.b16 %v1852, %v1850
    %v1893 = vpack.c.b16 %v1853, %v1851
    %v1894 = vpack.c.b16 %v1856, %v1854
    %v1895 = vpack.c.b16 %v1857, %v1855
    %v1896 = vpack.c.b16 %v1860, %v1858
    %v1897 = vpack.c.b16 %v1861, %v1859
    %v1898 = vpack.c.b16 %v1864, %v1862
    %v1899 = vpack.c.b16 %v1865, %v1863
    %v1900 = vpack.c.b16 %v1868, %v1866
    %v1901 = vpack.c.b16 %v1869, %v1867
    %1934 = vmatprep.subr.bf16.mxu0 %v1871
    %1935 = vmatpush1.bf16.msra.mxu0 %v1870
    %1936 = vmatprep.subr.bf16.mxu0 %v1873
    %1937 = vmatpush1.bf16.msra.mxu0 %v1872
    %1938 = vmatprep.subr.bf16.mxu0 %v1875
    %1939 = vmatpush1.bf16.msra.mxu0 %v1874
    %1940 = vmatprep.subr.bf16.mxu0 %v1877
    %1941 = vmatpush1.bf16.msra.mxu0 %v1876
    %1942 = vmatprep.subr.bf16.mxu0 %v1879
    %1943 = vmatpush1.bf16.msra.mxu0 %v1878
    %1944 = vmatprep.subr.bf16.mxu0 %v1881
    %1945 = vmatpush1.bf16.msra.mxu0 %v1880
    %1946 = vmatprep.subr.bf16.mxu0 %v1883
    %1947 = vmatpush1.bf16.msra.mxu0 %v1882
    %1948 = vmatprep.subr.bf16.mxu0 %v1885
    %1949 = vmatpush1.bf16.msra.mxu0 %v1884
    %1950 = vmatprep.subr.bf16.mxu0 %v1887
    %1951 = vmatpush1.bf16.msra.mxu0 %v1886
    %1952 = vmatprep.subr.bf16.mxu0 %v1889
    %1953 = vmatpush1.bf16.msra.mxu0 %v1888
    %1954 = vmatprep.subr.bf16.mxu0 %v1891
    %1955 = vmatpush1.bf16.msra.mxu0 %v1890
    %1956 = vmatprep.subr.bf16.mxu0 %v1893
    %1957 = vmatpush1.bf16.msra.mxu0 %v1892
    %1958 = vmatprep.subr.bf16.mxu0 %v1895
    %1959 = vmatpush1.bf16.msra.mxu0 %v1894
    %1960 = vmatprep.subr.bf16.mxu0 %v1897
    %1961 = vmatpush1.bf16.msra.mxu0 %v1896
    %1962 = vmatprep.subr.bf16.mxu0 %v1899
    %1963 = vmatpush1.bf16.msra.mxu0 %v1898
    %1964 = vmatprep.subr.bf16.mxu0 %v1901
    %1965 = vmatpush1.bf16.msra.mxu0 %v1900
    %1966 = vmatprep.mubr.bf16.mxu0 %v1771
    %1967 = vmatmul.mubr.bf16.gmra.mrb[0].mxu0 %v1770
    %v1968 = vpop.f32.mrb[0].mxu0
    %v1969 = vadd.f32 0.0, %v1968
    %v1970 = vpop.f32.mrb[0].mxu0
    %v1971 = vadd.f32 0.0, %v1970
    %v1972 = vpop.f32.mrb[0].mxu0
    %v1973 = vadd.f32 0.0, %v1972
    %v1974 = vpop.f32.mrb[0].mxu0
    %v1975 = vadd.f32 0.0, %v1974
    %1976 = vmatprep.mubr.bf16.mxu0 %v1773
    %1977 = vmatmul.mubr.bf16.gmra.mrb[0].mxu0 %v1772
    %v1978 = vpop.f32.mrb[0].mxu0
    %v1979 = vadd.f32 0.0, %v1978
    %v1980 = vpop.f32.mrb[0].mxu0
    %v1981 = vadd.f32 0.0, %v1980
    %v1982 = vpop.f32.mrb[0].mxu0
    %v1983 = vadd.f32 0.0, %v1982
    %v1984 = vpop.f32.mrb[0].mxu0
    %v1985 = vadd.f32 0.0, %v1984
    %1986 = vdwg.mxu0
    %v1987 = vpack.c.bf16 %v1645, %v1641
    %v1988 = vpack.c.bf16 %v1647, %v1643
    %v1989 = vpack.c.bf16 %v1655, %v1651
    %v1990 = vpack.c.bf16 %v1657, %v1653
    %1991 = vmatprep.subr.bf16.mxu0 %v1988
    %1992 = vmatpush1.bf16.msra.mxu0 %v1987
    %1993 = vmatprep.subr.bf16.mxu0 %v1990
    %1994 = vmatpush1.bf16.msra.mxu0 %v1989
    %1995 = vmatprep.subr.bf16.mxu0 0
    %1996 = vmatpush1.bf16.msra.mxu0 0
    %1997 = vmatprep.subr.bf16.mxu0 0
    %1998 = vmatpush1.bf16.msra.mxu0 0
    %1999 = vmatprep.subr.bf16.mxu0 0
    %2000 = vmatpush1.bf16.msra.mxu0 0
    %2001 = vmatprep.subr.bf16.mxu0 0
    %2002 = vmatpush1.bf16.msra.mxu0 0
    %2003 = vmatprep.subr.bf16.mxu0 0
    %2004 = vmatpush1.bf16.msra.mxu0 0
    %2005 = vmatprep.subr.bf16.mxu0 0
    %2006 = vmatpush1.bf16.msra.mxu0 0
    %2007 = vmatprep.subr.bf16.mxu0 0
    %2008 = vmatpush1.bf16.msra.mxu0 0
    %2009 = vmatprep.subr.bf16.mxu0 0
    %2010 = vmatpush1.bf16.msra.mxu0 0
    %2011 = vmatprep.subr.bf16.mxu0 0
    %2012 = vmatpush1.bf16.msra.mxu0 0
    %2013 = vmatprep.subr.bf16.mxu0 0
    %2014 = vmatpush1.bf16.msra.mxu0 0
    %2015 = vmatprep.subr.bf16.mxu0 0
    %2016 = vmatpush1.bf16.msra.mxu0 0
    %2017 = vmatprep.subr.bf16.mxu0 0
    %2018 = vmatpush1.bf16.msra.mxu0 0
    %2019 = vmatprep.subr.bf16.mxu0 0
    %2020 = vmatpush1.bf16.msra.mxu0 0
    %2021 = vmatprep.subr.bf16.mxu0 0
    %2022 = vmatpush1.bf16.msra.mxu0 0
    %2023 = vmatprep.mubr.bf16.mxu0 0
    %2024 = vmatmul.mubr.bf16.gmra.mrb[0].mxu0 %v1712
    %v2025 = vpop.f32.mrb[0].mxu0
    %v2026 = vadd.f32 0.0, %v2025
    %v2027 = vpop.f32.mrb[0].mxu0
    %v2028 = vadd.f32 0.0, %v2027
    %v2029 = vpop.f32.mrb[0].mxu0
    %v2030 = vadd.f32 0.0, %v2029
    %v2031 = vpop.f32.mrb[0].mxu0
    %v2032 = vadd.f32 0.0, %v2031
    %2033 = vmatprep.mubr.bf16.mxu0 0
    %2034 = vmatmul.mubr.bf16.gmra.mrb[0].mxu0 %v1715
    %v2035 = vpop.f32.mrb[0].mxu0
    %v2036 = vadd.f32 0.0, %v2035
    %v2037 = vpop.f32.mrb[0].mxu0
    %v2038 = vadd.f32 0.0, %v2037
    %v2039 = vpop.f32.mrb[0].mxu0
    %v2040 = vadd.f32 0.0, %v2039
    %v2041 = vpop.f32.mrb[0].mxu0
    %v2042 = vadd.f32 0.0, %v2041
    %2043 = vdwg.mxu0
    %v2044 = vpack.c.bf16 %v2030, %v2026
    %v2045 = vpack.c.bf16 %v2032, %v2028
    %v2046 = vpack.c.bf16 %v2040, %v2036
    %v2047 = vpack.c.bf16 %v2042, %v2038
    %2048 = vmatprep.subr.bf16.mxu0 %v1871
    %2049 = vmatpush1.bf16.msra.mxu0 %v1870
    %2050 = vmatprep.subr.bf16.mxu0 %v1873
    %2051 = vmatpush1.bf16.msra.mxu0 %v1872
    %2052 = vmatprep.subr.bf16.mxu0 %v1875
    %2053 = vmatpush1.bf16.msra.mxu0 %v1874
    %2054 = vmatprep.subr.bf16.mxu0 %v1877
    %2055 = vmatpush1.bf16.msra.mxu0 %v1876
    %2056 = vmatprep.subr.bf16.mxu0 %v1879
    %2057 = vmatpush1.bf16.msra.mxu0 %v1878
    %2058 = vmatprep.subr.bf16.mxu0 %v1881
    %2059 = vmatpush1.bf16.msra.mxu0 %v1880
    %2060 = vmatprep.subr.bf16.mxu0 %v1883
    %2061 = vmatpush1.bf16.msra.mxu0 %v1882
    %2062 = vmatprep.subr.bf16.mxu0 %v1885
    %2063 = vmatpush1.bf16.msra.mxu0 %v1884
    %2064 = vmatprep.subr.bf16.mxu0 %v1887
    %2065 = vmatpush1.bf16.msra.mxu0 %v1886
    %2066 = vmatprep.subr.bf16.mxu0 %v1889
    %2067 = vmatpush1.bf16.msra.mxu0 %v1888
    %2068 = vmatprep.subr.bf16.mxu0 %v1891
    %2069 = vmatpush1.bf16.msra.mxu0 %v1890
    %2070 = vmatprep.subr.bf16.mxu0 %v1893
    %2071 = vmatpush1.bf16.msra.mxu0 %v1892
    %2072 = vmatprep.subr.bf16.mxu0 %v1895
    %2073 = vmatpush1.bf16.msra.mxu0 %v1894
    %2074 = vmatprep.subr.bf16.mxu0 %v1897
    %2075 = vmatpush1.bf16.msra.mxu0 %v1896
    %2076 = vmatprep.subr.bf16.mxu0 %v1899
    %2077 = vmatpush1.bf16.msra.mxu0 %v1898
    %2078 = vmatprep.subr.bf16.mxu0 %v1901
    %2079 = vmatpush1.bf16.msra.mxu0 %v1900
    %2080 = vmatprep.mubr.bf16.mxu0 %v2045
    %2081 = vmatmul.mubr.bf16.gmra.mrb[0].mxu0 %v2044
    %v2082 = vpop.f32.mrb[0].mxu0
    %v2083 = vadd.f32 0.0, %v2082
    %v2084 = vpop.f32.mrb[0].mxu0
    %v2085 = vadd.f32 0.0, %v2084
    %v2086 = vpop.f32.mrb[0].mxu0
    %v2087 = vadd.f32 0.0, %v2086
    %v2088 = vpop.f32.mrb[0].mxu0
    %v2089 = vadd.f32 0.0, %v2088
    %2090 = vmatprep.mubr.bf16.mxu0 %v2047
    %2091 = vmatmul.mubr.bf16.gmra.mrb[0].mxu0 %v2046
    %v2092 = vpop.f32.mrb[0].mxu0
    %v2093 = vadd.f32 0.0, %v2092
    %v2094 = vpop.f32.mrb[0].mxu0
    %v2095 = vadd.f32 0.0, %v2094
    %v2096 = vpop.f32.mrb[0].mxu0
    %v2097 = vadd.f32 0.0, %v2096
    %v2098 = vpop.f32.mrb[0].mxu0
    %v2099 = vadd.f32 0.0, %v2098
    %2100 = vdwg.mxu0
    %v2101 = vmul.f32 %v1531, %v1531
    %v2102 = vmul.f32 %v1533, %v1533
    %v2103 = vmul.f32 %v1535, %v1535
    %v2104 = vmul.f32 %v1537, %v1537
    %v2105 = vmul.f32 %v1541, %v1541
    %v2106 = vmul.f32 %v1543, %v1543
    %v2107 = vmul.f32 %v1545, %v1545
    %v2108 = vmul.f32 %v1547, %v1547
    %v2109 = vpack.c.bf16 %v2103, %v2101
    %v2110 = vpack.c.bf16 %v2104, %v2102
    %v2111 = vpack.c.bf16 %v2107, %v2105
    %v2112 = vpack.c.bf16 %v2108, %v2106
    %2113 = vmatprep.subr.bf16.mxu0 %v2110
    %2114 = vmatpush1.bf16.msra.mxu0 %v2109
    %2115 = vmatprep.subr.bf16.mxu0 %v2112
    %2116 = vmatpush1.bf16.msra.mxu0 %v2111
    %2117 = vmatprep.subr.bf16.mxu0 0
    %2118 = vmatpush1.bf16.msra.mxu0 0
    %2119 = vmatprep.subr.bf16.mxu0 0
    %2120 = vmatpush1.bf16.msra.mxu0 0
    %2121 = vmatprep.subr.bf16.mxu0 0
    %2122 = vmatpush1.bf16.msra.mxu0 0
    %2123 = vmatprep.subr.bf16.mxu0 0
    %2124 = vmatpush1.bf16.msra.mxu0 0
    %2125 = vmatprep.subr.bf16.mxu0 0
    %2126 = vmatpush1.bf16.msra.mxu0 0
    %2127 = vmatprep.subr.bf16.mxu0 0
    %2128 = vmatpush1.bf16.msra.mxu0 0
    %2129 = vmatprep.subr.bf16.mxu0 0
    %2130 = vmatpush1.bf16.msra.mxu0 0
    %2131 = vmatprep.subr.bf16.mxu0 0
    %2132 = vmatpush1.bf16.msra.mxu0 0
    %2133 = vmatprep.subr.bf16.mxu0 0
    %2134 = vmatpush1.bf16.msra.mxu0 0
    %2135 = vmatprep.subr.bf16.mxu0 0
    %2136 = vmatpush1.bf16.msra.mxu0 0
    %2137 = vmatprep.subr.bf16.mxu0 0
    %2138 = vmatpush1.bf16.msra.mxu0 0
    %2139 = vmatprep.subr.bf16.mxu0 0
    %2140 = vmatpush1.bf16.msra.mxu0 0
    %2141 = vmatprep.subr.bf16.mxu0 0
    %2142 = vmatpush1.bf16.msra.mxu0 0
    %2143 = vmatprep.subr.bf16.mxu0 0
    %2144 = vmatpush1.bf16.msra.mxu0 0
    %2145 = vmatprep.mubr.bf16.mxu0 0
    %2146 = vmatmul.mubr.bf16.gmra.mrb[0].mxu0 %v1712
    %v2147 = vpop.f32.mrb[0].mxu0
    %v2148 = vadd.f32 0.0, %v2147
    %v2149 = vpop.f32.mrb[0].mxu0
    %v2150 = vadd.f32 0.0, %v2149
    %v2151 = vpop.f32.mrb[0].mxu0
    %v2152 = vadd.f32 0.0, %v2151
    %v2153 = vpop.f32.mrb[0].mxu0
    %v2154 = vadd.f32 0.0, %v2153
    %2155 = vmatprep.mubr.bf16.mxu0 0
    %2156 = vmatmul.mubr.bf16.gmra.mrb[0].mxu0 %v1715
    %v2157 = vpop.f32.mrb[0].mxu0
    %v2158 = vadd.f32 0.0, %v2157
    %v2159 = vpop.f32.mrb[0].mxu0
    %v2160 = vadd.f32 0.0, %v2159
    %v2161 = vpop.f32.mrb[0].mxu0
    %v2162 = vadd.f32 0.0, %v2161
    %v2163 = vpop.f32.mrb[0].mxu0
    %v2164 = vadd.f32 0.0, %v2163
    %2165 = vdwg.mxu0
    %v2166 = vpack.c.bf16 %v2152, %v2148
    %v2167 = vpack.c.bf16 %v2154, %v2150
    %v2168 = vpack.c.bf16 %v2162, %v2158
    %v2169 = vpack.c.bf16 %v2164, %v2160
    %2170 = vmatprep.subr.bf16.mxu0 %v1871
    %2171 = vmatpush1.bf16.msra.mxu0 %v1870
    %2172 = vmatprep.subr.bf16.mxu0 %v1873
    %2173 = vmatpush1.bf16.msra.mxu0 %v1872
    %2174 = vmatprep.subr.bf16.mxu0 %v1875
    %2175 = vmatpush1.bf16.msra.mxu0 %v1874
    %2176 = vmatprep.subr.bf16.mxu0 %v1877
    %2177 = vmatpush1.bf16.msra.mxu0 %v1876
    %2178 = vmatprep.subr.bf16.mxu0 %v1879
    %2179 = vmatpush1.bf16.msra.mxu0 %v1878
    %2180 = vmatprep.subr.bf16.mxu0 %v1881
    %2181 = vmatpush1.bf16.msra.mxu0 %v1880
    %2182 = vmatprep.subr.bf16.mxu0 %v1883
    %2183 = vmatpush1.bf16.msra.mxu0 %v1882
    %2184 = vmatprep.subr.bf16.mxu0 %v1885
    %2185 = vmatpush1.bf16.msra.mxu0 %v1884
    %2186 = vmatprep.subr.bf16.mxu0 %v1887
    %2187 = vmatpush1.bf16.msra.mxu0 %v1886
    %2188 = vmatprep.subr.bf16.mxu0 %v1889
    %2189 = vmatpush1.bf16.msra.mxu0 %v1888
    %2190 = vmatprep.subr.bf16.mxu0 %v1891
    %2191 = vmatpush1.bf16.msra.mxu0 %v1890
    %2192 = vmatprep.subr.bf16.mxu0 %v1893
    %2193 = vmatpush1.bf16.msra.mxu0 %v1892
    %2194 = vmatprep.subr.bf16.mxu0 %v1895
    %2195 = vmatpush1.bf16.msra.mxu0 %v1894
    %2196 = vmatprep.subr.bf16.mxu0 %v1897
    %2197 = vmatpush1.bf16.msra.mxu0 %v1896
    %2198 = vmatprep.subr.bf16.mxu0 %v1899
    %2199 = vmatpush1.bf16.msra.mxu0 %v1898
    %2200 = vmatprep.subr.bf16.mxu0 %v1901
    %2201 = vmatpush1.bf16.msra.mxu0 %v1900
    %2202 = vmatprep.mubr.bf16.mxu0 %v2167
    %2203 = vmatmul.mubr.bf16.gmra.mrb[0].mxu0 %v2166
    %v2204 = vpop.f32.mrb[0].mxu0
    %v2205 = vadd.f32 0.0, %v2204
    %v2206 = vpop.f32.mrb[0].mxu0
    %v2207 = vadd.f32 0.0, %v2206
    %v2208 = vpop.f32.mrb[0].mxu0
    %v2209 = vadd.f32 0.0, %v2208
    %v2210 = vpop.f32.mrb[0].mxu0
    %v2211 = vadd.f32 0.0, %v2210
    %2212 = vmatprep.mubr.bf16.mxu0 %v2169
    %2213 = vmatmul.mubr.bf16.gmra.mrb[0].mxu0 %v2168
    %v2214 = vpop.f32.mrb[0].mxu0
    %v2215 = vadd.f32 0.0, %v2214
    %v2216 = vpop.f32.mrb[0].mxu0
    %v2217 = vadd.f32 0.0, %v2216
    %v2218 = vpop.f32.mrb[0].mxu0
    %v2219 = vadd.f32 0.0, %v2218
    %v2220 = vpop.f32.mrb[0].mxu0
    %v2221 = vadd.f32 0.0, %v2220
    %2222 = vdwg.mxu0
    %v2223 = vmul.f32 %v1641, %v1641
    %v2224 = vmul.f32 %v1643, %v1643
    %v2225 = vmul.f32 %v1645, %v1645
    %v2226 = vmul.f32 %v1647, %v1647
    %v2227 = vmul.f32 %v1651, %v1651
    %v2228 = vmul.f32 %v1653, %v1653
    %v2229 = vmul.f32 %v1655, %v1655
    %v2230 = vmul.f32 %v1657, %v1657
    %v2231 = vpack.c.bf16 %v2225, %v2223
    %v2232 = vpack.c.bf16 %v2226, %v2224
    %v2233 = vpack.c.bf16 %v2229, %v2227
    %v2234 = vpack.c.bf16 %v2230, %v2228
    %2235 = vmatprep.subr.bf16.mxu0 %v2232
    %2236 = vmatpush1.bf16.msra.mxu0 %v2231
    %2237 = vmatprep.subr.bf16.mxu0 %v2234
    %2238 = vmatpush1.bf16.msra.mxu0 %v2233
    %2239 = vmatprep.subr.bf16.mxu0 0
    %2240 = vmatpush1.bf16.msra.mxu0 0
    %2241 = vmatprep.subr.bf16.mxu0 0
    %2242 = vmatpush1.bf16.msra.mxu0 0
    %2243 = vmatprep.subr.bf16.mxu0 0
    %2244 = vmatpush1.bf16.msra.mxu0 0
    %2245 = vmatprep.subr.bf16.mxu0 0
    %2246 = vmatpush1.bf16.msra.mxu0 0
    %2247 = vmatprep.subr.bf16.mxu0 0
    %2248 = vmatpush1.bf16.msra.mxu0 0
    %2249 = vmatprep.subr.bf16.mxu0 0
    %2250 = vmatpush1.bf16.msra.mxu0 0
    %2251 = vmatprep.subr.bf16.mxu0 0
    %2252 = vmatpush1.bf16.msra.mxu0 0
    %2253 = vmatprep.subr.bf16.mxu0 0
    %2254 = vmatpush1.bf16.msra.mxu0 0
    %2255 = vmatprep.subr.bf16.mxu0 0
    %2256 = vmatpush1.bf16.msra.mxu0 0
    %2257 = vmatprep.subr.bf16.mxu0 0
    %2258 = vmatpush1.bf16.msra.mxu0 0
    %2259 = vmatprep.subr.bf16.mxu0 0
    %2260 = vmatpush1.bf16.msra.mxu0 0
    %2261 = vmatprep.subr.bf16.mxu0 0
    %2262 = vmatpush1.bf16.msra.mxu0 0
    %2263 = vmatprep.subr.bf16.mxu0 0
    %2264 = vmatpush1.bf16.msra.mxu0 0
    %2265 = vmatprep.subr.bf16.mxu0 0
    %2266 = vmatpush1.bf16.msra.mxu0 0
    %2267 = vmatprep.mubr.bf16.mxu0 0
    %2268 = vmatmul.mubr.bf16.gmra.mrb[0].mxu0 %v1712
    %v2269 = vpop.f32.mrb[0].mxu0
    %v2270 = vadd.f32 0.0, %v2269
    %v2271 = vpop.f32.mrb[0].mxu0
    %v2272 = vadd.f32 0.0, %v2271
    %v2273 = vpop.f32.mrb[0].mxu0
    %v2274 = vadd.f32 0.0, %v2273
    %v2275 = vpop.f32.mrb[0].mxu0
    %v2276 = vadd.f32 0.0, %v2275
    %2277 = vmatprep.mubr.bf16.mxu0 0
    %2278 = vmatmul.mubr.bf16.gmra.mrb[0].mxu0 %v1715
    %v2279 = vpop.f32.mrb[0].mxu0
    %v2280 = vadd.f32 0.0, %v2279
    %v2281 = vpop.f32.mrb[0].mxu0
    %v2282 = vadd.f32 0.0, %v2281
    %v2283 = vpop.f32.mrb[0].mxu0
    %v2284 = vadd.f32 0.0, %v2283
    %v2285 = vpop.f32.mrb[0].mxu0
    %v2286 = vadd.f32 0.0, %v2285
    %2287 = vdwg.mxu0
    %v2288 = vpack.c.bf16 %v2274, %v2270
    %v2289 = vpack.c.bf16 %v2276, %v2272
    %v2290 = vpack.c.bf16 %v2284, %v2280
    %v2291 = vpack.c.bf16 %v2286, %v2282
    %2292 = vmatprep.subr.bf16.mxu0 %v1871
    %2293 = vmatpush1.bf16.msra.mxu0 %v1870
    %2294 = vmatprep.subr.bf16.mxu0 %v1873
    %2295 = vmatpush1.bf16.msra.mxu0 %v1872
    %2296 = vmatprep.subr.bf16.mxu0 %v1875
    %2297 = vmatpush1.bf16.msra.mxu0 %v1874
    %2298 = vmatprep.subr.bf16.mxu0 %v1877
    %2299 = vmatpush1.bf16.msra.mxu0 %v1876
    %2300 = vmatprep.subr.bf16.mxu0 %v1879
    %2301 = vmatpush1.bf16.msra.mxu0 %v1878
    %2302 = vmatprep.subr.bf16.mxu0 %v1881
    %2303 = vmatpush1.bf16.msra.mxu0 %v1880
    %2304 = vmatprep.subr.bf16.mxu0 %v1883
    %2305 = vmatpush1.bf16.msra.mxu0 %v1882
    %2306 = vmatprep.subr.bf16.mxu0 %v1885
    %2307 = vmatpush1.bf16.msra.mxu0 %v1884
    %2308 = vmatprep.subr.bf16.mxu0 %v1887
    %2309 = vmatpush1.bf16.msra.mxu0 %v1886
    %2310 = vmatprep.subr.bf16.mxu0 %v1889
    %2311 = vmatpush1.bf16.msra.mxu0 %v1888
    %2312 = vmatprep.subr.bf16.mxu0 %v1891
    %2313 = vmatpush1.bf16.msra.mxu0 %v1890
    %2314 = vmatprep.subr.bf16.mxu0 %v1893
    %2315 = vmatpush1.bf16.msra.mxu0 %v1892
    %2316 = vmatprep.subr.bf16.mxu0 %v1895
    %2317 = vmatpush1.bf16.msra.mxu0 %v1894
    %2318 = vmatprep.subr.bf16.mxu0 %v1897
    %2319 = vmatpush1.bf16.msra.mxu0 %v1896
    %2320 = vmatprep.subr.bf16.mxu0 %v1899
    %2321 = vmatpush1.bf16.msra.mxu0 %v1898
    %2322 = vmatprep.subr.bf16.mxu0 %v1901
    %2323 = vmatpush1.bf16.msra.mxu0 %v1900
    %2324 = vmatprep.mubr.bf16.mxu0 %v2289
    %2325 = vmatmul.mubr.bf16.gmra.mrb[0].mxu0 %v2288
    %v2326 = vpop.f32.mrb[0].mxu0
    %v2327 = vadd.f32 0.0, %v2326
    %v2328 = vpop.f32.mrb[0].mxu0
    %v2329 = vadd.f32 0.0, %v2328
    %v2330 = vpop.f32.mrb[0].mxu0
    %v2331 = vadd.f32 0.0, %v2330
    %v2332 = vpop.f32.mrb[0].mxu0
    %v2333 = vadd.f32 0.0, %v2332
    %2334 = vmatprep.mubr.bf16.mxu0 %v2291
    %2335 = vmatmul.mubr.bf16.gmra.mrb[0].mxu0 %v2290
    %v2336 = vpop.f32.mrb[0].mxu0
    %v2337 = vadd.f32 0.0, %v2336
    %v2338 = vpop.f32.mrb[0].mxu0
    %v2339 = vadd.f32 0.0, %v2338
    %v2340 = vpop.f32.mrb[0].mxu0
    %v2341 = vadd.f32 0.0, %v2340
    %v2342 = vpop.f32.mrb[0].mxu0
    %v2343 = vadd.f32 0.0, %v2342
    %2344 = vdwg.mxu0
    %v2345 = vmul.f32 %v1531, %v1641
    %v2346 = vmul.f32 %v1533, %v1643
    %v2347 = vmul.f32 %v1535, %v1645
    %v2348 = vmul.f32 %v1537, %v1647
    %v2349 = vmul.f32 %v1541, %v1651
    %v2350 = vmul.f32 %v1543, %v1653
    %v2351 = vmul.f32 %v1545, %v1655
    %v2352 = vmul.f32 %v1547, %v1657
    %v2353 = vpack.c.bf16 %v2347, %v2345
    %v2354 = vpack.c.bf16 %v2348, %v2346
    %v2355 = vpack.c.bf16 %v2351, %v2349
    %v2356 = vpack.c.bf16 %v2352, %v2350
    %2357 = vmatprep.subr.bf16.mxu0 %v2354
    %2358 = vmatpush1.bf16.msra.mxu0 %v2353
    %2359 = vmatprep.subr.bf16.mxu0 %v2356
    %2360 = vmatpush1.bf16.msra.mxu0 %v2355
    %2361 = vmatprep.subr.bf16.mxu0 0
    %2362 = vmatpush1.bf16.msra.mxu0 0
    %2363 = vmatprep.subr.bf16.mxu0 0
    %2364 = vmatpush1.bf16.msra.mxu0 0
    %2365 = vmatprep.subr.bf16.mxu0 0
    %2366 = vmatpush1.bf16.msra.mxu0 0
    %2367 = vmatprep.subr.bf16.mxu0 0
    %2368 = vmatpush1.bf16.msra.mxu0 0
    %2369 = vmatprep.subr.bf16.mxu0 0
    %2370 = vmatpush1.bf16.msra.mxu0 0
    %2371 = vmatprep.subr.bf16.mxu0 0
    %2372 = vmatpush1.bf16.msra.mxu0 0
    %2373 = vmatprep.subr.bf16.mxu0 0
    %2374 = vmatpush1.bf16.msra.mxu0 0
    %2375 = vmatprep.subr.bf16.mxu0 0
    %2376 = vmatpush1.bf16.msra.mxu0 0
    %2377 = vmatprep.subr.bf16.mxu0 0
    %2378 = vmatpush1.bf16.msra.mxu0 0
    %2379 = vmatprep.subr.bf16.mxu0 0
    %2380 = vmatpush1.bf16.msra.mxu0 0
    %2381 = vmatprep.subr.bf16.mxu0 0
    %2382 = vmatpush1.bf16.msra.mxu0 0
    %2383 = vmatprep.subr.bf16.mxu0 0
    %2384 = vmatpush1.bf16.msra.mxu0 0
    %2385 = vmatprep.subr.bf16.mxu0 0
    %2386 = vmatpush1.bf16.msra.mxu0 0
    %2387 = vmatprep.subr.bf16.mxu0 0
    %2388 = vmatpush1.bf16.msra.mxu0 0
    %2389 = vmatprep.mubr.bf16.mxu0 0
    %2390 = vmatmul.mubr.bf16.gmra.mrb[0].mxu0 %v1712
    %v2391 = vpop.f32.mrb[0].mxu0
    %v2392 = vadd.f32 0.0, %v2391
    %v2393 = vpop.f32.mrb[0].mxu0
    %v2394 = vadd.f32 0.0, %v2393
    %v2395 = vpop.f32.mrb[0].mxu0
    %v2396 = vadd.f32 0.0, %v2395
    %v2397 = vpop.f32.mrb[0].mxu0
    %v2398 = vadd.f32 0.0, %v2397
    %2399 = vmatprep.mubr.bf16.mxu0 0
    %2400 = vmatmul.mubr.bf16.gmra.mrb[0].mxu0 %v1715
    %v2401 = vpop.f32.mrb[0].mxu0
    %v2402 = vadd.f32 0.0, %v2401
    %v2403 = vpop.f32.mrb[0].mxu0
    %v2404 = vadd.f32 0.0, %v2403
    %v2405 = vpop.f32.mrb[0].mxu0
    %v2406 = vadd.f32 0.0, %v2405
    %v2407 = vpop.f32.mrb[0].mxu0
    %v2408 = vadd.f32 0.0, %v2407
    %2409 = vdwg.mxu0
    %v2410 = vpack.c.bf16 %v2396, %v2392
    %v2411 = vpack.c.bf16 %v2398, %v2394
    %v2412 = vpack.c.bf16 %v2406, %v2402
    %v2413 = vpack.c.bf16 %v2408, %v2404
    %2414 = vmatprep.subr.bf16.mxu0 %v1871
    %2415 = vmatpush1.bf16.msra.mxu0 %v1870
    %2416 = vmatprep.subr.bf16.mxu0 %v1873
    %2417 = vmatpush1.bf16.msra.mxu0 %v1872
    %2418 = vmatprep.subr.bf16.mxu0 %v1875
    %2419 = vmatpush1.bf16.msra.mxu0 %v1874
    %2420 = vmatprep.subr.bf16.mxu0 %v1877
    %2421 = vmatpush1.bf16.msra.mxu0 %v1876
    %2422 = vmatprep.subr.bf16.mxu0 %v1879
    %2423 = vmatpush1.bf16.msra.mxu0 %v1878
    %2424 = vmatprep.subr.bf16.mxu0 %v1881
    %2425 = vmatpush1.bf16.msra.mxu0 %v1880
    %2426 = vmatprep.subr.bf16.mxu0 %v1883
    %2427 = vmatpush1.bf16.msra.mxu0 %v1882
    %2428 = vmatprep.subr.bf16.mxu0 %v1885
    %2429 = vmatpush1.bf16.msra.mxu0 %v1884
    %2430 = vmatprep.subr.bf16.mxu0 %v1887
    %2431 = vmatpush1.bf16.msra.mxu0 %v1886
    %2432 = vmatprep.subr.bf16.mxu0 %v1889
    %2433 = vmatpush1.bf16.msra.mxu0 %v1888
    %2434 = vmatprep.subr.bf16.mxu0 %v1891
    %2435 = vmatpush1.bf16.msra.mxu0 %v1890
    %2436 = vmatprep.subr.bf16.mxu0 %v1893
    %2437 = vmatpush1.bf16.msra.mxu0 %v1892
    %2438 = vmatprep.subr.bf16.mxu0 %v1895
    %2439 = vmatpush1.bf16.msra.mxu0 %v1894
    %2440 = vmatprep.subr.bf16.mxu0 %v1897
    %2441 = vmatpush1.bf16.msra.mxu0 %v1896
    %2442 = vmatprep.subr.bf16.mxu0 %v1899
    %2443 = vmatpush1.bf16.msra.mxu0 %v1898
    %2444 = vmatprep.subr.bf16.mxu0 %v1901
    %2445 = vmatpush1.bf16.msra.mxu0 %v1900
    %2446 = vmatprep.mubr.bf16.mxu0 %v2411
    %2447 = vmatmul.mubr.bf16.gmra.mrb[0].mxu0 %v2410
    %v2448 = vpop.f32.mrb[0].mxu0
    %v2449 = vadd.f32 0.0, %v2448
    %v2450 = vpop.f32.mrb[0].mxu0
    %v2451 = vadd.f32 0.0, %v2450
    %v2452 = vpop.f32.mrb[0].mxu0
    %v2453 = vadd.f32 0.0, %v2452
    %v2454 = vpop.f32.mrb[0].mxu0
    %v2455 = vadd.f32 0.0, %v2454
    %2456 = vmatprep.mubr.bf16.mxu0 %v2413
    %2457 = vmatmul.mubr.bf16.gmra.mrb[0].mxu0 %v2412
    %v2458 = vpop.f32.mrb[0].mxu0
    %v2459 = vadd.f32 0.0, %v2458
    %v2460 = vpop.f32.mrb[0].mxu0
    %v2461 = vadd.f32 0.0, %v2460
    %v2462 = vpop.f32.mrb[0].mxu0
    %v2463 = vadd.f32 0.0, %v2462
    %v2464 = vpop.f32.mrb[0].mxu0
    %v2465 = vadd.f32 0.0, %v2464
    %2466 = vdwg.mxu0
    %v2467 = vmul.f32 %v1969, %v1969
    %v2468 = vmul.f32 %v1971, %v1971
    %v2469 = vmul.f32 %v1973, %v1973
    %v2470 = vmul.f32 %v1975, %v1975
    %v2471 = vmul.f32 %v1979, %v1979
    %v2472 = vmul.f32 %v1981, %v1981
    %v2473 = vmul.f32 %v1983, %v1983
    %v2474 = vmul.f32 %v1985, %v1985
    %v2475 = vmul.f32 %v2083, %v2083
    %v2476 = vmul.f32 %v2085, %v2085
    %v2477 = vmul.f32 %v2087, %v2087
    %v2478 = vmul.f32 %v2089, %v2089
    %v2479 = vmul.f32 %v2093, %v2093
    %v2480 = vmul.f32 %v2095, %v2095
    %v2481 = vmul.f32 %v2097, %v2097
    %v2482 = vmul.f32 %v2099, %v2099
    %v2483 = vmul.f32 %v1969, %v2083
    %v2484 = vmul.f32 %v1971, %v2085
    %v2485 = vmul.f32 %v1973, %v2087
    %v2486 = vmul.f32 %v1975, %v2089
    %v2487 = vmul.f32 %v1979, %v2093
    %v2488 = vmul.f32 %v1981, %v2095
    %v2489 = vmul.f32 %v1983, %v2097
    %v2490 = vmul.f32 %v1985, %v2099
    %v2491 = vsub.f32 %v2205, %v2467
    %v2492 = vsub.f32 %v2207, %v2468
    %v2493 = vsub.f32 %v2209, %v2469
    %v2494 = vsub.f32 %v2211, %v2470
    %v2495 = vsub.f32 %v2215, %v2471
    %v2496 = vsub.f32 %v2217, %v2472
    %v2497 = vsub.f32 %v2219, %v2473
    %v2498 = vsub.f32 %v2221, %v2474
    %v2499 = vsub.f32 %v2327, %v2475
    %v2500 = vsub.f32 %v2329, %v2476
    %v2501 = vsub.f32 %v2331, %v2477
    %v2502 = vsub.f32 %v2333, %v2478
    %v2503 = vsub.f32 %v2337, %v2479
    %v2504 = vsub.f32 %v2339, %v2480
    %v2505 = vsub.f32 %v2341, %v2481
    %v2506 = vsub.f32 %v2343, %v2482
    %v2507 = vsub.f32 %v2449, %v2483
    %v2508 = vsub.f32 %v2451, %v2484
    %v2509 = vsub.f32 %v2453, %v2485
    %v2510 = vsub.f32 %v2455, %v2486
    %v2511 = vsub.f32 %v2459, %v2487
    %v2512 = vsub.f32 %v2461, %v2488
    %v2513 = vsub.f32 %v2463, %v2489
    %v2514 = vsub.f32 %v2465, %v2490
    %v2515 = vmul.f32 %v2507, 2.0
    %v2516 = vmul.f32 %v2508, 2.0
    %v2517 = vmul.f32 %v2509, 2.0
    %v2518 = vmul.f32 %v2510, 2.0
    %v2519 = vmul.f32 %v2511, 2.0
    %v2520 = vmul.f32 %v2512, 2.0
    %v2521 = vmul.f32 %v2513, 2.0
    %v2522 = vmul.f32 %v2514, 2.0
    %v2523 = vadd.f32 %v2515, 0.0009
    %v2524 = vadd.f32 %v2516, 0.0009
    %v2525 = vadd.f32 %v2517, 0.0009
    %v2526 = vadd.f32 %v2518, 0.0009
    %v2527 = vadd.f32 %v2519, 0.0009
    %v2528 = vadd.f32 %v2520, 0.0009
    %v2529 = vadd.f32 %v2521, 0.0009
    %v2530 = vadd.f32 %v2522, 0.0009
    %v2531 = vadd.f32 %v2491, %v2499
    %v2532 = vadd.f32 %v2492, %v2500
    %v2533 = vadd.f32 %v2493, %v2501
    %v2534 = vadd.f32 %v2494, %v2502
    %v2535 = vadd.f32 %v2495, %v2503
    %v2536 = vadd.f32 %v2496, %v2504
    %v2537 = vadd.f32 %v2497, %v2505
    %v2538 = vadd.f32 %v2498, %v2506
    %v2539 = vadd.f32 %v2531, 0.0009
    %v2540 = vadd.f32 %v2532, 0.0009
    %v2541 = vadd.f32 %v2533, 0.0009
    %v2542 = vadd.f32 %v2534, 0.0009
    %v2543 = vadd.f32 %v2535, 0.0009
    %v2544 = vadd.f32 %v2536, 0.0009
    %v2545 = vadd.f32 %v2537, 0.0009
    %v2546 = vadd.f32 %v2538, 0.0009
    %v2547 = vrcp.pop %v2539
    %v2548 = vrcp.pop %v2540
    %v2549 = vrcp.pop %v2541
    %v2550 = vrcp.pop %v2542
    %v2551 = vrcp.pop %v2543
    %v2552 = vrcp.pop %v2544
    %v2553 = vrcp.pop %v2545
    %v2554 = vrcp.pop %v2546
    %v2555 = vmul.f32 %v2539, %v2547
    %v2556 = vmul.f32 %v2540, %v2548
    %v2557 = vmul.f32 %v2541, %v2549
    %v2558 = vmul.f32 %v2542, %v2550
    %v2559 = vmul.f32 %v2543, %v2551
    %v2560 = vmul.f32 %v2544, %v2552
    %v2561 = vmul.f32 %v2545, %v2553
    %v2562 = vmul.f32 %v2546, %v2554
    %v2563 = vsub.f32 2.0, %v2555
    %v2564 = vsub.f32 2.0, %v2556
    %v2565 = vsub.f32 2.0, %v2557
    %v2566 = vsub.f32 2.0, %v2558
    %v2567 = vsub.f32 2.0, %v2559
    %v2568 = vsub.f32 2.0, %v2560
    %v2569 = vsub.f32 2.0, %v2561
    %v2570 = vsub.f32 2.0, %v2562
    %v2571 = vmul.f32 %v2547, %v2563
    %v2572 = vmul.f32 %v2548, %v2564
    %v2573 = vmul.f32 %v2549, %v2565
    %v2574 = vmul.f32 %v2550, %v2566
    %v2575 = vmul.f32 %v2551, %v2567
    %v2576 = vmul.f32 %v2552, %v2568
    %v2577 = vmul.f32 %v2553, %v2569
    %v2578 = vmul.f32 %v2554, %v2570
    %v2579 = vmul.f32 %v2523, %v2571
    %v2580 = vmul.f32 %v2524, %v2572
    %v2581 = vmul.f32 %v2525, %v2573
    %v2582 = vmul.f32 %v2526, %v2574
    %v2583 = vmul.f32 %v2527, %v2575
    %v2584 = vmul.f32 %v2528, %v2576
    %v2585 = vmul.f32 %v2529, %v2577
    %v2586 = vmul.f32 %v2530, %v2578
    %v2587 = vadd.f32 %v2467, %v2475
    %v2588 = vadd.f32 %v2468, %v2476
    %v2589 = vadd.f32 %v2469, %v2477
    %v2590 = vadd.f32 %v2470, %v2478
    %v2591 = vadd.f32 %v2471, %v2479
    %v2592 = vadd.f32 %v2472, %v2480
    %v2593 = vadd.f32 %v2473, %v2481
    %v2594 = vadd.f32 %v2474, %v2482
    %v2595 = vadd.f32 %v2587, 0.0001
    %v2596 = vadd.f32 %v2588, 0.0001
    %v2597 = vadd.f32 %v2589, 0.0001
    %v2598 = vadd.f32 %v2590, 0.0001
    %v2599 = vadd.f32 %v2591, 0.0001
    %v2600 = vadd.f32 %v2592, 0.0001
    %v2601 = vadd.f32 %v2593, 0.0001
    %v2602 = vadd.f32 %v2594, 0.0001
    %v2603 = vrcp.pop %v2595
    %v2604 = vrcp.pop %v2596
    %v2605 = vrcp.pop %v2597
    %v2606 = vrcp.pop %v2598
    %v2607 = vrcp.pop %v2599
    %v2608 = vrcp.pop %v2600
    %v2609 = vrcp.pop %v2601
    %v2610 = vrcp.pop %v2602
    %v2611 = vmul.f32 %v2595, %v2603
    %v2612 = vmul.f32 %v2596, %v2604
    %v2613 = vmul.f32 %v2597, %v2605
    %v2614 = vmul.f32 %v2598, %v2606
    %v2615 = vmul.f32 %v2599, %v2607
    %v2616 = vmul.f32 %v2600, %v2608
    %v2617 = vmul.f32 %v2601, %v2609
    %v2618 = vmul.f32 %v2602, %v2610
    %v2619 = vsub.f32 2.0, %v2611
    %v2620 = vsub.f32 2.0, %v2612
    %v2621 = vsub.f32 2.0, %v2613
    %v2622 = vsub.f32 2.0, %v2614
    %v2623 = vsub.f32 2.0, %v2615
    %v2624 = vsub.f32 2.0, %v2616
    %v2625 = vsub.f32 2.0, %v2617
    %v2626 = vsub.f32 2.0, %v2618
    %v2627 = vmul.f32 %v2603, %v2619
    %v2628 = vmul.f32 %v2604, %v2620
    %v2629 = vmul.f32 %v2605, %v2621
    %v2630 = vmul.f32 %v2606, %v2622
    %v2631 = vmul.f32 %v2607, %v2623
    %v2632 = vmul.f32 %v2608, %v2624
    %v2633 = vmul.f32 %v2609, %v2625
    %v2634 = vmul.f32 %v2610, %v2626
    %v2635 = vmul.f32 %v2483, 2.0
    %v2636 = vmul.f32 %v2484, 2.0
    %v2637 = vmul.f32 %v2485, 2.0
    %v2638 = vmul.f32 %v2486, 2.0
    %v2639 = vmul.f32 %v2487, 2.0
    %v2640 = vmul.f32 %v2488, 2.0
    %v2641 = vmul.f32 %v2489, 2.0
    %v2642 = vmul.f32 %v2490, 2.0
    %v2643 = vadd.f32 %v2635, 0.0001
    %v2644 = vadd.f32 %v2636, 0.0001
    %v2645 = vadd.f32 %v2637, 0.0001
    %v2646 = vadd.f32 %v2638, 0.0001
    %v2647 = vadd.f32 %v2639, 0.0001
    %v2648 = vadd.f32 %v2640, 0.0001
    %v2649 = vadd.f32 %v2641, 0.0001
    %v2650 = vadd.f32 %v2642, 0.0001
    %v2651 = vmul.f32 %v2579, %v2643
    %v2652 = vmul.f32 %v2580, %v2644
    %v2653 = vmul.f32 %v2581, %v2645
    %v2654 = vmul.f32 %v2582, %v2646
    %v2655 = vmul.f32 %v2583, %v2647
    %v2656 = vmul.f32 %v2584, %v2648
    %v2657 = vmul.f32 %v2585, %v2649
    %v2658 = vmul.f32 %v2586, %v2650
    %v2659 = vmul.f32 %v2651, %v2627
    %v2660 = vmul.f32 %v2652, %v2628
    %v2661 = vmul.f32 %v2653, %v2629
    %v2662 = vmul.f32 %v2654, %v2630
    %v2663 = vmul.f32 %v2655, %v2631
    %v2664 = vmul.f32 %v2656, %v2632
    %v2665 = vmul.f32 %v2657, %v2633
    %v2666 = vmul.f32 %v2658, %v2634
    %vm2667 = vcmp.lt.s32.totalorder %v127, 16
    %vm2668 = vcmp.lt.s32.totalorder %v128, 16
    %vm2669 = vcmp.lt.s32.totalorder %v129, 16
    %vm2670 = vcmp.lt.s32.totalorder %v130, 16
    %s2671 = smul.u32 %s137, 16
    %v2672 = vstv %s2671
    %vm2673 = vcmp.lt.s32.totalorder %v132, %v2672
    %vm2674 = vcmp.lt.s32.totalorder %v133, %v2672
    %vm2675 = vmand %vm2667, %vm2673
    %vm2676 = vmand %vm2667, %vm2674
    %vm2677 = vmand %vm2668, %vm2673
    %vm2678 = vmand %vm2668, %vm2674
    %vm2679 = vmand %vm2669, %vm2673
    %vm2680 = vmand %vm2669, %vm2674
    %vm2681 = vmand %vm2670, %vm2673
    %vm2682 = vmand %vm2670, %vm2674
    %v2683 = vsel %vm2675, 1, 0
    %v2684 = vsel %vm2676, 1, 0
    %v2685 = vsel %vm2677, 1, 0
    %v2686 = vsel %vm2678, 1, 0
    %v2687 = vsel %vm2679, 1, 0
    %v2688 = vsel %vm2680, 1, 0
    %v2689 = vsel %vm2681, 1, 0
    %v2690 = vsel %vm2682, 1, 0
    %v2691 = vcvt.s32.f32 %v2683
    %v2692 = vcvt.s32.f32 %v2684
    %v2693 = vcvt.s32.f32 %v2685
    %v2694 = vcvt.s32.f32 %v2686
    %v2695 = vcvt.s32.f32 %v2687
    %v2696 = vcvt.s32.f32 %v2688
    %v2697 = vcvt.s32.f32 %v2689
    %v2698 = vcvt.s32.f32 %v2690
    %v2699 = vmul.f32 %v2659, %v2691
    %v2700 = vmul.f32 %v2660, %v2692
    %v2701 = vmul.f32 %v2661, %v2693
    %v2702 = vmul.f32 %v2662, %v2694
    %v2703 = vmul.f32 %v2663, %v2695
    %v2704 = vmul.f32 %v2664, %v2696
    %v2705 = vmul.f32 %v2665, %v2697
    %v2706 = vmul.f32 %v2666, %v2698
    %v2707 = vadd.f32 %v2699, %v2700
    %v2708 = vadd.f32 %v2707, %v2701
    %v2709 = vadd.f32 %v2708, %v2702
    %v2710 = vadd.f32 %v2709, %v2703
    %v2711 = vadd.f32 %v2710, %v2704
    %v2712 = vadd.f32 %v2711, %v2705
    %v2713 = vadd.f32 %v2712, %v2706
    %2714 = vadd.xlane.f32.xlu0 %v2713
    %v2715 = vpop.xlane.xlu0 %2714
    %v2716 = vrot.slane %v2715, 4
    %v2717 = vadd.f32 %v2715, %v2716
    %v2718 = vrot.slane %v2717, 2
    %v2719 = vadd.f32 %v2717, %v2718
    %v2720 = vrot.slane %v2719, 1
    %v2721 = vadd.f32 %v2719, %v2720
    %s2722 = vtos %v2721
    %v2723 = vstv %s2722
    %v2724 = vmul.f32 %v2579, %v2691
    %v2725 = vmul.f32 %v2580, %v2692
    %v2726 = vmul.f32 %v2581, %v2693
    %v2727 = vmul.f32 %v2582, %v2694
    %v2728 = vmul.f32 %v2583, %v2695
    %v2729 = vmul.f32 %v2584, %v2696
    %v2730 = vmul.f32 %v2585, %v2697
    %v2731 = vmul.f32 %v2586, %v2698
    %v2732 = vadd.f32 %v2724, %v2725
    %v2733 = vadd.f32 %v2732, %v2726
    %v2734 = vadd.f32 %v2733, %v2727
    %v2735 = vadd.f32 %v2734, %v2728
    %v2736 = vadd.f32 %v2735, %v2729
    %v2737 = vadd.f32 %v2736, %v2730
    %v2738 = vadd.f32 %v2737, %v2731
    %2739 = vadd.xlane.f32.xlu0 %v2738
    %v2740 = vpop.xlane.xlu0 %2739
    %v2741 = vrot.slane %v2740, 4
    %v2742 = vadd.f32 %v2740, %v2741
    %v2743 = vrot.slane %v2742, 2
    %v2744 = vadd.f32 %v2742, %v2743
    %v2745 = vrot.slane %v2744, 1
    %v2746 = vadd.f32 %v2744, %v2745
    %s2747 = vtos %v2746
    %v2748 = vstv %s2747
    %s2749 = scalar_lea.vmem [#allocation10], 16
    %v2750 = vld [vmem:[%s2749] sm:$0xf]
    %v2751 = vld [vmem:[%s2749 + $0x4] sm:$0xf]
    %v2752 = vld [vmem:[%s2749 + $0x8] sm:$0xf]
    %v2753 = vld [vmem:[%s2749 + $0xc] sm:$0xf]
    %s2754 = scalar_lea.vmem [#allocation11], 256
    %v2755 = vld [vmem:[%s2754] sm:$0xff]
    %v2756 = vld [vmem:[%s2754 + $0x8] sm:$0xff]
    %v2757 = vld [vmem:[%s2754 + $0x10] sm:$0xff]
    %v2758 = vld [vmem:[%s2754 + $0x18] sm:$0xff]
    %v2759 = vld [vmem:[%s2754 + $0x20] sm:$0xff]
    %v2760 = vld [vmem:[%s2754 + $0x28] sm:$0xff]
    %v2761 = vld [vmem:[%s2754 + $0x30] sm:$0xff]
    %v2762 = vld [vmem:[%s2754 + $0x38] sm:$0xff]
    %v2763 = vld [vmem:[%s2754 + $0x40] sm:$0xff]
    %v2764 = vld [vmem:[%s2754 + $0x48] sm:$0xff]
    %v2765 = vld [vmem:[%s2754 + $0x50] sm:$0xff]
    %v2766 = vld [vmem:[%s2754 + $0x58] sm:$0xff]
    %v2767 = vld [vmem:[%s2754 + $0x60] sm:$0xff]
    %v2768 = vld [vmem:[%s2754 + $0x68] sm:$0xff]
    %v2769 = vld [vmem:[%s2754 + $0x70] sm:$0xff]
    %v2770 = vld [vmem:[%s2754 + $0x78] sm:$0xff]
    %v2771 = vld [vmem:[%s2754 + $0x80] sm:$0xff]
    %v2772 = vld [vmem:[%s2754 + $0x88] sm:$0xff]
    %v2773 = vld [vmem:[%s2754 + $0x90] sm:$0xff]
    %v2774 = vld [vmem:[%s2754 + $0x98] sm:$0xff]
    %v2775 = vld [vmem:[%s2754 + $0xa0] sm:$0xff]
    %v2776 = vld [vmem:[%s2754 + $0xa8] sm:$0xff]
    %v2777 = vld [vmem:[%s2754 + $0xb0] sm:$0xff]
    %v2778 = vld [vmem:[%s2754 + $0xb8] sm:$0xff]
    %v2779 = vld [vmem:[%s2754 + $0xc0] sm:$0xff]
    %v2780 = vld [vmem:[%s2754 + $0xc8] sm:$0xff]
    %v2781 = vld [vmem:[%s2754 + $0xd0] sm:$0xff]
    %v2782 = vld [vmem:[%s2754 + $0xd8] sm:$0xff]
    %v2783 = vld [vmem:[%s2754 + $0xe0] sm:$0xff]
    %v2784 = vld [vmem:[%s2754 + $0xe8] sm:$0xff]
    %v2785 = vld [vmem:[%s2754 + $0xf0] sm:$0xff]
    %v2786 = vld [vmem:[%s2754 + $0xf8] sm:$0xff]
    %v2791 = vunpack.c.l.b16 %v2750
    %v2792 = vunpack.c.l.b16 %v2751
    %v2793 = vunpack.c.l.b16 %v2752
    %v2794 = vunpack.c.l.b16 %v2753
    %v2795 = vpack.c.b16 %v2792, %v2791
    %v2796 = vpack.c.b16 %v2794, %v2793
    %v2798 = vsel %vm188, %v2795, 0
    %v2801 = vsel %vm188, %v2796, 0
    %2803 = vmatprep.subr.bf16.mxu0 %v1698
    %2804 = vmatpush1.bf16.msra.mxu0 %v1697
    %2805 = vmatprep.subr.bf16.mxu0 %v1700
    %2806 = vmatpush1.bf16.msra.mxu0 %v1699
    %2807 = vmatprep.subr.bf16.mxu0 0
    %2808 = vmatpush1.bf16.msra.mxu0 0
    %2809 = vmatprep.subr.bf16.mxu0 0
    %2810 = vmatpush1.bf16.msra.mxu0 0
    %2811 = vmatprep.subr.bf16.mxu0 0
    %2812 = vmatpush1.bf16.msra.mxu0 0
    %2813 = vmatprep.subr.bf16.mxu0 0
    %2814 = vmatpush1.bf16.msra.mxu0 0
    %2815 = vmatprep.subr.bf16.mxu0 0
    %2816 = vmatpush1.bf16.msra.mxu0 0
    %2817 = vmatprep.subr.bf16.mxu0 0
    %2818 = vmatpush1.bf16.msra.mxu0 0
    %2819 = vmatprep.subr.bf16.mxu0 0
    %2820 = vmatpush1.bf16.msra.mxu0 0
    %2821 = vmatprep.subr.bf16.mxu0 0
    %2822 = vmatpush1.bf16.msra.mxu0 0
    %2823 = vmatprep.subr.bf16.mxu0 0
    %2824 = vmatpush1.bf16.msra.mxu0 0
    %2825 = vmatprep.subr.bf16.mxu0 0
    %2826 = vmatpush1.bf16.msra.mxu0 0
    %2827 = vmatprep.subr.bf16.mxu0 0
    %2828 = vmatpush1.bf16.msra.mxu0 0
    %2829 = vmatprep.subr.bf16.mxu0 0
    %2830 = vmatpush1.bf16.msra.mxu0 0
    %2831 = vmatprep.subr.bf16.mxu0 0
    %2832 = vmatpush1.bf16.msra.mxu0 0
    %2833 = vmatprep.subr.bf16.mxu0 0
    %2834 = vmatpush1.bf16.msra.mxu0 0
    %2835 = vmatprep.mubr.bf16.mxu0 0
    %2836 = vmatmul.mubr.bf16.gmra.mrb[0].mxu0 %v2798
    %v2837 = vpop.f32.mrb[0].mxu0
    %v2838 = vadd.f32 0.0, %v2837
    %v2839 = vpop.f32.mrb[0].mxu0
    %v2840 = vadd.f32 0.0, %v2839
    %v2841 = vpop.f32.mrb[0].mxu0
    %v2842 = vadd.f32 0.0, %v2841
    %v2843 = vpop.f32.mrb[0].mxu0
    %v2844 = vadd.f32 0.0, %v2843
    %2845 = vmatprep.mubr.bf16.mxu0 0
    %2846 = vmatmul.mubr.bf16.gmra.mrb[0].mxu0 %v2801
    %v2847 = vpop.f32.mrb[0].mxu0
    %v2848 = vadd.f32 0.0, %v2847
    %v2849 = vpop.f32.mrb[0].mxu0
    %v2850 = vadd.f32 0.0, %v2849
    %v2851 = vpop.f32.mrb[0].mxu0
    %v2852 = vadd.f32 0.0, %v2851
    %v2853 = vpop.f32.mrb[0].mxu0
    %v2854 = vadd.f32 0.0, %v2853
    %2855 = vdwg.mxu0
    %v2856 = vpack.c.bf16 %v2842, %v2838
    %v2857 = vpack.c.bf16 %v2844, %v2840
    %v2858 = vpack.c.bf16 %v2852, %v2848
    %v2859 = vpack.c.bf16 %v2854, %v2850
    %v2892 = vunpack.c.l.b16 %v2755
    %v2893 = vunpack.c.h.b16 %v2755
    %v2894 = vunpack.c.l.b16 %v2756
    %v2895 = vunpack.c.h.b16 %v2756
    %v2896 = vunpack.c.l.b16 %v2757
    %v2897 = vunpack.c.h.b16 %v2757
    %v2898 = vunpack.c.l.b16 %v2758
    %v2899 = vunpack.c.h.b16 %v2758
    %v2900 = vunpack.c.l.b16 %v2759
    %v2901 = vunpack.c.h.b16 %v2759
    %v2902 = vunpack.c.l.b16 %v2760
    %v2903 = vunpack.c.h.b16 %v2760
    %v2904 = vunpack.c.l.b16 %v2761
    %v2905 = vunpack.c.h.b16 %v2761
    %v2906 = vunpack.c.l.b16 %v2762
    %v2907 = vunpack.c.h.b16 %v2762
    %v2908 = vunpack.c.l.b16 %v2763
    %v2909 = vunpack.c.h.b16 %v2763
    %v2910 = vunpack.c.l.b16 %v2764
    %v2911 = vunpack.c.h.b16 %v2764
    %v2912 = vunpack.c.l.b16 %v2765
    %v2913 = vunpack.c.h.b16 %v2765
    %v2914 = vunpack.c.l.b16 %v2766
    %v2915 = vunpack.c.h.b16 %v2766
    %v2916 = vunpack.c.l.b16 %v2767
    %v2917 = vunpack.c.h.b16 %v2767
    %v2918 = vunpack.c.l.b16 %v2768
    %v2919 = vunpack.c.h.b16 %v2768
    %v2920 = vunpack.c.l.b16 %v2769
    %v2921 = vunpack.c.h.b16 %v2769
    %v2922 = vunpack.c.l.b16 %v2770
    %v2923 = vunpack.c.h.b16 %v2770
    %v2924 = vunpack.c.l.b16 %v2771
    %v2925 = vunpack.c.h.b16 %v2771
    %v2926 = vunpack.c.l.b16 %v2772
    %v2927 = vunpack.c.h.b16 %v2772
    %v2928 = vunpack.c.l.b16 %v2773
    %v2929 = vunpack.c.h.b16 %v2773
    %v2930 = vunpack.c.l.b16 %v2774
    %v2931 = vunpack.c.h.b16 %v2774
    %v2932 = vunpack.c.l.b16 %v2775
    %v2933 = vunpack.c.h.b16 %v2775
    %v2934 = vunpack.c.l.b16 %v2776
    %v2935 = vunpack.c.h.b16 %v2776
    %v2936 = vunpack.c.l.b16 %v2777
    %v2937 = vunpack.c.h.b16 %v2777
    %v2938 = vunpack.c.l.b16 %v2778
    %v2939 = vunpack.c.h.b16 %v2778
    %v2940 = vunpack.c.l.b16 %v2779
    %v2941 = vunpack.c.h.b16 %v2779
    %v2942 = vunpack.c.l.b16 %v2780
    %v2943 = vunpack.c.h.b16 %v2780
    %v2944 = vunpack.c.l.b16 %v2781
    %v2945 = vunpack.c.h.b16 %v2781
    %v2946 = vunpack.c.l.b16 %v2782
    %v2947 = vunpack.c.h.b16 %v2782
    %v2948 = vunpack.c.l.b16 %v2783
    %v2949 = vunpack.c.h.b16 %v2783
    %v2950 = vunpack.c.l.b16 %v2784
    %v2951 = vunpack.c.h.b16 %v2784
    %v2952 = vunpack.c.l.b16 %v2785
    %v2953 = vunpack.c.h.b16 %v2785
    %v2954 = vunpack.c.l.b16 %v2786
    %v2955 = vunpack.c.h.b16 %v2786
    %v2956 = vpack.c.b16 %v2894, %v2892
    %v2957 = vpack.c.b16 %v2895, %v2893
    %v2958 = vpack.c.b16 %v2898, %v2896
    %v2959 = vpack.c.b16 %v2899, %v2897
    %v2960 = vpack.c.b16 %v2902, %v2900
    %v2961 = vpack.c.b16 %v2903, %v2901
    %v2962 = vpack.c.b16 %v2906, %v2904
    %v2963 = vpack.c.b16 %v2907, %v2905
    %v2964 = vpack.c.b16 %v2910, %v2908
    %v2965 = vpack.c.b16 %v2911, %v2909
    %v2966 = vpack.c.b16 %v2914, %v2912
    %v2967 = vpack.c.b16 %v2915, %v2913
    %v2968 = vpack.c.b16 %v2918, %v2916
    %v2969 = vpack.c.b16 %v2919, %v2917
    %v2970 = vpack.c.b16 %v2922, %v2920
    %v2971 = vpack.c.b16 %v2923, %v2921
    %v2972 = vpack.c.b16 %v2926, %v2924
    %v2973 = vpack.c.b16 %v2927, %v2925
    %v2974 = vpack.c.b16 %v2930, %v2928
    %v2975 = vpack.c.b16 %v2931, %v2929
    %v2976 = vpack.c.b16 %v2934, %v2932
    %v2977 = vpack.c.b16 %v2935, %v2933
    %v2978 = vpack.c.b16 %v2938, %v2936
    %v2979 = vpack.c.b16 %v2939, %v2937
    %v2980 = vpack.c.b16 %v2942, %v2940
    %v2981 = vpack.c.b16 %v2943, %v2941
    %v2982 = vpack.c.b16 %v2946, %v2944
    %v2983 = vpack.c.b16 %v2947, %v2945
    %v2984 = vpack.c.b16 %v2950, %v2948
    %v2985 = vpack.c.b16 %v2951, %v2949
    %v2986 = vpack.c.b16 %v2954, %v2952
    %v2987 = vpack.c.b16 %v2955, %v2953
    %3020 = vmatprep.subr.bf16.mxu0 %v2957
    %3021 = vmatpush1.bf16.msra.mxu0 %v2956
    %3022 = vmatprep.subr.bf16.mxu0 %v2959
    %3023 = vmatpush1.bf16.msra.mxu0 %v2958
    %3024 = vmatprep.subr.bf16.mxu0 %v2961
    %3025 = vmatpush1.bf16.msra.mxu0 %v2960
    %3026 = vmatprep.subr.bf16.mxu0 %v2963
    %3027 = vmatpush1.bf16.msra.mxu0 %v2962
    %3028 = vmatprep.subr.bf16.mxu0 %v2965
    %3029 = vmatpush1.bf16.msra.mxu0 %v2964
    %3030 = vmatprep.subr.bf16.mxu0 %v2967
    %3031 = vmatpush1.bf16.msra.mxu0 %v2966
    %3032 = vmatprep.subr.bf16.mxu0 %v2969
    %3033 = vmatpush1.bf16.msra.mxu0 %v2968
    %3034 = vmatprep.subr.bf16.mxu0 %v2971
    %3035 = vmatpush1.bf16.msra.mxu0 %v2970
    %3036 = vmatprep.subr.bf16.mxu0 %v2973
    %3037 = vmatpush1.bf16.msra.mxu0 %v2972
    %3038 = vmatprep.subr.bf16.mxu0 %v2975
    %3039 = vmatpush1.bf16.msra.mxu0 %v2974
    %3040 = vmatprep.subr.bf16.mxu0 %v2977
    %3041 = vmatpush1.bf16.msra.mxu0 %v2976
    %3042 = vmatprep.subr.bf16.mxu0 %v2979
    %3043 = vmatpush1.bf16.msra.mxu0 %v2978
    %3044 = vmatprep.subr.bf16.mxu0 %v2981
    %3045 = vmatpush1.bf16.msra.mxu0 %v2980
    %3046 = vmatprep.subr.bf16.mxu0 %v2983
    %3047 = vmatpush1.bf16.msra.mxu0 %v2982
    %3048 = vmatprep.subr.bf16.mxu0 %v2985
    %3049 = vmatpush1.bf16.msra.mxu0 %v2984
    %3050 = vmatprep.subr.bf16.mxu0 %v2987
    %3051 = vmatpush1.bf16.msra.mxu0 %v2986
    %3052 = vmatprep.mubr.bf16.mxu0 %v2857
    %3053 = vmatmul.mubr.bf16.gmra.mrb[0].mxu0 %v2856
    %v3054 = vpop.f32.mrb[0].mxu0
    %v3055 = vadd.f32 0.0, %v3054
    %v3056 = vpop.f32.mrb[0].mxu0
    %v3057 = vadd.f32 0.0, %v3056
    %v3058 = vpop.f32.mrb[0].mxu0
    %v3059 = vadd.f32 0.0, %v3058
    %v3060 = vpop.f32.mrb[0].mxu0
    %v3061 = vadd.f32 0.0, %v3060
    %3062 = vmatprep.mubr.bf16.mxu0 %v2859
    %3063 = vmatmul.mubr.bf16.gmra.mrb[0].mxu0 %v2858
    %v3064 = vpop.f32.mrb[0].mxu0
    %v3065 = vadd.f32 0.0, %v3064
    %v3066 = vpop.f32.mrb[0].mxu0
    %v3067 = vadd.f32 0.0, %v3066
    %v3068 = vpop.f32.mrb[0].mxu0
    %v3069 = vadd.f32 0.0, %v3068
    %v3070 = vpop.f32.mrb[0].mxu0
    %v3071 = vadd.f32 0.0, %v3070
    %3072 = vdwg.mxu0
    %3073 = vmatprep.subr.bf16.mxu0 %v1988
    %3074 = vmatpush1.bf16.msra.mxu0 %v1987
    %3075 = vmatprep.subr.bf16.mxu0 %v1990
    %3076 = vmatpush1.bf16.msra.mxu0 %v1989
    %3077 = vmatprep.subr.bf16.mxu0 0
    %3078 = vmatpush1.bf16.msra.mxu0 0
    %3079 = vmatprep.subr.bf16.mxu0 0
    %3080 = vmatpush1.bf16.msra.mxu0 0
    %3081 = vmatprep.subr.bf16.mxu0 0
    %3082 = vmatpush1.bf16.msra.mxu0 0
    %3083 = vmatprep.subr.bf16.mxu0 0
    %3084 = vmatpush1.bf16.msra.mxu0 0
    %3085 = vmatprep.subr.bf16.mxu0 0
    %3086 = vmatpush1.bf16.msra.mxu0 0
    %3087 = vmatprep.subr.bf16.mxu0 0
    %3088 = vmatpush1.bf16.msra.mxu0 0
    %3089 = vmatprep.subr.bf16.mxu0 0
    %3090 = vmatpush1.bf16.msra.mxu0 0
    %3091 = vmatprep.subr.bf16.mxu0 0
    %3092 = vmatpush1.bf16.msra.mxu0 0
    %3093 = vmatprep.subr.bf16.mxu0 0
    %3094 = vmatpush1.bf16.msra.mxu0 0
    %3095 = vmatprep.subr.bf16.mxu0 0
    %3096 = vmatpush1.bf16.msra.mxu0 0
    %3097 = vmatprep.subr.bf16.mxu0 0
    %3098 = vmatpush1.bf16.msra.mxu0 0
    %3099 = vmatprep.subr.bf16.mxu0 0
    %3100 = vmatpush1.bf16.msra.mxu0 0
    %3101 = vmatprep.subr.bf16.mxu0 0
    %3102 = vmatpush1.bf16.msra.mxu0 0
    %3103 = vmatprep.subr.bf16.mxu0 0
    %3104 = vmatpush1.bf16.msra.mxu0 0
    %3105 = vmatprep.mubr.bf16.mxu0 0
    %3106 = vmatmul.mubr.bf16.gmra.mrb[0].mxu0 %v2798
    %v3107 = vpop.f32.mrb[0].mxu0
    %v3108 = vadd.f32 0.0, %v3107
    %v3109 = vpop.f32.mrb[0].mxu0
    %v3110 = vadd.f32 0.0, %v3109
    %v3111 = vpop.f32.mrb[0].mxu0
    %v3112 = vadd.f32 0.0, %v3111
    %v3113 = vpop.f32.mrb[0].mxu0
    %v3114 = vadd.f32 0.0, %v3113
    %3115 = vmatprep.mubr.bf16.mxu0 0
    %3116 = vmatmul.mubr.bf16.gmra.mrb[0].mxu0 %v2801
    %v3117 = vpop.f32.mrb[0].mxu0
    %v3118 = vadd.f32 0.0, %v3117
    %v3119 = vpop.f32.mrb[0].mxu0
    %v3120 = vadd.f32 0.0, %v3119
    %v3121 = vpop.f32.mrb[0].mxu0
    %v3122 = vadd.f32 0.0, %v3121
    %v3123 = vpop.f32.mrb[0].mxu0
    %v3124 = vadd.f32 0.0, %v3123
    %3125 = vdwg.mxu0
    %v3126 = vpack.c.bf16 %v3112, %v3108
    %v3127 = vpack.c.bf16 %v3114, %v3110
    %v3128 = vpack.c.bf16 %v3122, %v3118
    %v3129 = vpack.c.bf16 %v3124, %v3120
    %3130 = vmatprep.subr.bf16.mxu0 %v2957
    %3131 = vmatpush1.bf16.msra.mxu0 %v2956
    %3132 = vmatprep.subr.bf16.mxu0 %v2959
    %3133 = vmatpush1.bf16.msra.mxu0 %v2958
    %3134 = vmatprep.subr.bf16.mxu0 %v2961
    %3135 = vmatpush1.bf16.msra.mxu0 %v2960
    %3136 = vmatprep.subr.bf16.mxu0 %v2963
    %3137 = vmatpush1.bf16.msra.mxu0 %v2962
    %3138 = vmatprep.subr.bf16.mxu0 %v2965
    %3139 = vmatpush1.bf16.msra.mxu0 %v2964
    %3140 = vmatprep.subr.bf16.mxu0 %v2967
    %3141 = vmatpush1.bf16.msra.mxu0 %v2966
    %3142 = vmatprep.subr.bf16.mxu0 %v2969
    %3143 = vmatpush1.bf16.msra.mxu0 %v2968
    %3144 = vmatprep.subr.bf16.mxu0 %v2971
    %3145 = vmatpush1.bf16.msra.mxu0 %v2970
    %3146 = vmatprep.subr.bf16.mxu0 %v2973
    %3147 = vmatpush1.bf16.msra.mxu0 %v2972
    %3148 = vmatprep.subr.bf16.mxu0 %v2975
    %3149 = vmatpush1.bf16.msra.mxu0 %v2974
    %3150 = vmatprep.subr.bf16.mxu0 %v2977
    %3151 = vmatpush1.bf16.msra.mxu0 %v2976
    %3152 = vmatprep.subr.bf16.mxu0 %v2979
    %3153 = vmatpush1.bf16.msra.mxu0 %v2978
    %3154 = vmatprep.subr.bf16.mxu0 %v2981
    %3155 = vmatpush1.bf16.msra.mxu0 %v2980
    %3156 = vmatprep.subr.bf16.mxu0 %v2983
    %3157 = vmatpush1.bf16.msra.mxu0 %v2982
    %3158 = vmatprep.subr.bf16.mxu0 %v2985
    %3159 = vmatpush1.bf16.msra.mxu0 %v2984
    %3160 = vmatprep.subr.bf16.mxu0 %v2987
    %3161 = vmatpush1.bf16.msra.mxu0 %v2986
    %3162 = vmatprep.mubr.bf16.mxu0 %v3127
    %3163 = vmatmul.mubr.bf16.gmra.mrb[0].mxu0 %v3126
    %v3164 = vpop.f32.mrb[0].mxu0
    %v3165 = vadd.f32 0.0, %v3164
    %v3166 = vpop.f32.mrb[0].mxu0
    %v3167 = vadd.f32 0.0, %v3166
    %v3168 = vpop.f32.mrb[0].mxu0
    %v3169 = vadd.f32 0.0, %v3168
    %v3170 = vpop.f32.mrb[0].mxu0
    %v3171 = vadd.f32 0.0, %v3170
    %3172 = vmatprep.mubr.bf16.mxu0 %v3129
    %3173 = vmatmul.mubr.bf16.gmra.mrb[0].mxu0 %v3128
    %v3174 = vpop.f32.mrb[0].mxu0
    %v3175 = vadd.f32 0.0, %v3174
    %v3176 = vpop.f32.mrb[0].mxu0
    %v3177 = vadd.f32 0.0, %v3176
    %v3178 = vpop.f32.mrb[0].mxu0
    %v3179 = vadd.f32 0.0, %v3178
    %v3180 = vpop.f32.mrb[0].mxu0
    %v3181 = vadd.f32 0.0, %v3180
    %3182 = vdwg.mxu0
    %s3183 = scalar_lea.vmem [#allocation7], 32
    %v3184 = vld [vmem:[%s3183] sm:$0xf]
    %v3185 = vld [vmem:[%s3183 + $0x4] sm:$0xf]
    %v3186 = vld [vmem:[%s3183 + $0x8] sm:$0xf]
    %v3187 = vld [vmem:[%s3183 + $0xc] sm:$0xf]
    %s3188 = scalar_lea.vmem [#allocation8], 512
    %v3189 = vld [vmem:[%s3188] sm:$0xff]
    %v3190 = vld [vmem:[%s3188 + $0x8] sm:$0xff]
    %v3191 = vld [vmem:[%s3188 + $0x10] sm:$0xff]
    %v3192 = vld [vmem:[%s3188 + $0x18] sm:$0xff]
    %v3193 = vld [vmem:[%s3188 + $0x20] sm:$0xff]
    %v3194 = vld [vmem:[%s3188 + $0x28] sm:$0xff]
    %v3195 = vld [vmem:[%s3188 + $0x30] sm:$0xff]
    %v3196 = vld [vmem:[%s3188 + $0x38] sm:$0xff]
    %v3197 = vld [vmem:[%s3188 + $0x40] sm:$0xff]
    %v3198 = vld [vmem:[%s3188 + $0x48] sm:$0xff]
    %v3199 = vld [vmem:[%s3188 + $0x50] sm:$0xff]
    %v3200 = vld [vmem:[%s3188 + $0x58] sm:$0xff]
    %v3201 = vld [vmem:[%s3188 + $0x60] sm:$0xff]
    %v3202 = vld [vmem:[%s3188 + $0x68] sm:$0xff]
    %v3203 = vld [vmem:[%s3188 + $0x70] sm:$0xff]
    %v3204 = vld [vmem:[%s3188 + $0x78] sm:$0xff]
    %v3205 = vld [vmem:[%s3188 + $0x80] sm:$0xff]
    %v3206 = vld [vmem:[%s3188 + $0x88] sm:$0xff]
    %v3207 = vld [vmem:[%s3188 + $0x90] sm:$0xff]
    %v3208 = vld [vmem:[%s3188 + $0x98] sm:$0xff]
    %v3209 = vld [vmem:[%s3188 + $0xa0] sm:$0xff]
    %v3210 = vld [vmem:[%s3188 + $0xa8] sm:$0xff]
    %v3211 = vld [vmem:[%s3188 + $0xb0] sm:$0xff]
    %v3212 = vld [vmem:[%s3188 + $0xb8] sm:$0xff]
    %v3213 = vld [vmem:[%s3188 + $0xc0] sm:$0xff]
    %v3214 = vld [vmem:[%s3188 + $0xc8] sm:$0xff]
    %v3215 = vld [vmem:[%s3188 + $0xd0] sm:$0xff]
    %v3216 = vld [vmem:[%s3188 + $0xd8] sm:$0xff]
    %v3217 = vld [vmem:[%s3188 + $0xe0] sm:$0xff]
    %v3218 = vld [vmem:[%s3188 + $0xe8] sm:$0xff]
    %v3219 = vld [vmem:[%s3188 + $0xf0] sm:$0xff]
    %v3220 = vld [vmem:[%s3188 + $0xf8] sm:$0xff]
    %v3221 = vpack.c.bf16 %v3059, %v3055
    %v3222 = vpack.c.bf16 %v3061, %v3057
    %v3223 = vpack.c.bf16 %v3069, %v3065
    %v3224 = vpack.c.bf16 %v3071, %v3067
    %v3229 = vunpack.c.l.b16 %v3184
    %v3230 = vunpack.c.l.b16 %v3185
    %v3231 = vunpack.c.l.b16 %v3186
    %v3232 = vunpack.c.l.b16 %v3187
    %v3233 = vpack.c.b16 %v3230, %v3229
    %v3234 = vpack.c.b16 %v3232, %v3231
    %v3236 = vsel %vm188, %v3233, 0
    %v3239 = vsel %vm188, %v3234, 0
    %3241 = vmatprep.subr.bf16.mxu0 %v3222
    %3242 = vmatpush1.bf16.msra.mxu0 %v3221
    %3243 = vmatprep.subr.bf16.mxu0 %v3224
    %3244 = vmatpush1.bf16.msra.mxu0 %v3223
    %3245 = vmatprep.subr.bf16.mxu0 0
    %3246 = vmatpush1.bf16.msra.mxu0 0
    %3247 = vmatprep.subr.bf16.mxu0 0
    %3248 = vmatpush1.bf16.msra.mxu0 0
    %3249 = vmatprep.subr.bf16.mxu0 0
    %3250 = vmatpush1.bf16.msra.mxu0 0
    %3251 = vmatprep.subr.bf16.mxu0 0
    %3252 = vmatpush1.bf16.msra.mxu0 0
    %3253 = vmatprep.subr.bf16.mxu0 0
    %3254 = vmatpush1.bf16.msra.mxu0 0
    %3255 = vmatprep.subr.bf16.mxu0 0
    %3256 = vmatpush1.bf16.msra.mxu0 0
    %3257 = vmatprep.subr.bf16.mxu0 0
    %3258 = vmatpush1.bf16.msra.mxu0 0
    %3259 = vmatprep.subr.bf16.mxu0 0
    %3260 = vmatpush1.bf16.msra.mxu0 0
    %3261 = vmatprep.subr.bf16.mxu0 0
    %3262 = vmatpush1.bf16.msra.mxu0 0
    %3263 = vmatprep.subr.bf16.mxu0 0
    %3264 = vmatpush1.bf16.msra.mxu0 0
    %3265 = vmatprep.subr.bf16.mxu0 0
    %3266 = vmatpush1.bf16.msra.mxu0 0
    %3267 = vmatprep.subr.bf16.mxu0 0
    %3268 = vmatpush1.bf16.msra.mxu0 0
    %3269 = vmatprep.subr.bf16.mxu0 0
    %3270 = vmatpush1.bf16.msra.mxu0 0
    %3271 = vmatprep.subr.bf16.mxu0 0
    %3272 = vmatpush1.bf16.msra.mxu0 0
    %3273 = vmatprep.mubr.bf16.mxu0 0
    %3274 = vmatmul.mubr.bf16.gmra.mrb[0].mxu0 %v3236
    %v3275 = vpop.f32.mrb[0].mxu0
    %v3276 = vadd.f32 0.0, %v3275
    %v3277 = vpop.f32.mrb[0].mxu0
    %v3278 = vadd.f32 0.0, %v3277
    %v3279 = vpop.f32.mrb[0].mxu0
    %v3280 = vadd.f32 0.0, %v3279
    %v3281 = vpop.f32.mrb[0].mxu0
    %v3282 = vadd.f32 0.0, %v3281
    %3283 = vmatprep.mubr.bf16.mxu0 0
    %3284 = vmatmul.mubr.bf16.gmra.mrb[0].mxu0 %v3239
    %v3285 = vpop.f32.mrb[0].mxu0
    %v3286 = vadd.f32 0.0, %v3285
    %v3287 = vpop.f32.mrb[0].mxu0
    %v3288 = vadd.f32 0.0, %v3287
    %v3289 = vpop.f32.mrb[0].mxu0
    %v3290 = vadd.f32 0.0, %v3289
    %v3291 = vpop.f32.mrb[0].mxu0
    %v3292 = vadd.f32 0.0, %v3291
    %3293 = vdwg.mxu0
    %v3294 = vpack.c.bf16 %v3280, %v3276
    %v3295 = vpack.c.bf16 %v3282, %v3278
    %v3296 = vpack.c.bf16 %v3290, %v3286
    %v3297 = vpack.c.bf16 %v3292, %v3288
    %v3330 = vunpack.c.l.b16 %v3189
    %v3331 = vunpack.c.h.b16 %v3189
    %v3332 = vunpack.c.l.b16 %v3190
    %v3333 = vunpack.c.h.b16 %v3190
    %v3334 = vunpack.c.l.b16 %v3191
    %v3335 = vunpack.c.h.b16 %v3191
    %v3336 = vunpack.c.l.b16 %v3192
    %v3337 = vunpack.c.h.b16 %v3192
    %v3338 = vunpack.c.l.b16 %v3193
    %v3339 = vunpack.c.h.b16 %v3193
    %v3340 = vunpack.c.l.b16 %v3194
    %v3341 = vunpack.c.h.b16 %v3194
    %v3342 = vunpack.c.l.b16 %v3195
    %v3343 = vunpack.c.h.b16 %v3195
    %v3344 = vunpack.c.l.b16 %v3196
    %v3345 = vunpack.c.h.b16 %v3196
    %v3346 = vunpack.c.l.b16 %v3197
    %v3347 = vunpack.c.h.b16 %v3197
    %v3348 = vunpack.c.l.b16 %v3198
    %v3349 = vunpack.c.h.b16 %v3198
    %v3350 = vunpack.c.l.b16 %v3199
    %v3351 = vunpack.c.h.b16 %v3199
    %v3352 = vunpack.c.l.b16 %v3200
    %v3353 = vunpack.c.h.b16 %v3200
    %v3354 = vunpack.c.l.b16 %v3201
    %v3355 = vunpack.c.h.b16 %v3201
    %v3356 = vunpack.c.l.b16 %v3202
    %v3357 = vunpack.c.h.b16 %v3202
    %v3358 = vunpack.c.l.b16 %v3203
    %v3359 = vunpack.c.h.b16 %v3203
    %v3360 = vunpack.c.l.b16 %v3204
    %v3361 = vunpack.c.h.b16 %v3204
    %v3362 = vunpack.c.l.b16 %v3205
    %v3363 = vunpack.c.h.b16 %v3205
    %v3364 = vunpack.c.l.b16 %v3206
    %v3365 = vunpack.c.h.b16 %v3206
    %v3366 = vunpack.c.l.b16 %v3207
    %v3367 = vunpack.c.h.b16 %v3207
    %v3368 = vunpack.c.l.b16 %v3208
    %v3369 = vunpack.c.h.b16 %v3208
    %v3370 = vunpack.c.l.b16 %v3209
    %v3371 = vunpack.c.h.b16 %v3209
    %v3372 = vunpack.c.l.b16 %v3210
    %v3373 = vunpack.c.h.b16 %v3210
    %v3374 = vunpack.c.l.b16 %v3211
    %v3375 = vunpack.c.h.b16 %v3211
    %v3376 = vunpack.c.l.b16 %v3212
    %v3377 = vunpack.c.h.b16 %v3212
    %v3378 = vunpack.c.l.b16 %v3213
    %v3379 = vunpack.c.h.b16 %v3213
    %v3380 = vunpack.c.l.b16 %v3214
    %v3381 = vunpack.c.h.b16 %v3214
    %v3382 = vunpack.c.l.b16 %v3215
    %v3383 = vunpack.c.h.b16 %v3215
    %v3384 = vunpack.c.l.b16 %v3216
    %v3385 = vunpack.c.h.b16 %v3216
    %v3386 = vunpack.c.l.b16 %v3217
    %v3387 = vunpack.c.h.b16 %v3217
    %v3388 = vunpack.c.l.b16 %v3218
    %v3389 = vunpack.c.h.b16 %v3218
    %v3390 = vunpack.c.l.b16 %v3219
    %v3391 = vunpack.c.h.b16 %v3219
    %v3392 = vunpack.c.l.b16 %v3220
    %v3393 = vunpack.c.h.b16 %v3220
    %v3394 = vpack.c.b16 %v3332, %v3330
    %v3395 = vpack.c.b16 %v3333, %v3331
    %v3396 = vpack.c.b16 %v3336, %v3334
    %v3397 = vpack.c.b16 %v3337, %v3335
    %v3398 = vpack.c.b16 %v3340, %v3338
    %v3399 = vpack.c.b16 %v3341, %v3339
    %v3400 = vpack.c.b16 %v3344, %v3342
    %v3401 = vpack.c.b16 %v3345, %v3343
    %v3402 = vpack.c.b16 %v3348, %v3346
    %v3403 = vpack.c.b16 %v3349, %v3347
    %v3404 = vpack.c.b16 %v3352, %v3350
    %v3405 = vpack.c.b16 %v3353, %v3351
    %v3406 = vpack.c.b16 %v3356, %v3354
    %v3407 = vpack.c.b16 %v3357, %v3355
    %v3408 = vpack.c.b16 %v3360, %v3358
    %v3409 = vpack.c.b16 %v3361, %v3359
    %v3410 = vpack.c.b16 %v3364, %v3362
    %v3411 = vpack.c.b16 %v3365, %v3363
    %v3412 = vpack.c.b16 %v3368, %v3366
    %v3413 = vpack.c.b16 %v3369, %v3367
    %v3414 = vpack.c.b16 %v3372, %v3370
    %v3415 = vpack.c.b16 %v3373, %v3371
    %v3416 = vpack.c.b16 %v3376, %v3374
    %v3417 = vpack.c.b16 %v3377, %v3375
    %v3418 = vpack.c.b16 %v3380, %v3378
    %v3419 = vpack.c.b16 %v3381, %v3379
    %v3420 = vpack.c.b16 %v3384, %v3382
    %v3421 = vpack.c.b16 %v3385, %v3383
    %v3422 = vpack.c.b16 %v3388, %v3386
    %v3423 = vpack.c.b16 %v3389, %v3387
    %v3424 = vpack.c.b16 %v3392, %v3390
    %v3425 = vpack.c.b16 %v3393, %v3391
    %3458 = vmatprep.subr.bf16.mxu0 %v3395
    %3459 = vmatpush1.bf16.msra.mxu0 %v3394
    %3460 = vmatprep.subr.bf16.mxu0 %v3397
    %3461 = vmatpush1.bf16.msra.mxu0 %v3396
    %3462 = vmatprep.subr.bf16.mxu0 %v3399
    %3463 = vmatpush1.bf16.msra.mxu0 %v3398
    %3464 = vmatprep.subr.bf16.mxu0 %v3401
    %3465 = vmatpush1.bf16.msra.mxu0 %v3400
    %3466 = vmatprep.subr.bf16.mxu0 %v3403
    %3467 = vmatpush1.bf16.msra.mxu0 %v3402
    %3468 = vmatprep.subr.bf16.mxu0 %v3405
    %3469 = vmatpush1.bf16.msra.mxu0 %v3404
    %3470 = vmatprep.subr.bf16.mxu0 %v3407
    %3471 = vmatpush1.bf16.msra.mxu0 %v3406
    %3472 = vmatprep.subr.bf16.mxu0 %v3409
    %3473 = vmatpush1.bf16.msra.mxu0 %v3408
    %3474 = vmatprep.subr.bf16.mxu0 %v3411
    %3475 = vmatpush1.bf16.msra.mxu0 %v3410
    %3476 = vmatprep.subr.bf16.mxu0 %v3413
    %3477 = vmatpush1.bf16.msra.mxu0 %v3412
    %3478 = vmatprep.subr.bf16.mxu0 %v3415
    %3479 = vmatpush1.bf16.msra.mxu0 %v3414
    %3480 = vmatprep.subr.bf16.mxu0 %v3417
    %3481 = vmatpush1.bf16.msra.mxu0 %v3416
    %3482 = vmatprep.subr.bf16.mxu0 %v3419
    %3483 = vmatpush1.bf16.msra.mxu0 %v3418
    %3484 = vmatprep.subr.bf16.mxu0 %v3421
    %3485 = vmatpush1.bf16.msra.mxu0 %v3420
    %3486 = vmatprep.subr.bf16.mxu0 %v3423
    %3487 = vmatpush1.bf16.msra.mxu0 %v3422
    %3488 = vmatprep.subr.bf16.mxu0 %v3425
    %3489 = vmatpush1.bf16.msra.mxu0 %v3424
    %3490 = vmatprep.mubr.bf16.mxu0 %v3295
    %3491 = vmatmul.mubr.bf16.gmra.mrb[0].mxu0 %v3294
    %v3492 = vpop.f32.mrb[0].mxu0
    %v3493 = vadd.f32 0.0, %v3492
    %v3494 = vpop.f32.mrb[0].mxu0
    %v3495 = vadd.f32 0.0, %v3494
    %v3496 = vpop.f32.mrb[0].mxu0
    %v3497 = vadd.f32 0.0, %v3496
    %v3498 = vpop.f32.mrb[0].mxu0
    %v3499 = vadd.f32 0.0, %v3498
    %3500 = vmatprep.mubr.bf16.mxu0 %v3297
    %3501 = vmatmul.mubr.bf16.gmra.mrb[0].mxu0 %v3296
    %v3502 = vpop.f32.mrb[0].mxu0
    %v3503 = vadd.f32 0.0, %v3502
    %v3504 = vpop.f32.mrb[0].mxu0
    %v3505 = vadd.f32 0.0, %v3504
    %v3506 = vpop.f32.mrb[0].mxu0
    %v3507 = vadd.f32 0.0, %v3506
    %v3508 = vpop.f32.mrb[0].mxu0
    %v3509 = vadd.f32 0.0, %v3508
    %3510 = vdwg.mxu0
    %v3511 = vpack.c.bf16 %v3169, %v3165
    %v3512 = vpack.c.bf16 %v3171, %v3167
    %v3513 = vpack.c.bf16 %v3179, %v3175
    %v3514 = vpack.c.bf16 %v3181, %v3177
    %3515 = vmatprep.subr.bf16.mxu0 %v3512
    %3516 = vmatpush1.bf16.msra.mxu0 %v3511
    %3517 = vmatprep.subr.bf16.mxu0 %v3514
    %3518 = vmatpush1.bf16.msra.mxu0 %v3513
    %3519 = vmatprep.subr.bf16.mxu0 0
    %3520 = vmatpush1.bf16.msra.mxu0 0
    %3521 = vmatprep.subr.bf16.mxu0 0
    %3522 = vmatpush1.bf16.msra.mxu0 0
    %3523 = vmatprep.subr.bf16.mxu0 0
    %3524 = vmatpush1.bf16.msra.mxu0 0
    %3525 = vmatprep.subr.bf16.mxu0 0
    %3526 = vmatpush1.bf16.msra.mxu0 0
    %3527 = vmatprep.subr.bf16.mxu0 0
    %3528 = vmatpush1.bf16.msra.mxu0 0
    %3529 = vmatprep.subr.bf16.mxu0 0
    %3530 = vmatpush1.bf16.msra.mxu0 0
    %3531 = vmatprep.subr.bf16.mxu0 0
    %3532 = vmatpush1.bf16.msra.mxu0 0
    %3533 = vmatprep.subr.bf16.mxu0 0
    %3534 = vmatpush1.bf16.msra.mxu0 0
    %3535 = vmatprep.subr.bf16.mxu0 0
    %3536 = vmatpush1.bf16.msra.mxu0 0
    %3537 = vmatprep.subr.bf16.mxu0 0
    %3538 = vmatpush1.bf16.msra.mxu0 0
    %3539 = vmatprep.subr.bf16.mxu0 0
    %3540 = vmatpush1.bf16.msra.mxu0 0
    %3541 = vmatprep.subr.bf16.mxu0 0
    %3542 = vmatpush1.bf16.msra.mxu0 0
    %3543 = vmatprep.subr.bf16.mxu0 0
    %3544 = vmatpush1.bf16.msra.mxu0 0
    %3545 = vmatprep.subr.bf16.mxu0 0
    %3546 = vmatpush1.bf16.msra.mxu0 0
    %3547 = vmatprep.mubr.bf16.mxu0 0
    %3548 = vmatmul.mubr.bf16.gmra.mrb[0].mxu0 %v3236
    %v3549 = vpop.f32.mrb[0].mxu0
    %v3550 = vadd.f32 0.0, %v3549
    %v3551 = vpop.f32.mrb[0].mxu0
    %v3552 = vadd.f32 0.0, %v3551
    %v3553 = vpop.f32.mrb[0].mxu0
    %v3554 = vadd.f32 0.0, %v3553
    %v3555 = vpop.f32.mrb[0].mxu0
    %v3556 = vadd.f32 0.0, %v3555
    %3557 = vmatprep.mubr.bf16.mxu0 0
    %3558 = vmatmul.mubr.bf16.gmra.mrb[0].mxu0 %v3239
    %v3559 = vpop.f32.mrb[0].mxu0
    %v3560 = vadd.f32 0.0, %v3559
    %v3561 = vpop.f32.mrb[0].mxu0
    %v3562 = vadd.f32 0.0, %v3561
    %v3563 = vpop.f32.mrb[0].mxu0
    %v3564 = vadd.f32 0.0, %v3563
    %v3565 = vpop.f32.mrb[0].mxu0
    %v3566 = vadd.f32 0.0, %v3565
    %3567 = vdwg.mxu0
    %v3568 = vpack.c.bf16 %v3554, %v3550
    %v3569 = vpack.c.bf16 %v3556, %v3552
    %v3570 = vpack.c.bf16 %v3564, %v3560
    %v3571 = vpack.c.bf16 %v3566, %v3562
    %3572 = vmatprep.subr.bf16.mxu0 %v3395
    %3573 = vmatpush1.bf16.msra.mxu0 %v3394
    %3574 = vmatprep.subr.bf16.mxu0 %v3397
    %3575 = vmatpush1.bf16.msra.mxu0 %v3396
    %3576 = vmatprep.subr.bf16.mxu0 %v3399
    %3577 = vmatpush1.bf16.msra.mxu0 %v3398
    %3578 = vmatprep.subr.bf16.mxu0 %v3401
    %3579 = vmatpush1.bf16.msra.mxu0 %v3400
    %3580 = vmatprep.subr.bf16.mxu0 %v3403
    %3581 = vmatpush1.bf16.msra.mxu0 %v3402
    %3582 = vmatprep.subr.bf16.mxu0 %v3405
    %3583 = vmatpush1.bf16.msra.mxu0 %v3404
    %3584 = vmatprep.subr.bf16.mxu0 %v3407
    %3585 = vmatpush1.bf16.msra.mxu0 %v3406
    %3586 = vmatprep.subr.bf16.mxu0 %v3409
    %3587 = vmatpush1.bf16.msra.mxu0 %v3408
    %3588 = vmatprep.subr.bf16.mxu0 %v3411
    %3589 = vmatpush1.bf16.msra.mxu0 %v3410
    %3590 = vmatprep.subr.bf16.mxu0 %v3413
    %3591 = vmatpush1.bf16.msra.mxu0 %v3412
    %3592 = vmatprep.subr.bf16.mxu0 %v3415
    %3593 = vmatpush1.bf16.msra.mxu0 %v3414
    %3594 = vmatprep.subr.bf16.mxu0 %v3417
    %3595 = vmatpush1.bf16.msra.mxu0 %v3416
    %3596 = vmatprep.subr.bf16.mxu0 %v3419
    %3597 = vmatpush1.bf16.msra.mxu0 %v3418
    %3598 = vmatprep.subr.bf16.mxu0 %v3421
    %3599 = vmatpush1.bf16.msra.mxu0 %v3420
    %3600 = vmatprep.subr.bf16.mxu0 %v3423
    %3601 = vmatpush1.bf16.msra.mxu0 %v3422
    %3602 = vmatprep.subr.bf16.mxu0 %v3425
    %3603 = vmatpush1.bf16.msra.mxu0 %v3424
    %3604 = vmatprep.mubr.bf16.mxu0 %v3569
    %3605 = vmatmul.mubr.bf16.gmra.mrb[0].mxu0 %v3568
    %v3606 = vpop.f32.mrb[0].mxu0
    %v3607 = vadd.f32 0.0, %v3606
    %v3608 = vpop.f32.mrb[0].mxu0
    %v3609 = vadd.f32 0.0, %v3608
    %v3610 = vpop.f32.mrb[0].mxu0
    %v3611 = vadd.f32 0.0, %v3610
    %v3612 = vpop.f32.mrb[0].mxu0
    %v3613 = vadd.f32 0.0, %v3612
    %3614 = vmatprep.mubr.bf16.mxu0 %v3571
    %3615 = vmatmul.mubr.bf16.gmra.mrb[0].mxu0 %v3570
    %v3616 = vpop.f32.mrb[0].mxu0
    %v3617 = vadd.f32 0.0, %v3616
    %v3618 = vpop.f32.mrb[0].mxu0
    %v3619 = vadd.f32 0.0, %v3618
    %v3620 = vpop.f32.mrb[0].mxu0
    %v3621 = vadd.f32 0.0, %v3620
    %v3622 = vpop.f32.mrb[0].mxu0
    %v3623 = vadd.f32 0.0, %v3622
    %3624 = vdwg.mxu0
    %v3625 = vmul.f32 %v3055, %v3055
    %v3626 = vmul.f32 %v3057, %v3057
    %v3627 = vmul.f32 %v3059, %v3059
    %v3628 = vmul.f32 %v3061, %v3061
    %v3629 = vmul.f32 %v3065, %v3065
    %v3630 = vmul.f32 %v3067, %v3067
    %v3631 = vmul.f32 %v3069, %v3069
    %v3632 = vmul.f32 %v3071, %v3071
    %v3633 = vpack.c.bf16 %v3627, %v3625
    %v3634 = vpack.c.bf16 %v3628, %v3626
    %v3635 = vpack.c.bf16 %v3631, %v3629
    %v3636 = vpack.c.bf16 %v3632, %v3630
    %3637 = vmatprep.subr.bf16.mxu0 %v3634
    %3638 = vmatpush1.bf16.msra.mxu0 %v3633
    %3639 = vmatprep.subr.bf16.mxu0 %v3636
    %3640 = vmatpush1.bf16.msra.mxu0 %v3635
    %3641 = vmatprep.subr.bf16.mxu0 0
    %3642 = vmatpush1.bf16.msra.mxu0 0
    %3643 = vmatprep.subr.bf16.mxu0 0
    %3644 = vmatpush1.bf16.msra.mxu0 0
    %3645 = vmatprep.subr.bf16.mxu0 0
    %3646 = vmatpush1.bf16.msra.mxu0 0
    %3647 = vmatprep.subr.bf16.mxu0 0
    %3648 = vmatpush1.bf16.msra.mxu0 0
    %3649 = vmatprep.subr.bf16.mxu0 0
    %3650 = vmatpush1.bf16.msra.mxu0 0
    %3651 = vmatprep.subr.bf16.mxu0 0
    %3652 = vmatpush1.bf16.msra.mxu0 0
    %3653 = vmatprep.subr.bf16.mxu0 0
    %3654 = vmatpush1.bf16.msra.mxu0 0
    %3655 = vmatprep.subr.bf16.mxu0 0
    %3656 = vmatpush1.bf16.msra.mxu0 0
    %3657 = vmatprep.subr.bf16.mxu0 0
    %3658 = vmatpush1.bf16.msra.mxu0 0
    %3659 = vmatprep.subr.bf16.mxu0 0
    %3660 = vmatpush1.bf16.msra.mxu0 0
    %3661 = vmatprep.subr.bf16.mxu0 0
    %3662 = vmatpush1.bf16.msra.mxu0 0
    %3663 = vmatprep.subr.bf16.mxu0 0
    %3664 = vmatpush1.bf16.msra.mxu0 0
    %3665 = vmatprep.subr.bf16.mxu0 0
    %3666 = vmatpush1.bf16.msra.mxu0 0
    %3667 = vmatprep.subr.bf16.mxu0 0
    %3668 = vmatpush1.bf16.msra.mxu0 0
    %3669 = vmatprep.mubr.bf16.mxu0 0
    %3670 = vmatmul.mubr.bf16.gmra.mrb[0].mxu0 %v3236
    %v3671 = vpop.f32.mrb[0].mxu0
    %v3672 = vadd.f32 0.0, %v3671
    %v3673 = vpop.f32.mrb[0].mxu0
    %v3674 = vadd.f32 0.0, %v3673
    %v3675 = vpop.f32.mrb[0].mxu0
    %v3676 = vadd.f32 0.0, %v3675
    %v3677 = vpop.f32.mrb[0].mxu0
    %v3678 = vadd.f32 0.0, %v3677
    %3679 = vmatprep.mubr.bf16.mxu0 0
    %3680 = vmatmul.mubr.bf16.gmra.mrb[0].mxu0 %v3239
    %v3681 = vpop.f32.mrb[0].mxu0
    %v3682 = vadd.f32 0.0, %v3681
    %v3683 = vpop.f32.mrb[0].mxu0
    %v3684 = vadd.f32 0.0, %v3683
    %v3685 = vpop.f32.mrb[0].mxu0
    %v3686 = vadd.f32 0.0, %v3685
    %v3687 = vpop.f32.mrb[0].mxu0
    %v3688 = vadd.f32 0.0, %v3687
    %3689 = vdwg.mxu0
    %v3690 = vpack.c.bf16 %v3676, %v3672
    %v3691 = vpack.c.bf16 %v3678, %v3674
    %v3692 = vpack.c.bf16 %v3686, %v3682
    %v3693 = vpack.c.bf16 %v3688, %v3684
    %3694 = vmatprep.subr.bf16.mxu0 %v3395
    %3695 = vmatpush1.bf16.msra.mxu0 %v3394
    %3696 = vmatprep.subr.bf16.mxu0 %v3397
    %3697 = vmatpush1.bf16.msra.mxu0 %v3396
    %3698 = vmatprep.subr.bf16.mxu0 %v3399
    %3699 = vmatpush1.bf16.msra.mxu0 %v3398
    %3700 = vmatprep.subr.bf16.mxu0 %v3401
    %3701 = vmatpush1.bf16.msra.mxu0 %v3400
    %3702 = vmatprep.subr.bf16.mxu0 %v3403
    %3703 = vmatpush1.bf16.msra.mxu0 %v3402
    %3704 = vmatprep.subr.bf16.mxu0 %v3405
    %3705 = vmatpush1.bf16.msra.mxu0 %v3404
    %3706 = vmatprep.subr.bf16.mxu0 %v3407
    %3707 = vmatpush1.bf16.msra.mxu0 %v3406
    %3708 = vmatprep.subr.bf16.mxu0 %v3409
    %3709 = vmatpush1.bf16.msra.mxu0 %v3408
    %3710 = vmatprep.subr.bf16.mxu0 %v3411
    %3711 = vmatpush1.bf16.msra.mxu0 %v3410
    %3712 = vmatprep.subr.bf16.mxu0 %v3413
    %3713 = vmatpush1.bf16.msra.mxu0 %v3412
    %3714 = vmatprep.subr.bf16.mxu0 %v3415
    %3715 = vmatpush1.bf16.msra.mxu0 %v3414
    %3716 = vmatprep.subr.bf16.mxu0 %v3417
    %3717 = vmatpush1.bf16.msra.mxu0 %v3416
    %3718 = vmatprep.subr.bf16.mxu0 %v3419
    %3719 = vmatpush1.bf16.msra.mxu0 %v3418
    %3720 = vmatprep.subr.bf16.mxu0 %v3421
    %3721 = vmatpush1.bf16.msra.mxu0 %v3420
    %3722 = vmatprep.subr.bf16.mxu0 %v3423
    %3723 = vmatpush1.bf16.msra.mxu0 %v3422
    %3724 = vmatprep.subr.bf16.mxu0 %v3425
    %3725 = vmatpush1.bf16.msra.mxu0 %v3424
    %3726 = vmatprep.mubr.bf16.mxu0 %v3691
    %3727 = vmatmul.mubr.bf16.gmra.mrb[0].mxu0 %v3690
    %v3728 = vpop.f32.mrb[0].mxu0
    %v3729 = vadd.f32 0.0, %v3728
    %v3730 = vpop.f32.mrb[0].mxu0
    %v3731 = vadd.f32 0.0, %v3730
    %v3732 = vpop.f32.mrb[0].mxu0
    %v3733 = vadd.f32 0.0, %v3732
    %v3734 = vpop.f32.mrb[0].mxu0
    %v3735 = vadd.f32 0.0, %v3734
    %3736 = vmatprep.mubr.bf16.mxu0 %v3693
    %3737 = vmatmul.mubr.bf16.gmra.mrb[0].mxu0 %v3692
    %v3738 = vpop.f32.mrb[0].mxu0
    %v3739 = vadd.f32 0.0, %v3738
    %v3740 = vpop.f32.mrb[0].mxu0
    %v3741 = vadd.f32 0.0, %v3740
    %v3742 = vpop.f32.mrb[0].mxu0
    %v3743 = vadd.f32 0.0, %v3742
    %v3744 = vpop.f32.mrb[0].mxu0
    %v3745 = vadd.f32 0.0, %v3744
    %3746 = vdwg.mxu0
    %v3747 = vmul.f32 %v3165, %v3165
    %v3748 = vmul.f32 %v3167, %v3167
    %v3749 = vmul.f32 %v3169, %v3169
    %v3750 = vmul.f32 %v3171, %v3171
    %v3751 = vmul.f32 %v3175, %v3175
    %v3752 = vmul.f32 %v3177, %v3177
    %v3753 = vmul.f32 %v3179, %v3179
    %v3754 = vmul.f32 %v3181, %v3181
    %v3755 = vpack.c.bf16 %v3749, %v3747
    %v3756 = vpack.c.bf16 %v3750, %v3748
    %v3757 = vpack.c.bf16 %v3753, %v3751
    %v3758 = vpack.c.bf16 %v3754, %v3752
    %3759 = vmatprep.subr.bf16.mxu0 %v3756
    %3760 = vmatpush1.bf16.msra.mxu0 %v3755
    %3761 = vmatprep.subr.bf16.mxu0 %v3758
    %3762 = vmatpush1.bf16.msra.mxu0 %v3757
    %3763 = vmatprep.subr.bf16.mxu0 0
    %3764 = vmatpush1.bf16.msra.mxu0 0
    %3765 = vmatprep.subr.bf16.mxu0 0
    %3766 = vmatpush1.bf16.msra.mxu0 0
    %3767 = vmatprep.subr.bf16.mxu0 0
    %3768 = vmatpush1.bf16.msra.mxu0 0
    %3769 = vmatprep.subr.bf16.mxu0 0
    %3770 = vmatpush1.bf16.msra.mxu0 0
    %3771 = vmatprep.subr.bf16.mxu0 0
    %3772 = vmatpush1.bf16.msra.mxu0 0
    %3773 = vmatprep.subr.bf16.mxu0 0
    %3774 = vmatpush1.bf16.msra.mxu0 0
    %3775 = vmatprep.subr.bf16.mxu0 0
    %3776 = vmatpush1.bf16.msra.mxu0 0
    %3777 = vmatprep.subr.bf16.mxu0 0
    %3778 = vmatpush1.bf16.msra.mxu0 0
    %3779 = vmatprep.subr.bf16.mxu0 0
    %3780 = vmatpush1.bf16.msra.mxu0 0
    %3781 = vmatprep.subr.bf16.mxu0 0
    %3782 = vmatpush1.bf16.msra.mxu0 0
    %3783 = vmatprep.subr.bf16.mxu0 0
    %3784 = vmatpush1.bf16.msra.mxu0 0
    %3785 = vmatprep.subr.bf16.mxu0 0
    %3786 = vmatpush1.bf16.msra.mxu0 0
    %3787 = vmatprep.subr.bf16.mxu0 0
    %3788 = vmatpush1.bf16.msra.mxu0 0
    %3789 = vmatprep.subr.bf16.mxu0 0
    %3790 = vmatpush1.bf16.msra.mxu0 0
    %3791 = vmatprep.mubr.bf16.mxu0 0
    %3792 = vmatmul.mubr.bf16.gmra.mrb[0].mxu0 %v3236
    %v3793 = vpop.f32.mrb[0].mxu0
    %v3794 = vadd.f32 0.0, %v3793
    %v3795 = vpop.f32.mrb[0].mxu0
    %v3796 = vadd.f32 0.0, %v3795
    %v3797 = vpop.f32.mrb[0].mxu0
    %v3798 = vadd.f32 0.0, %v3797
    %v3799 = vpop.f32.mrb[0].mxu0
    %v3800 = vadd.f32 0.0, %v3799
    %3801 = vmatprep.mubr.bf16.mxu0 0
    %3802 = vmatmul.mubr.bf16.gmra.mrb[0].mxu0 %v3239
    %v3803 = vpop.f32.mrb[0].mxu0
    %v3804 = vadd.f32 0.0, %v3803
    %v3805 = vpop.f32.mrb[0].mxu0
    %v3806 = vadd.f32 0.0, %v3805
    %v3807 = vpop.f32.mrb[0].mxu0
    %v3808 = vadd.f32 0.0, %v3807
    %v3809 = vpop.f32.mrb[0].mxu0
    %v3810 = vadd.f32 0.0, %v3809
    %3811 = vdwg.mxu0
    %v3812 = vpack.c.bf16 %v3798, %v3794
    %v3813 = vpack.c.bf16 %v3800, %v3796
    %v3814 = vpack.c.bf16 %v3808, %v3804
    %v3815 = vpack.c.bf16 %v3810, %v3806
    %3816 = vmatprep.subr.bf16.mxu0 %v3395
    %3817 = vmatpush1.bf16.msra.mxu0 %v3394
    %3818 = vmatprep.subr.bf16.mxu0 %v3397
    %3819 = vmatpush1.bf16.msra.mxu0 %v3396
    %3820 = vmatprep.subr.bf16.mxu0 %v3399
    %3821 = vmatpush1.bf16.msra.mxu0 %v3398
    %3822 = vmatprep.subr.bf16.mxu0 %v3401
    %3823 = vmatpush1.bf16.msra.mxu0 %v3400
    %3824 = vmatprep.subr.bf16.mxu0 %v3403
    %3825 = vmatpush1.bf16.msra.mxu0 %v3402
    %3826 = vmatprep.subr.bf16.mxu0 %v3405
    %3827 = vmatpush1.bf16.msra.mxu0 %v3404
    %3828 = vmatprep.subr.bf16.mxu0 %v3407
    %3829 = vmatpush1.bf16.msra.mxu0 %v3406
    %3830 = vmatprep.subr.bf16.mxu0 %v3409
    %3831 = vmatpush1.bf16.msra.mxu0 %v3408
    %3832 = vmatprep.subr.bf16.mxu0 %v3411
    %3833 = vmatpush1.bf16.msra.mxu0 %v3410
    %3834 = vmatprep.subr.bf16.mxu0 %v3413
    %3835 = vmatpush1.bf16.msra.mxu0 %v3412
    %3836 = vmatprep.subr.bf16.mxu0 %v3415
    %3837 = vmatpush1.bf16.msra.mxu0 %v3414
    %3838 = vmatprep.subr.bf16.mxu0 %v3417
    %3839 = vmatpush1.bf16.msra.mxu0 %v3416
    %3840 = vmatprep.subr.bf16.mxu0 %v3419
    %3841 = vmatpush1.bf16.msra.mxu0 %v3418
    %3842 = vmatprep.subr.bf16.mxu0 %v3421
    %3843 = vmatpush1.bf16.msra.mxu0 %v3420
    %3844 = vmatprep.subr.bf16.mxu0 %v3423
    %3845 = vmatpush1.bf16.msra.mxu0 %v3422
    %3846 = vmatprep.subr.bf16.mxu0 %v3425
    %3847 = vmatpush1.bf16.msra.mxu0 %v3424
    %3848 = vmatprep.mubr.bf16.mxu0 %v3813
    %3849 = vmatmul.mubr.bf16.gmra.mrb[0].mxu0 %v3812
    %v3850 = vpop.f32.mrb[0].mxu0
    %v3851 = vadd.f32 0.0, %v3850
    %v3852 = vpop.f32.mrb[0].mxu0
    %v3853 = vadd.f32 0.0, %v3852
    %v3854 = vpop.f32.mrb[0].mxu0
    %v3855 = vadd.f32 0.0, %v3854
    %v3856 = vpop.f32.mrb[0].mxu0
    %v3857 = vadd.f32 0.0, %v3856
    %3858 = vmatprep.mubr.bf16.mxu0 %v3815
    %3859 = vmatmul.mubr.bf16.gmra.mrb[0].mxu0 %v3814
    %v3860 = vpop.f32.mrb[0].mxu0
    %v3861 = vadd.f32 0.0, %v3860
    %v3862 = vpop.f32.mrb[0].mxu0
    %v3863 = vadd.f32 0.0, %v3862
    %v3864 = vpop.f32.mrb[0].mxu0
    %v3865 = vadd.f32 0.0, %v3864
    %v3866 = vpop.f32.mrb[0].mxu0
    %v3867 = vadd.f32 0.0, %v3866
    %3868 = vdwg.mxu0
    %v3869 = vmul.f32 %v3055, %v3165
    %v3870 = vmul.f32 %v3057, %v3167
    %v3871 = vmul.f32 %v3059, %v3169
    %v3872 = vmul.f32 %v3061, %v3171
    %v3873 = vmul.f32 %v3065, %v3175
    %v3874 = vmul.f32 %v3067, %v3177
    %v3875 = vmul.f32 %v3069, %v3179
    %v3876 = vmul.f32 %v3071, %v3181
    %v3877 = vpack.c.bf16 %v3871, %v3869
    %v3878 = vpack.c.bf16 %v3872, %v3870
    %v3879 = vpack.c.bf16 %v3875, %v3873
    %v3880 = vpack.c.bf16 %v3876, %v3874
    %3881 = vmatprep.subr.bf16.mxu0 %v3878
    %3882 = vmatpush1.bf16.msra.mxu0 %v3877
    %3883 = vmatprep.subr.bf16.mxu0 %v3880
    %3884 = vmatpush1.bf16.msra.mxu0 %v3879
    %3885 = vmatprep.subr.bf16.mxu0 0
    %3886 = vmatpush1.bf16.msra.mxu0 0
    %3887 = vmatprep.subr.bf16.mxu0 0
    %3888 = vmatpush1.bf16.msra.mxu0 0
    %3889 = vmatprep.subr.bf16.mxu0 0
    %3890 = vmatpush1.bf16.msra.mxu0 0
    %3891 = vmatprep.subr.bf16.mxu0 0
    %3892 = vmatpush1.bf16.msra.mxu0 0
    %3893 = vmatprep.subr.bf16.mxu0 0
    %3894 = vmatpush1.bf16.msra.mxu0 0
    %3895 = vmatprep.subr.bf16.mxu0 0
    %3896 = vmatpush1.bf16.msra.mxu0 0
    %3897 = vmatprep.subr.bf16.mxu0 0
    %3898 = vmatpush1.bf16.msra.mxu0 0
    %3899 = vmatprep.subr.bf16.mxu0 0
    %3900 = vmatpush1.bf16.msra.mxu0 0
    %3901 = vmatprep.subr.bf16.mxu0 0
    %3902 = vmatpush1.bf16.msra.mxu0 0
    %3903 = vmatprep.subr.bf16.mxu0 0
    %3904 = vmatpush1.bf16.msra.mxu0 0
    %3905 = vmatprep.subr.bf16.mxu0 0
    %3906 = vmatpush1.bf16.msra.mxu0 0
    %3907 = vmatprep.subr.bf16.mxu0 0
    %3908 = vmatpush1.bf16.msra.mxu0 0
    %3909 = vmatprep.subr.bf16.mxu0 0
    %3910 = vmatpush1.bf16.msra.mxu0 0
    %3911 = vmatprep.subr.bf16.mxu0 0
    %3912 = vmatpush1.bf16.msra.mxu0 0
    %3913 = vmatprep.mubr.bf16.mxu0 0
    %3914 = vmatmul.mubr.bf16.gmra.mrb[0].mxu0 %v3236
    %v3915 = vpop.f32.mrb[0].mxu0
    %v3916 = vadd.f32 0.0, %v3915
    %v3917 = vpop.f32.mrb[0].mxu0
    %v3918 = vadd.f32 0.0, %v3917
    %v3919 = vpop.f32.mrb[0].mxu0
    %v3920 = vadd.f32 0.0, %v3919
    %v3921 = vpop.f32.mrb[0].mxu0
    %v3922 = vadd.f32 0.0, %v3921
    %3923 = vmatprep.mubr.bf16.mxu0 0
    %3924 = vmatmul.mubr.bf16.gmra.mrb[0].mxu0 %v3239
    %v3925 = vpop.f32.mrb[0].mxu0
    %v3926 = vadd.f32 0.0, %v3925
    %v3927 = vpop.f32.mrb[0].mxu0
    %v3928 = vadd.f32 0.0, %v3927
    %v3929 = vpop.f32.mrb[0].mxu0
    %v3930 = vadd.f32 0.0, %v3929
    %v3931 = vpop.f32.mrb[0].mxu0
    %v3932 = vadd.f32 0.0, %v3931
    %3933 = vdwg.mxu0
    %v3934 = vpack.c.bf16 %v3920, %v3916
    %v3935 = vpack.c.bf16 %v3922, %v3918
    %v3936 = vpack.c.bf16 %v3930, %v3926
    %v3937 = vpack.c.bf16 %v3932, %v3928
    %3938 = vmatprep.subr.bf16.mxu0 %v3395
    %3939 = vmatpush1.bf16.msra.mxu0 %v3394
    %3940 = vmatprep.subr.bf16.mxu0 %v3397
    %3941 = vmatpush1.bf16.msra.mxu0 %v3396
    %3942 = vmatprep.subr.bf16.mxu0 %v3399
    %3943 = vmatpush1.bf16.msra.mxu0 %v3398
    %3944 = vmatprep.subr.bf16.mxu0 %v3401
    %3945 = vmatpush1.bf16.msra.mxu0 %v3400
    %3946 = vmatprep.subr.bf16.mxu0 %v3403
    %3947 = vmatpush1.bf16.msra.mxu0 %v3402
    %3948 = vmatprep.subr.bf16.mxu0 %v3405
    %3949 = vmatpush1.bf16.msra.mxu0 %v3404
    %3950 = vmatprep.subr.bf16.mxu0 %v3407
    %3951 = vmatpush1.bf16.msra.mxu0 %v3406
    %3952 = vmatprep.subr.bf16.mxu0 %v3409
    %3953 = vmatpush1.bf16.msra.mxu0 %v3408
    %3954 = vmatprep.subr.bf16.mxu0 %v3411
    %3955 = vmatpush1.bf16.msra.mxu0 %v3410
    %3956 = vmatprep.subr.bf16.mxu0 %v3413
    %3957 = vmatpush1.bf16.msra.mxu0 %v3412
    %3958 = vmatprep.subr.bf16.mxu0 %v3415
    %3959 = vmatpush1.bf16.msra.mxu0 %v3414
    %3960 = vmatprep.subr.bf16.mxu0 %v3417
    %3961 = vmatpush1.bf16.msra.mxu0 %v3416
    %3962 = vmatprep.subr.bf16.mxu0 %v3419
    %3963 = vmatpush1.bf16.msra.mxu0 %v3418
    %3964 = vmatprep.subr.bf16.mxu0 %v3421
    %3965 = vmatpush1.bf16.msra.mxu0 %v3420
    %3966 = vmatprep.subr.bf16.mxu0 %v3423
    %3967 = vmatpush1.bf16.msra.mxu0 %v3422
    %3968 = vmatprep.subr.bf16.mxu0 %v3425
    %3969 = vmatpush1.bf16.msra.mxu0 %v3424
    %3970 = vmatprep.mubr.bf16.mxu0 %v3935
    %3971 = vmatmul.mubr.bf16.gmra.mrb[0].mxu0 %v3934
    %v3972 = vpop.f32.mrb[0].mxu0
    %v3973 = vadd.f32 0.0, %v3972
    %v3974 = vpop.f32.mrb[0].mxu0
    %v3975 = vadd.f32 0.0, %v3974
    %v3976 = vpop.f32.mrb[0].mxu0
    %v3977 = vadd.f32 0.0, %v3976
    %v3978 = vpop.f32.mrb[0].mxu0
    %v3979 = vadd.f32 0.0, %v3978
    %3980 = vmatprep.mubr.bf16.mxu0 %v3937
    %3981 = vmatmul.mubr.bf16.gmra.mrb[0].mxu0 %v3936
    %v3982 = vpop.f32.mrb[0].mxu0
    %v3983 = vadd.f32 0.0, %v3982
    %v3984 = vpop.f32.mrb[0].mxu0
    %v3985 = vadd.f32 0.0, %v3984
    %v3986 = vpop.f32.mrb[0].mxu0
    %v3987 = vadd.f32 0.0, %v3986
    %v3988 = vpop.f32.mrb[0].mxu0
    %v3989 = vadd.f32 0.0, %v3988
    %3990 = vdwg.mxu0
    %v3991 = vmul.f32 %v3493, %v3493
    %v3992 = vmul.f32 %v3495, %v3495
    %v3993 = vmul.f32 %v3497, %v3497
    %v3994 = vmul.f32 %v3499, %v3499
    %v3995 = vmul.f32 %v3503, %v3503
    %v3996 = vmul.f32 %v3505, %v3505
    %v3997 = vmul.f32 %v3507, %v3507
    %v3998 = vmul.f32 %v3509, %v3509
    %v3999 = vmul.f32 %v3607, %v3607
    %v4000 = vmul.f32 %v3609, %v3609
    %v4001 = vmul.f32 %v3611, %v3611
    %v4002 = vmul.f32 %v3613, %v3613
    %v4003 = vmul.f32 %v3617, %v3617
    %v4004 = vmul.f32 %v3619, %v3619
    %v4005 = vmul.f32 %v3621, %v3621
    %v4006 = vmul.f32 %v3623, %v3623
    %v4007 = vmul.f32 %v3493, %v3607
    %v4008 = vmul.f32 %v3495, %v3609
    %v4009 = vmul.f32 %v3497, %v3611
    %v4010 = vmul.f32 %v3499, %v3613
    %v4011 = vmul.f32 %v3503, %v3617
    %v4012 = vmul.f32 %v3505, %v3619
    %v4013 = vmul.f32 %v3507, %v3621
    %v4014 = vmul.f32 %v3509, %v3623
    %v4015 = vsub.f32 %v3729, %v3991
    %v4016 = vsub.f32 %v3731, %v3992
    %v4017 = vsub.f32 %v3733, %v3993
    %v4018 = vsub.f32 %v3735, %v3994
    %v4019 = vsub.f32 %v3739, %v3995
    %v4020 = vsub.f32 %v3741, %v3996
    %v4021 = vsub.f32 %v3743, %v3997
    %v4022 = vsub.f32 %v3745, %v3998
    %v4023 = vsub.f32 %v3851, %v3999
    %v4024 = vsub.f32 %v3853, %v4000
    %v4025 = vsub.f32 %v3855, %v4001
    %v4026 = vsub.f32 %v3857, %v4002
    %v4027 = vsub.f32 %v3861, %v4003
    %v4028 = vsub.f32 %v3863, %v4004
    %v4029 = vsub.f32 %v3865, %v4005
    %v4030 = vsub.f32 %v3867, %v4006
    %v4031 = vsub.f32 %v3973, %v4007
    %v4032 = vsub.f32 %v3975, %v4008
    %v4033 = vsub.f32 %v3977, %v4009
    %v4034 = vsub.f32 %v3979, %v4010
    %v4035 = vsub.f32 %v3983, %v4011
    %v4036 = vsub.f32 %v3985, %v4012
    %v4037 = vsub.f32 %v3987, %v4013
    %v4038 = vsub.f32 %v3989, %v4014
    %v4039 = vmul.f32 %v4031, 2.0
    %v4040 = vmul.f32 %v4032, 2.0
    %v4041 = vmul.f32 %v4033, 2.0
    %v4042 = vmul.f32 %v4034, 2.0
    %v4043 = vmul.f32 %v4035, 2.0
    %v4044 = vmul.f32 %v4036, 2.0
    %v4045 = vmul.f32 %v4037, 2.0
    %v4046 = vmul.f32 %v4038, 2.0
    %v4047 = vadd.f32 %v4039, 0.0009
    %v4048 = vadd.f32 %v4040, 0.0009
    %v4049 = vadd.f32 %v4041, 0.0009
    %v4050 = vadd.f32 %v4042, 0.0009
    %v4051 = vadd.f32 %v4043, 0.0009
    %v4052 = vadd.f32 %v4044, 0.0009
    %v4053 = vadd.f32 %v4045, 0.0009
    %v4054 = vadd.f32 %v4046, 0.0009
    %v4055 = vadd.f32 %v4015, %v4023
    %v4056 = vadd.f32 %v4016, %v4024
    %v4057 = vadd.f32 %v4017, %v4025
    %v4058 = vadd.f32 %v4018, %v4026
    %v4059 = vadd.f32 %v4019, %v4027
    %v4060 = vadd.f32 %v4020, %v4028
    %v4061 = vadd.f32 %v4021, %v4029
    %v4062 = vadd.f32 %v4022, %v4030
    %v4063 = vadd.f32 %v4055, 0.0009
    %v4064 = vadd.f32 %v4056, 0.0009
    %v4065 = vadd.f32 %v4057, 0.0009
    %v4066 = vadd.f32 %v4058, 0.0009
    %v4067 = vadd.f32 %v4059, 0.0009
    %v4068 = vadd.f32 %v4060, 0.0009
    %v4069 = vadd.f32 %v4061, 0.0009
    %v4070 = vadd.f32 %v4062, 0.0009
    %v4071 = vrcp.pop %v4063
    %v4072 = vrcp.pop %v4064
    %v4073 = vrcp.pop %v4065
    %v4074 = vrcp.pop %v4066
    %v4075 = vrcp.pop %v4067
    %v4076 = vrcp.pop %v4068
    %v4077 = vrcp.pop %v4069
    %v4078 = vrcp.pop %v4070
    %v4079 = vmul.f32 %v4063, %v4071
    %v4080 = vmul.f32 %v4064, %v4072
    %v4081 = vmul.f32 %v4065, %v4073
    %v4082 = vmul.f32 %v4066, %v4074
    %v4083 = vmul.f32 %v4067, %v4075
    %v4084 = vmul.f32 %v4068, %v4076
    %v4085 = vmul.f32 %v4069, %v4077
    %v4086 = vmul.f32 %v4070, %v4078
    %v4087 = vsub.f32 2.0, %v4079
    %v4088 = vsub.f32 2.0, %v4080
    %v4089 = vsub.f32 2.0, %v4081
    %v4090 = vsub.f32 2.0, %v4082
    %v4091 = vsub.f32 2.0, %v4083
    %v4092 = vsub.f32 2.0, %v4084
    %v4093 = vsub.f32 2.0, %v4085
    %v4094 = vsub.f32 2.0, %v4086
    %v4095 = vmul.f32 %v4071, %v4087
    %v4096 = vmul.f32 %v4072, %v4088
    %v4097 = vmul.f32 %v4073, %v4089
    %v4098 = vmul.f32 %v4074, %v4090
    %v4099 = vmul.f32 %v4075, %v4091
    %v4100 = vmul.f32 %v4076, %v4092
    %v4101 = vmul.f32 %v4077, %v4093
    %v4102 = vmul.f32 %v4078, %v4094
    %v4103 = vmul.f32 %v4047, %v4095
    %v4104 = vmul.f32 %v4048, %v4096
    %v4105 = vmul.f32 %v4049, %v4097
    %v4106 = vmul.f32 %v4050, %v4098
    %v4107 = vmul.f32 %v4051, %v4099
    %v4108 = vmul.f32 %v4052, %v4100
    %v4109 = vmul.f32 %v4053, %v4101
    %v4110 = vmul.f32 %v4054, %v4102
    %v4111 = vadd.f32 %v3991, %v3999
    %v4112 = vadd.f32 %v3992, %v4000
    %v4113 = vadd.f32 %v3993, %v4001
    %v4114 = vadd.f32 %v3994, %v4002
    %v4115 = vadd.f32 %v3995, %v4003
    %v4116 = vadd.f32 %v3996, %v4004
    %v4117 = vadd.f32 %v3997, %v4005
    %v4118 = vadd.f32 %v3998, %v4006
    %v4119 = vadd.f32 %v4111, 0.0001
    %v4120 = vadd.f32 %v4112, 0.0001
    %v4121 = vadd.f32 %v4113, 0.0001
    %v4122 = vadd.f32 %v4114, 0.0001
    %v4123 = vadd.f32 %v4115, 0.0001
    %v4124 = vadd.f32 %v4116, 0.0001
    %v4125 = vadd.f32 %v4117, 0.0001
    %v4126 = vadd.f32 %v4118, 0.0001
    %v4127 = vrcp.pop %v4119
    %v4128 = vrcp.pop %v4120
    %v4129 = vrcp.pop %v4121
    %v4130 = vrcp.pop %v4122
    %v4131 = vrcp.pop %v4123
    %v4132 = vrcp.pop %v4124
    %v4133 = vrcp.pop %v4125
    %v4134 = vrcp.pop %v4126
    %v4135 = vmul.f32 %v4119, %v4127
    %v4136 = vmul.f32 %v4120, %v4128
    %v4137 = vmul.f32 %v4121, %v4129
    %v4138 = vmul.f32 %v4122, %v4130
    %v4139 = vmul.f32 %v4123, %v4131
    %v4140 = vmul.f32 %v4124, %v4132
    %v4141 = vmul.f32 %v4125, %v4133
    %v4142 = vmul.f32 %v4126, %v4134
    %v4143 = vsub.f32 2.0, %v4135
    %v4144 = vsub.f32 2.0, %v4136
    %v4145 = vsub.f32 2.0, %v4137
    %v4146 = vsub.f32 2.0, %v4138
    %v4147 = vsub.f32 2.0, %v4139
    %v4148 = vsub.f32 2.0, %v4140
    %v4149 = vsub.f32 2.0, %v4141
    %v4150 = vsub.f32 2.0, %v4142
    %v4151 = vmul.f32 %v4127, %v4143
    %v4152 = vmul.f32 %v4128, %v4144
    %v4153 = vmul.f32 %v4129, %v4145
    %v4154 = vmul.f32 %v4130, %v4146
    %v4155 = vmul.f32 %v4131, %v4147
    %v4156 = vmul.f32 %v4132, %v4148
    %v4157 = vmul.f32 %v4133, %v4149
    %v4158 = vmul.f32 %v4134, %v4150
    %v4159 = vmul.f32 %v4007, 2.0
    %v4160 = vmul.f32 %v4008, 2.0
    %v4161 = vmul.f32 %v4009, 2.0
    %v4162 = vmul.f32 %v4010, 2.0
    %v4163 = vmul.f32 %v4011, 2.0
    %v4164 = vmul.f32 %v4012, 2.0
    %v4165 = vmul.f32 %v4013, 2.0
    %v4166 = vmul.f32 %v4014, 2.0
    %v4167 = vadd.f32 %v4159, 0.0001
    %v4168 = vadd.f32 %v4160, 0.0001
    %v4169 = vadd.f32 %v4161, 0.0001
    %v4170 = vadd.f32 %v4162, 0.0001
    %v4171 = vadd.f32 %v4163, 0.0001
    %v4172 = vadd.f32 %v4164, 0.0001
    %v4173 = vadd.f32 %v4165, 0.0001
    %v4174 = vadd.f32 %v4166, 0.0001
    %v4175 = vmul.f32 %v4103, %v4167
    %v4176 = vmul.f32 %v4104, %v4168
    %v4177 = vmul.f32 %v4105, %v4169
    %v4178 = vmul.f32 %v4106, %v4170
    %v4179 = vmul.f32 %v4107, %v4171
    %v4180 = vmul.f32 %v4108, %v4172
    %v4181 = vmul.f32 %v4109, %v4173
    %v4182 = vmul.f32 %v4110, %v4174
    %v4183 = vmul.f32 %v4175, %v4151
    %v4184 = vmul.f32 %v4176, %v4152
    %v4185 = vmul.f32 %v4177, %v4153
    %v4186 = vmul.f32 %v4178, %v4154
    %v4187 = vmul.f32 %v4179, %v4155
    %v4188 = vmul.f32 %v4180, %v4156
    %v4189 = vmul.f32 %v4181, %v4157
    %v4190 = vmul.f32 %v4182, %v4158
    %vm4191 = vcmp.lt.s32.totalorder %v127, 8
    %vm4192 = vcmp.lt.s32.totalorder %v128, 8
    %vm4193 = vcmp.lt.s32.totalorder %v129, 8
    %vm4194 = vcmp.lt.s32.totalorder %v130, 8
    %s4195 = smul.u32 %s137, 8
    %v4196 = vstv %s4195
    %vm4197 = vcmp.lt.s32.totalorder %v132, %v4196
    %vm4198 = vcmp.lt.s32.totalorder %v133, %v4196
    %vm4199 = vmand %vm4191, %vm4197
    %vm4200 = vmand %vm4191, %vm4198
    %vm4201 = vmand %vm4192, %vm4197
    %vm4202 = vmand %vm4192, %vm4198
    %vm4203 = vmand %vm4193, %vm4197
    %vm4204 = vmand %vm4193, %vm4198
    %vm4205 = vmand %vm4194, %vm4197
    %vm4206 = vmand %vm4194, %vm4198
    %v4207 = vsel %vm4199, 1, 0
    %v4208 = vsel %vm4200, 1, 0
    %v4209 = vsel %vm4201, 1, 0
    %v4210 = vsel %vm4202, 1, 0
    %v4211 = vsel %vm4203, 1, 0
    %v4212 = vsel %vm4204, 1, 0
    %v4213 = vsel %vm4205, 1, 0
    %v4214 = vsel %vm4206, 1, 0
    %v4215 = vcvt.s32.f32 %v4207
    %v4216 = vcvt.s32.f32 %v4208
    %v4217 = vcvt.s32.f32 %v4209
    %v4218 = vcvt.s32.f32 %v4210
    %v4219 = vcvt.s32.f32 %v4211
    %v4220 = vcvt.s32.f32 %v4212
    %v4221 = vcvt.s32.f32 %v4213
    %v4222 = vcvt.s32.f32 %v4214
    %v4223 = vmul.f32 %v4183, %v4215
    %v4224 = vmul.f32 %v4184, %v4216
    %v4225 = vmul.f32 %v4185, %v4217
    %v4226 = vmul.f32 %v4186, %v4218
    %v4227 = vmul.f32 %v4187, %v4219
    %v4228 = vmul.f32 %v4188, %v4220
    %v4229 = vmul.f32 %v4189, %v4221
    %v4230 = vmul.f32 %v4190, %v4222
    %v4231 = vadd.f32 %v4223, %v4224
    %v4232 = vadd.f32 %v4231, %v4225
    %v4233 = vadd.f32 %v4232, %v4226
    %v4234 = vadd.f32 %v4233, %v4227
    %v4235 = vadd.f32 %v4234, %v4228
    %v4236 = vadd.f32 %v4235, %v4229
    %v4237 = vadd.f32 %v4236, %v4230
    %4238 = vadd.xlane.f32.xlu0 %v4237
    %v4239 = vpop.xlane.xlu0 %4238
    %v4240 = vrot.slane %v4239, 4
    %v4241 = vadd.f32 %v4239, %v4240
    %v4242 = vrot.slane %v4241, 2
    %v4243 = vadd.f32 %v4241, %v4242
    %v4244 = vrot.slane %v4243, 1
    %v4245 = vadd.f32 %v4243, %v4244
    %s4246 = vtos %v4245
    %v4247 = vstv %s4246
    %v4248 = vmul.f32 %v4103, %v4215
    %v4249 = vmul.f32 %v4104, %v4216
    %v4250 = vmul.f32 %v4105, %v4217
    %v4251 = vmul.f32 %v4106, %v4218
    %v4252 = vmul.f32 %v4107, %v4219
    %v4253 = vmul.f32 %v4108, %v4220
    %v4254 = vmul.f32 %v4109, %v4221
    %v4255 = vmul.f32 %v4110, %v4222
    %v4256 = vadd.f32 %v4248, %v4249
    %v4257 = vadd.f32 %v4256, %v4250
    %v4258 = vadd.f32 %v4257, %v4251
    %v4259 = vadd.f32 %v4258, %v4252
    %v4260 = vadd.f32 %v4259, %v4253
    %v4261 = vadd.f32 %v4260, %v4254
    %v4262 = vadd.f32 %v4261, %v4255
    %4263 = vadd.xlane.f32.xlu0 %v4262
    %v4264 = vpop.xlane.xlu0 %4263
    %v4265 = vrot.slane %v4264, 4
    %v4266 = vadd.f32 %v4264, %v4265
    %v4267 = vrot.slane %v4266, 2
    %v4268 = vadd.f32 %v4266, %v4267
    %v4269 = vrot.slane %v4268, 1
    %v4270 = vadd.f32 %v4268, %v4269
    %s4271 = vtos %v4270
    %v4272 = vstv %s4271
    %s4273 = scalar_lea.vmem [#allocation10], 32
    %v4274 = vld [vmem:[%s4273] sm:$0xf]
    %v4275 = vld [vmem:[%s4273 + $0x4] sm:$0xf]
    %v4276 = vld [vmem:[%s4273 + $0x8] sm:$0xf]
    %v4277 = vld [vmem:[%s4273 + $0xc] sm:$0xf]
    %s4278 = scalar_lea.vmem [#allocation11], 512
    %v4279 = vld [vmem:[%s4278] sm:$0xff]
    %v4280 = vld [vmem:[%s4278 + $0x8] sm:$0xff]
    %v4281 = vld [vmem:[%s4278 + $0x10] sm:$0xff]
    %v4282 = vld [vmem:[%s4278 + $0x18] sm:$0xff]
    %v4283 = vld [vmem:[%s4278 + $0x20] sm:$0xff]
    %v4284 = vld [vmem:[%s4278 + $0x28] sm:$0xff]
    %v4285 = vld [vmem:[%s4278 + $0x30] sm:$0xff]
    %v4286 = vld [vmem:[%s4278 + $0x38] sm:$0xff]
    %v4287 = vld [vmem:[%s4278 + $0x40] sm:$0xff]
    %v4288 = vld [vmem:[%s4278 + $0x48] sm:$0xff]
    %v4289 = vld [vmem:[%s4278 + $0x50] sm:$0xff]
    %v4290 = vld [vmem:[%s4278 + $0x58] sm:$0xff]
    %v4291 = vld [vmem:[%s4278 + $0x60] sm:$0xff]
    %v4292 = vld [vmem:[%s4278 + $0x68] sm:$0xff]
    %v4293 = vld [vmem:[%s4278 + $0x70] sm:$0xff]
    %v4294 = vld [vmem:[%s4278 + $0x78] sm:$0xff]
    %v4295 = vld [vmem:[%s4278 + $0x80] sm:$0xff]
    %v4296 = vld [vmem:[%s4278 + $0x88] sm:$0xff]
    %v4297 = vld [vmem:[%s4278 + $0x90] sm:$0xff]
    %v4298 = vld [vmem:[%s4278 + $0x98] sm:$0xff]
    %v4299 = vld [vmem:[%s4278 + $0xa0] sm:$0xff]
    %v4300 = vld [vmem:[%s4278 + $0xa8] sm:$0xff]
    %v4301 = vld [vmem:[%s4278 + $0xb0] sm:$0xff]
    %v4302 = vld [vmem:[%s4278 + $0xb8] sm:$0xff]
    %v4303 = vld [vmem:[%s4278 + $0xc0] sm:$0xff]
    %v4304 = vld [vmem:[%s4278 + $0xc8] sm:$0xff]
    %v4305 = vld [vmem:[%s4278 + $0xd0] sm:$0xff]
    %v4306 = vld [vmem:[%s4278 + $0xd8] sm:$0xff]
    %v4307 = vld [vmem:[%s4278 + $0xe0] sm:$0xff]
    %v4308 = vld [vmem:[%s4278 + $0xe8] sm:$0xff]
    %v4309 = vld [vmem:[%s4278 + $0xf0] sm:$0xff]
    %v4310 = vld [vmem:[%s4278 + $0xf8] sm:$0xff]
    %v4315 = vunpack.c.l.b16 %v4274
    %v4316 = vunpack.c.l.b16 %v4275
    %v4317 = vunpack.c.l.b16 %v4276
    %v4318 = vunpack.c.l.b16 %v4277
    %v4319 = vpack.c.b16 %v4316, %v4315
    %v4320 = vpack.c.b16 %v4318, %v4317
    %v4322 = vsel %vm188, %v4319, 0
    %v4325 = vsel %vm188, %v4320, 0
    %4327 = vmatprep.subr.bf16.mxu0 %v3222
    %4328 = vmatpush1.bf16.msra.mxu0 %v3221
    %4329 = vmatprep.subr.bf16.mxu0 %v3224
    %4330 = vmatpush1.bf16.msra.mxu0 %v3223
    %4331 = vmatprep.subr.bf16.mxu0 0
    %4332 = vmatpush1.bf16.msra.mxu0 0
    %4333 = vmatprep.subr.bf16.mxu0 0
    %4334 = vmatpush1.bf16.msra.mxu0 0
    %4335 = vmatprep.subr.bf16.mxu0 0
    %4336 = vmatpush1.bf16.msra.mxu0 0
    %4337 = vmatprep.subr.bf16.mxu0 0
    %4338 = vmatpush1.bf16.msra.mxu0 0
    %4339 = vmatprep.subr.bf16.mxu0 0
    %4340 = vmatpush1.bf16.msra.mxu0 0
    %4341 = vmatprep.subr.bf16.mxu0 0
    %4342 = vmatpush1.bf16.msra.mxu0 0
    %4343 = vmatprep.subr.bf16.mxu0 0
    %4344 = vmatpush1.bf16.msra.mxu0 0
    %4345 = vmatprep.subr.bf16.mxu0 0
    %4346 = vmatpush1.bf16.msra.mxu0 0
    %4347 = vmatprep.subr.bf16.mxu0 0
    %4348 = vmatpush1.bf16.msra.mxu0 0
    %4349 = vmatprep.subr.bf16.mxu0 0
    %4350 = vmatpush1.bf16.msra.mxu0 0
    %4351 = vmatprep.subr.bf16.mxu0 0
    %4352 = vmatpush1.bf16.msra.mxu0 0
    %4353 = vmatprep.subr.bf16.mxu0 0
    %4354 = vmatpush1.bf16.msra.mxu0 0
    %4355 = vmatprep.subr.bf16.mxu0 0
    %4356 = vmatpush1.bf16.msra.mxu0 0
    %4357 = vmatprep.subr.bf16.mxu0 0
    %4358 = vmatpush1.bf16.msra.mxu0 0
    %4359 = vmatprep.mubr.bf16.mxu0 0
    %4360 = vmatmul.mubr.bf16.gmra.mrb[0].mxu0 %v4322
    %v4361 = vpop.f32.mrb[0].mxu0
    %v4362 = vadd.f32 0.0, %v4361
    %v4363 = vpop.f32.mrb[0].mxu0
    %v4364 = vadd.f32 0.0, %v4363
    %v4365 = vpop.f32.mrb[0].mxu0
    %v4366 = vadd.f32 0.0, %v4365
    %v4367 = vpop.f32.mrb[0].mxu0
    %v4368 = vadd.f32 0.0, %v4367
    %4369 = vmatprep.mubr.bf16.mxu0 0
    %4370 = vmatmul.mubr.bf16.gmra.mrb[0].mxu0 %v4325
    %v4371 = vpop.f32.mrb[0].mxu0
    %v4372 = vadd.f32 0.0, %v4371
    %v4373 = vpop.f32.mrb[0].mxu0
    %v4374 = vadd.f32 0.0, %v4373
    %v4375 = vpop.f32.mrb[0].mxu0
    %v4376 = vadd.f32 0.0, %v4375
    %v4377 = vpop.f32.mrb[0].mxu0
    %v4378 = vadd.f32 0.0, %v4377
    %4379 = vdwg.mxu0
    %v4380 = vpack.c.bf16 %v4366, %v4362
    %v4381 = vpack.c.bf16 %v4368, %v4364
    %v4382 = vpack.c.bf16 %v4376, %v4372
    %v4383 = vpack.c.bf16 %v4378, %v4374
    %v4416 = vunpack.c.l.b16 %v4279
    %v4417 = vunpack.c.h.b16 %v4279
    %v4418 = vunpack.c.l.b16 %v4280
    %v4419 = vunpack.c.h.b16 %v4280
    %v4420 = vunpack.c.l.b16 %v4281
    %v4421 = vunpack.c.h.b16 %v4281
    %v4422 = vunpack.c.l.b16 %v4282
    %v4423 = vunpack.c.h.b16 %v4282
    %v4424 = vunpack.c.l.b16 %v4283
    %v4425 = vunpack.c.h.b16 %v4283
    %v4426 = vunpack.c.l.b16 %v4284
    %v4427 = vunpack.c.h.b16 %v4284
    %v4428 = vunpack.c.l.b16 %v4285
    %v4429 = vunpack.c.h.b16 %v4285
    %v4430 = vunpack.c.l.b16 %v4286
    %v4431 = vunpack.c.h.b16 %v4286
    %v4432 = vunpack.c.l.b16 %v4287
    %v4433 = vunpack.c.h.b16 %v4287
    %v4434 = vunpack.c.l.b16 %v4288
    %v4435 = vunpack.c.h.b16 %v4288
    %v4436 = vunpack.c.l.b16 %v4289
    %v4437 = vunpack.c.h.b16 %v4289
    %v4438 = vunpack.c.l.b16 %v4290
    %v4439 = vunpack.c.h.b16 %v4290
    %v4440 = vunpack.c.l.b16 %v4291
    %v4441 = vunpack.c.h.b16 %v4291
    %v4442 = vunpack.c.l.b16 %v4292
    %v4443 = vunpack.c.h.b16 %v4292
    %v4444 = vunpack.c.l.b16 %v4293
    %v4445 = vunpack.c.h.b16 %v4293
    %v4446 = vunpack.c.l.b16 %v4294
    %v4447 = vunpack.c.h.b16 %v4294
    %v4448 = vunpack.c.l.b16 %v4295
    %v4449 = vunpack.c.h.b16 %v4295
    %v4450 = vunpack.c.l.b16 %v4296
    %v4451 = vunpack.c.h.b16 %v4296
    %v4452 = vunpack.c.l.b16 %v4297
    %v4453 = vunpack.c.h.b16 %v4297
    %v4454 = vunpack.c.l.b16 %v4298
    %v4455 = vunpack.c.h.b16 %v4298
    %v4456 = vunpack.c.l.b16 %v4299
    %v4457 = vunpack.c.h.b16 %v4299
    %v4458 = vunpack.c.l.b16 %v4300
    %v4459 = vunpack.c.h.b16 %v4300
    %v4460 = vunpack.c.l.b16 %v4301
    %v4461 = vunpack.c.h.b16 %v4301
    %v4462 = vunpack.c.l.b16 %v4302
    %v4463 = vunpack.c.h.b16 %v4302
    %v4464 = vunpack.c.l.b16 %v4303
    %v4465 = vunpack.c.h.b16 %v4303
    %v4466 = vunpack.c.l.b16 %v4304
    %v4467 = vunpack.c.h.b16 %v4304
    %v4468 = vunpack.c.l.b16 %v4305
    %v4469 = vunpack.c.h.b16 %v4305
    %v4470 = vunpack.c.l.b16 %v4306
    %v4471 = vunpack.c.h.b16 %v4306
    %v4472 = vunpack.c.l.b16 %v4307
    %v4473 = vunpack.c.h.b16 %v4307
    %v4474 = vunpack.c.l.b16 %v4308
    %v4475 = vunpack.c.h.b16 %v4308
    %v4476 = vunpack.c.l.b16 %v4309
    %v4477 = vunpack.c.h.b16 %v4309
    %v4478 = vunpack.c.l.b16 %v4310
    %v4479 = vunpack.c.h.b16 %v4310
    %v4480 = vpack.c.b16 %v4418, %v4416
    %v4481 = vpack.c.b16 %v4419, %v4417
    %v4482 = vpack.c.b16 %v4422, %v4420
    %v4483 = vpack.c.b16 %v4423, %v4421
    %v4484 = vpack.c.b16 %v4426, %v4424
    %v4485 = vpack.c.b16 %v4427, %v4425
    %v4486 = vpack.c.b16 %v4430, %v4428
    %v4487 = vpack.c.b16 %v4431, %v4429
    %v4488 = vpack.c.b16 %v4434, %v4432
    %v4489 = vpack.c.b16 %v4435, %v4433
    %v4490 = vpack.c.b16 %v4438, %v4436
    %v4491 = vpack.c.b16 %v4439, %v4437
    %v4492 = vpack.c.b16 %v4442, %v4440
    %v4493 = vpack.c.b16 %v4443, %v4441
    %v4494 = vpack.c.b16 %v4446, %v4444
    %v4495 = vpack.c.b16 %v4447, %v4445
    %v4496 = vpack.c.b16 %v4450, %v4448
    %v4497 = vpack.c.b16 %v4451, %v4449
    %v4498 = vpack.c.b16 %v4454, %v4452
    %v4499 = vpack.c.b16 %v4455, %v4453
    %v4500 = vpack.c.b16 %v4458, %v4456
    %v4501 = vpack.c.b16 %v4459, %v4457
    %v4502 = vpack.c.b16 %v4462, %v4460
    %v4503 = vpack.c.b16 %v4463, %v4461
    %v4504 = vpack.c.b16 %v4466, %v4464
    %v4505 = vpack.c.b16 %v4467, %v4465
    %v4506 = vpack.c.b16 %v4470, %v4468
    %v4507 = vpack.c.b16 %v4471, %v4469
    %v4508 = vpack.c.b16 %v4474, %v4472
    %v4509 = vpack.c.b16 %v4475, %v4473
    %v4510 = vpack.c.b16 %v4478, %v4476
    %v4511 = vpack.c.b16 %v4479, %v4477
    %4544 = vmatprep.subr.bf16.mxu0 %v4481
    %4545 = vmatpush1.bf16.msra.mxu0 %v4480
    %4546 = vmatprep.subr.bf16.mxu0 %v4483
    %4547 = vmatpush1.bf16.msra.mxu0 %v4482
    %4548 = vmatprep.subr.bf16.mxu0 %v4485
    %4549 = vmatpush1.bf16.msra.mxu0 %v4484
    %4550 = vmatprep.subr.bf16.mxu0 %v4487
    %4551 = vmatpush1.bf16.msra.mxu0 %v4486
    %4552 = vmatprep.subr.bf16.mxu0 %v4489
    %4553 = vmatpush1.bf16.msra.mxu0 %v4488
    %4554 = vmatprep.subr.bf16.mxu0 %v4491
    %4555 = vmatpush1.bf16.msra.mxu0 %v4490
    %4556 = vmatprep.subr.bf16.mxu0 %v4493
    %4557 = vmatpush1.bf16.msra.mxu0 %v4492
    %4558 = vmatprep.subr.bf16.mxu0 %v4495
    %4559 = vmatpush1.bf16.msra.mxu0 %v4494
    %4560 = vmatprep.subr.bf16.mxu0 %v4497
    %4561 = vmatpush1.bf16.msra.mxu0 %v4496
    %4562 = vmatprep.subr.bf16.mxu0 %v4499
    %4563 = vmatpush1.bf16.msra.mxu0 %v4498
    %4564 = vmatprep.subr.bf16.mxu0 %v4501
    %4565 = vmatpush1.bf16.msra.mxu0 %v4500
    %4566 = vmatprep.subr.bf16.mxu0 %v4503
    %4567 = vmatpush1.bf16.msra.mxu0 %v4502
    %4568 = vmatprep.subr.bf16.mxu0 %v4505
    %4569 = vmatpush1.bf16.msra.mxu0 %v4504
    %4570 = vmatprep.subr.bf16.mxu0 %v4507
    %4571 = vmatpush1.bf16.msra.mxu0 %v4506
    %4572 = vmatprep.subr.bf16.mxu0 %v4509
    %4573 = vmatpush1.bf16.msra.mxu0 %v4508
    %4574 = vmatprep.subr.bf16.mxu0 %v4511
    %4575 = vmatpush1.bf16.msra.mxu0 %v4510
    %4576 = vmatprep.mubr.bf16.mxu0 %v4381
    %4577 = vmatmul.mubr.bf16.gmra.mrb[0].mxu0 %v4380
    %v4578 = vpop.f32.mrb[0].mxu0
    %v4579 = vadd.f32 0.0, %v4578
    %v4580 = vpop.f32.mrb[0].mxu0
    %v4581 = vadd.f32 0.0, %v4580
    %v4582 = vpop.f32.mrb[0].mxu0
    %v4583 = vadd.f32 0.0, %v4582
    %v4584 = vpop.f32.mrb[0].mxu0
    %v4585 = vadd.f32 0.0, %v4584
    %4586 = vmatprep.mubr.bf16.mxu0 %v4383
    %4587 = vmatmul.mubr.bf16.gmra.mrb[0].mxu0 %v4382
    %v4588 = vpop.f32.mrb[0].mxu0
    %v4589 = vadd.f32 0.0, %v4588
    %v4590 = vpop.f32.mrb[0].mxu0
    %v4591 = vadd.f32 0.0, %v4590
    %v4592 = vpop.f32.mrb[0].mxu0
    %v4593 = vadd.f32 0.0, %v4592
    %v4594 = vpop.f32.mrb[0].mxu0
    %v4595 = vadd.f32 0.0, %v4594
    %4596 = vdwg.mxu0
    %4597 = vmatprep.subr.bf16.mxu0 %v3512
    %4598 = vmatpush1.bf16.msra.mxu0 %v3511
    %4599 = vmatprep.subr.bf16.mxu0 %v3514
    %4600 = vmatpush1.bf16.msra.mxu0 %v3513
    %4601 = vmatprep.subr.bf16.mxu0 0
    %4602 = vmatpush1.bf16.msra.mxu0 0
    %4603 = vmatprep.subr.bf16.mxu0 0
    %4604 = vmatpush1.bf16.msra.mxu0 0
    %4605 = vmatprep.subr.bf16.mxu0 0
    %4606 = vmatpush1.bf16.msra.mxu0 0
    %4607 = vmatprep.subr.bf16.mxu0 0
    %4608 = vmatpush1.bf16.msra.mxu0 0
    %4609 = vmatprep.subr.bf16.mxu0 0
    %4610 = vmatpush1.bf16.msra.mxu0 0
    %4611 = vmatprep.subr.bf16.mxu0 0
    %4612 = vmatpush1.bf16.msra.mxu0 0
    %4613 = vmatprep.subr.bf16.mxu0 0
    %4614 = vmatpush1.bf16.msra.mxu0 0
    %4615 = vmatprep.subr.bf16.mxu0 0
    %4616 = vmatpush1.bf16.msra.mxu0 0
    %4617 = vmatprep.subr.bf16.mxu0 0
    %4618 = vmatpush1.bf16.msra.mxu0 0
    %4619 = vmatprep.subr.bf16.mxu0 0
    %4620 = vmatpush1.bf16.msra.mxu0 0
    %4621 = vmatprep.subr.bf16.mxu0 0
    %4622 = vmatpush1.bf16.msra.mxu0 0
    %4623 = vmatprep.subr.bf16.mxu0 0
    %4624 = vmatpush1.bf16.msra.mxu0 0
    %4625 = vmatprep.subr.bf16.mxu0 0
    %4626 = vmatpush1.bf16.msra.mxu0 0
    %4627 = vmatprep.subr.bf16.mxu0 0
    %4628 = vmatpush1.bf16.msra.mxu0 0
    %4629 = vmatprep.mubr.bf16.mxu0 0
    %4630 = vmatmul.mubr.bf16.gmra.mrb[0].mxu0 %v4322
    %v4631 = vpop.f32.mrb[0].mxu0
    %v4632 = vadd.f32 0.0, %v4631
    %v4633 = vpop.f32.mrb[0].mxu0
    %v4634 = vadd.f32 0.0, %v4633
    %v4635 = vpop.f32.mrb[0].mxu0
    %v4636 = vadd.f32 0.0, %v4635
    %v4637 = vpop.f32.mrb[0].mxu0
    %v4638 = vadd.f32 0.0, %v4637
    %4639 = vmatprep.mubr.bf16.mxu0 0
    %4640 = vmatmul.mubr.bf16.gmra.mrb[0].mxu0 %v4325
    %v4641 = vpop.f32.mrb[0].mxu0
    %v4642 = vadd.f32 0.0, %v4641
    %v4643 = vpop.f32.mrb[0].mxu0
    %v4644 = vadd.f32 0.0, %v4643
    %v4645 = vpop.f32.mrb[0].mxu0
    %v4646 = vadd.f32 0.0, %v4645
    %v4647 = vpop.f32.mrb[0].mxu0
    %v4648 = vadd.f32 0.0, %v4647
    %4649 = vdwg.mxu0
    %v4650 = vpack.c.bf16 %v4636, %v4632
    %v4651 = vpack.c.bf16 %v4638, %v4634
    %v4652 = vpack.c.bf16 %v4646, %v4642
    %v4653 = vpack.c.bf16 %v4648, %v4644
    %4654 = vmatprep.subr.bf16.mxu0 %v4481
    %4655 = vmatpush1.bf16.msra.mxu0 %v4480
    %4656 = vmatprep.subr.bf16.mxu0 %v4483
    %4657 = vmatpush1.bf16.msra.mxu0 %v4482
    %4658 = vmatprep.subr.bf16.mxu0 %v4485
    %4659 = vmatpush1.bf16.msra.mxu0 %v4484
    %4660 = vmatprep.subr.bf16.mxu0 %v4487
    %4661 = vmatpush1.bf16.msra.mxu0 %v4486
    %4662 = vmatprep.subr.bf16.mxu0 %v4489
    %4663 = vmatpush1.bf16.msra.mxu0 %v4488
    %4664 = vmatprep.subr.bf16.mxu0 %v4491
    %4665 = vmatpush1.bf16.msra.mxu0 %v4490
    %4666 = vmatprep.subr.bf16.mxu0 %v4493
    %4667 = vmatpush1.bf16.msra.mxu0 %v4492
    %4668 = vmatprep.subr.bf16.mxu0 %v4495
    %4669 = vmatpush1.bf16.msra.mxu0 %v4494
    %4670 = vmatprep.subr.bf16.mxu0 %v4497
    %4671 = vmatpush1.bf16.msra.mxu0 %v4496
    %4672 = vmatprep.subr.bf16.mxu0 %v4499
    %4673 = vmatpush1.bf16.msra.mxu0 %v4498
    %4674 = vmatprep.subr.bf16.mxu0 %v4501
    %4675 = vmatpush1.bf16.msra.mxu0 %v4500
    %4676 = vmatprep.subr.bf16.mxu0 %v4503
    %4677 = vmatpush1.bf16.msra.mxu0 %v4502
    %4678 = vmatprep.subr.bf16.mxu0 %v4505
    %4679 = vmatpush1.bf16.msra.mxu0 %v4504
    %4680 = vmatprep.subr.bf16.mxu0 %v4507
    %4681 = vmatpush1.bf16.msra.mxu0 %v4506
    %4682 = vmatprep.subr.bf16.mxu0 %v4509
    %4683 = vmatpush1.bf16.msra.mxu0 %v4508
    %4684 = vmatprep.subr.bf16.mxu0 %v4511
    %4685 = vmatpush1.bf16.msra.mxu0 %v4510
    %4686 = vmatprep.mubr.bf16.mxu0 %v4651
    %4687 = vmatmul.mubr.bf16.gmra.mrb[0].mxu0 %v4650
    %v4688 = vpop.f32.mrb[0].mxu0
    %v4689 = vadd.f32 0.0, %v4688
    %v4690 = vpop.f32.mrb[0].mxu0
    %v4691 = vadd.f32 0.0, %v4690
    %v4692 = vpop.f32.mrb[0].mxu0
    %v4693 = vadd.f32 0.0, %v4692
    %v4694 = vpop.f32.mrb[0].mxu0
    %v4695 = vadd.f32 0.0, %v4694
    %4696 = vmatprep.mubr.bf16.mxu0 %v4653
    %4697 = vmatmul.mubr.bf16.gmra.mrb[0].mxu0 %v4652
    %v4698 = vpop.f32.mrb[0].mxu0
    %v4699 = vadd.f32 0.0, %v4698
    %v4700 = vpop.f32.mrb[0].mxu0
    %v4701 = vadd.f32 0.0, %v4700
    %v4702 = vpop.f32.mrb[0].mxu0
    %v4703 = vadd.f32 0.0, %v4702
    %v4704 = vpop.f32.mrb[0].mxu0
    %v4705 = vadd.f32 0.0, %v4704
    %4706 = vdwg.mxu0
    %s4707 = scalar_lea.vmem [#allocation7], 48
    %v4708 = vld [vmem:[%s4707] sm:$0xf]
    %v4709 = vld [vmem:[%s4707 + $0x4] sm:$0xf]
    %v4710 = vld [vmem:[%s4707 + $0x8] sm:$0xf]
    %v4711 = vld [vmem:[%s4707 + $0xc] sm:$0xf]
    %s4712 = scalar_lea.vmem [#allocation8], 768
    %v4713 = vld [vmem:[%s4712] sm:$0xff]
    %v4714 = vld [vmem:[%s4712 + $0x8] sm:$0xff]
    %v4715 = vld [vmem:[%s4712 + $0x10] sm:$0xff]
    %v4716 = vld [vmem:[%s4712 + $0x18] sm:$0xff]
    %v4717 = vld [vmem:[%s4712 + $0x20] sm:$0xff]
    %v4718 = vld [vmem:[%s4712 + $0x28] sm:$0xff]
    %v4719 = vld [vmem:[%s4712 + $0x30] sm:$0xff]
    %v4720 = vld [vmem:[%s4712 + $0x38] sm:$0xff]
    %v4721 = vld [vmem:[%s4712 + $0x40] sm:$0xff]
    %v4722 = vld [vmem:[%s4712 + $0x48] sm:$0xff]
    %v4723 = vld [vmem:[%s4712 + $0x50] sm:$0xff]
    %v4724 = vld [vmem:[%s4712 + $0x58] sm:$0xff]
    %v4725 = vld [vmem:[%s4712 + $0x60] sm:$0xff]
    %v4726 = vld [vmem:[%s4712 + $0x68] sm:$0xff]
    %v4727 = vld [vmem:[%s4712 + $0x70] sm:$0xff]
    %v4728 = vld [vmem:[%s4712 + $0x78] sm:$0xff]
    %v4729 = vld [vmem:[%s4712 + $0x80] sm:$0xff]
    %v4730 = vld [vmem:[%s4712 + $0x88] sm:$0xff]
    %v4731 = vld [vmem:[%s4712 + $0x90] sm:$0xff]
    %v4732 = vld [vmem:[%s4712 + $0x98] sm:$0xff]
    %v4733 = vld [vmem:[%s4712 + $0xa0] sm:$0xff]
    %v4734 = vld [vmem:[%s4712 + $0xa8] sm:$0xff]
    %v4735 = vld [vmem:[%s4712 + $0xb0] sm:$0xff]
    %v4736 = vld [vmem:[%s4712 + $0xb8] sm:$0xff]
    %v4737 = vld [vmem:[%s4712 + $0xc0] sm:$0xff]
    %v4738 = vld [vmem:[%s4712 + $0xc8] sm:$0xff]
    %v4739 = vld [vmem:[%s4712 + $0xd0] sm:$0xff]
    %v4740 = vld [vmem:[%s4712 + $0xd8] sm:$0xff]
    %v4741 = vld [vmem:[%s4712 + $0xe0] sm:$0xff]
    %v4742 = vld [vmem:[%s4712 + $0xe8] sm:$0xff]
    %v4743 = vld [vmem:[%s4712 + $0xf0] sm:$0xff]
    %v4744 = vld [vmem:[%s4712 + $0xf8] sm:$0xff]
    %v4745 = vpack.c.bf16 %v4583, %v4579
    %v4746 = vpack.c.bf16 %v4585, %v4581
    %v4747 = vpack.c.bf16 %v4593, %v4589
    %v4748 = vpack.c.bf16 %v4595, %v4591
    %v4753 = vunpack.c.l.b16 %v4708
    %v4754 = vunpack.c.l.b16 %v4709
    %v4755 = vunpack.c.l.b16 %v4710
    %v4756 = vunpack.c.l.b16 %v4711
    %v4757 = vpack.c.b16 %v4754, %v4753
    %v4758 = vpack.c.b16 %v4756, %v4755
    %v4760 = vsel %vm188, %v4757, 0
    %v4763 = vsel %vm188, %v4758, 0
    %4765 = vmatprep.subr.bf16.mxu0 %v4746
    %4766 = vmatpush1.bf16.msra.mxu0 %v4745
    %4767 = vmatprep.subr.bf16.mxu0 %v4748
    %4768 = vmatpush1.bf16.msra.mxu0 %v4747
    %4769 = vmatprep.subr.bf16.mxu0 0
    %4770 = vmatpush1.bf16.msra.mxu0 0
    %4771 = vmatprep.subr.bf16.mxu0 0
    %4772 = vmatpush1.bf16.msra.mxu0 0
    %4773 = vmatprep.subr.bf16.mxu0 0
    %4774 = vmatpush1.bf16.msra.mxu0 0
    %4775 = vmatprep.subr.bf16.mxu0 0
    %4776 = vmatpush1.bf16.msra.mxu0 0
    %4777 = vmatprep.subr.bf16.mxu0 0
    %4778 = vmatpush1.bf16.msra.mxu0 0
    %4779 = vmatprep.subr.bf16.mxu0 0
    %4780 = vmatpush1.bf16.msra.mxu0 0
    %4781 = vmatprep.subr.bf16.mxu0 0
    %4782 = vmatpush1.bf16.msra.mxu0 0
    %4783 = vmatprep.subr.bf16.mxu0 0
    %4784 = vmatpush1.bf16.msra.mxu0 0
    %4785 = vmatprep.subr.bf16.mxu0 0
    %4786 = vmatpush1.bf16.msra.mxu0 0
    %4787 = vmatprep.subr.bf16.mxu0 0
    %4788 = vmatpush1.bf16.msra.mxu0 0
    %4789 = vmatprep.subr.bf16.mxu0 0
    %4790 = vmatpush1.bf16.msra.mxu0 0
    %4791 = vmatprep.subr.bf16.mxu0 0
    %4792 = vmatpush1.bf16.msra.mxu0 0
    %4793 = vmatprep.subr.bf16.mxu0 0
    %4794 = vmatpush1.bf16.msra.mxu0 0
    %4795 = vmatprep.subr.bf16.mxu0 0
    %4796 = vmatpush1.bf16.msra.mxu0 0
    %4797 = vmatprep.mubr.bf16.mxu0 0
    %4798 = vmatmul.mubr.bf16.gmra.mrb[0].mxu0 %v4760
    %v4799 = vpop.f32.mrb[0].mxu0
    %v4800 = vadd.f32 0.0, %v4799
    %v4801 = vpop.f32.mrb[0].mxu0
    %v4802 = vadd.f32 0.0, %v4801
    %v4803 = vpop.f32.mrb[0].mxu0
    %v4804 = vadd.f32 0.0, %v4803
    %v4805 = vpop.f32.mrb[0].mxu0
    %v4806 = vadd.f32 0.0, %v4805
    %4807 = vmatprep.mubr.bf16.mxu0 0
    %4808 = vmatmul.mubr.bf16.gmra.mrb[0].mxu0 %v4763
    %v4809 = vpop.f32.mrb[0].mxu0
    %v4810 = vadd.f32 0.0, %v4809
    %v4811 = vpop.f32.mrb[0].mxu0
    %v4812 = vadd.f32 0.0, %v4811
    %v4813 = vpop.f32.mrb[0].mxu0
    %v4814 = vadd.f32 0.0, %v4813
    %v4815 = vpop.f32.mrb[0].mxu0
    %v4816 = vadd.f32 0.0, %v4815
    %4817 = vdwg.mxu0
    %v4818 = vpack.c.bf16 %v4804, %v4800
    %v4819 = vpack.c.bf16 %v4806, %v4802
    %v4820 = vpack.c.bf16 %v4814, %v4810
    %v4821 = vpack.c.bf16 %v4816, %v4812
    %v4854 = vunpack.c.l.b16 %v4713
    %v4855 = vunpack.c.h.b16 %v4713
    %v4856 = vunpack.c.l.b16 %v4714
    %v4857 = vunpack.c.h.b16 %v4714
    %v4858 = vunpack.c.l.b16 %v4715
    %v4859 = vunpack.c.h.b16 %v4715
    %v4860 = vunpack.c.l.b16 %v4716
    %v4861 = vunpack.c.h.b16 %v4716
    %v4862 = vunpack.c.l.b16 %v4717
    %v4863 = vunpack.c.h.b16 %v4717
    %v4864 = vunpack.c.l.b16 %v4718
    %v4865 = vunpack.c.h.b16 %v4718
    %v4866 = vunpack.c.l.b16 %v4719
    %v4867 = vunpack.c.h.b16 %v4719
    %v4868 = vunpack.c.l.b16 %v4720
    %v4869 = vunpack.c.h.b16 %v4720
    %v4870 = vunpack.c.l.b16 %v4721
    %v4871 = vunpack.c.h.b16 %v4721
    %v4872 = vunpack.c.l.b16 %v4722
    %v4873 = vunpack.c.h.b16 %v4722
    %v4874 = vunpack.c.l.b16 %v4723
    %v4875 = vunpack.c.h.b16 %v4723
    %v4876 = vunpack.c.l.b16 %v4724
    %v4877 = vunpack.c.h.b16 %v4724
    %v4878 = vunpack.c.l.b16 %v4725
    %v4879 = vunpack.c.h.b16 %v4725
    %v4880 = vunpack.c.l.b16 %v4726
    %v4881 = vunpack.c.h.b16 %v4726
    %v4882 = vunpack.c.l.b16 %v4727
    %v4883 = vunpack.c.h.b16 %v4727
    %v4884 = vunpack.c.l.b16 %v4728
    %v4885 = vunpack.c.h.b16 %v4728
    %v4886 = vunpack.c.l.b16 %v4729
    %v4887 = vunpack.c.h.b16 %v4729
    %v4888 = vunpack.c.l.b16 %v4730
    %v4889 = vunpack.c.h.b16 %v4730
    %v4890 = vunpack.c.l.b16 %v4731
    %v4891 = vunpack.c.h.b16 %v4731
    %v4892 = vunpack.c.l.b16 %v4732
    %v4893 = vunpack.c.h.b16 %v4732
    %v4894 = vunpack.c.l.b16 %v4733
    %v4895 = vunpack.c.h.b16 %v4733
    %v4896 = vunpack.c.l.b16 %v4734
    %v4897 = vunpack.c.h.b16 %v4734
    %v4898 = vunpack.c.l.b16 %v4735
    %v4899 = vunpack.c.h.b16 %v4735
    %v4900 = vunpack.c.l.b16 %v4736
    %v4901 = vunpack.c.h.b16 %v4736
    %v4902 = vunpack.c.l.b16 %v4737
    %v4903 = vunpack.c.h.b16 %v4737
    %v4904 = vunpack.c.l.b16 %v4738
    %v4905 = vunpack.c.h.b16 %v4738
    %v4906 = vunpack.c.l.b16 %v4739
    %v4907 = vunpack.c.h.b16 %v4739
    %v4908 = vunpack.c.l.b16 %v4740
    %v4909 = vunpack.c.h.b16 %v4740
    %v4910 = vunpack.c.l.b16 %v4741
    %v4911 = vunpack.c.h.b16 %v4741
    %v4912 = vunpack.c.l.b16 %v4742
    %v4913 = vunpack.c.h.b16 %v4742
    %v4914 = vunpack.c.l.b16 %v4743
    %v4915 = vunpack.c.h.b16 %v4743
    %v4916 = vunpack.c.l.b16 %v4744
    %v4917 = vunpack.c.h.b16 %v4744
    %v4918 = vpack.c.b16 %v4856, %v4854
    %v4919 = vpack.c.b16 %v4857, %v4855
    %v4920 = vpack.c.b16 %v4860, %v4858
    %v4921 = vpack.c.b16 %v4861, %v4859
    %v4922 = vpack.c.b16 %v4864, %v4862
    %v4923 = vpack.c.b16 %v4865, %v4863
    %v4924 = vpack.c.b16 %v4868, %v4866
    %v4925 = vpack.c.b16 %v4869, %v4867
    %v4926 = vpack.c.b16 %v4872, %v4870
    %v4927 = vpack.c.b16 %v4873, %v4871
    %v4928 = vpack.c.b16 %v4876, %v4874
    %v4929 = vpack.c.b16 %v4877, %v4875
    %v4930 = vpack.c.b16 %v4880, %v4878
    %v4931 = vpack.c.b16 %v4881, %v4879
    %v4932 = vpack.c.b16 %v4884, %v4882
    %v4933 = vpack.c.b16 %v4885, %v4883
    %v4934 = vpack.c.b16 %v4888, %v4886
    %v4935 = vpack.c.b16 %v4889, %v4887
    %v4936 = vpack.c.b16 %v4892, %v4890
    %v4937 = vpack.c.b16 %v4893, %v4891
    %v4938 = vpack.c.b16 %v4896, %v4894
    %v4939 = vpack.c.b16 %v4897, %v4895
    %v4940 = vpack.c.b16 %v4900, %v4898
    %v4941 = vpack.c.b16 %v4901, %v4899
    %v4942 = vpack.c.b16 %v4904, %v4902
    %v4943 = vpack.c.b16 %v4905, %v4903
    %v4944 = vpack.c.b16 %v4908, %v4906
    %v4945 = vpack.c.b16 %v4909, %v4907
    %v4946 = vpack.c.b16 %v4912, %v4910
    %v4947 = vpack.c.b16 %v4913, %v4911
    %v4948 = vpack.c.b16 %v4916, %v4914
    %v4949 = vpack.c.b16 %v4917, %v4915
    %4982 = vmatprep.subr.bf16.mxu0 %v4919
    %4983 = vmatpush1.bf16.msra.mxu0 %v4918
    %4984 = vmatprep.subr.bf16.mxu0 %v4921
    %4985 = vmatpush1.bf16.msra.mxu0 %v4920
    %4986 = vmatprep.subr.bf16.mxu0 %v4923
    %4987 = vmatpush1.bf16.msra.mxu0 %v4922
    %4988 = vmatprep.subr.bf16.mxu0 %v4925
    %4989 = vmatpush1.bf16.msra.mxu0 %v4924
    %4990 = vmatprep.subr.bf16.mxu0 %v4927
    %4991 = vmatpush1.bf16.msra.mxu0 %v4926
    %4992 = vmatprep.subr.bf16.mxu0 %v4929
    %4993 = vmatpush1.bf16.msra.mxu0 %v4928
    %4994 = vmatprep.subr.bf16.mxu0 %v4931
    %4995 = vmatpush1.bf16.msra.mxu0 %v4930
    %4996 = vmatprep.subr.bf16.mxu0 %v4933
    %4997 = vmatpush1.bf16.msra.mxu0 %v4932
    %4998 = vmatprep.subr.bf16.mxu0 %v4935
    %4999 = vmatpush1.bf16.msra.mxu0 %v4934
    %5000 = vmatprep.subr.bf16.mxu0 %v4937
    %5001 = vmatpush1.bf16.msra.mxu0 %v4936
    %5002 = vmatprep.subr.bf16.mxu0 %v4939
    %5003 = vmatpush1.bf16.msra.mxu0 %v4938
    %5004 = vmatprep.subr.bf16.mxu0 %v4941
    %5005 = vmatpush1.bf16.msra.mxu0 %v4940
    %5006 = vmatprep.subr.bf16.mxu0 %v4943
    %5007 = vmatpush1.bf16.msra.mxu0 %v4942
    %5008 = vmatprep.subr.bf16.mxu0 %v4945
    %5009 = vmatpush1.bf16.msra.mxu0 %v4944
    %5010 = vmatprep.subr.bf16.mxu0 %v4947
    %5011 = vmatpush1.bf16.msra.mxu0 %v4946
    %5012 = vmatprep.subr.bf16.mxu0 %v4949
    %5013 = vmatpush1.bf16.msra.mxu0 %v4948
    %5014 = vmatprep.mubr.bf16.mxu0 %v4819
    %5015 = vmatmul.mubr.bf16.gmra.mrb[0].mxu0 %v4818
    %v5016 = vpop.f32.mrb[0].mxu0
    %v5017 = vadd.f32 0.0, %v5016
    %v5018 = vpop.f32.mrb[0].mxu0
    %v5019 = vadd.f32 0.0, %v5018
    %v5020 = vpop.f32.mrb[0].mxu0
    %v5021 = vadd.f32 0.0, %v5020
    %v5022 = vpop.f32.mrb[0].mxu0
    %v5023 = vadd.f32 0.0, %v5022
    %5024 = vmatprep.mubr.bf16.mxu0 %v4821
    %5025 = vmatmul.mubr.bf16.gmra.mrb[0].mxu0 %v4820
    %v5026 = vpop.f32.mrb[0].mxu0
    %v5027 = vadd.f32 0.0, %v5026
    %v5028 = vpop.f32.mrb[0].mxu0
    %v5029 = vadd.f32 0.0, %v5028
    %v5030 = vpop.f32.mrb[0].mxu0
    %v5031 = vadd.f32 0.0, %v5030
    %v5032 = vpop.f32.mrb[0].mxu0
    %v5033 = vadd.f32 0.0, %v5032
    %5034 = vdwg.mxu0
    %v5035 = vpack.c.bf16 %v4693, %v4689
    %v5036 = vpack.c.bf16 %v4695, %v4691
    %v5037 = vpack.c.bf16 %v4703, %v4699
    %v5038 = vpack.c.bf16 %v4705, %v4701
    %5039 = vmatprep.subr.bf16.mxu0 %v5036
    %5040 = vmatpush1.bf16.msra.mxu0 %v5035
    %5041 = vmatprep.subr.bf16.mxu0 %v5038
    %5042 = vmatpush1.bf16.msra.mxu0 %v5037
    %5043 = vmatprep.subr.bf16.mxu0 0
    %5044 = vmatpush1.bf16.msra.mxu0 0
    %5045 = vmatprep.subr.bf16.mxu0 0
    %5046 = vmatpush1.bf16.msra.mxu0 0
    %5047 = vmatprep.subr.bf16.mxu0 0
    %5048 = vmatpush1.bf16.msra.mxu0 0
    %5049 = vmatprep.subr.bf16.mxu0 0
    %5050 = vmatpush1.bf16.msra.mxu0 0
    %5051 = vmatprep.subr.bf16.mxu0 0
    %5052 = vmatpush1.bf16.msra.mxu0 0
    %5053 = vmatprep.subr.bf16.mxu0 0
    %5054 = vmatpush1.bf16.msra.mxu0 0
    %5055 = vmatprep.subr.bf16.mxu0 0
    %5056 = vmatpush1.bf16.msra.mxu0 0
    %5057 = vmatprep.subr.bf16.mxu0 0
    %5058 = vmatpush1.bf16.msra.mxu0 0
    %5059 = vmatprep.subr.bf16.mxu0 0
    %5060 = vmatpush1.bf16.msra.mxu0 0
    %5061 = vmatprep.subr.bf16.mxu0 0
    %5062 = vmatpush1.bf16.msra.mxu0 0
    %5063 = vmatprep.subr.bf16.mxu0 0
    %5064 = vmatpush1.bf16.msra.mxu0 0
    %5065 = vmatprep.subr.bf16.mxu0 0
    %5066 = vmatpush1.bf16.msra.mxu0 0
    %5067 = vmatprep.subr.bf16.mxu0 0
    %5068 = vmatpush1.bf16.msra.mxu0 0
    %5069 = vmatprep.subr.bf16.mxu0 0
    %5070 = vmatpush1.bf16.msra.mxu0 0
    %5071 = vmatprep.mubr.bf16.mxu0 0
    %5072 = vmatmul.mubr.bf16.gmra.mrb[0].mxu0 %v4760
    %v5073 = vpop.f32.mrb[0].mxu0
    %v5074 = vadd.f32 0.0, %v5073
    %v5075 = vpop.f32.mrb[0].mxu0
    %v5076 = vadd.f32 0.0, %v5075
    %v5077 = vpop.f32.mrb[0].mxu0
    %v5078 = vadd.f32 0.0, %v5077
    %v5079 = vpop.f32.mrb[0].mxu0
    %v5080 = vadd.f32 0.0, %v5079
    %5081 = vmatprep.mubr.bf16.mxu0 0
    %5082 = vmatmul.mubr.bf16.gmra.mrb[0].mxu0 %v4763
    %v5083 = vpop.f32.mrb[0].mxu0
    %v5084 = vadd.f32 0.0, %v5083
    %v5085 = vpop.f32.mrb[0].mxu0
    %v5086 = vadd.f32 0.0, %v5085
    %v5087 = vpop.f32.mrb[0].mxu0
    %v5088 = vadd.f32 0.0, %v5087
    %v5089 = vpop.f32.mrb[0].mxu0
    %v5090 = vadd.f32 0.0, %v5089
    %5091 = vdwg.mxu0
    %v5092 = vpack.c.bf16 %v5078, %v5074
    %v5093 = vpack.c.bf16 %v5080, %v5076
    %v5094 = vpack.c.bf16 %v5088, %v5084
    %v5095 = vpack.c.bf16 %v5090, %v5086
    %5096 = vmatprep.subr.bf16.mxu0 %v4919
    %5097 = vmatpush1.bf16.msra.mxu0 %v4918
    %5098 = vmatprep.subr.bf16.mxu0 %v4921
    %5099 = vmatpush1.bf16.msra.mxu0 %v4920
    %5100 = vmatprep.subr.bf16.mxu0 %v4923
    %5101 = vmatpush1.bf16.msra.mxu0 %v4922
    %5102 = vmatprep.subr.bf16.mxu0 %v4925
    %5103 = vmatpush1.bf16.msra.mxu0 %v4924
    %5104 = vmatprep.subr.bf16.mxu0 %v4927
    %5105 = vmatpush1.bf16.msra.mxu0 %v4926
    %5106 = vmatprep.subr.bf16.mxu0 %v4929
    %5107 = vmatpush1.bf16.msra.mxu0 %v4928
    %5108 = vmatprep.subr.bf16.mxu0 %v4931
    %5109 = vmatpush1.bf16.msra.mxu0 %v4930
    %5110 = vmatprep.subr.bf16.mxu0 %v4933
    %5111 = vmatpush1.bf16.msra.mxu0 %v4932
    %5112 = vmatprep.subr.bf16.mxu0 %v4935
    %5113 = vmatpush1.bf16.msra.mxu0 %v4934
    %5114 = vmatprep.subr.bf16.mxu0 %v4937
    %5115 = vmatpush1.bf16.msra.mxu0 %v4936
    %5116 = vmatprep.subr.bf16.mxu0 %v4939
    %5117 = vmatpush1.bf16.msra.mxu0 %v4938
    %5118 = vmatprep.subr.bf16.mxu0 %v4941
    %5119 = vmatpush1.bf16.msra.mxu0 %v4940
    %5120 = vmatprep.subr.bf16.mxu0 %v4943
    %5121 = vmatpush1.bf16.msra.mxu0 %v4942
    %5122 = vmatprep.subr.bf16.mxu0 %v4945
    %5123 = vmatpush1.bf16.msra.mxu0 %v4944
    %5124 = vmatprep.subr.bf16.mxu0 %v4947
    %5125 = vmatpush1.bf16.msra.mxu0 %v4946
    %5126 = vmatprep.subr.bf16.mxu0 %v4949
    %5127 = vmatpush1.bf16.msra.mxu0 %v4948
    %5128 = vmatprep.mubr.bf16.mxu0 %v5093
    %5129 = vmatmul.mubr.bf16.gmra.mrb[0].mxu0 %v5092
    %v5130 = vpop.f32.mrb[0].mxu0
    %v5131 = vadd.f32 0.0, %v5130
    %v5132 = vpop.f32.mrb[0].mxu0
    %v5133 = vadd.f32 0.0, %v5132
    %v5134 = vpop.f32.mrb[0].mxu0
    %v5135 = vadd.f32 0.0, %v5134
    %v5136 = vpop.f32.mrb[0].mxu0
    %v5137 = vadd.f32 0.0, %v5136
    %5138 = vmatprep.mubr.bf16.mxu0 %v5095
    %5139 = vmatmul.mubr.bf16.gmra.mrb[0].mxu0 %v5094
    %v5140 = vpop.f32.mrb[0].mxu0
    %v5141 = vadd.f32 0.0, %v5140
    %v5142 = vpop.f32.mrb[0].mxu0
    %v5143 = vadd.f32 0.0, %v5142
    %v5144 = vpop.f32.mrb[0].mxu0
    %v5145 = vadd.f32 0.0, %v5144
    %v5146 = vpop.f32.mrb[0].mxu0
    %v5147 = vadd.f32 0.0, %v5146
    %5148 = vdwg.mxu0
    %v5149 = vmul.f32 %v4579, %v4579
    %v5150 = vmul.f32 %v4581, %v4581
    %v5151 = vmul.f32 %v4583, %v4583
    %v5152 = vmul.f32 %v4585, %v4585
    %v5153 = vmul.f32 %v4589, %v4589
    %v5154 = vmul.f32 %v4591, %v4591
    %v5155 = vmul.f32 %v4593, %v4593
    %v5156 = vmul.f32 %v4595, %v4595
    %v5157 = vpack.c.bf16 %v5151, %v5149
    %v5158 = vpack.c.bf16 %v5152, %v5150
    %v5159 = vpack.c.bf16 %v5155, %v5153
    %v5160 = vpack.c.bf16 %v5156, %v5154
    %5161 = vmatprep.subr.bf16.mxu0 %v5158
    %5162 = vmatpush1.bf16.msra.mxu0 %v5157
    %5163 = vmatprep.subr.bf16.mxu0 %v5160
    %5164 = vmatpush1.bf16.msra.mxu0 %v5159
    %5165 = vmatprep.subr.bf16.mxu0 0
    %5166 = vmatpush1.bf16.msra.mxu0 0
    %5167 = vmatprep.subr.bf16.mxu0 0
    %5168 = vmatpush1.bf16.msra.mxu0 0
    %5169 = vmatprep.subr.bf16.mxu0 0
    %5170 = vmatpush1.bf16.msra.mxu0 0
    %5171 = vmatprep.subr.bf16.mxu0 0
    %5172 = vmatpush1.bf16.msra.mxu0 0
    %5173 = vmatprep.subr.bf16.mxu0 0
    %5174 = vmatpush1.bf16.msra.mxu0 0
    %5175 = vmatprep.subr.bf16.mxu0 0
    %5176 = vmatpush1.bf16.msra.mxu0 0
    %5177 = vmatprep.subr.bf16.mxu0 0
    %5178 = vmatpush1.bf16.msra.mxu0 0
    %5179 = vmatprep.subr.bf16.mxu0 0
    %5180 = vmatpush1.bf16.msra.mxu0 0
    %5181 = vmatprep.subr.bf16.mxu0 0
    %5182 = vmatpush1.bf16.msra.mxu0 0
    %5183 = vmatprep.subr.bf16.mxu0 0
    %5184 = vmatpush1.bf16.msra.mxu0 0
    %5185 = vmatprep.subr.bf16.mxu0 0
    %5186 = vmatpush1.bf16.msra.mxu0 0
    %5187 = vmatprep.subr.bf16.mxu0 0
    %5188 = vmatpush1.bf16.msra.mxu0 0
    %5189 = vmatprep.subr.bf16.mxu0 0
    %5190 = vmatpush1.bf16.msra.mxu0 0
    %5191 = vmatprep.subr.bf16.mxu0 0
    %5192 = vmatpush1.bf16.msra.mxu0 0
    %5193 = vmatprep.mubr.bf16.mxu0 0
    %5194 = vmatmul.mubr.bf16.gmra.mrb[0].mxu0 %v4760
    %v5195 = vpop.f32.mrb[0].mxu0
    %v5196 = vadd.f32 0.0, %v5195
    %v5197 = vpop.f32.mrb[0].mxu0
    %v5198 = vadd.f32 0.0, %v5197
    %v5199 = vpop.f32.mrb[0].mxu0
    %v5200 = vadd.f32 0.0, %v5199
    %v5201 = vpop.f32.mrb[0].mxu0
    %v5202 = vadd.f32 0.0, %v5201
    %5203 = vmatprep.mubr.bf16.mxu0 0
    %5204 = vmatmul.mubr.bf16.gmra.mrb[0].mxu0 %v4763
    %v5205 = vpop.f32.mrb[0].mxu0
    %v5206 = vadd.f32 0.0, %v5205
    %v5207 = vpop.f32.mrb[0].mxu0
    %v5208 = vadd.f32 0.0, %v5207
    %v5209 = vpop.f32.mrb[0].mxu0
    %v5210 = vadd.f32 0.0, %v5209
    %v5211 = vpop.f32.mrb[0].mxu0
    %v5212 = vadd.f32 0.0, %v5211
    %5213 = vdwg.mxu0
    %v5214 = vpack.c.bf16 %v5200, %v5196
    %v5215 = vpack.c.bf16 %v5202, %v5198
    %v5216 = vpack.c.bf16 %v5210, %v5206
    %v5217 = vpack.c.bf16 %v5212, %v5208
    %5218 = vmatprep.subr.bf16.mxu0 %v4919
    %5219 = vmatpush1.bf16.msra.mxu0 %v4918
    %5220 = vmatprep.subr.bf16.mxu0 %v4921
    %5221 = vmatpush1.bf16.msra.mxu0 %v4920
    %5222 = vmatprep.subr.bf16.mxu0 %v4923
    %5223 = vmatpush1.bf16.msra.mxu0 %v4922
    %5224 = vmatprep.subr.bf16.mxu0 %v4925
    %5225 = vmatpush1.bf16.msra.mxu0 %v4924
    %5226 = vmatprep.subr.bf16.mxu0 %v4927
    %5227 = vmatpush1.bf16.msra.mxu0 %v4926
    %5228 = vmatprep.subr.bf16.mxu0 %v4929
    %5229 = vmatpush1.bf16.msra.mxu0 %v4928
    %5230 = vmatprep.subr.bf16.mxu0 %v4931
    %5231 = vmatpush1.bf16.msra.mxu0 %v4930
    %5232 = vmatprep.subr.bf16.mxu0 %v4933
    %5233 = vmatpush1.bf16.msra.mxu0 %v4932
    %5234 = vmatprep.subr.bf16.mxu0 %v4935
    %5235 = vmatpush1.bf16.msra.mxu0 %v4934
    %5236 = vmatprep.subr.bf16.mxu0 %v4937
    %5237 = vmatpush1.bf16.msra.mxu0 %v4936
    %5238 = vmatprep.subr.bf16.mxu0 %v4939
    %5239 = vmatpush1.bf16.msra.mxu0 %v4938
    %5240 = vmatprep.subr.bf16.mxu0 %v4941
    %5241 = vmatpush1.bf16.msra.mxu0 %v4940
    %5242 = vmatprep.subr.bf16.mxu0 %v4943
    %5243 = vmatpush1.bf16.msra.mxu0 %v4942
    %5244 = vmatprep.subr.bf16.mxu0 %v4945
    %5245 = vmatpush1.bf16.msra.mxu0 %v4944
    %5246 = vmatprep.subr.bf16.mxu0 %v4947
    %5247 = vmatpush1.bf16.msra.mxu0 %v4946
    %5248 = vmatprep.subr.bf16.mxu0 %v4949
    %5249 = vmatpush1.bf16.msra.mxu0 %v4948
    %5250 = vmatprep.mubr.bf16.mxu0 %v5215
    %5251 = vmatmul.mubr.bf16.gmra.mrb[0].mxu0 %v5214
    %v5252 = vpop.f32.mrb[0].mxu0
    %v5253 = vadd.f32 0.0, %v5252
    %v5254 = vpop.f32.mrb[0].mxu0
    %v5255 = vadd.f32 0.0, %v5254
    %v5256 = vpop.f32.mrb[0].mxu0
    %v5257 = vadd.f32 0.0, %v5256
    %v5258 = vpop.f32.mrb[0].mxu0
    %v5259 = vadd.f32 0.0, %v5258
    %5260 = vmatprep.mubr.bf16.mxu0 %v5217
    %5261 = vmatmul.mubr.bf16.gmra.mrb[0].mxu0 %v5216
    %v5262 = vpop.f32.mrb[0].mxu0
    %v5263 = vadd.f32 0.0, %v5262
    %v5264 = vpop.f32.mrb[0].mxu0
    %v5265 = vadd.f32 0.0, %v5264
    %v5266 = vpop.f32.mrb[0].mxu0
    %v5267 = vadd.f32 0.0, %v5266
    %v5268 = vpop.f32.mrb[0].mxu0
    %v5269 = vadd.f32 0.0, %v5268
    %5270 = vdwg.mxu0
    %v5271 = vmul.f32 %v4689, %v4689
    %v5272 = vmul.f32 %v4691, %v4691
    %v5273 = vmul.f32 %v4693, %v4693
    %v5274 = vmul.f32 %v4695, %v4695
    %v5275 = vmul.f32 %v4699, %v4699
    %v5276 = vmul.f32 %v4701, %v4701
    %v5277 = vmul.f32 %v4703, %v4703
    %v5278 = vmul.f32 %v4705, %v4705
    %v5279 = vpack.c.bf16 %v5273, %v5271
    %v5280 = vpack.c.bf16 %v5274, %v5272
    %v5281 = vpack.c.bf16 %v5277, %v5275
    %v5282 = vpack.c.bf16 %v5278, %v5276
    %5283 = vmatprep.subr.bf16.mxu0 %v5280
    %5284 = vmatpush1.bf16.msra.mxu0 %v5279
    %5285 = vmatprep.subr.bf16.mxu0 %v5282
    %5286 = vmatpush1.bf16.msra.mxu0 %v5281
    %5287 = vmatprep.subr.bf16.mxu0 0
    %5288 = vmatpush1.bf16.msra.mxu0 0
    %5289 = vmatprep.subr.bf16.mxu0 0
    %5290 = vmatpush1.bf16.msra.mxu0 0
    %5291 = vmatprep.subr.bf16.mxu0 0
    %5292 = vmatpush1.bf16.msra.mxu0 0
    %5293 = vmatprep.subr.bf16.mxu0 0
    %5294 = vmatpush1.bf16.msra.mxu0 0
    %5295 = vmatprep.subr.bf16.mxu0 0
    %5296 = vmatpush1.bf16.msra.mxu0 0
    %5297 = vmatprep.subr.bf16.mxu0 0
    %5298 = vmatpush1.bf16.msra.mxu0 0
    %5299 = vmatprep.subr.bf16.mxu0 0
    %5300 = vmatpush1.bf16.msra.mxu0 0
    %5301 = vmatprep.subr.bf16.mxu0 0
    %5302 = vmatpush1.bf16.msra.mxu0 0
    %5303 = vmatprep.subr.bf16.mxu0 0
    %5304 = vmatpush1.bf16.msra.mxu0 0
    %5305 = vmatprep.subr.bf16.mxu0 0
    %5306 = vmatpush1.bf16.msra.mxu0 0
    %5307 = vmatprep.subr.bf16.mxu0 0
    %5308 = vmatpush1.bf16.msra.mxu0 0
    %5309 = vmatprep.subr.bf16.mxu0 0
    %5310 = vmatpush1.bf16.msra.mxu0 0
    %5311 = vmatprep.subr.bf16.mxu0 0
    %5312 = vmatpush1.bf16.msra.mxu0 0
    %5313 = vmatprep.subr.bf16.mxu0 0
    %5314 = vmatpush1.bf16.msra.mxu0 0
    %5315 = vmatprep.mubr.bf16.mxu0 0
    %5316 = vmatmul.mubr.bf16.gmra.mrb[0].mxu0 %v4760
    %v5317 = vpop.f32.mrb[0].mxu0
    %v5318 = vadd.f32 0.0, %v5317
    %v5319 = vpop.f32.mrb[0].mxu0
    %v5320 = vadd.f32 0.0, %v5319
    %v5321 = vpop.f32.mrb[0].mxu0
    %v5322 = vadd.f32 0.0, %v5321
    %v5323 = vpop.f32.mrb[0].mxu0
    %v5324 = vadd.f32 0.0, %v5323
    %5325 = vmatprep.mubr.bf16.mxu0 0
    %5326 = vmatmul.mubr.bf16.gmra.mrb[0].mxu0 %v4763
    %v5327 = vpop.f32.mrb[0].mxu0
    %v5328 = vadd.f32 0.0, %v5327
    %v5329 = vpop.f32.mrb[0].mxu0
    %v5330 = vadd.f32 0.0, %v5329
    %v5331 = vpop.f32.mrb[0].mxu0
    %v5332 = vadd.f32 0.0, %v5331
    %v5333 = vpop.f32.mrb[0].mxu0
    %v5334 = vadd.f32 0.0, %v5333
    %5335 = vdwg.mxu0
    %v5336 = vpack.c.bf16 %v5322, %v5318
    %v5337 = vpack.c.bf16 %v5324, %v5320
    %v5338 = vpack.c.bf16 %v5332, %v5328
    %v5339 = vpack.c.bf16 %v5334, %v5330
    %5340 = vmatprep.subr.bf16.mxu0 %v4919
    %5341 = vmatpush1.bf16.msra.mxu0 %v4918
    %5342 = vmatprep.subr.bf16.mxu0 %v4921
    %5343 = vmatpush1.bf16.msra.mxu0 %v4920
    %5344 = vmatprep.subr.bf16.mxu0 %v4923
    %5345 = vmatpush1.bf16.msra.mxu0 %v4922
    %5346 = vmatprep.subr.bf16.mxu0 %v4925
    %5347 = vmatpush1.bf16.msra.mxu0 %v4924
    %5348 = vmatprep.subr.bf16.mxu0 %v4927
    %5349 = vmatpush1.bf16.msra.mxu0 %v4926
    %5350 = vmatprep.subr.bf16.mxu0 %v4929
    %5351 = vmatpush1.bf16.msra.mxu0 %v4928
    %5352 = vmatprep.subr.bf16.mxu0 %v4931
    %5353 = vmatpush1.bf16.msra.mxu0 %v4930
    %5354 = vmatprep.subr.bf16.mxu0 %v4933
    %5355 = vmatpush1.bf16.msra.mxu0 %v4932
    %5356 = vmatprep.subr.bf16.mxu0 %v4935
    %5357 = vmatpush1.bf16.msra.mxu0 %v4934
    %5358 = vmatprep.subr.bf16.mxu0 %v4937
    %5359 = vmatpush1.bf16.msra.mxu0 %v4936
    %5360 = vmatprep.subr.bf16.mxu0 %v4939
    %5361 = vmatpush1.bf16.msra.mxu0 %v4938
    %5362 = vmatprep.subr.bf16.mxu0 %v4941
    %5363 = vmatpush1.bf16.msra.mxu0 %v4940
    %5364 = vmatprep.subr.bf16.mxu0 %v4943
    %5365 = vmatpush1.bf16.msra.mxu0 %v4942
    %5366 = vmatprep.subr.bf16.mxu0 %v4945
    %5367 = vmatpush1.bf16.msra.mxu0 %v4944
    %5368 = vmatprep.subr.bf16.mxu0 %v4947
    %5369 = vmatpush1.bf16.msra.mxu0 %v4946
    %5370 = vmatprep.subr.bf16.mxu0 %v4949
    %5371 = vmatpush1.bf16.msra.mxu0 %v4948
    %5372 = vmatprep.mubr.bf16.mxu0 %v5337
    %5373 = vmatmul.mubr.bf16.gmra.mrb[0].mxu0 %v5336
    %v5374 = vpop.f32.mrb[0].mxu0
    %v5375 = vadd.f32 0.0, %v5374
    %v5376 = vpop.f32.mrb[0].mxu0
    %v5377 = vadd.f32 0.0, %v5376
    %v5378 = vpop.f32.mrb[0].mxu0
    %v5379 = vadd.f32 0.0, %v5378
    %v5380 = vpop.f32.mrb[0].mxu0
    %v5381 = vadd.f32 0.0, %v5380
    %5382 = vmatprep.mubr.bf16.mxu0 %v5339
    %5383 = vmatmul.mubr.bf16.gmra.mrb[0].mxu0 %v5338
    %v5384 = vpop.f32.mrb[0].mxu0
    %v5385 = vadd.f32 0.0, %v5384
    %v5386 = vpop.f32.mrb[0].mxu0
    %v5387 = vadd.f32 0.0, %v5386
    %v5388 = vpop.f32.mrb[0].mxu0
    %v5389 = vadd.f32 0.0, %v5388
    %v5390 = vpop.f32.mrb[0].mxu0
    %v5391 = vadd.f32 0.0, %v5390
    %5392 = vdwg.mxu0
    %v5393 = vmul.f32 %v4579, %v4689
    %v5394 = vmul.f32 %v4581, %v4691
    %v5395 = vmul.f32 %v4583, %v4693
    %v5396 = vmul.f32 %v4585, %v4695
    %v5397 = vmul.f32 %v4589, %v4699
    %v5398 = vmul.f32 %v4591, %v4701
    %v5399 = vmul.f32 %v4593, %v4703
    %v5400 = vmul.f32 %v4595, %v4705
    %v5401 = vpack.c.bf16 %v5395, %v5393
    %v5402 = vpack.c.bf16 %v5396, %v5394
    %v5403 = vpack.c.bf16 %v5399, %v5397
    %v5404 = vpack.c.bf16 %v5400, %v5398
    %5405 = vmatprep.subr.bf16.mxu0 %v5402
    %5406 = vmatpush1.bf16.msra.mxu0 %v5401
    %5407 = vmatprep.subr.bf16.mxu0 %v5404
    %5408 = vmatpush1.bf16.msra.mxu0 %v5403
    %5409 = vmatprep.subr.bf16.mxu0 0
    %5410 = vmatpush1.bf16.msra.mxu0 0
    %5411 = vmatprep.subr.bf16.mxu0 0
    %5412 = vmatpush1.bf16.msra.mxu0 0
    %5413 = vmatprep.subr.bf16.mxu0 0
    %5414 = vmatpush1.bf16.msra.mxu0 0
    %5415 = vmatprep.subr.bf16.mxu0 0
    %5416 = vmatpush1.bf16.msra.mxu0 0
    %5417 = vmatprep.subr.bf16.mxu0 0
    %5418 = vmatpush1.bf16.msra.mxu0 0
    %5419 = vmatprep.subr.bf16.mxu0 0
    %5420 = vmatpush1.bf16.msra.mxu0 0
    %5421 = vmatprep.subr.bf16.mxu0 0
    %5422 = vmatpush1.bf16.msra.mxu0 0
    %5423 = vmatprep.subr.bf16.mxu0 0
    %5424 = vmatpush1.bf16.msra.mxu0 0
    %5425 = vmatprep.subr.bf16.mxu0 0
    %5426 = vmatpush1.bf16.msra.mxu0 0
    %5427 = vmatprep.subr.bf16.mxu0 0
    %5428 = vmatpush1.bf16.msra.mxu0 0
    %5429 = vmatprep.subr.bf16.mxu0 0
    %5430 = vmatpush1.bf16.msra.mxu0 0
    %5431 = vmatprep.subr.bf16.mxu0 0
    %5432 = vmatpush1.bf16.msra.mxu0 0
    %5433 = vmatprep.subr.bf16.mxu0 0
    %5434 = vmatpush1.bf16.msra.mxu0 0
    %5435 = vmatprep.subr.bf16.mxu0 0
    %5436 = vmatpush1.bf16.msra.mxu0 0
    %5437 = vmatprep.mubr.bf16.mxu0 0
    %5438 = vmatmul.mubr.bf16.gmra.mrb[0].mxu0 %v4760
    %v5439 = vpop.f32.mrb[0].mxu0
    %v5440 = vadd.f32 0.0, %v5439
    %v5441 = vpop.f32.mrb[0].mxu0
    %v5442 = vadd.f32 0.0, %v5441
    %v5443 = vpop.f32.mrb[0].mxu0
    %v5444 = vadd.f32 0.0, %v5443
    %v5445 = vpop.f32.mrb[0].mxu0
    %v5446 = vadd.f32 0.0, %v5445
    %5447 = vmatprep.mubr.bf16.mxu0 0
    %5448 = vmatmul.mubr.bf16.gmra.mrb[0].mxu0 %v4763
    %v5449 = vpop.f32.mrb[0].mxu0
    %v5450 = vadd.f32 0.0, %v5449
    %v5451 = vpop.f32.mrb[0].mxu0
    %v5452 = vadd.f32 0.0, %v5451
    %v5453 = vpop.f32.mrb[0].mxu0
    %v5454 = vadd.f32 0.0, %v5453
    %v5455 = vpop.f32.mrb[0].mxu0
    %v5456 = vadd.f32 0.0, %v5455
    %5457 = vdwg.mxu0
    %v5458 = vpack.c.bf16 %v5444, %v5440
    %v5459 = vpack.c.bf16 %v5446, %v5442
    %v5460 = vpack.c.bf16 %v5454, %v5450
    %v5461 = vpack.c.bf16 %v5456, %v5452
    %5462 = vmatprep.subr.bf16.mxu0 %v4919
    %5463 = vmatpush1.bf16.msra.mxu0 %v4918
    %5464 = vmatprep.subr.bf16.mxu0 %v4921
    %5465 = vmatpush1.bf16.msra.mxu0 %v4920
    %5466 = vmatprep.subr.bf16.mxu0 %v4923
    %5467 = vmatpush1.bf16.msra.mxu0 %v4922
    %5468 = vmatprep.subr.bf16.mxu0 %v4925
    %5469 = vmatpush1.bf16.msra.mxu0 %v4924
    %5470 = vmatprep.subr.bf16.mxu0 %v4927
    %5471 = vmatpush1.bf16.msra.mxu0 %v4926
    %5472 = vmatprep.subr.bf16.mxu0 %v4929
    %5473 = vmatpush1.bf16.msra.mxu0 %v4928
    %5474 = vmatprep.subr.bf16.mxu0 %v4931
    %5475 = vmatpush1.bf16.msra.mxu0 %v4930
    %5476 = vmatprep.subr.bf16.mxu0 %v4933
    %5477 = vmatpush1.bf16.msra.mxu0 %v4932
    %5478 = vmatprep.subr.bf16.mxu0 %v4935
    %5479 = vmatpush1.bf16.msra.mxu0 %v4934
    %5480 = vmatprep.subr.bf16.mxu0 %v4937
    %5481 = vmatpush1.bf16.msra.mxu0 %v4936
    %5482 = vmatprep.subr.bf16.mxu0 %v4939
    %5483 = vmatpush1.bf16.msra.mxu0 %v4938
    %5484 = vmatprep.subr.bf16.mxu0 %v4941
    %5485 = vmatpush1.bf16.msra.mxu0 %v4940
    %5486 = vmatprep.subr.bf16.mxu0 %v4943
    %5487 = vmatpush1.bf16.msra.mxu0 %v4942
    %5488 = vmatprep.subr.bf16.mxu0 %v4945
    %5489 = vmatpush1.bf16.msra.mxu0 %v4944
    %5490 = vmatprep.subr.bf16.mxu0 %v4947
    %5491 = vmatpush1.bf16.msra.mxu0 %v4946
    %5492 = vmatprep.subr.bf16.mxu0 %v4949
    %5493 = vmatpush1.bf16.msra.mxu0 %v4948
    %5494 = vmatprep.mubr.bf16.mxu0 %v5459
    %5495 = vmatmul.mubr.bf16.gmra.mrb[0].mxu0 %v5458
    %v5496 = vpop.f32.mrb[0].mxu0
    %v5497 = vadd.f32 0.0, %v5496
    %v5498 = vpop.f32.mrb[0].mxu0
    %v5499 = vadd.f32 0.0, %v5498
    %v5500 = vpop.f32.mrb[0].mxu0
    %v5501 = vadd.f32 0.0, %v5500
    %v5502 = vpop.f32.mrb[0].mxu0
    %v5503 = vadd.f32 0.0, %v5502
    %5504 = vmatprep.mubr.bf16.mxu0 %v5461
    %5505 = vmatmul.mubr.bf16.gmra.mrb[0].mxu0 %v5460
    %v5506 = vpop.f32.mrb[0].mxu0
    %v5507 = vadd.f32 0.0, %v5506
    %v5508 = vpop.f32.mrb[0].mxu0
    %v5509 = vadd.f32 0.0, %v5508
    %v5510 = vpop.f32.mrb[0].mxu0
    %v5511 = vadd.f32 0.0, %v5510
    %v5512 = vpop.f32.mrb[0].mxu0
    %v5513 = vadd.f32 0.0, %v5512
    %5514 = vdwg.mxu0
    %v5515 = vmul.f32 %v5017, %v5017
    %v5516 = vmul.f32 %v5019, %v5019
    %v5517 = vmul.f32 %v5021, %v5021
    %v5518 = vmul.f32 %v5023, %v5023
    %v5519 = vmul.f32 %v5027, %v5027
    %v5520 = vmul.f32 %v5029, %v5029
    %v5521 = vmul.f32 %v5031, %v5031
    %v5522 = vmul.f32 %v5033, %v5033
    %v5523 = vmul.f32 %v5131, %v5131
    %v5524 = vmul.f32 %v5133, %v5133
    %v5525 = vmul.f32 %v5135, %v5135
    %v5526 = vmul.f32 %v5137, %v5137
    %v5527 = vmul.f32 %v5141, %v5141
    %v5528 = vmul.f32 %v5143, %v5143
    %v5529 = vmul.f32 %v5145, %v5145
    %v5530 = vmul.f32 %v5147, %v5147
    %v5531 = vmul.f32 %v5017, %v5131
    %v5532 = vmul.f32 %v5019, %v5133
    %v5533 = vmul.f32 %v5021, %v5135
    %v5534 = vmul.f32 %v5023, %v5137
    %v5535 = vmul.f32 %v5027, %v5141
    %v5536 = vmul.f32 %v5029, %v5143
    %v5537 = vmul.f32 %v5031, %v5145
    %v5538 = vmul.f32 %v5033, %v5147
    %v5539 = vsub.f32 %v5253, %v5515
    %v5540 = vsub.f32 %v5255, %v5516
    %v5541 = vsub.f32 %v5257, %v5517
    %v5542 = vsub.f32 %v5259, %v5518
    %v5543 = vsub.f32 %v5263, %v5519
    %v5544 = vsub.f32 %v5265, %v5520
    %v5545 = vsub.f32 %v5267, %v5521
    %v5546 = vsub.f32 %v5269, %v5522
    %v5547 = vsub.f32 %v5375, %v5523
    %v5548 = vsub.f32 %v5377, %v5524
    %v5549 = vsub.f32 %v5379, %v5525
    %v5550 = vsub.f32 %v5381, %v5526
    %v5551 = vsub.f32 %v5385, %v5527
    %v5552 = vsub.f32 %v5387, %v5528
    %v5553 = vsub.f32 %v5389, %v5529
    %v5554 = vsub.f32 %v5391, %v5530
    %v5555 = vsub.f32 %v5497, %v5531
    %v5556 = vsub.f32 %v5499, %v5532
    %v5557 = vsub.f32 %v5501, %v5533
    %v5558 = vsub.f32 %v5503, %v5534
    %v5559 = vsub.f32 %v5507, %v5535
    %v5560 = vsub.f32 %v5509, %v5536
    %v5561 = vsub.f32 %v5511, %v5537
    %v5562 = vsub.f32 %v5513, %v5538
    %v5563 = vmul.f32 %v5555, 2.0
    %v5564 = vmul.f32 %v5556, 2.0
    %v5565 = vmul.f32 %v5557, 2.0
    %v5566 = vmul.f32 %v5558, 2.0
    %v5567 = vmul.f32 %v5559, 2.0
    %v5568 = vmul.f32 %v5560, 2.0
    %v5569 = vmul.f32 %v5561, 2.0
    %v5570 = vmul.f32 %v5562, 2.0
    %v5571 = vadd.f32 %v5563, 0.0009
    %v5572 = vadd.f32 %v5564, 0.0009
    %v5573 = vadd.f32 %v5565, 0.0009
    %v5574 = vadd.f32 %v5566, 0.0009
    %v5575 = vadd.f32 %v5567, 0.0009
    %v5576 = vadd.f32 %v5568, 0.0009
    %v5577 = vadd.f32 %v5569, 0.0009
    %v5578 = vadd.f32 %v5570, 0.0009
    %v5579 = vadd.f32 %v5539, %v5547
    %v5580 = vadd.f32 %v5540, %v5548
    %v5581 = vadd.f32 %v5541, %v5549
    %v5582 = vadd.f32 %v5542, %v5550
    %v5583 = vadd.f32 %v5543, %v5551
    %v5584 = vadd.f32 %v5544, %v5552
    %v5585 = vadd.f32 %v5545, %v5553
    %v5586 = vadd.f32 %v5546, %v5554
    %v5587 = vadd.f32 %v5579, 0.0009
    %v5588 = vadd.f32 %v5580, 0.0009
    %v5589 = vadd.f32 %v5581, 0.0009
    %v5590 = vadd.f32 %v5582, 0.0009
    %v5591 = vadd.f32 %v5583, 0.0009
    %v5592 = vadd.f32 %v5584, 0.0009
    %v5593 = vadd.f32 %v5585, 0.0009
    %v5594 = vadd.f32 %v5586, 0.0009
    %v5595 = vrcp.pop %v5587
    %v5596 = vrcp.pop %v5588
    %v5597 = vrcp.pop %v5589
    %v5598 = vrcp.pop %v5590
    %v5599 = vrcp.pop %v5591
    %v5600 = vrcp.pop %v5592
    %v5601 = vrcp.pop %v5593
    %v5602 = vrcp.pop %v5594
    %v5603 = vmul.f32 %v5587, %v5595
    %v5604 = vmul.f32 %v5588, %v5596
    %v5605 = vmul.f32 %v5589, %v5597
    %v5606 = vmul.f32 %v5590, %v5598
    %v5607 = vmul.f32 %v5591, %v5599
    %v5608 = vmul.f32 %v5592, %v5600
    %v5609 = vmul.f32 %v5593, %v5601
    %v5610 = vmul.f32 %v5594, %v5602
    %v5611 = vsub.f32 2.0, %v5603
    %v5612 = vsub.f32 2.0, %v5604
    %v5613 = vsub.f32 2.0, %v5605
    %v5614 = vsub.f32 2.0, %v5606
    %v5615 = vsub.f32 2.0, %v5607
    %v5616 = vsub.f32 2.0, %v5608
    %v5617 = vsub.f32 2.0, %v5609
    %v5618 = vsub.f32 2.0, %v5610
    %v5619 = vmul.f32 %v5595, %v5611
    %v5620 = vmul.f32 %v5596, %v5612
    %v5621 = vmul.f32 %v5597, %v5613
    %v5622 = vmul.f32 %v5598, %v5614
    %v5623 = vmul.f32 %v5599, %v5615
    %v5624 = vmul.f32 %v5600, %v5616
    %v5625 = vmul.f32 %v5601, %v5617
    %v5626 = vmul.f32 %v5602, %v5618
    %v5627 = vmul.f32 %v5571, %v5619
    %v5628 = vmul.f32 %v5572, %v5620
    %v5629 = vmul.f32 %v5573, %v5621
    %v5630 = vmul.f32 %v5574, %v5622
    %v5631 = vmul.f32 %v5575, %v5623
    %v5632 = vmul.f32 %v5576, %v5624
    %v5633 = vmul.f32 %v5577, %v5625
    %v5634 = vmul.f32 %v5578, %v5626
    %v5635 = vadd.f32 %v5515, %v5523
    %v5636 = vadd.f32 %v5516, %v5524
    %v5637 = vadd.f32 %v5517, %v5525
    %v5638 = vadd.f32 %v5518, %v5526
    %v5639 = vadd.f32 %v5519, %v5527
    %v5640 = vadd.f32 %v5520, %v5528
    %v5641 = vadd.f32 %v5521, %v5529
    %v5642 = vadd.f32 %v5522, %v5530
    %v5643 = vadd.f32 %v5635, 0.0001
    %v5644 = vadd.f32 %v5636, 0.0001
    %v5645 = vadd.f32 %v5637, 0.0001
    %v5646 = vadd.f32 %v5638, 0.0001
    %v5647 = vadd.f32 %v5639, 0.0001
    %v5648 = vadd.f32 %v5640, 0.0001
    %v5649 = vadd.f32 %v5641, 0.0001
    %v5650 = vadd.f32 %v5642, 0.0001
    %v5651 = vrcp.pop %v5643
    %v5652 = vrcp.pop %v5644
    %v5653 = vrcp.pop %v5645
    %v5654 = vrcp.pop %v5646
    %v5655 = vrcp.pop %v5647
    %v5656 = vrcp.pop %v5648
    %v5657 = vrcp.pop %v5649
    %v5658 = vrcp.pop %v5650
    %v5659 = vmul.f32 %v5643, %v5651
    %v5660 = vmul.f32 %v5644, %v5652
    %v5661 = vmul.f32 %v5645, %v5653
    %v5662 = vmul.f32 %v5646, %v5654
    %v5663 = vmul.f32 %v5647, %v5655
    %v5664 = vmul.f32 %v5648, %v5656
    %v5665 = vmul.f32 %v5649, %v5657
    %v5666 = vmul.f32 %v5650, %v5658
    %v5667 = vsub.f32 2.0, %v5659
    %v5668 = vsub.f32 2.0, %v5660
    %v5669 = vsub.f32 2.0, %v5661
    %v5670 = vsub.f32 2.0, %v5662
    %v5671 = vsub.f32 2.0, %v5663
    %v5672 = vsub.f32 2.0, %v5664
    %v5673 = vsub.f32 2.0, %v5665
    %v5674 = vsub.f32 2.0, %v5666
    %v5675 = vmul.f32 %v5651, %v5667
    %v5676 = vmul.f32 %v5652, %v5668
    %v5677 = vmul.f32 %v5653, %v5669
    %v5678 = vmul.f32 %v5654, %v5670
    %v5679 = vmul.f32 %v5655, %v5671
    %v5680 = vmul.f32 %v5656, %v5672
    %v5681 = vmul.f32 %v5657, %v5673
    %v5682 = vmul.f32 %v5658, %v5674
    %v5683 = vmul.f32 %v5531, 2.0
    %v5684 = vmul.f32 %v5532, 2.0
    %v5685 = vmul.f32 %v5533, 2.0
    %v5686 = vmul.f32 %v5534, 2.0
    %v5687 = vmul.f32 %v5535, 2.0
    %v5688 = vmul.f32 %v5536, 2.0
    %v5689 = vmul.f32 %v5537, 2.0
    %v5690 = vmul.f32 %v5538, 2.0
    %v5691 = vadd.f32 %v5683, 0.0001
    %v5692 = vadd.f32 %v5684, 0.0001
    %v5693 = vadd.f32 %v5685, 0.0001
    %v5694 = vadd.f32 %v5686, 0.0001
    %v5695 = vadd.f32 %v5687, 0.0001
    %v5696 = vadd.f32 %v5688, 0.0001
    %v5697 = vadd.f32 %v5689, 0.0001
    %v5698 = vadd.f32 %v5690, 0.0001
    %v5699 = vmul.f32 %v5627, %v5691
    %v5700 = vmul.f32 %v5628, %v5692
    %v5701 = vmul.f32 %v5629, %v5693
    %v5702 = vmul.f32 %v5630, %v5694
    %v5703 = vmul.f32 %v5631, %v5695
    %v5704 = vmul.f32 %v5632, %v5696
    %v5705 = vmul.f32 %v5633, %v5697
    %v5706 = vmul.f32 %v5634, %v5698
    %v5707 = vmul.f32 %v5699, %v5675
    %v5708 = vmul.f32 %v5700, %v5676
    %v5709 = vmul.f32 %v5701, %v5677
    %v5710 = vmul.f32 %v5702, %v5678
    %v5711 = vmul.f32 %v5703, %v5679
    %v5712 = vmul.f32 %v5704, %v5680
    %v5713 = vmul.f32 %v5705, %v5681
    %v5714 = vmul.f32 %v5706, %v5682
    %vm5715 = vcmp.lt.s32.totalorder %v127, 4
    %vm5716 = vcmp.lt.s32.totalorder %v128, 4
    %vm5717 = vcmp.lt.s32.totalorder %v129, 4
    %vm5718 = vcmp.lt.s32.totalorder %v130, 4
    %s5719 = smul.u32 %s137, 4
    %v5720 = vstv %s5719
    %vm5721 = vcmp.lt.s32.totalorder %v132, %v5720
    %vm5722 = vcmp.lt.s32.totalorder %v133, %v5720
    %vm5723 = vmand %vm5715, %vm5721
    %vm5724 = vmand %vm5715, %vm5722
    %vm5725 = vmand %vm5716, %vm5721
    %vm5726 = vmand %vm5716, %vm5722
    %vm5727 = vmand %vm5717, %vm5721
    %vm5728 = vmand %vm5717, %vm5722
    %vm5729 = vmand %vm5718, %vm5721
    %vm5730 = vmand %vm5718, %vm5722
    %v5731 = vsel %vm5723, 1, 0
    %v5732 = vsel %vm5724, 1, 0
    %v5733 = vsel %vm5725, 1, 0
    %v5734 = vsel %vm5726, 1, 0
    %v5735 = vsel %vm5727, 1, 0
    %v5736 = vsel %vm5728, 1, 0
    %v5737 = vsel %vm5729, 1, 0
    %v5738 = vsel %vm5730, 1, 0
    %v5739 = vcvt.s32.f32 %v5731
    %v5740 = vcvt.s32.f32 %v5732
    %v5741 = vcvt.s32.f32 %v5733
    %v5742 = vcvt.s32.f32 %v5734
    %v5743 = vcvt.s32.f32 %v5735
    %v5744 = vcvt.s32.f32 %v5736
    %v5745 = vcvt.s32.f32 %v5737
    %v5746 = vcvt.s32.f32 %v5738
    %v5747 = vmul.f32 %v5707, %v5739
    %v5748 = vmul.f32 %v5708, %v5740
    %v5749 = vmul.f32 %v5709, %v5741
    %v5750 = vmul.f32 %v5710, %v5742
    %v5751 = vmul.f32 %v5711, %v5743
    %v5752 = vmul.f32 %v5712, %v5744
    %v5753 = vmul.f32 %v5713, %v5745
    %v5754 = vmul.f32 %v5714, %v5746
    %v5755 = vadd.f32 %v5747, %v5748
    %v5756 = vadd.f32 %v5755, %v5749
    %v5757 = vadd.f32 %v5756, %v5750
    %v5758 = vadd.f32 %v5757, %v5751
    %v5759 = vadd.f32 %v5758, %v5752
    %v5760 = vadd.f32 %v5759, %v5753
    %v5761 = vadd.f32 %v5760, %v5754
    %5762 = vadd.xlane.f32.xlu0 %v5761
    %v5763 = vpop.xlane.xlu0 %5762
    %v5764 = vrot.slane %v5763, 4
    %v5765 = vadd.f32 %v5763, %v5764
    %v5766 = vrot.slane %v5765, 2
    %v5767 = vadd.f32 %v5765, %v5766
    %v5768 = vrot.slane %v5767, 1
    %v5769 = vadd.f32 %v5767, %v5768
    %s5770 = vtos %v5769
    %v5771 = vstv %s5770
    %v5772 = vmul.f32 %v5627, %v5739
    %v5773 = vmul.f32 %v5628, %v5740
    %v5774 = vmul.f32 %v5629, %v5741
    %v5775 = vmul.f32 %v5630, %v5742
    %v5776 = vmul.f32 %v5631, %v5743
    %v5777 = vmul.f32 %v5632, %v5744
    %v5778 = vmul.f32 %v5633, %v5745
    %v5779 = vmul.f32 %v5634, %v5746
    %v5780 = vadd.f32 %v5772, %v5773
    %v5781 = vadd.f32 %v5780, %v5774
    %v5782 = vadd.f32 %v5781, %v5775
    %v5783 = vadd.f32 %v5782, %v5776
    %v5784 = vadd.f32 %v5783, %v5777
    %v5785 = vadd.f32 %v5784, %v5778
    %v5786 = vadd.f32 %v5785, %v5779
    %5787 = vadd.xlane.f32.xlu0 %v5786
    %v5788 = vpop.xlane.xlu0 %5787
    %v5789 = vrot.slane %v5788, 4
    %v5790 = vadd.f32 %v5788, %v5789
    %v5791 = vrot.slane %v5790, 2
    %v5792 = vadd.f32 %v5790, %v5791
    %v5793 = vrot.slane %v5792, 1
    %v5794 = vadd.f32 %v5792, %v5793
    %s5795 = vtos %v5794
    %v5796 = vstv %s5795
    %s5797 = scalar_lea.vmem [#allocation10], 48
    %v5798 = vld [vmem:[%s5797] sm:$0xf]
    %v5799 = vld [vmem:[%s5797 + $0x4] sm:$0xf]
    %v5800 = vld [vmem:[%s5797 + $0x8] sm:$0xf]
    %v5801 = vld [vmem:[%s5797 + $0xc] sm:$0xf]
    %s5802 = scalar_lea.vmem [#allocation11], 768
    %v5803 = vld [vmem:[%s5802] sm:$0xff]
    %v5804 = vld [vmem:[%s5802 + $0x8] sm:$0xff]
    %v5805 = vld [vmem:[%s5802 + $0x10] sm:$0xff]
    %v5806 = vld [vmem:[%s5802 + $0x18] sm:$0xff]
    %v5807 = vld [vmem:[%s5802 + $0x20] sm:$0xff]
    %v5808 = vld [vmem:[%s5802 + $0x28] sm:$0xff]
    %v5809 = vld [vmem:[%s5802 + $0x30] sm:$0xff]
    %v5810 = vld [vmem:[%s5802 + $0x38] sm:$0xff]
    %v5811 = vld [vmem:[%s5802 + $0x40] sm:$0xff]
    %v5812 = vld [vmem:[%s5802 + $0x48] sm:$0xff]
    %v5813 = vld [vmem:[%s5802 + $0x50] sm:$0xff]
    %v5814 = vld [vmem:[%s5802 + $0x58] sm:$0xff]
    %v5815 = vld [vmem:[%s5802 + $0x60] sm:$0xff]
    %v5816 = vld [vmem:[%s5802 + $0x68] sm:$0xff]
    %v5817 = vld [vmem:[%s5802 + $0x70] sm:$0xff]
    %v5818 = vld [vmem:[%s5802 + $0x78] sm:$0xff]
    %v5819 = vld [vmem:[%s5802 + $0x80] sm:$0xff]
    %v5820 = vld [vmem:[%s5802 + $0x88] sm:$0xff]
    %v5821 = vld [vmem:[%s5802 + $0x90] sm:$0xff]
    %v5822 = vld [vmem:[%s5802 + $0x98] sm:$0xff]
    %v5823 = vld [vmem:[%s5802 + $0xa0] sm:$0xff]
    %v5824 = vld [vmem:[%s5802 + $0xa8] sm:$0xff]
    %v5825 = vld [vmem:[%s5802 + $0xb0] sm:$0xff]
    %v5826 = vld [vmem:[%s5802 + $0xb8] sm:$0xff]
    %v5827 = vld [vmem:[%s5802 + $0xc0] sm:$0xff]
    %v5828 = vld [vmem:[%s5802 + $0xc8] sm:$0xff]
    %v5829 = vld [vmem:[%s5802 + $0xd0] sm:$0xff]
    %v5830 = vld [vmem:[%s5802 + $0xd8] sm:$0xff]
    %v5831 = vld [vmem:[%s5802 + $0xe0] sm:$0xff]
    %v5832 = vld [vmem:[%s5802 + $0xe8] sm:$0xff]
    %v5833 = vld [vmem:[%s5802 + $0xf0] sm:$0xff]
    %v5834 = vld [vmem:[%s5802 + $0xf8] sm:$0xff]
    %v5839 = vunpack.c.l.b16 %v5798
    %v5840 = vunpack.c.l.b16 %v5799
    %v5841 = vunpack.c.l.b16 %v5800
    %v5842 = vunpack.c.l.b16 %v5801
    %v5843 = vpack.c.b16 %v5840, %v5839
    %v5844 = vpack.c.b16 %v5842, %v5841
    %v5846 = vsel %vm188, %v5843, 0
    %v5849 = vsel %vm188, %v5844, 0
    %5851 = vmatprep.subr.bf16.mxu0 %v4746
    %5852 = vmatpush1.bf16.msra.mxu0 %v4745
    %5853 = vmatprep.subr.bf16.mxu0 %v4748
    %5854 = vmatpush1.bf16.msra.mxu0 %v4747
    %5855 = vmatprep.subr.bf16.mxu0 0
    %5856 = vmatpush1.bf16.msra.mxu0 0
    %5857 = vmatprep.subr.bf16.mxu0 0
    %5858 = vmatpush1.bf16.msra.mxu0 0
    %5859 = vmatprep.subr.bf16.mxu0 0
    %5860 = vmatpush1.bf16.msra.mxu0 0
    %5861 = vmatprep.subr.bf16.mxu0 0
    %5862 = vmatpush1.bf16.msra.mxu0 0
    %5863 = vmatprep.subr.bf16.mxu0 0
    %5864 = vmatpush1.bf16.msra.mxu0 0
    %5865 = vmatprep.subr.bf16.mxu0 0
    %5866 = vmatpush1.bf16.msra.mxu0 0
    %5867 = vmatprep.subr.bf16.mxu0 0
    %5868 = vmatpush1.bf16.msra.mxu0 0
    %5869 = vmatprep.subr.bf16.mxu0 0
    %5870 = vmatpush1.bf16.msra.mxu0 0
    %5871 = vmatprep.subr.bf16.mxu0 0
    %5872 = vmatpush1.bf16.msra.mxu0 0
    %5873 = vmatprep.subr.bf16.mxu0 0
    %5874 = vmatpush1.bf16.msra.mxu0 0
    %5875 = vmatprep.subr.bf16.mxu0 0
    %5876 = vmatpush1.bf16.msra.mxu0 0
    %5877 = vmatprep.subr.bf16.mxu0 0
    %5878 = vmatpush1.bf16.msra.mxu0 0
    %5879 = vmatprep.subr.bf16.mxu0 0
    %5880 = vmatpush1.bf16.msra.mxu0 0
    %5881 = vmatprep.subr.bf16.mxu0 0
    %5882 = vmatpush1.bf16.msra.mxu0 0
    %5883 = vmatprep.mubr.bf16.mxu0 0
    %5884 = vmatmul.mubr.bf16.gmra.mrb[0].mxu0 %v5846
    %v5885 = vpop.f32.mrb[0].mxu0
    %v5886 = vadd.f32 0.0, %v5885
    %v5887 = vpop.f32.mrb[0].mxu0
    %v5888 = vadd.f32 0.0, %v5887
    %v5889 = vpop.f32.mrb[0].mxu0
    %v5890 = vadd.f32 0.0, %v5889
    %v5891 = vpop.f32.mrb[0].mxu0
    %v5892 = vadd.f32 0.0, %v5891
    %5893 = vmatprep.mubr.bf16.mxu0 0
    %5894 = vmatmul.mubr.bf16.gmra.mrb[0].mxu0 %v5849
    %v5895 = vpop.f32.mrb[0].mxu0
    %v5896 = vadd.f32 0.0, %v5895
    %v5897 = vpop.f32.mrb[0].mxu0
    %v5898 = vadd.f32 0.0, %v5897
    %v5899 = vpop.f32.mrb[0].mxu0
    %v5900 = vadd.f32 0.0, %v5899
    %v5901 = vpop.f32.mrb[0].mxu0
    %v5902 = vadd.f32 0.0, %v5901
    %5903 = vdwg.mxu0
    %v5904 = vpack.c.bf16 %v5890, %v5886
    %v5905 = vpack.c.bf16 %v5892, %v5888
    %v5906 = vpack.c.bf16 %v5900, %v5896
    %v5907 = vpack.c.bf16 %v5902, %v5898
    %v5940 = vunpack.c.l.b16 %v5803
    %v5941 = vunpack.c.h.b16 %v5803
    %v5942 = vunpack.c.l.b16 %v5804
    %v5943 = vunpack.c.h.b16 %v5804
    %v5944 = vunpack.c.l.b16 %v5805
    %v5945 = vunpack.c.h.b16 %v5805
    %v5946 = vunpack.c.l.b16 %v5806
    %v5947 = vunpack.c.h.b16 %v5806
    %v5948 = vunpack.c.l.b16 %v5807
    %v5949 = vunpack.c.h.b16 %v5807
    %v5950 = vunpack.c.l.b16 %v5808
    %v5951 = vunpack.c.h.b16 %v5808
    %v5952 = vunpack.c.l.b16 %v5809
    %v5953 = vunpack.c.h.b16 %v5809
    %v5954 = vunpack.c.l.b16 %v5810
    %v5955 = vunpack.c.h.b16 %v5810
    %v5956 = vunpack.c.l.b16 %v5811
    %v5957 = vunpack.c.h.b16 %v5811
    %v5958 = vunpack.c.l.b16 %v5812
    %v5959 = vunpack.c.h.b16 %v5812
    %v5960 = vunpack.c.l.b16 %v5813
    %v5961 = vunpack.c.h.b16 %v5813
    %v5962 = vunpack.c.l.b16 %v5814
    %v5963 = vunpack.c.h.b16 %v5814
    %v5964 = vunpack.c.l.b16 %v5815
    %v5965 = vunpack.c.h.b16 %v5815
    %v5966 = vunpack.c.l.b16 %v5816
    %v5967 = vunpack.c.h.b16 %v5816
    %v5968 = vunpack.c.l.b16 %v5817
    %v5969 = vunpack.c.h.b16 %v5817
    %v5970 = vunpack.c.l.b16 %v5818
    %v5971 = vunpack.c.h.b16 %v5818
    %v5972 = vunpack.c.l.b16 %v5819
    %v5973 = vunpack.c.h.b16 %v5819
    %v5974 = vunpack.c.l.b16 %v5820
    %v5975 = vunpack.c.h.b16 %v5820
    %v5976 = vunpack.c.l.b16 %v5821
    %v5977 = vunpack.c.h.b16 %v5821
    %v5978 = vunpack.c.l.b16 %v5822
    %v5979 = vunpack.c.h.b16 %v5822
    %v5980 = vunpack.c.l.b16 %v5823
    %v5981 = vunpack.c.h.b16 %v5823
    %v5982 = vunpack.c.l.b16 %v5824
    %v5983 = vunpack.c.h.b16 %v5824
    %v5984 = vunpack.c.l.b16 %v5825
    %v5985 = vunpack.c.h.b16 %v5825
    %v5986 = vunpack.c.l.b16 %v5826
    %v5987 = vunpack.c.h.b16 %v5826
    %v5988 = vunpack.c.l.b16 %v5827
    %v5989 = vunpack.c.h.b16 %v5827
    %v5990 = vunpack.c.l.b16 %v5828
    %v5991 = vunpack.c.h.b16 %v5828
    %v5992 = vunpack.c.l.b16 %v5829
    %v5993 = vunpack.c.h.b16 %v5829
    %v5994 = vunpack.c.l.b16 %v5830
    %v5995 = vunpack.c.h.b16 %v5830
    %v5996 = vunpack.c.l.b16 %v5831
    %v5997 = vunpack.c.h.b16 %v5831
    %v5998 = vunpack.c.l.b16 %v5832
    %v5999 = vunpack.c.h.b16 %v5832
    %v6000 = vunpack.c.l.b16 %v5833
    %v6001 = vunpack.c.h.b16 %v5833
    %v6002 = vunpack.c.l.b16 %v5834
    %v6003 = vunpack.c.h.b16 %v5834
    %v6004 = vpack.c.b16 %v5942, %v5940
    %v6005 = vpack.c.b16 %v5943, %v5941
    %v6006 = vpack.c.b16 %v5946, %v5944
    %v6007 = vpack.c.b16 %v5947, %v5945
    %v6008 = vpack.c.b16 %v5950, %v5948
    %v6009 = vpack.c.b16 %v5951, %v5949
    %v6010 = vpack.c.b16 %v5954, %v5952
    %v6011 = vpack.c.b16 %v5955, %v5953
    %v6012 = vpack.c.b16 %v5958, %v5956
    %v6013 = vpack.c.b16 %v5959, %v5957
    %v6014 = vpack.c.b16 %v5962, %v5960
    %v6015 = vpack.c.b16 %v5963, %v5961
    %v6016 = vpack.c.b16 %v5966, %v5964
    %v6017 = vpack.c.b16 %v5967, %v5965
    %v6018 = vpack.c.b16 %v5970, %v5968
    %v6019 = vpack.c.b16 %v5971, %v5969
    %v6020 = vpack.c.b16 %v5974, %v5972
    %v6021 = vpack.c.b16 %v5975, %v5973
    %v6022 = vpack.c.b16 %v5978, %v5976
    %v6023 = vpack.c.b16 %v5979, %v5977
    %v6024 = vpack.c.b16 %v5982, %v5980
    %v6025 = vpack.c.b16 %v5983, %v5981
    %v6026 = vpack.c.b16 %v5986, %v5984
    %v6027 = vpack.c.b16 %v5987, %v5985
    %v6028 = vpack.c.b16 %v5990, %v5988
    %v6029 = vpack.c.b16 %v5991, %v5989
    %v6030 = vpack.c.b16 %v5994, %v5992
    %v6031 = vpack.c.b16 %v5995, %v5993
    %v6032 = vpack.c.b16 %v5998, %v5996
    %v6033 = vpack.c.b16 %v5999, %v5997
    %v6034 = vpack.c.b16 %v6002, %v6000
    %v6035 = vpack.c.b16 %v6003, %v6001
    %6068 = vmatprep.subr.bf16.mxu0 %v6005
    %6069 = vmatpush1.bf16.msra.mxu0 %v6004
    %6070 = vmatprep.subr.bf16.mxu0 %v6007
    %6071 = vmatpush1.bf16.msra.mxu0 %v6006
    %6072 = vmatprep.subr.bf16.mxu0 %v6009
    %6073 = vmatpush1.bf16.msra.mxu0 %v6008
    %6074 = vmatprep.subr.bf16.mxu0 %v6011
    %6075 = vmatpush1.bf16.msra.mxu0 %v6010
    %6076 = vmatprep.subr.bf16.mxu0 %v6013
    %6077 = vmatpush1.bf16.msra.mxu0 %v6012
    %6078 = vmatprep.subr.bf16.mxu0 %v6015
    %6079 = vmatpush1.bf16.msra.mxu0 %v6014
    %6080 = vmatprep.subr.bf16.mxu0 %v6017
    %6081 = vmatpush1.bf16.msra.mxu0 %v6016
    %6082 = vmatprep.subr.bf16.mxu0 %v6019
    %6083 = vmatpush1.bf16.msra.mxu0 %v6018
    %6084 = vmatprep.subr.bf16.mxu0 %v6021
    %6085 = vmatpush1.bf16.msra.mxu0 %v6020
    %6086 = vmatprep.subr.bf16.mxu0 %v6023
    %6087 = vmatpush1.bf16.msra.mxu0 %v6022
    %6088 = vmatprep.subr.bf16.mxu0 %v6025
    %6089 = vmatpush1.bf16.msra.mxu0 %v6024
    %6090 = vmatprep.subr.bf16.mxu0 %v6027
    %6091 = vmatpush1.bf16.msra.mxu0 %v6026
    %6092 = vmatprep.subr.bf16.mxu0 %v6029
    %6093 = vmatpush1.bf16.msra.mxu0 %v6028
    %6094 = vmatprep.subr.bf16.mxu0 %v6031
    %6095 = vmatpush1.bf16.msra.mxu0 %v6030
    %6096 = vmatprep.subr.bf16.mxu0 %v6033
    %6097 = vmatpush1.bf16.msra.mxu0 %v6032
    %6098 = vmatprep.subr.bf16.mxu0 %v6035
    %6099 = vmatpush1.bf16.msra.mxu0 %v6034
    %6100 = vmatprep.mubr.bf16.mxu0 %v5905
    %6101 = vmatmul.mubr.bf16.gmra.mrb[0].mxu0 %v5904
    %v6102 = vpop.f32.mrb[0].mxu0
    %v6103 = vadd.f32 0.0, %v6102
    %v6104 = vpop.f32.mrb[0].mxu0
    %v6105 = vadd.f32 0.0, %v6104
    %v6106 = vpop.f32.mrb[0].mxu0
    %v6107 = vadd.f32 0.0, %v6106
    %v6108 = vpop.f32.mrb[0].mxu0
    %v6109 = vadd.f32 0.0, %v6108
    %6110 = vmatprep.mubr.bf16.mxu0 %v5907
    %6111 = vmatmul.mubr.bf16.gmra.mrb[0].mxu0 %v5906
    %v6112 = vpop.f32.mrb[0].mxu0
    %v6113 = vadd.f32 0.0, %v6112
    %v6114 = vpop.f32.mrb[0].mxu0
    %v6115 = vadd.f32 0.0, %v6114
    %v6116 = vpop.f32.mrb[0].mxu0
    %v6117 = vadd.f32 0.0, %v6116
    %v6118 = vpop.f32.mrb[0].mxu0
    %v6119 = vadd.f32 0.0, %v6118
    %6120 = vdwg.mxu0
    %6121 = vmatprep.subr.bf16.mxu0 %v5036
    %6122 = vmatpush1.bf16.msra.mxu0 %v5035
    %6123 = vmatprep.subr.bf16.mxu0 %v5038
    %6124 = vmatpush1.bf16.msra.mxu0 %v5037
    %6125 = vmatprep.subr.bf16.mxu0 0
    %6126 = vmatpush1.bf16.msra.mxu0 0
    %6127 = vmatprep.subr.bf16.mxu0 0
    %6128 = vmatpush1.bf16.msra.mxu0 0
    %6129 = vmatprep.subr.bf16.mxu0 0
    %6130 = vmatpush1.bf16.msra.mxu0 0
    %6131 = vmatprep.subr.bf16.mxu0 0
    %6132 = vmatpush1.bf16.msra.mxu0 0
    %6133 = vmatprep.subr.bf16.mxu0 0
    %6134 = vmatpush1.bf16.msra.mxu0 0
    %6135 = vmatprep.subr.bf16.mxu0 0
    %6136 = vmatpush1.bf16.msra.mxu0 0
    %6137 = vmatprep.subr.bf16.mxu0 0
    %6138 = vmatpush1.bf16.msra.mxu0 0
    %6139 = vmatprep.subr.bf16.mxu0 0
    %6140 = vmatpush1.bf16.msra.mxu0 0
    %6141 = vmatprep.subr.bf16.mxu0 0
    %6142 = vmatpush1.bf16.msra.mxu0 0
    %6143 = vmatprep.subr.bf16.mxu0 0
    %6144 = vmatpush1.bf16.msra.mxu0 0
    %6145 = vmatprep.subr.bf16.mxu0 0
    %6146 = vmatpush1.bf16.msra.mxu0 0
    %6147 = vmatprep.subr.bf16.mxu0 0
    %6148 = vmatpush1.bf16.msra.mxu0 0
    %6149 = vmatprep.subr.bf16.mxu0 0
    %6150 = vmatpush1.bf16.msra.mxu0 0
    %6151 = vmatprep.subr.bf16.mxu0 0
    %6152 = vmatpush1.bf16.msra.mxu0 0
    %6153 = vmatprep.mubr.bf16.mxu0 0
    %6154 = vmatmul.mubr.bf16.gmra.mrb[0].mxu0 %v5846
    %v6155 = vpop.f32.mrb[0].mxu0
    %v6156 = vadd.f32 0.0, %v6155
    %v6157 = vpop.f32.mrb[0].mxu0
    %v6158 = vadd.f32 0.0, %v6157
    %v6159 = vpop.f32.mrb[0].mxu0
    %v6160 = vadd.f32 0.0, %v6159
    %v6161 = vpop.f32.mrb[0].mxu0
    %v6162 = vadd.f32 0.0, %v6161
    %6163 = vmatprep.mubr.bf16.mxu0 0
    %6164 = vmatmul.mubr.bf16.gmra.mrb[0].mxu0 %v5849
    %v6165 = vpop.f32.mrb[0].mxu0
    %v6166 = vadd.f32 0.0, %v6165
    %v6167 = vpop.f32.mrb[0].mxu0
    %v6168 = vadd.f32 0.0, %v6167
    %v6169 = vpop.f32.mrb[0].mxu0
    %v6170 = vadd.f32 0.0, %v6169
    %v6171 = vpop.f32.mrb[0].mxu0
    %v6172 = vadd.f32 0.0, %v6171
    %6173 = vdwg.mxu0
    %v6174 = vpack.c.bf16 %v6160, %v6156
    %v6175 = vpack.c.bf16 %v6162, %v6158
    %v6176 = vpack.c.bf16 %v6170, %v6166
    %v6177 = vpack.c.bf16 %v6172, %v6168
    %6178 = vmatprep.subr.bf16.mxu0 %v6005
    %6179 = vmatpush1.bf16.msra.mxu0 %v6004
    %6180 = vmatprep.subr.bf16.mxu0 %v6007
    %6181 = vmatpush1.bf16.msra.mxu0 %v6006
    %6182 = vmatprep.subr.bf16.mxu0 %v6009
    %6183 = vmatpush1.bf16.msra.mxu0 %v6008
    %6184 = vmatprep.subr.bf16.mxu0 %v6011
    %6185 = vmatpush1.bf16.msra.mxu0 %v6010
    %6186 = vmatprep.subr.bf16.mxu0 %v6013
    %6187 = vmatpush1.bf16.msra.mxu0 %v6012
    %6188 = vmatprep.subr.bf16.mxu0 %v6015
    %6189 = vmatpush1.bf16.msra.mxu0 %v6014
    %6190 = vmatprep.subr.bf16.mxu0 %v6017
    %6191 = vmatpush1.bf16.msra.mxu0 %v6016
    %6192 = vmatprep.subr.bf16.mxu0 %v6019
    %6193 = vmatpush1.bf16.msra.mxu0 %v6018
    %6194 = vmatprep.subr.bf16.mxu0 %v6021
    %6195 = vmatpush1.bf16.msra.mxu0 %v6020
    %6196 = vmatprep.subr.bf16.mxu0 %v6023
    %6197 = vmatpush1.bf16.msra.mxu0 %v6022
    %6198 = vmatprep.subr.bf16.mxu0 %v6025
    %6199 = vmatpush1.bf16.msra.mxu0 %v6024
    %6200 = vmatprep.subr.bf16.mxu0 %v6027
    %6201 = vmatpush1.bf16.msra.mxu0 %v6026
    %6202 = vmatprep.subr.bf16.mxu0 %v6029
    %6203 = vmatpush1.bf16.msra.mxu0 %v6028
    %6204 = vmatprep.subr.bf16.mxu0 %v6031
    %6205 = vmatpush1.bf16.msra.mxu0 %v6030
    %6206 = vmatprep.subr.bf16.mxu0 %v6033
    %6207 = vmatpush1.bf16.msra.mxu0 %v6032
    %6208 = vmatprep.subr.bf16.mxu0 %v6035
    %6209 = vmatpush1.bf16.msra.mxu0 %v6034
    %6210 = vmatprep.mubr.bf16.mxu0 %v6175
    %6211 = vmatmul.mubr.bf16.gmra.mrb[0].mxu0 %v6174
    %v6212 = vpop.f32.mrb[0].mxu0
    %v6213 = vadd.f32 0.0, %v6212
    %v6214 = vpop.f32.mrb[0].mxu0
    %v6215 = vadd.f32 0.0, %v6214
    %v6216 = vpop.f32.mrb[0].mxu0
    %v6217 = vadd.f32 0.0, %v6216
    %v6218 = vpop.f32.mrb[0].mxu0
    %v6219 = vadd.f32 0.0, %v6218
    %6220 = vmatprep.mubr.bf16.mxu0 %v6177
    %6221 = vmatmul.mubr.bf16.gmra.mrb[0].mxu0 %v6176
    %v6222 = vpop.f32.mrb[0].mxu0
    %v6223 = vadd.f32 0.0, %v6222
    %v6224 = vpop.f32.mrb[0].mxu0
    %v6225 = vadd.f32 0.0, %v6224
    %v6226 = vpop.f32.mrb[0].mxu0
    %v6227 = vadd.f32 0.0, %v6226
    %v6228 = vpop.f32.mrb[0].mxu0
    %v6229 = vadd.f32 0.0, %v6228
    %6230 = vdwg.mxu0
    %s6231 = scalar_lea.vmem [#allocation7], 64
    %v6232 = vld [vmem:[%s6231] sm:$0xf]
    %v6233 = vld [vmem:[%s6231 + $0x4] sm:$0xf]
    %v6234 = vld [vmem:[%s6231 + $0x8] sm:$0xf]
    %v6235 = vld [vmem:[%s6231 + $0xc] sm:$0xf]
    %s6236 = scalar_lea.vmem [#allocation8], 1024
    %v6237 = vld [vmem:[%s6236] sm:$0xff]
    %v6238 = vld [vmem:[%s6236 + $0x8] sm:$0xff]
    %v6239 = vld [vmem:[%s6236 + $0x10] sm:$0xff]
    %v6240 = vld [vmem:[%s6236 + $0x18] sm:$0xff]
    %v6241 = vld [vmem:[%s6236 + $0x20] sm:$0xff]
    %v6242 = vld [vmem:[%s6236 + $0x28] sm:$0xff]
    %v6243 = vld [vmem:[%s6236 + $0x30] sm:$0xff]
    %v6244 = vld [vmem:[%s6236 + $0x38] sm:$0xff]
    %v6245 = vld [vmem:[%s6236 + $0x40] sm:$0xff]
    %v6246 = vld [vmem:[%s6236 + $0x48] sm:$0xff]
    %v6247 = vld [vmem:[%s6236 + $0x50] sm:$0xff]
    %v6248 = vld [vmem:[%s6236 + $0x58] sm:$0xff]
    %v6249 = vld [vmem:[%s6236 + $0x60] sm:$0xff]
    %v6250 = vld [vmem:[%s6236 + $0x68] sm:$0xff]
    %v6251 = vld [vmem:[%s6236 + $0x70] sm:$0xff]
    %v6252 = vld [vmem:[%s6236 + $0x78] sm:$0xff]
    %v6253 = vld [vmem:[%s6236 + $0x80] sm:$0xff]
    %v6254 = vld [vmem:[%s6236 + $0x88] sm:$0xff]
    %v6255 = vld [vmem:[%s6236 + $0x90] sm:$0xff]
    %v6256 = vld [vmem:[%s6236 + $0x98] sm:$0xff]
    %v6257 = vld [vmem:[%s6236 + $0xa0] sm:$0xff]
    %v6258 = vld [vmem:[%s6236 + $0xa8] sm:$0xff]
    %v6259 = vld [vmem:[%s6236 + $0xb0] sm:$0xff]
    %v6260 = vld [vmem:[%s6236 + $0xb8] sm:$0xff]
    %v6261 = vld [vmem:[%s6236 + $0xc0] sm:$0xff]
    %v6262 = vld [vmem:[%s6236 + $0xc8] sm:$0xff]
    %v6263 = vld [vmem:[%s6236 + $0xd0] sm:$0xff]
    %v6264 = vld [vmem:[%s6236 + $0xd8] sm:$0xff]
    %v6265 = vld [vmem:[%s6236 + $0xe0] sm:$0xff]
    %v6266 = vld [vmem:[%s6236 + $0xe8] sm:$0xff]
    %v6267 = vld [vmem:[%s6236 + $0xf0] sm:$0xff]
    %v6268 = vld [vmem:[%s6236 + $0xf8] sm:$0xff]
    %v6269 = vpack.c.bf16 %v6107, %v6103
    %v6270 = vpack.c.bf16 %v6109, %v6105
    %v6271 = vpack.c.bf16 %v6117, %v6113
    %v6272 = vpack.c.bf16 %v6119, %v6115
    %v6277 = vunpack.c.l.b16 %v6232
    %v6278 = vunpack.c.l.b16 %v6233
    %v6279 = vunpack.c.l.b16 %v6234
    %v6280 = vunpack.c.l.b16 %v6235
    %v6281 = vpack.c.b16 %v6278, %v6277
    %v6282 = vpack.c.b16 %v6280, %v6279
    %v6284 = vsel %vm188, %v6281, 0
    %v6287 = vsel %vm188, %v6282, 0
    %6289 = vmatprep.subr.bf16.mxu0 %v6270
    %6290 = vmatpush1.bf16.msra.mxu0 %v6269
    %6291 = vmatprep.subr.bf16.mxu0 %v6272
    %6292 = vmatpush1.bf16.msra.mxu0 %v6271
    %6293 = vmatprep.subr.bf16.mxu0 0
    %6294 = vmatpush1.bf16.msra.mxu0 0
    %6295 = vmatprep.subr.bf16.mxu0 0
    %6296 = vmatpush1.bf16.msra.mxu0 0
    %6297 = vmatprep.subr.bf16.mxu0 0
    %6298 = vmatpush1.bf16.msra.mxu0 0
    %6299 = vmatprep.subr.bf16.mxu0 0
    %6300 = vmatpush1.bf16.msra.mxu0 0
    %6301 = vmatprep.subr.bf16.mxu0 0
    %6302 = vmatpush1.bf16.msra.mxu0 0
    %6303 = vmatprep.subr.bf16.mxu0 0
    %6304 = vmatpush1.bf16.msra.mxu0 0
    %6305 = vmatprep.subr.bf16.mxu0 0
    %6306 = vmatpush1.bf16.msra.mxu0 0
    %6307 = vmatprep.subr.bf16.mxu0 0
    %6308 = vmatpush1.bf16.msra.mxu0 0
    %6309 = vmatprep.subr.bf16.mxu0 0
    %6310 = vmatpush1.bf16.msra.mxu0 0
    %6311 = vmatprep.subr.bf16.mxu0 0
    %6312 = vmatpush1.bf16.msra.mxu0 0
    %6313 = vmatprep.subr.bf16.mxu0 0
    %6314 = vmatpush1.bf16.msra.mxu0 0
    %6315 = vmatprep.subr.bf16.mxu0 0
    %6316 = vmatpush1.bf16.msra.mxu0 0
    %6317 = vmatprep.subr.bf16.mxu0 0
    %6318 = vmatpush1.bf16.msra.mxu0 0
    %6319 = vmatprep.subr.bf16.mxu0 0
    %6320 = vmatpush1.bf16.msra.mxu0 0
    %6321 = vmatprep.mubr.bf16.mxu0 0
    %6322 = vmatmul.mubr.bf16.gmra.mrb[0].mxu0 %v6284
    %v6323 = vpop.f32.mrb[0].mxu0
    %v6324 = vadd.f32 0.0, %v6323
    %v6325 = vpop.f32.mrb[0].mxu0
    %v6326 = vadd.f32 0.0, %v6325
    %v6327 = vpop.f32.mrb[0].mxu0
    %v6328 = vadd.f32 0.0, %v6327
    %v6329 = vpop.f32.mrb[0].mxu0
    %v6330 = vadd.f32 0.0, %v6329
    %6331 = vmatprep.mubr.bf16.mxu0 0
    %6332 = vmatmul.mubr.bf16.gmra.mrb[0].mxu0 %v6287
    %v6333 = vpop.f32.mrb[0].mxu0
    %v6334 = vadd.f32 0.0, %v6333
    %v6335 = vpop.f32.mrb[0].mxu0
    %v6336 = vadd.f32 0.0, %v6335
    %v6337 = vpop.f32.mrb[0].mxu0
    %v6338 = vadd.f32 0.0, %v6337
    %v6339 = vpop.f32.mrb[0].mxu0
    %v6340 = vadd.f32 0.0, %v6339
    %6341 = vdwg.mxu0
    %v6342 = vpack.c.bf16 %v6328, %v6324
    %v6343 = vpack.c.bf16 %v6330, %v6326
    %v6344 = vpack.c.bf16 %v6338, %v6334
    %v6345 = vpack.c.bf16 %v6340, %v6336
    %v6378 = vunpack.c.l.b16 %v6237
    %v6379 = vunpack.c.h.b16 %v6237
    %v6380 = vunpack.c.l.b16 %v6238
    %v6381 = vunpack.c.h.b16 %v6238
    %v6382 = vunpack.c.l.b16 %v6239
    %v6383 = vunpack.c.h.b16 %v6239
    %v6384 = vunpack.c.l.b16 %v6240
    %v6385 = vunpack.c.h.b16 %v6240
    %v6386 = vunpack.c.l.b16 %v6241
    %v6387 = vunpack.c.h.b16 %v6241
    %v6388 = vunpack.c.l.b16 %v6242
    %v6389 = vunpack.c.h.b16 %v6242
    %v6390 = vunpack.c.l.b16 %v6243
    %v6391 = vunpack.c.h.b16 %v6243
    %v6392 = vunpack.c.l.b16 %v6244
    %v6393 = vunpack.c.h.b16 %v6244
    %v6394 = vunpack.c.l.b16 %v6245
    %v6395 = vunpack.c.h.b16 %v6245
    %v6396 = vunpack.c.l.b16 %v6246
    %v6397 = vunpack.c.h.b16 %v6246
    %v6398 = vunpack.c.l.b16 %v6247
    %v6399 = vunpack.c.h.b16 %v6247
    %v6400 = vunpack.c.l.b16 %v6248
    %v6401 = vunpack.c.h.b16 %v6248
    %v6402 = vunpack.c.l.b16 %v6249
    %v6403 = vunpack.c.h.b16 %v6249
    %v6404 = vunpack.c.l.b16 %v6250
    %v6405 = vunpack.c.h.b16 %v6250
    %v6406 = vunpack.c.l.b16 %v6251
    %v6407 = vunpack.c.h.b16 %v6251
    %v6408 = vunpack.c.l.b16 %v6252
    %v6409 = vunpack.c.h.b16 %v6252
    %v6410 = vunpack.c.l.b16 %v6253
    %v6411 = vunpack.c.h.b16 %v6253
    %v6412 = vunpack.c.l.b16 %v6254
    %v6413 = vunpack.c.h.b16 %v6254
    %v6414 = vunpack.c.l.b16 %v6255
    %v6415 = vunpack.c.h.b16 %v6255
    %v6416 = vunpack.c.l.b16 %v6256
    %v6417 = vunpack.c.h.b16 %v6256
    %v6418 = vunpack.c.l.b16 %v6257
    %v6419 = vunpack.c.h.b16 %v6257
    %v6420 = vunpack.c.l.b16 %v6258
    %v6421 = vunpack.c.h.b16 %v6258
    %v6422 = vunpack.c.l.b16 %v6259
    %v6423 = vunpack.c.h.b16 %v6259
    %v6424 = vunpack.c.l.b16 %v6260
    %v6425 = vunpack.c.h.b16 %v6260
    %v6426 = vunpack.c.l.b16 %v6261
    %v6427 = vunpack.c.h.b16 %v6261
    %v6428 = vunpack.c.l.b16 %v6262
    %v6429 = vunpack.c.h.b16 %v6262
    %v6430 = vunpack.c.l.b16 %v6263
    %v6431 = vunpack.c.h.b16 %v6263
    %v6432 = vunpack.c.l.b16 %v6264
    %v6433 = vunpack.c.h.b16 %v6264
    %v6434 = vunpack.c.l.b16 %v6265
    %v6435 = vunpack.c.h.b16 %v6265
    %v6436 = vunpack.c.l.b16 %v6266
    %v6437 = vunpack.c.h.b16 %v6266
    %v6438 = vunpack.c.l.b16 %v6267
    %v6439 = vunpack.c.h.b16 %v6267
    %v6440 = vunpack.c.l.b16 %v6268
    %v6441 = vunpack.c.h.b16 %v6268
    %v6442 = vpack.c.b16 %v6380, %v6378
    %v6443 = vpack.c.b16 %v6381, %v6379
    %v6444 = vpack.c.b16 %v6384, %v6382
    %v6445 = vpack.c.b16 %v6385, %v6383
    %v6446 = vpack.c.b16 %v6388, %v6386
    %v6447 = vpack.c.b16 %v6389, %v6387
    %v6448 = vpack.c.b16 %v6392, %v6390
    %v6449 = vpack.c.b16 %v6393, %v6391
    %v6450 = vpack.c.b16 %v6396, %v6394
    %v6451 = vpack.c.b16 %v6397, %v6395
    %v6452 = vpack.c.b16 %v6400, %v6398
    %v6453 = vpack.c.b16 %v6401, %v6399
    %v6454 = vpack.c.b16 %v6404, %v6402
    %v6455 = vpack.c.b16 %v6405, %v6403
    %v6456 = vpack.c.b16 %v6408, %v6406
    %v6457 = vpack.c.b16 %v6409, %v6407
    %v6458 = vpack.c.b16 %v6412, %v6410
    %v6459 = vpack.c.b16 %v6413, %v6411
    %v6460 = vpack.c.b16 %v6416, %v6414
    %v6461 = vpack.c.b16 %v6417, %v6415
    %v6462 = vpack.c.b16 %v6420, %v6418
    %v6463 = vpack.c.b16 %v6421, %v6419
    %v6464 = vpack.c.b16 %v6424, %v6422
    %v6465 = vpack.c.b16 %v6425, %v6423
    %v6466 = vpack.c.b16 %v6428, %v6426
    %v6467 = vpack.c.b16 %v6429, %v6427
    %v6468 = vpack.c.b16 %v6432, %v6430
    %v6469 = vpack.c.b16 %v6433, %v6431
    %v6470 = vpack.c.b16 %v6436, %v6434
    %v6471 = vpack.c.b16 %v6437, %v6435
    %v6472 = vpack.c.b16 %v6440, %v6438
    %v6473 = vpack.c.b16 %v6441, %v6439
    %6506 = vmatprep.subr.bf16.mxu0 %v6443
    %6507 = vmatpush1.bf16.msra.mxu0 %v6442
    %6508 = vmatprep.subr.bf16.mxu0 %v6445
    %6509 = vmatpush1.bf16.msra.mxu0 %v6444
    %6510 = vmatprep.subr.bf16.mxu0 %v6447
    %6511 = vmatpush1.bf16.msra.mxu0 %v6446
    %6512 = vmatprep.subr.bf16.mxu0 %v6449
    %6513 = vmatpush1.bf16.msra.mxu0 %v6448
    %6514 = vmatprep.subr.bf16.mxu0 %v6451
    %6515 = vmatpush1.bf16.msra.mxu0 %v6450
    %6516 = vmatprep.subr.bf16.mxu0 %v6453
    %6517 = vmatpush1.bf16.msra.mxu0 %v6452
    %6518 = vmatprep.subr.bf16.mxu0 %v6455
    %6519 = vmatpush1.bf16.msra.mxu0 %v6454
    %6520 = vmatprep.subr.bf16.mxu0 %v6457
    %6521 = vmatpush1.bf16.msra.mxu0 %v6456
    %6522 = vmatprep.subr.bf16.mxu0 %v6459
    %6523 = vmatpush1.bf16.msra.mxu0 %v6458
    %6524 = vmatprep.subr.bf16.mxu0 %v6461
    %6525 = vmatpush1.bf16.msra.mxu0 %v6460
    %6526 = vmatprep.subr.bf16.mxu0 %v6463
    %6527 = vmatpush1.bf16.msra.mxu0 %v6462
    %6528 = vmatprep.subr.bf16.mxu0 %v6465
    %6529 = vmatpush1.bf16.msra.mxu0 %v6464
    %6530 = vmatprep.subr.bf16.mxu0 %v6467
    %6531 = vmatpush1.bf16.msra.mxu0 %v6466
    %6532 = vmatprep.subr.bf16.mxu0 %v6469
    %6533 = vmatpush1.bf16.msra.mxu0 %v6468
    %6534 = vmatprep.subr.bf16.mxu0 %v6471
    %6535 = vmatpush1.bf16.msra.mxu0 %v6470
    %6536 = vmatprep.subr.bf16.mxu0 %v6473
    %6537 = vmatpush1.bf16.msra.mxu0 %v6472
    %6538 = vmatprep.mubr.bf16.mxu0 %v6343
    %6539 = vmatmul.mubr.bf16.gmra.mrb[0].mxu0 %v6342
    %v6540 = vpop.f32.mrb[0].mxu0
    %v6541 = vadd.f32 0.0, %v6540
    %v6542 = vpop.f32.mrb[0].mxu0
    %v6543 = vadd.f32 0.0, %v6542
    %v6544 = vpop.f32.mrb[0].mxu0
    %v6545 = vadd.f32 0.0, %v6544
    %v6546 = vpop.f32.mrb[0].mxu0
    %v6547 = vadd.f32 0.0, %v6546
    %6548 = vmatprep.mubr.bf16.mxu0 %v6345
    %6549 = vmatmul.mubr.bf16.gmra.mrb[0].mxu0 %v6344
    %v6550 = vpop.f32.mrb[0].mxu0
    %v6551 = vadd.f32 0.0, %v6550
    %v6552 = vpop.f32.mrb[0].mxu0
    %v6553 = vadd.f32 0.0, %v6552
    %v6554 = vpop.f32.mrb[0].mxu0
    %v6555 = vadd.f32 0.0, %v6554
    %v6556 = vpop.f32.mrb[0].mxu0
    %v6557 = vadd.f32 0.0, %v6556
    %6558 = vdwg.mxu0
    %v6559 = vpack.c.bf16 %v6217, %v6213
    %v6560 = vpack.c.bf16 %v6219, %v6215
    %v6561 = vpack.c.bf16 %v6227, %v6223
    %v6562 = vpack.c.bf16 %v6229, %v6225
    %6563 = vmatprep.subr.bf16.mxu0 %v6560
    %6564 = vmatpush1.bf16.msra.mxu0 %v6559
    %6565 = vmatprep.subr.bf16.mxu0 %v6562
    %6566 = vmatpush1.bf16.msra.mxu0 %v6561
    %6567 = vmatprep.subr.bf16.mxu0 0
    %6568 = vmatpush1.bf16.msra.mxu0 0
    %6569 = vmatprep.subr.bf16.mxu0 0
    %6570 = vmatpush1.bf16.msra.mxu0 0
    %6571 = vmatprep.subr.bf16.mxu0 0
    %6572 = vmatpush1.bf16.msra.mxu0 0
    %6573 = vmatprep.subr.bf16.mxu0 0
    %6574 = vmatpush1.bf16.msra.mxu0 0
    %6575 = vmatprep.subr.bf16.mxu0 0
    %6576 = vmatpush1.bf16.msra.mxu0 0
    %6577 = vmatprep.subr.bf16.mxu0 0
    %6578 = vmatpush1.bf16.msra.mxu0 0
    %6579 = vmatprep.subr.bf16.mxu0 0
    %6580 = vmatpush1.bf16.msra.mxu0 0
    %6581 = vmatprep.subr.bf16.mxu0 0
    %6582 = vmatpush1.bf16.msra.mxu0 0
    %6583 = vmatprep.subr.bf16.mxu0 0
    %6584 = vmatpush1.bf16.msra.mxu0 0
    %6585 = vmatprep.subr.bf16.mxu0 0
    %6586 = vmatpush1.bf16.msra.mxu0 0
    %6587 = vmatprep.subr.bf16.mxu0 0
    %6588 = vmatpush1.bf16.msra.mxu0 0
    %6589 = vmatprep.subr.bf16.mxu0 0
    %6590 = vmatpush1.bf16.msra.mxu0 0
    %6591 = vmatprep.subr.bf16.mxu0 0
    %6592 = vmatpush1.bf16.msra.mxu0 0
    %6593 = vmatprep.subr.bf16.mxu0 0
    %6594 = vmatpush1.bf16.msra.mxu0 0
    %6595 = vmatprep.mubr.bf16.mxu0 0
    %6596 = vmatmul.mubr.bf16.gmra.mrb[0].mxu0 %v6284
    %v6597 = vpop.f32.mrb[0].mxu0
    %v6598 = vadd.f32 0.0, %v6597
    %v6599 = vpop.f32.mrb[0].mxu0
    %v6600 = vadd.f32 0.0, %v6599
    %v6601 = vpop.f32.mrb[0].mxu0
    %v6602 = vadd.f32 0.0, %v6601
    %v6603 = vpop.f32.mrb[0].mxu0
    %v6604 = vadd.f32 0.0, %v6603
    %6605 = vmatprep.mubr.bf16.mxu0 0
    %6606 = vmatmul.mubr.bf16.gmra.mrb[0].mxu0 %v6287
    %v6607 = vpop.f32.mrb[0].mxu0
    %v6608 = vadd.f32 0.0, %v6607
    %v6609 = vpop.f32.mrb[0].mxu0
    %v6610 = vadd.f32 0.0, %v6609
    %v6611 = vpop.f32.mrb[0].mxu0
    %v6612 = vadd.f32 0.0, %v6611
    %v6613 = vpop.f32.mrb[0].mxu0
    %v6614 = vadd.f32 0.0, %v6613
    %6615 = vdwg.mxu0
    %v6616 = vpack.c.bf16 %v6602, %v6598
    %v6617 = vpack.c.bf16 %v6604, %v6600
    %v6618 = vpack.c.bf16 %v6612, %v6608
    %v6619 = vpack.c.bf16 %v6614, %v6610
    %6620 = vmatprep.subr.bf16.mxu0 %v6443
    %6621 = vmatpush1.bf16.msra.mxu0 %v6442
    %6622 = vmatprep.subr.bf16.mxu0 %v6445
    %6623 = vmatpush1.bf16.msra.mxu0 %v6444
    %6624 = vmatprep.subr.bf16.mxu0 %v6447
    %6625 = vmatpush1.bf16.msra.mxu0 %v6446
    %6626 = vmatprep.subr.bf16.mxu0 %v6449
    %6627 = vmatpush1.bf16.msra.mxu0 %v6448
    %6628 = vmatprep.subr.bf16.mxu0 %v6451
    %6629 = vmatpush1.bf16.msra.mxu0 %v6450
    %6630 = vmatprep.subr.bf16.mxu0 %v6453
    %6631 = vmatpush1.bf16.msra.mxu0 %v6452
    %6632 = vmatprep.subr.bf16.mxu0 %v6455
    %6633 = vmatpush1.bf16.msra.mxu0 %v6454
    %6634 = vmatprep.subr.bf16.mxu0 %v6457
    %6635 = vmatpush1.bf16.msra.mxu0 %v6456
    %6636 = vmatprep.subr.bf16.mxu0 %v6459
    %6637 = vmatpush1.bf16.msra.mxu0 %v6458
    %6638 = vmatprep.subr.bf16.mxu0 %v6461
    %6639 = vmatpush1.bf16.msra.mxu0 %v6460
    %6640 = vmatprep.subr.bf16.mxu0 %v6463
    %6641 = vmatpush1.bf16.msra.mxu0 %v6462
    %6642 = vmatprep.subr.bf16.mxu0 %v6465
    %6643 = vmatpush1.bf16.msra.mxu0 %v6464
    %6644 = vmatprep.subr.bf16.mxu0 %v6467
    %6645 = vmatpush1.bf16.msra.mxu0 %v6466
    %6646 = vmatprep.subr.bf16.mxu0 %v6469
    %6647 = vmatpush1.bf16.msra.mxu0 %v6468
    %6648 = vmatprep.subr.bf16.mxu0 %v6471
    %6649 = vmatpush1.bf16.msra.mxu0 %v6470
    %6650 = vmatprep.subr.bf16.mxu0 %v6473
    %6651 = vmatpush1.bf16.msra.mxu0 %v6472
    %6652 = vmatprep.mubr.bf16.mxu0 %v6617
    %6653 = vmatmul.mubr.bf16.gmra.mrb[0].mxu0 %v6616
    %v6654 = vpop.f32.mrb[0].mxu0
    %v6655 = vadd.f32 0.0, %v6654
    %v6656 = vpop.f32.mrb[0].mxu0
    %v6657 = vadd.f32 0.0, %v6656
    %v6658 = vpop.f32.mrb[0].mxu0
    %v6659 = vadd.f32 0.0, %v6658
    %v6660 = vpop.f32.mrb[0].mxu0
    %v6661 = vadd.f32 0.0, %v6660
    %6662 = vmatprep.mubr.bf16.mxu0 %v6619
    %6663 = vmatmul.mubr.bf16.gmra.mrb[0].mxu0 %v6618
    %v6664 = vpop.f32.mrb[0].mxu0
    %v6665 = vadd.f32 0.0, %v6664
    %v6666 = vpop.f32.mrb[0].mxu0
    %v6667 = vadd.f32 0.0, %v6666
    %v6668 = vpop.f32.mrb[0].mxu0
    %v6669 = vadd.f32 0.0, %v6668
    %v6670 = vpop.f32.mrb[0].mxu0
    %v6671 = vadd.f32 0.0, %v6670
    %6672 = vdwg.mxu0
    %v6673 = vmul.f32 %v6103, %v6103
    %v6674 = vmul.f32 %v6105, %v6105
    %v6675 = vmul.f32 %v6107, %v6107
    %v6676 = vmul.f32 %v6109, %v6109
    %v6677 = vmul.f32 %v6113, %v6113
    %v6678 = vmul.f32 %v6115, %v6115
    %v6679 = vmul.f32 %v6117, %v6117
    %v6680 = vmul.f32 %v6119, %v6119
    %v6681 = vpack.c.bf16 %v6675, %v6673
    %v6682 = vpack.c.bf16 %v6676, %v6674
    %v6683 = vpack.c.bf16 %v6679, %v6677
    %v6684 = vpack.c.bf16 %v6680, %v6678
    %6685 = vmatprep.subr.bf16.mxu0 %v6682
    %6686 = vmatpush1.bf16.msra.mxu0 %v6681
    %6687 = vmatprep.subr.bf16.mxu0 %v6684
    %6688 = vmatpush1.bf16.msra.mxu0 %v6683
    %6689 = vmatprep.subr.bf16.mxu0 0
    %6690 = vmatpush1.bf16.msra.mxu0 0
    %6691 = vmatprep.subr.bf16.mxu0 0
    %6692 = vmatpush1.bf16.msra.mxu0 0
    %6693 = vmatprep.subr.bf16.mxu0 0
    %6694 = vmatpush1.bf16.msra.mxu0 0
    %6695 = vmatprep.subr.bf16.mxu0 0
    %6696 = vmatpush1.bf16.msra.mxu0 0
    %6697 = vmatprep.subr.bf16.mxu0 0
    %6698 = vmatpush1.bf16.msra.mxu0 0
    %6699 = vmatprep.subr.bf16.mxu0 0
    %6700 = vmatpush1.bf16.msra.mxu0 0
    %6701 = vmatprep.subr.bf16.mxu0 0
    %6702 = vmatpush1.bf16.msra.mxu0 0
    %6703 = vmatprep.subr.bf16.mxu0 0
    %6704 = vmatpush1.bf16.msra.mxu0 0
    %6705 = vmatprep.subr.bf16.mxu0 0
    %6706 = vmatpush1.bf16.msra.mxu0 0
    %6707 = vmatprep.subr.bf16.mxu0 0
    %6708 = vmatpush1.bf16.msra.mxu0 0
    %6709 = vmatprep.subr.bf16.mxu0 0
    %6710 = vmatpush1.bf16.msra.mxu0 0
    %6711 = vmatprep.subr.bf16.mxu0 0
    %6712 = vmatpush1.bf16.msra.mxu0 0
    %6713 = vmatprep.subr.bf16.mxu0 0
    %6714 = vmatpush1.bf16.msra.mxu0 0
    %6715 = vmatprep.subr.bf16.mxu0 0
    %6716 = vmatpush1.bf16.msra.mxu0 0
    %6717 = vmatprep.mubr.bf16.mxu0 0
    %6718 = vmatmul.mubr.bf16.gmra.mrb[0].mxu0 %v6284
    %v6719 = vpop.f32.mrb[0].mxu0
    %v6720 = vadd.f32 0.0, %v6719
    %v6721 = vpop.f32.mrb[0].mxu0
    %v6722 = vadd.f32 0.0, %v6721
    %v6723 = vpop.f32.mrb[0].mxu0
    %v6724 = vadd.f32 0.0, %v6723
    %v6725 = vpop.f32.mrb[0].mxu0
    %v6726 = vadd.f32 0.0, %v6725
    %6727 = vmatprep.mubr.bf16.mxu0 0
    %6728 = vmatmul.mubr.bf16.gmra.mrb[0].mxu0 %v6287
    %v6729 = vpop.f32.mrb[0].mxu0
    %v6730 = vadd.f32 0.0, %v6729
    %v6731 = vpop.f32.mrb[0].mxu0
    %v6732 = vadd.f32 0.0, %v6731
    %v6733 = vpop.f32.mrb[0].mxu0
    %v6734 = vadd.f32 0.0, %v6733
    %v6735 = vpop.f32.mrb[0].mxu0
    %v6736 = vadd.f32 0.0, %v6735
    %6737 = vdwg.mxu0
    %v6738 = vpack.c.bf16 %v6724, %v6720
    %v6739 = vpack.c.bf16 %v6726, %v6722
    %v6740 = vpack.c.bf16 %v6734, %v6730
    %v6741 = vpack.c.bf16 %v6736, %v6732
    %6742 = vmatprep.subr.bf16.mxu0 %v6443
    %6743 = vmatpush1.bf16.msra.mxu0 %v6442
    %6744 = vmatprep.subr.bf16.mxu0 %v6445
    %6745 = vmatpush1.bf16.msra.mxu0 %v6444
    %6746 = vmatprep.subr.bf16.mxu0 %v6447
    %6747 = vmatpush1.bf16.msra.mxu0 %v6446
    %6748 = vmatprep.subr.bf16.mxu0 %v6449
    %6749 = vmatpush1.bf16.msra.mxu0 %v6448
    %6750 = vmatprep.subr.bf16.mxu0 %v6451
    %6751 = vmatpush1.bf16.msra.mxu0 %v6450
    %6752 = vmatprep.subr.bf16.mxu0 %v6453
    %6753 = vmatpush1.bf16.msra.mxu0 %v6452
    %6754 = vmatprep.subr.bf16.mxu0 %v6455
    %6755 = vmatpush1.bf16.msra.mxu0 %v6454
    %6756 = vmatprep.subr.bf16.mxu0 %v6457
    %6757 = vmatpush1.bf16.msra.mxu0 %v6456
    %6758 = vmatprep.subr.bf16.mxu0 %v6459
    %6759 = vmatpush1.bf16.msra.mxu0 %v6458
    %6760 = vmatprep.subr.bf16.mxu0 %v6461
    %6761 = vmatpush1.bf16.msra.mxu0 %v6460
    %6762 = vmatprep.subr.bf16.mxu0 %v6463
    %6763 = vmatpush1.bf16.msra.mxu0 %v6462
    %6764 = vmatprep.subr.bf16.mxu0 %v6465
    %6765 = vmatpush1.bf16.msra.mxu0 %v6464
    %6766 = vmatprep.subr.bf16.mxu0 %v6467
    %6767 = vmatpush1.bf16.msra.mxu0 %v6466
    %6768 = vmatprep.subr.bf16.mxu0 %v6469
    %6769 = vmatpush1.bf16.msra.mxu0 %v6468
    %6770 = vmatprep.subr.bf16.mxu0 %v6471
    %6771 = vmatpush1.bf16.msra.mxu0 %v6470
    %6772 = vmatprep.subr.bf16.mxu0 %v6473
    %6773 = vmatpush1.bf16.msra.mxu0 %v6472
    %6774 = vmatprep.mubr.bf16.mxu0 %v6739
    %6775 = vmatmul.mubr.bf16.gmra.mrb[0].mxu0 %v6738
    %v6776 = vpop.f32.mrb[0].mxu0
    %v6777 = vadd.f32 0.0, %v6776
    %v6778 = vpop.f32.mrb[0].mxu0
    %v6779 = vadd.f32 0.0, %v6778
    %v6780 = vpop.f32.mrb[0].mxu0
    %v6781 = vadd.f32 0.0, %v6780
    %v6782 = vpop.f32.mrb[0].mxu0
    %v6783 = vadd.f32 0.0, %v6782
    %6784 = vmatprep.mubr.bf16.mxu0 %v6741
    %6785 = vmatmul.mubr.bf16.gmra.mrb[0].mxu0 %v6740
    %v6786 = vpop.f32.mrb[0].mxu0
    %v6787 = vadd.f32 0.0, %v6786
    %v6788 = vpop.f32.mrb[0].mxu0
    %v6789 = vadd.f32 0.0, %v6788
    %v6790 = vpop.f32.mrb[0].mxu0
    %v6791 = vadd.f32 0.0, %v6790
    %v6792 = vpop.f32.mrb[0].mxu0
    %v6793 = vadd.f32 0.0, %v6792
    %6794 = vdwg.mxu0
    %v6795 = vmul.f32 %v6213, %v6213
    %v6796 = vmul.f32 %v6215, %v6215
    %v6797 = vmul.f32 %v6217, %v6217
    %v6798 = vmul.f32 %v6219, %v6219
    %v6799 = vmul.f32 %v6223, %v6223
    %v6800 = vmul.f32 %v6225, %v6225
    %v6801 = vmul.f32 %v6227, %v6227
    %v6802 = vmul.f32 %v6229, %v6229
    %v6803 = vpack.c.bf16 %v6797, %v6795
    %v6804 = vpack.c.bf16 %v6798, %v6796
    %v6805 = vpack.c.bf16 %v6801, %v6799
    %v6806 = vpack.c.bf16 %v6802, %v6800
    %6807 = vmatprep.subr.bf16.mxu0 %v6804
    %6808 = vmatpush1.bf16.msra.mxu0 %v6803
    %6809 = vmatprep.subr.bf16.mxu0 %v6806
    %6810 = vmatpush1.bf16.msra.mxu0 %v6805
    %6811 = vmatprep.subr.bf16.mxu0 0
    %6812 = vmatpush1.bf16.msra.mxu0 0
    %6813 = vmatprep.subr.bf16.mxu0 0
    %6814 = vmatpush1.bf16.msra.mxu0 0
    %6815 = vmatprep.subr.bf16.mxu0 0
    %6816 = vmatpush1.bf16.msra.mxu0 0
    %6817 = vmatprep.subr.bf16.mxu0 0
    %6818 = vmatpush1.bf16.msra.mxu0 0
    %6819 = vmatprep.subr.bf16.mxu0 0
    %6820 = vmatpush1.bf16.msra.mxu0 0
    %6821 = vmatprep.subr.bf16.mxu0 0
    %6822 = vmatpush1.bf16.msra.mxu0 0
    %6823 = vmatprep.subr.bf16.mxu0 0
    %6824 = vmatpush1.bf16.msra.mxu0 0
    %6825 = vmatprep.subr.bf16.mxu0 0
    %6826 = vmatpush1.bf16.msra.mxu0 0
    %6827 = vmatprep.subr.bf16.mxu0 0
    %6828 = vmatpush1.bf16.msra.mxu0 0
    %6829 = vmatprep.subr.bf16.mxu0 0
    %6830 = vmatpush1.bf16.msra.mxu0 0
    %6831 = vmatprep.subr.bf16.mxu0 0
    %6832 = vmatpush1.bf16.msra.mxu0 0
    %6833 = vmatprep.subr.bf16.mxu0 0
    %6834 = vmatpush1.bf16.msra.mxu0 0
    %6835 = vmatprep.subr.bf16.mxu0 0
    %6836 = vmatpush1.bf16.msra.mxu0 0
    %6837 = vmatprep.subr.bf16.mxu0 0
    %6838 = vmatpush1.bf16.msra.mxu0 0
    %6839 = vmatprep.mubr.bf16.mxu0 0
    %6840 = vmatmul.mubr.bf16.gmra.mrb[0].mxu0 %v6284
    %v6841 = vpop.f32.mrb[0].mxu0
    %v6842 = vadd.f32 0.0, %v6841
    %v6843 = vpop.f32.mrb[0].mxu0
    %v6844 = vadd.f32 0.0, %v6843
    %v6845 = vpop.f32.mrb[0].mxu0
    %v6846 = vadd.f32 0.0, %v6845
    %v6847 = vpop.f32.mrb[0].mxu0
    %v6848 = vadd.f32 0.0, %v6847
    %6849 = vmatprep.mubr.bf16.mxu0 0
    %6850 = vmatmul.mubr.bf16.gmra.mrb[0].mxu0 %v6287
    %v6851 = vpop.f32.mrb[0].mxu0
    %v6852 = vadd.f32 0.0, %v6851
    %v6853 = vpop.f32.mrb[0].mxu0
    %v6854 = vadd.f32 0.0, %v6853
    %v6855 = vpop.f32.mrb[0].mxu0
    %v6856 = vadd.f32 0.0, %v6855
    %v6857 = vpop.f32.mrb[0].mxu0
    %v6858 = vadd.f32 0.0, %v6857
    %6859 = vdwg.mxu0
    %v6860 = vpack.c.bf16 %v6846, %v6842
    %v6861 = vpack.c.bf16 %v6848, %v6844
    %v6862 = vpack.c.bf16 %v6856, %v6852
    %v6863 = vpack.c.bf16 %v6858, %v6854
    %6864 = vmatprep.subr.bf16.mxu0 %v6443
    %6865 = vmatpush1.bf16.msra.mxu0 %v6442
    %6866 = vmatprep.subr.bf16.mxu0 %v6445
    %6867 = vmatpush1.bf16.msra.mxu0 %v6444
    %6868 = vmatprep.subr.bf16.mxu0 %v6447
    %6869 = vmatpush1.bf16.msra.mxu0 %v6446
    %6870 = vmatprep.subr.bf16.mxu0 %v6449
    %6871 = vmatpush1.bf16.msra.mxu0 %v6448
    %6872 = vmatprep.subr.bf16.mxu0 %v6451
    %6873 = vmatpush1.bf16.msra.mxu0 %v6450
    %6874 = vmatprep.subr.bf16.mxu0 %v6453
    %6875 = vmatpush1.bf16.msra.mxu0 %v6452
    %6876 = vmatprep.subr.bf16.mxu0 %v6455
    %6877 = vmatpush1.bf16.msra.mxu0 %v6454
    %6878 = vmatprep.subr.bf16.mxu0 %v6457
    %6879 = vmatpush1.bf16.msra.mxu0 %v6456
    %6880 = vmatprep.subr.bf16.mxu0 %v6459
    %6881 = vmatpush1.bf16.msra.mxu0 %v6458
    %6882 = vmatprep.subr.bf16.mxu0 %v6461
    %6883 = vmatpush1.bf16.msra.mxu0 %v6460
    %6884 = vmatprep.subr.bf16.mxu0 %v6463
    %6885 = vmatpush1.bf16.msra.mxu0 %v6462
    %6886 = vmatprep.subr.bf16.mxu0 %v6465
    %6887 = vmatpush1.bf16.msra.mxu0 %v6464
    %6888 = vmatprep.subr.bf16.mxu0 %v6467
    %6889 = vmatpush1.bf16.msra.mxu0 %v6466
    %6890 = vmatprep.subr.bf16.mxu0 %v6469
    %6891 = vmatpush1.bf16.msra.mxu0 %v6468
    %6892 = vmatprep.subr.bf16.mxu0 %v6471
    %6893 = vmatpush1.bf16.msra.mxu0 %v6470
    %6894 = vmatprep.subr.bf16.mxu0 %v6473
    %6895 = vmatpush1.bf16.msra.mxu0 %v6472
    %6896 = vmatprep.mubr.bf16.mxu0 %v6861
    %6897 = vmatmul.mubr.bf16.gmra.mrb[0].mxu0 %v6860
    %v6898 = vpop.f32.mrb[0].mxu0
    %v6899 = vadd.f32 0.0, %v6898
    %v6900 = vpop.f32.mrb[0].mxu0
    %v6901 = vadd.f32 0.0, %v6900
    %v6902 = vpop.f32.mrb[0].mxu0
    %v6903 = vadd.f32 0.0, %v6902
    %v6904 = vpop.f32.mrb[0].mxu0
    %v6905 = vadd.f32 0.0, %v6904
    %6906 = vmatprep.mubr.bf16.mxu0 %v6863
    %6907 = vmatmul.mubr.bf16.gmra.mrb[0].mxu0 %v6862
    %v6908 = vpop.f32.mrb[0].mxu0
    %v6909 = vadd.f32 0.0, %v6908
    %v6910 = vpop.f32.mrb[0].mxu0
    %v6911 = vadd.f32 0.0, %v6910
    %v6912 = vpop.f32.mrb[0].mxu0
    %v6913 = vadd.f32 0.0, %v6912
    %v6914 = vpop.f32.mrb[0].mxu0
    %v6915 = vadd.f32 0.0, %v6914
    %6916 = vdwg.mxu0
    %v6917 = vmul.f32 %v6103, %v6213
    %v6918 = vmul.f32 %v6105, %v6215
    %v6919 = vmul.f32 %v6107, %v6217
    %v6920 = vmul.f32 %v6109, %v6219
    %v6921 = vmul.f32 %v6113, %v6223
    %v6922 = vmul.f32 %v6115, %v6225
    %v6923 = vmul.f32 %v6117, %v6227
    %v6924 = vmul.f32 %v6119, %v6229
    %v6925 = vpack.c.bf16 %v6919, %v6917
    %v6926 = vpack.c.bf16 %v6920, %v6918
    %v6927 = vpack.c.bf16 %v6923, %v6921
    %v6928 = vpack.c.bf16 %v6924, %v6922
    %6929 = vmatprep.subr.bf16.mxu0 %v6926
    %6930 = vmatpush1.bf16.msra.mxu0 %v6925
    %6931 = vmatprep.subr.bf16.mxu0 %v6928
    %6932 = vmatpush1.bf16.msra.mxu0 %v6927
    %6933 = vmatprep.subr.bf16.mxu0 0
    %6934 = vmatpush1.bf16.msra.mxu0 0
    %6935 = vmatprep.subr.bf16.mxu0 0
    %6936 = vmatpush1.bf16.msra.mxu0 0
    %6937 = vmatprep.subr.bf16.mxu0 0
    %6938 = vmatpush1.bf16.msra.mxu0 0
    %6939 = vmatprep.subr.bf16.mxu0 0
    %6940 = vmatpush1.bf16.msra.mxu0 0
    %6941 = vmatprep.subr.bf16.mxu0 0
    %6942 = vmatpush1.bf16.msra.mxu0 0
    %6943 = vmatprep.subr.bf16.mxu0 0
    %6944 = vmatpush1.bf16.msra.mxu0 0
    %6945 = vmatprep.subr.bf16.mxu0 0
    %6946 = vmatpush1.bf16.msra.mxu0 0
    %6947 = vmatprep.subr.bf16.mxu0 0
    %6948 = vmatpush1.bf16.msra.mxu0 0
    %6949 = vmatprep.subr.bf16.mxu0 0
    %6950 = vmatpush1.bf16.msra.mxu0 0
    %6951 = vmatprep.subr.bf16.mxu0 0
    %6952 = vmatpush1.bf16.msra.mxu0 0
    %6953 = vmatprep.subr.bf16.mxu0 0
    %6954 = vmatpush1.bf16.msra.mxu0 0
    %6955 = vmatprep.subr.bf16.mxu0 0
    %6956 = vmatpush1.bf16.msra.mxu0 0
    %6957 = vmatprep.subr.bf16.mxu0 0
    %6958 = vmatpush1.bf16.msra.mxu0 0
    %6959 = vmatprep.subr.bf16.mxu0 0
    %6960 = vmatpush1.bf16.msra.mxu0 0
    %6961 = vmatprep.mubr.bf16.mxu0 0
    %6962 = vmatmul.mubr.bf16.gmra.mrb[0].mxu0 %v6284
    %v6963 = vpop.f32.mrb[0].mxu0
    %v6964 = vadd.f32 0.0, %v6963
    %v6965 = vpop.f32.mrb[0].mxu0
    %v6966 = vadd.f32 0.0, %v6965
    %v6967 = vpop.f32.mrb[0].mxu0
    %v6968 = vadd.f32 0.0, %v6967
    %v6969 = vpop.f32.mrb[0].mxu0
    %v6970 = vadd.f32 0.0, %v6969
    %6971 = vmatprep.mubr.bf16.mxu0 0
    %6972 = vmatmul.mubr.bf16.gmra.mrb[0].mxu0 %v6287
    %v6973 = vpop.f32.mrb[0].mxu0
    %v6974 = vadd.f32 0.0, %v6973
    %v6975 = vpop.f32.mrb[0].mxu0
    %v6976 = vadd.f32 0.0, %v6975
    %v6977 = vpop.f32.mrb[0].mxu0
    %v6978 = vadd.f32 0.0, %v6977
    %v6979 = vpop.f32.mrb[0].mxu0
    %v6980 = vadd.f32 0.0, %v6979
    %6981 = vdwg.mxu0
    %v6982 = vpack.c.bf16 %v6968, %v6964
    %v6983 = vpack.c.bf16 %v6970, %v6966
    %v6984 = vpack.c.bf16 %v6978, %v6974
    %v6985 = vpack.c.bf16 %v6980, %v6976
    %6986 = vmatprep.subr.bf16.mxu0 %v6443
    %6987 = vmatpush1.bf16.msra.mxu0 %v6442
    %6988 = vmatprep.subr.bf16.mxu0 %v6445
    %6989 = vmatpush1.bf16.msra.mxu0 %v6444
    %6990 = vmatprep.subr.bf16.mxu0 %v6447
    %6991 = vmatpush1.bf16.msra.mxu0 %v6446
    %6992 = vmatprep.subr.bf16.mxu0 %v6449
    %6993 = vmatpush1.bf16.msra.mxu0 %v6448
    %6994 = vmatprep.subr.bf16.mxu0 %v6451
    %6995 = vmatpush1.bf16.msra.mxu0 %v6450
    %6996 = vmatprep.subr.bf16.mxu0 %v6453
    %6997 = vmatpush1.bf16.msra.mxu0 %v6452
    %6998 = vmatprep.subr.bf16.mxu0 %v6455
    %6999 = vmatpush1.bf16.msra.mxu0 %v6454
    %7000 = vmatprep.subr.bf16.mxu0 %v6457
    %7001 = vmatpush1.bf16.msra.mxu0 %v6456
    %7002 = vmatprep.subr.bf16.mxu0 %v6459
    %7003 = vmatpush1.bf16.msra.mxu0 %v6458
    %7004 = vmatprep.subr.bf16.mxu0 %v6461
    %7005 = vmatpush1.bf16.msra.mxu0 %v6460
    %7006 = vmatprep.subr.bf16.mxu0 %v6463
    %7007 = vmatpush1.bf16.msra.mxu0 %v6462
    %7008 = vmatprep.subr.bf16.mxu0 %v6465
    %7009 = vmatpush1.bf16.msra.mxu0 %v6464
    %7010 = vmatprep.subr.bf16.mxu0 %v6467
    %7011 = vmatpush1.bf16.msra.mxu0 %v6466
    %7012 = vmatprep.subr.bf16.mxu0 %v6469
    %7013 = vmatpush1.bf16.msra.mxu0 %v6468
    %7014 = vmatprep.subr.bf16.mxu0 %v6471
    %7015 = vmatpush1.bf16.msra.mxu0 %v6470
    %7016 = vmatprep.subr.bf16.mxu0 %v6473
    %7017 = vmatpush1.bf16.msra.mxu0 %v6472
    %7018 = vmatprep.mubr.bf16.mxu0 %v6983
    %7019 = vmatmul.mubr.bf16.gmra.mrb[0].mxu0 %v6982
    %v7020 = vpop.f32.mrb[0].mxu0
    %v7021 = vadd.f32 0.0, %v7020
    %v7022 = vpop.f32.mrb[0].mxu0
    %v7023 = vadd.f32 0.0, %v7022
    %v7024 = vpop.f32.mrb[0].mxu0
    %v7025 = vadd.f32 0.0, %v7024
    %v7026 = vpop.f32.mrb[0].mxu0
    %v7027 = vadd.f32 0.0, %v7026
    %7028 = vmatprep.mubr.bf16.mxu0 %v6985
    %7029 = vmatmul.mubr.bf16.gmra.mrb[0].mxu0 %v6984
    %v7030 = vpop.f32.mrb[0].mxu0
    %v7031 = vadd.f32 0.0, %v7030
    %v7032 = vpop.f32.mrb[0].mxu0
    %v7033 = vadd.f32 0.0, %v7032
    %v7034 = vpop.f32.mrb[0].mxu0
    %v7035 = vadd.f32 0.0, %v7034
    %v7036 = vpop.f32.mrb[0].mxu0
    %v7037 = vadd.f32 0.0, %v7036
    %7038 = vdwg.mxu0
    %v7039 = vmul.f32 %v6541, %v6541
    %v7040 = vmul.f32 %v6543, %v6543
    %v7041 = vmul.f32 %v6545, %v6545
    %v7042 = vmul.f32 %v6547, %v6547
    %v7043 = vmul.f32 %v6551, %v6551
    %v7044 = vmul.f32 %v6553, %v6553
    %v7045 = vmul.f32 %v6555, %v6555
    %v7046 = vmul.f32 %v6557, %v6557
    %v7047 = vmul.f32 %v6655, %v6655
    %v7048 = vmul.f32 %v6657, %v6657
    %v7049 = vmul.f32 %v6659, %v6659
    %v7050 = vmul.f32 %v6661, %v6661
    %v7051 = vmul.f32 %v6665, %v6665
    %v7052 = vmul.f32 %v6667, %v6667
    %v7053 = vmul.f32 %v6669, %v6669
    %v7054 = vmul.f32 %v6671, %v6671
    %v7055 = vmul.f32 %v6541, %v6655
    %v7056 = vmul.f32 %v6543, %v6657
    %v7057 = vmul.f32 %v6545, %v6659
    %v7058 = vmul.f32 %v6547, %v6661
    %v7059 = vmul.f32 %v6551, %v6665
    %v7060 = vmul.f32 %v6553, %v6667
    %v7061 = vmul.f32 %v6555, %v6669
    %v7062 = vmul.f32 %v6557, %v6671
    %v7063 = vsub.f32 %v6777, %v7039
    %v7064 = vsub.f32 %v6779, %v7040
    %v7065 = vsub.f32 %v6781, %v7041
    %v7066 = vsub.f32 %v6783, %v7042
    %v7067 = vsub.f32 %v6787, %v7043
    %v7068 = vsub.f32 %v6789, %v7044
    %v7069 = vsub.f32 %v6791, %v7045
    %v7070 = vsub.f32 %v6793, %v7046
    %v7071 = vsub.f32 %v6899, %v7047
    %v7072 = vsub.f32 %v6901, %v7048
    %v7073 = vsub.f32 %v6903, %v7049
    %v7074 = vsub.f32 %v6905, %v7050
    %v7075 = vsub.f32 %v6909, %v7051
    %v7076 = vsub.f32 %v6911, %v7052
    %v7077 = vsub.f32 %v6913, %v7053
    %v7078 = vsub.f32 %v6915, %v7054
    %v7079 = vsub.f32 %v7021, %v7055
    %v7080 = vsub.f32 %v7023, %v7056
    %v7081 = vsub.f32 %v7025, %v7057
    %v7082 = vsub.f32 %v7027, %v7058
    %v7083 = vsub.f32 %v7031, %v7059
    %v7084 = vsub.f32 %v7033, %v7060
    %v7085 = vsub.f32 %v7035, %v7061
    %v7086 = vsub.f32 %v7037, %v7062
    %v7087 = vmul.f32 %v7079, 2.0
    %v7088 = vmul.f32 %v7080, 2.0
    %v7089 = vmul.f32 %v7081, 2.0
    %v7090 = vmul.f32 %v7082, 2.0
    %v7091 = vmul.f32 %v7083, 2.0
    %v7092 = vmul.f32 %v7084, 2.0
    %v7093 = vmul.f32 %v7085, 2.0
    %v7094 = vmul.f32 %v7086, 2.0
    %v7095 = vadd.f32 %v7087, 0.0009
    %v7096 = vadd.f32 %v7088, 0.0009
    %v7097 = vadd.f32 %v7089, 0.0009
    %v7098 = vadd.f32 %v7090, 0.0009
    %v7099 = vadd.f32 %v7091, 0.0009
    %v7100 = vadd.f32 %v7092, 0.0009
    %v7101 = vadd.f32 %v7093, 0.0009
    %v7102 = vadd.f32 %v7094, 0.0009
    %v7103 = vadd.f32 %v7063, %v7071
    %v7104 = vadd.f32 %v7064, %v7072
    %v7105 = vadd.f32 %v7065, %v7073
    %v7106 = vadd.f32 %v7066, %v7074
    %v7107 = vadd.f32 %v7067, %v7075
    %v7108 = vadd.f32 %v7068, %v7076
    %v7109 = vadd.f32 %v7069, %v7077
    %v7110 = vadd.f32 %v7070, %v7078
    %v7111 = vadd.f32 %v7103, 0.0009
    %v7112 = vadd.f32 %v7104, 0.0009
    %v7113 = vadd.f32 %v7105, 0.0009
    %v7114 = vadd.f32 %v7106, 0.0009
    %v7115 = vadd.f32 %v7107, 0.0009
    %v7116 = vadd.f32 %v7108, 0.0009
    %v7117 = vadd.f32 %v7109, 0.0009
    %v7118 = vadd.f32 %v7110, 0.0009
    %v7119 = vrcp.pop %v7111
    %v7120 = vrcp.pop %v7112
    %v7121 = vrcp.pop %v7113
    %v7122 = vrcp.pop %v7114
    %v7123 = vrcp.pop %v7115
    %v7124 = vrcp.pop %v7116
    %v7125 = vrcp.pop %v7117
    %v7126 = vrcp.pop %v7118
    %v7127 = vmul.f32 %v7111, %v7119
    %v7128 = vmul.f32 %v7112, %v7120
    %v7129 = vmul.f32 %v7113, %v7121
    %v7130 = vmul.f32 %v7114, %v7122
    %v7131 = vmul.f32 %v7115, %v7123
    %v7132 = vmul.f32 %v7116, %v7124
    %v7133 = vmul.f32 %v7117, %v7125
    %v7134 = vmul.f32 %v7118, %v7126
    %v7135 = vsub.f32 2.0, %v7127
    %v7136 = vsub.f32 2.0, %v7128
    %v7137 = vsub.f32 2.0, %v7129
    %v7138 = vsub.f32 2.0, %v7130
    %v7139 = vsub.f32 2.0, %v7131
    %v7140 = vsub.f32 2.0, %v7132
    %v7141 = vsub.f32 2.0, %v7133
    %v7142 = vsub.f32 2.0, %v7134
    %v7143 = vmul.f32 %v7119, %v7135
    %v7144 = vmul.f32 %v7120, %v7136
    %v7145 = vmul.f32 %v7121, %v7137
    %v7146 = vmul.f32 %v7122, %v7138
    %v7147 = vmul.f32 %v7123, %v7139
    %v7148 = vmul.f32 %v7124, %v7140
    %v7149 = vmul.f32 %v7125, %v7141
    %v7150 = vmul.f32 %v7126, %v7142
    %v7151 = vmul.f32 %v7095, %v7143
    %v7152 = vmul.f32 %v7096, %v7144
    %v7153 = vmul.f32 %v7097, %v7145
    %v7154 = vmul.f32 %v7098, %v7146
    %v7155 = vmul.f32 %v7099, %v7147
    %v7156 = vmul.f32 %v7100, %v7148
    %v7157 = vmul.f32 %v7101, %v7149
    %v7158 = vmul.f32 %v7102, %v7150
    %v7159 = vadd.f32 %v7039, %v7047
    %v7160 = vadd.f32 %v7040, %v7048
    %v7161 = vadd.f32 %v7041, %v7049
    %v7162 = vadd.f32 %v7042, %v7050
    %v7163 = vadd.f32 %v7043, %v7051
    %v7164 = vadd.f32 %v7044, %v7052
    %v7165 = vadd.f32 %v7045, %v7053
    %v7166 = vadd.f32 %v7046, %v7054
    %v7167 = vadd.f32 %v7159, 0.0001
    %v7168 = vadd.f32 %v7160, 0.0001
    %v7169 = vadd.f32 %v7161, 0.0001
    %v7170 = vadd.f32 %v7162, 0.0001
    %v7171 = vadd.f32 %v7163, 0.0001
    %v7172 = vadd.f32 %v7164, 0.0001
    %v7173 = vadd.f32 %v7165, 0.0001
    %v7174 = vadd.f32 %v7166, 0.0001
    %v7175 = vrcp.pop %v7167
    %v7176 = vrcp.pop %v7168
    %v7177 = vrcp.pop %v7169
    %v7178 = vrcp.pop %v7170
    %v7179 = vrcp.pop %v7171
    %v7180 = vrcp.pop %v7172
    %v7181 = vrcp.pop %v7173
    %v7182 = vrcp.pop %v7174
    %v7183 = vmul.f32 %v7167, %v7175
    %v7184 = vmul.f32 %v7168, %v7176
    %v7185 = vmul.f32 %v7169, %v7177
    %v7186 = vmul.f32 %v7170, %v7178
    %v7187 = vmul.f32 %v7171, %v7179
    %v7188 = vmul.f32 %v7172, %v7180
    %v7189 = vmul.f32 %v7173, %v7181
    %v7190 = vmul.f32 %v7174, %v7182
    %v7191 = vsub.f32 2.0, %v7183
    %v7192 = vsub.f32 2.0, %v7184
    %v7193 = vsub.f32 2.0, %v7185
    %v7194 = vsub.f32 2.0, %v7186
    %v7195 = vsub.f32 2.0, %v7187
    %v7196 = vsub.f32 2.0, %v7188
    %v7197 = vsub.f32 2.0, %v7189
    %v7198 = vsub.f32 2.0, %v7190
    %v7199 = vmul.f32 %v7175, %v7191
    %v7200 = vmul.f32 %v7176, %v7192
    %v7201 = vmul.f32 %v7177, %v7193
    %v7202 = vmul.f32 %v7178, %v7194
    %v7203 = vmul.f32 %v7179, %v7195
    %v7204 = vmul.f32 %v7180, %v7196
    %v7205 = vmul.f32 %v7181, %v7197
    %v7206 = vmul.f32 %v7182, %v7198
    %v7207 = vmul.f32 %v7055, 2.0
    %v7208 = vmul.f32 %v7056, 2.0
    %v7209 = vmul.f32 %v7057, 2.0
    %v7210 = vmul.f32 %v7058, 2.0
    %v7211 = vmul.f32 %v7059, 2.0
    %v7212 = vmul.f32 %v7060, 2.0
    %v7213 = vmul.f32 %v7061, 2.0
    %v7214 = vmul.f32 %v7062, 2.0
    %v7215 = vadd.f32 %v7207, 0.0001
    %v7216 = vadd.f32 %v7208, 0.0001
    %v7217 = vadd.f32 %v7209, 0.0001
    %v7218 = vadd.f32 %v7210, 0.0001
    %v7219 = vadd.f32 %v7211, 0.0001
    %v7220 = vadd.f32 %v7212, 0.0001
    %v7221 = vadd.f32 %v7213, 0.0001
    %v7222 = vadd.f32 %v7214, 0.0001
    %v7223 = vmul.f32 %v7151, %v7215
    %v7224 = vmul.f32 %v7152, %v7216
    %v7225 = vmul.f32 %v7153, %v7217
    %v7226 = vmul.f32 %v7154, %v7218
    %v7227 = vmul.f32 %v7155, %v7219
    %v7228 = vmul.f32 %v7156, %v7220
    %v7229 = vmul.f32 %v7157, %v7221
    %v7230 = vmul.f32 %v7158, %v7222
    %v7231 = vmul.f32 %v7223, %v7199
    %v7232 = vmul.f32 %v7224, %v7200
    %v7233 = vmul.f32 %v7225, %v7201
    %v7234 = vmul.f32 %v7226, %v7202
    %v7235 = vmul.f32 %v7227, %v7203
    %v7236 = vmul.f32 %v7228, %v7204
    %v7237 = vmul.f32 %v7229, %v7205
    %v7238 = vmul.f32 %v7230, %v7206
    %vm7239 = vcmp.lt.s32.totalorder %v127, 2
    %vm7240 = vcmp.lt.s32.totalorder %v128, 2
    %vm7241 = vcmp.lt.s32.totalorder %v129, 2
    %vm7242 = vcmp.lt.s32.totalorder %v130, 2
    %s7243 = smul.u32 %s137, 2
    %v7244 = vstv %s7243
    %vm7245 = vcmp.lt.s32.totalorder %v132, %v7244
    %vm7246 = vcmp.lt.s32.totalorder %v133, %v7244
    %vm7247 = vmand %vm7239, %vm7245
    %vm7248 = vmand %vm7239, %vm7246
    %vm7249 = vmand %vm7240, %vm7245
    %vm7250 = vmand %vm7240, %vm7246
    %vm7251 = vmand %vm7241, %vm7245
    %vm7252 = vmand %vm7241, %vm7246
    %vm7253 = vmand %vm7242, %vm7245
    %vm7254 = vmand %vm7242, %vm7246
    %v7255 = vsel %vm7247, 1, 0
    %v7256 = vsel %vm7248, 1, 0
    %v7257 = vsel %vm7249, 1, 0
    %v7258 = vsel %vm7250, 1, 0
    %v7259 = vsel %vm7251, 1, 0
    %v7260 = vsel %vm7252, 1, 0
    %v7261 = vsel %vm7253, 1, 0
    %v7262 = vsel %vm7254, 1, 0
    %v7263 = vcvt.s32.f32 %v7255
    %v7264 = vcvt.s32.f32 %v7256
    %v7265 = vcvt.s32.f32 %v7257
    %v7266 = vcvt.s32.f32 %v7258
    %v7267 = vcvt.s32.f32 %v7259
    %v7268 = vcvt.s32.f32 %v7260
    %v7269 = vcvt.s32.f32 %v7261
    %v7270 = vcvt.s32.f32 %v7262
    %v7271 = vmul.f32 %v7231, %v7263
    %v7272 = vmul.f32 %v7232, %v7264
    %v7273 = vmul.f32 %v7233, %v7265
    %v7274 = vmul.f32 %v7234, %v7266
    %v7275 = vmul.f32 %v7235, %v7267
    %v7276 = vmul.f32 %v7236, %v7268
    %v7277 = vmul.f32 %v7237, %v7269
    %v7278 = vmul.f32 %v7238, %v7270
    %v7279 = vadd.f32 %v7271, %v7272
    %v7280 = vadd.f32 %v7279, %v7273
    %v7281 = vadd.f32 %v7280, %v7274
    %v7282 = vadd.f32 %v7281, %v7275
    %v7283 = vadd.f32 %v7282, %v7276
    %v7284 = vadd.f32 %v7283, %v7277
    %v7285 = vadd.f32 %v7284, %v7278
    %7286 = vadd.xlane.f32.xlu0 %v7285
    %v7287 = vpop.xlane.xlu0 %7286
    %v7288 = vrot.slane %v7287, 4
    %v7289 = vadd.f32 %v7287, %v7288
    %v7290 = vrot.slane %v7289, 2
    %v7291 = vadd.f32 %v7289, %v7290
    %v7292 = vrot.slane %v7291, 1
    %v7293 = vadd.f32 %v7291, %v7292
    %s7294 = vtos %v7293
    %v7295 = vstv %s7294
    %v7296 = vmul.f32 %v7151, %v7263
    %v7297 = vmul.f32 %v7152, %v7264
    %v7298 = vmul.f32 %v7153, %v7265
    %v7299 = vmul.f32 %v7154, %v7266
    %v7300 = vmul.f32 %v7155, %v7267
    %v7301 = vmul.f32 %v7156, %v7268
    %v7302 = vmul.f32 %v7157, %v7269
    %v7303 = vmul.f32 %v7158, %v7270
    %v7304 = vadd.f32 %v7296, %v7297
    %v7305 = vadd.f32 %v7304, %v7298
    %v7306 = vadd.f32 %v7305, %v7299
    %v7307 = vadd.f32 %v7306, %v7300
    %v7308 = vadd.f32 %v7307, %v7301
    %v7309 = vadd.f32 %v7308, %v7302
    %v7310 = vadd.f32 %v7309, %v7303
    %7311 = vadd.xlane.f32.xlu0 %v7310
    %v7312 = vpop.xlane.xlu0 %7311
    %v7313 = vrot.slane %v7312, 4
    %v7314 = vadd.f32 %v7312, %v7313
    %v7315 = vrot.slane %v7314, 2
    %v7316 = vadd.f32 %v7314, %v7315
    %v7317 = vrot.slane %v7316, 1
    %v7318 = vadd.f32 %v7316, %v7317
    %s7319 = vtos %v7318
    %v7320 = vstv %s7319
    %vm7321 = vcmask 7168
    %v7322 = vsel %vm7321, %v1201, %v2723
    %vm7323 = vcmask 15360
    %v7324 = vsel %vm7323, %v7322, %v4247
    %vm7325 = vcmask 23552
    %v7326 = vsel %vm7325, %v7324, %v5771
    %vm7327 = vcmask 31744
    %v7328 = vsel %vm7327, %v7326, %v7295
    %vm7329 = vcmask 32768
    %7330 = vst.msk [vmem:[#allocation13] sm:$0x1] %vm7329, %v7328
    %v7331 = vsel %vm7321, %v1226, %v2748
    %v7332 = vsel %vm7323, %v7331, %v4272
    %v7333 = vsel %vm7325, %v7332, %v5796
    %v7334 = vsel %vm7327, %v7333, %v7320
    %7335 = vst.msk [vmem:[#allocation14] sm:$0x1] %vm7329, %v7334
    // Predicated region
    $region50: #{tpu_custom_call.1} parent=1 // pred_check
      _
    $region51: #{tpu_custom_call.1} parent=1 // pred_check_branch
      %7337 = sbr.rel (0) target = $region53
    $region52: #{tpu_custom_call.1} parent=1 // pred_region
      %s7339 = ssub.s32 16, 16
      %7340 = vsyncadd [#allocation4], %s7339
      %s7342 = sshll.u32 [#allocation13], 4
      %s7343 = int_to_ptr.vmem [resolvable:$true] %s7342
      %7345 = dma.vmem_to_hbm [thread:$0]  %s7343, 16, %s6, [#allocation4]
    $region53: #{tpu_custom_call.1} parent=1 // pred_fallthru
      _
    // Predicated region
    $region54: #{tpu_custom_call.1} parent=1 // pred_check
      _
    $region55: #{tpu_custom_call.1} parent=1 // pred_check_branch
      %7347 = sbr.rel (0) target = $region57
    $region56: #{tpu_custom_call.1} parent=1 // pred_region
      %s7349 = ssub.s32 16, 16
      %7350 = vsyncadd [#allocation15], %s7349
      %s7352 = sshll.u32 [#allocation14], 4
      %s7353 = int_to_ptr.vmem [resolvable:$true] %s7352
      %7355 = dma.vmem_to_hbm [thread:$0]  %s7353, 16, %s7, [#allocation15]
    $region57: #{tpu_custom_call.1} parent=1 // pred_fallthru
      _
    // Predicated region
    $region58: #{tpu_custom_call.1} parent=1 // pred_check
      _
    $region59: #{tpu_custom_call.1} parent=1 // pred_check_branch
      %7357 = sbr.rel (0) target = $region61
    $region60: #{tpu_custom_call.1} parent=1 // pred_region
      %7358 = dma.done [#allocation4], 16
    $region61: #{tpu_custom_call.1} parent=1 // pred_fallthru
      _
    // Predicated region
    $region62: #{tpu_custom_call.1} parent=1 // pred_check
      _
    $region63: #{tpu_custom_call.1} parent=1 // pred_check_branch
      %7360 = sbr.rel (0) target = $region65
    $region64: #{tpu_custom_call.1} parent=1 // pred_region
      %7361 = dma.done [#allocation15], 16
    $region65: #{tpu_custom_call.1} parent=1 // pred_fallthru
      _
    %7362 = vsyncpa [#allocation3], 1
    %7363 = vsyncpa [#allocation6], 1
    %7364 = vsyncpa [#allocation9], 1
    %7365 = vsyncpa [#allocation12], 1
    %7366 = vsyncpa [#allocation4], 1
    %7367 = vsyncpa [#allocation15], 1

</llo_original>
